<compile_context>
chip_gen: v7x
topology: tpu7x:2x2x1
jax: 0.10.0
libtpu: 0.0.40
codegen_flags: <defaults>
</compile_context>

<pallas_src>
import functools

import numpy as np

import jax
import jax.numpy as jnp
from jax.experimental import pallas as pl
from jax.experimental.pallas import tpu as pltpu


# 48 MiB scoped VMEM: well above what the kernels use at tile_cap=8192, and
# safe on v5e/v6e (128 MiB physical) as well as v7x (64 MiB physical per TC).
_VMEM_LIMIT = 48 * 1024 * 1024


def _cparams(*sems):
    return pltpu.CompilerParams(dimension_semantics=sems,
                                vmem_limit_bytes=_VMEM_LIMIT)


def _nbytes(*arrays):
    return int(sum(a.size * a.dtype.itemsize for a in arrays))


def _tile_and_pad(P, cap=8192):
    """Pick a lane-dense tile (multiple of 128) and the padded lane extent.

    Returns (tp, P_pad) with tp % 128 == 0 and P_pad % tp == 0.
    cap=8192 is conservative for v7x's 64 MiB VMEM; v5e/v6e can raise it.
    """
    cap = max(128, (cap // 128) * 128)
    P128 = ((P + 127) // 128) * 128
    if P128 <= cap:
        return P128, P128
    n = P128 // 128
    d = next(d for d in range(cap // 128, 0, -1) if n % d == 0)
    if d * 128 >= 1024:              # a big exact tile exists -> minimal padding
        return d * 128, P128
    P_pad = ((P128 + cap - 1) // cap) * cap
    return cap, P_pad


def _pad_lane(x, P_pad):
    P = x.shape[-1]
    if P == P_pad:
        return x
    pad = [(0, 0)] * (x.ndim - 1) + [(0, P_pad - P)]
    return jnp.pad(x, pad)


# ----------------------------------------------------------------------------
# Pallas kernel 1: channels-first pointwise linear
#   y[b, :, p] = W^T @ x[b, :, p] + b  (+ residual) (+ relu)
#   blocks: x (1, Cin, tp), out (1, Cout, tp)  (tp is a multiple of 128)
# ----------------------------------------------------------------------------
def _pwcf_kernel(x_ref, wt_ref, b_ref, o_ref, *, relu, small_k):
    x = x_ref[0]            # (Cin, tp)
    wt = wt_ref[...]        # (Cout, Cin)
    if small_k:
        # VPU path for tiny contraction dims (fc0, Cin=3): unrolled MACs.
        xf = x.astype(jnp.float32)
        wf = wt.astype(jnp.float32)
        acc = wf[:, 0:1] * xf[0:1, :]
        for c in range(1, xf.shape[0]):
            acc = acc + wf[:, c:c + 1] * xf[c:c + 1, :]
        y = acc
    else:
        y = jnp.dot(wt, x, preferred_element_type=jnp.float32)   # bf16 MXU, f32 acc
    y = y + b_ref[...]
    if relu:
        y = jnp.maximum(y, 0.0)
    o_ref[0] = y.astype(o_ref.dtype)


def _pwcf_res_kernel(x_ref, wt_ref, b_ref, r_ref, o_ref, *, relu):
    y = jnp.dot(wt_ref[...], x_ref[0], preferred_element_type=jnp.float32)
    y = y + b_ref[...] + r_ref[0].astype(jnp.float32)
    if relu:
        y = jnp.maximum(y, 0.0)
    o_ref[0] = y.astype(o_ref.dtype)


def pointwise_cf(x, wt, b, residual=None, relu=False,
                 out_dtype=jnp.bfloat16, tile_cap=8192):
    """x: (B, Cin, P); wt: (Cout, Cin) pre-transposed; b: (Cout, 1) f32."""
    B, Cin, P = x.shape
    Cout = wt.shape[0]
    tp, P_pad = _tile_and_pad(P, tile_cap)
    x = _pad_lane(x, P_pad)
    if residual is not None:
        residual = _pad_lane(residual, P_pad)

    x_spec = pl.BlockSpec((1, Cin, tp), lambda i, j: (i, 0, j))
    w_spec = pl.BlockSpec((Cout, Cin), lambda i, j: (0, 0))
    b_spec = pl.BlockSpec((Cout, 1), lambda i, j: (0, 0))
    r_spec = pl.BlockSpec((1, Cout, tp), lambda i, j: (i, 0, j))
    o_spec = pl.BlockSpec((1, Cout, tp), lambda i, j: (i, 0, j))

    out_bytes = B * Cout * P_pad * np.dtype(out_dtype).itemsize
    if residual is None:
        kernel = functools.partial(_pwcf_kernel, relu=relu, small_k=(Cin <= 8))
        in_specs = [x_spec, w_spec, b_spec]
        args = (x, wt, b)
        bytes_acc = _nbytes(x, wt, b) + out_bytes
    else:
        kernel = functools.partial(_pwcf_res_kernel, relu=relu)
        in_specs = [x_spec, w_spec, b_spec, r_spec]
        args = (x, wt, b, residual)
        bytes_acc = _nbytes(x, wt, b, residual) + out_bytes

    out = pl.pallas_call(
        kernel,
        out_shape=jax.ShapeDtypeStruct((B, Cout, P_pad), out_dtype),
        grid=(B, P_pad // tp),
        in_specs=in_specs,
        out_specs=o_spec,
        compiler_params=_cparams("parallel", "parallel"),
        cost_estimate=pl.CostEstimate(flops=2 * B * Cin * Cout * P_pad,
                                      transcendentals=0,
                                      bytes_accessed=bytes_acc),
    )(*args)
    if P_pad != P:
        out = out[:, :, :P]
    return out


# ----------------------------------------------------------------------------
# Pallas kernel 2: complex mode mixing (both corner blocks in one call)
#   out[c, b, o, m] = sum_i x[c, b, i, m] * w[c, i, o, m]   (complex, Gauss 3x)
#   mode axis M is on lanes; contraction over Cin is a VPU broadcast-MAC loop.
# ----------------------------------------------------------------------------
def _cmul_kernel(xr_ref, xi_ref, wr_ref, wi_ref, or_ref, oi_ref):
    xr = xr_ref[0]          # (B, Cin, M)
    xi = xi_ref[0]
    wr = wr_ref[0]          # (Cin, Cout, M)
    wi = wi_ref[0]
    xs = xr + xi
    ws = wr + wi
    cin = xr.shape[1]

    rr = xr[:, 0:1, :] * wr[0][None]            # (B,1,M)*(1,Cout,M) -> (B,Cout,M)
    ii = xi[:, 0:1, :] * wi[0][None]
    tt = xs[:, 0:1, :] * ws[0][None]
    for c in range(1, cin):
        rr = rr + xr[:, c:c + 1, :] * wr[c][None]
        ii = ii + xi[:, c:c + 1, :] * wi[c][None]
        tt = tt + xs[:, c:c + 1, :] * ws[c][None]

    or_ref[0] = (rr - ii).astype(or_ref.dtype)
    oi_ref[0] = (tt - rr - ii).astype(oi_ref.dtype)


# ----------------------------------------------------------------------------
# SpectralConv2d forward (FFT glue in JAX, mode mixing in Pallas)
# ----------------------------------------------------------------------------
def spectral_conv2d(h_cf, H, W, wr, wi, m1, m2):
    """h_cf: (B, C, H*W); wr/wi: (2, C, Cout, m1*m2) pre-packed. -> (B, Cout, H*W) f32."""
    B, C, _ = h_cf.shape
    Cout = wr.shape[2]
    M = m1 * m2
    Wf = W // 2 + 1

    x_ft = jnp.fft.rfft2(h_cf.reshape(B, C, H, W).astype(jnp.float32))  # (B,C,H,Wf)

    # Gather the two corner blocks (small slices only; no full-tensor transposes).
    xc = jnp.concatenate([x_ft[:, :, :m1, :m2], x_ft[:, :, H - m1:, :m2]], axis=2)
    xc = xc.reshape(B, C, 2, m1, m2).transpose(2, 0, 1, 3, 4).reshape(2, B, C, M)
    xr = jnp.real(xc)
    xi = jnp.imag(xc)

    out_r, out_i = pl.pallas_call(
        _cmul_kernel,
        out_shape=(jax.ShapeDtypeStruct((2, B, Cout, M), jnp.float32),
                   jax.ShapeDtypeStruct((2, B, Cout, M), jnp.float32)),
        grid=(2,),
        in_specs=[
            pl.BlockSpec((1, B, C, M), lambda i: (i, 0, 0, 0)),
            pl.BlockSpec((1, B, C, M), lambda i: (i, 0, 0, 0)),
            pl.BlockSpec((1, C, Cout, M), lambda i: (i, 0, 0, 0)),
            pl.BlockSpec((1, C, Cout, M), lambda i: (i, 0, 0, 0)),
        ],
        out_specs=(
            pl.BlockSpec((1, B, Cout, M), lambda i: (i, 0, 0, 0)),
            pl.BlockSpec((1, B, Cout, M), lambda i: (i, 0, 0, 0)),
        ),
        compiler_params=_cparams("parallel"),
    )(xr, xi, wr, wi)

    out_c = jax.lax.complex(out_r, out_i).reshape(2, B, Cout, m1, m2)

    # Assemble out_ft with one pad + concat instead of zeros + two scatters.
    top = jnp.pad(out_c[0], ((0, 0), (0, 0), (0, 0), (0, Wf - m2)))
    bot = jnp.pad(out_c[1], ((0, 0), (0, 0), (0, 0), (0, Wf - m2)))
    if H >= 2 * m1:
        mid = jnp.zeros((B, Cout, H - 2 * m1, Wf), dtype=out_c.dtype)
        out_ft = jnp.concatenate([top, mid, bot], axis=2)
    else:
        # Degenerate overlapping-corner case: keep PyTorch's write order.
        out_ft = jnp.zeros((B, Cout, H, Wf), dtype=out_c.dtype)
        out_ft = out_ft.at[:, :, :m1, :m2].set(out_c[0])
        out_ft = out_ft.at[:, :, H - m1:, :m2].set(out_c[1])

    y = jnp.fft.irfft2(out_ft, s=(H, W))                 # (B, Cout, H, W) f32
    return y.reshape(B, Cout, H * W)


# ----------------------------------------------------------------------------
# Pallas kernel 3: fused tail  (w3 + spectral residual) -> fc1 -> relu -> fc2
#   All intermediates stay in VMEM; fc2 is a VPU weighted sum (no M=1 matmul).
# ----------------------------------------------------------------------------
def _tail_kernel(h_ref, x1_ref, w3t_ref, b3_ref, w1t_ref, b1_ref, w2_ref,
                 b2_ref, o_ref):
    # last Fourier layer: 1x1 conv + spectral residual (no relu)
    h2 = jnp.dot(w3t_ref[...], h_ref[0], preferred_element_type=jnp.float32)
    h2 = h2 + b3_ref[...] + x1_ref[0].astype(jnp.float32)        # (width, tp) f32
    # fc1 + relu
    h1 = jnp.dot(w1t_ref[...], h2.astype(jnp.bfloat16),
                 preferred_element_type=jnp.float32)
    h1 = jnp.maximum(h1 + b1_ref[...], 0.0)                      # (128, tp) f32
    # fc2 (128 -> 1): VPU multiply + sublane reduce
    y = jnp.sum(w2_ref[...] * h1, axis=0, keepdims=True) + b2_ref[...]
    o_ref[0] = y.astype(o_ref.dtype)                             # (1, tp)


def fused_tail(h, x1, w3t, b3, w1t, b1, w2, b2, tile_cap=8192):
    """h, x1: (B, width, P) bf16.  Returns (B, 1, P) f32."""
    B, width, P = h.shape
    H1 = w1t.shape[0]
    tp, P_pad = _tile_and_pad(P, tile_cap)
    h = _pad_lane(h, P_pad)
    x1 = _pad_lane(x1, P_pad)

    cost = pl.CostEstimate(
        flops=B * P_pad * (2 * width * width + 2 * width * H1 + 2 * H1),
        transcendentals=0,
        bytes_accessed=_nbytes(h, x1, w3t, b3, w1t, b1, w2, b2) + B * P_pad * 4)

    out = pl.pallas_call(
        _tail_kernel,
        out_shape=jax.ShapeDtypeStruct((B, 1, P_pad), jnp.float32),
        grid=(B, P_pad // tp),
        in_specs=[
            pl.BlockSpec((1, width, tp), lambda i, j: (i, 0, j)),
            pl.BlockSpec((1, width, tp), lambda i, j: (i, 0, j)),
            pl.BlockSpec((width, width), lambda i, j: (0, 0)),
            pl.BlockSpec((width, 1), lambda i, j: (0, 0)),
            pl.BlockSpec((H1, width), lambda i, j: (0, 0)),
            pl.BlockSpec((H1, 1), lambda i, j: (0, 0)),
            pl.BlockSpec((H1, 1), lambda i, j: (0, 0)),
            pl.BlockSpec((1, 1), lambda i, j: (0, 0)),
        ],
        out_specs=pl.BlockSpec((1, 1, tp), lambda i, j: (i, 0, j)),
        compiler_params=_cparams("parallel", "parallel"),
        cost_estimate=cost,
    )(h, x1, w3t, b3, w1t, b1, w2, b2)
    if P_pad != P:
        out = out[:, :, :P]
    return out


# ----------------------------------------------------------------------------
# FNO2d forward (consumes pre-packed params)
# ----------------------------------------------------------------------------
def fno2d_forward(x, pk, modes1, modes2):
    """x: (B, S, S, 3) float32 -> (B, S, S, 1) float32."""
    B, Sx, Sy, _ = x.shape
    width = pk["fc0_wt"].shape[0]
    P = Sx * Sy

    # Only 3 channels are transposed here; everything after stays channels-first.
    x_cf = x.transpose(0, 3, 1, 2).reshape(B, 3, P).astype(jnp.float32)
    h = pointwise_cf(x_cf, pk["fc0_wt"], pk["fc0_b"])            # (B, width, P) bf16

    for l in range(3):
        x1 = spectral_conv2d(h, Sx, Sy, pk[f"conv{l}_wr"], pk[f"conv{l}_wi"],
                             modes1, modes2)                     # f32
        # fused: 1x1 conv + spectral residual + relu
        h = pointwise_cf(h, pk[f"w{l}_wt"], pk[f"w{l}_b"],
                         residual=x1.astype(jnp.bfloat16), relu=True)

    # layer 3 pointwise conv + residual is fused into the projection head
    x1 = spectral_conv2d(h, Sx, Sy, pk["conv3_wr"], pk["conv3_wi"],
                         modes1, modes2)
    out = fused_tail(h, x1.astype(jnp.bfloat16),
                     pk["w3_wt"], pk["w3_b"],
                     pk["fc1_wt"], pk["fc1_b"],
                     pk["fc2_w"], pk["fc2_b"])                   # (B, 1, P) f32
    return out.reshape(B, Sx, Sy, 1)


# ----------------------------------------------------------------------------
# Parameters: deterministic init (PyTorch-like shapes) + one-time packing
# ----------------------------------------------------------------------------
def init_params(key, width, modes1, modes2):
    params = {}
    keys = iter(jax.random.split(key, 64))

    def linear(cin, cout):
        bound = 1.0 / jnp.sqrt(cin)
        w = jax.random.uniform(next(keys), (cin, cout), jnp.float32, -bound, bound)
        b = jax.random.uniform(next(keys), (cout,), jnp.float32, -bound, bound)
        return w, b

    params["fc0_w"], params["fc0_b"] = linear(3, width)
    for l in range(4):
        scale = 1.0 / (width * width)
        for tag in ("w1r", "w1i", "w2r", "w2i"):
            params[f"conv{l}_{tag}"] = scale * jax.random.uniform(
                next(keys), (width, width, modes1, modes2), jnp.float32)
        # 1x1 Conv1d == pointwise linear with weight (Cin, Cout)
        params[f"w{l}_w"], params[f"w{l}_b"] = linear(width, width)
    params["fc1_w"], params["fc1_b"] = linear(width, 128)
    params["fc2_w"], params["fc2_b"] = linear(128, 1)
    return params


def pack_params(params):
    """One-time re-layout into kernel formats (done OUTSIDE the hot path)."""
    f32, bf16 = jnp.float32, jnp.bfloat16
    pk = {}
    pk["fc0_wt"] = jnp.asarray(params["fc0_w"], f32).T                 # (width, 3)
    pk["fc0_b"] = jnp.asarray(params["fc0_b"], f32).reshape(-1, 1)
    for l in range(4):
        cin, cout, m1, m2 = params[f"conv{l}_w1r"].shape
        wr = jnp.stack([params[f"conv{l}_w1r"], params[f"conv{l}_w2r"]], 0)
        wi = jnp.stack([params[f"conv{l}_w1i"], params[f"conv{l}_w2i"]], 0)
        pk[f"conv{l}_wr"] = jnp.asarray(wr, f32).reshape(2, cin, cout, m1 * m2)
        pk[f"conv{l}_wi"] = jnp.asarray(wi, f32).reshape(2, cin, cout, m1 * m2)
        pk[f"w{l}_wt"] = jnp.asarray(params[f"w{l}_w"], f32).T.astype(bf16)
        pk[f"w{l}_b"] = jnp.asarray(params[f"w{l}_b"], f32).reshape(-1, 1)
    pk["fc1_wt"] = jnp.asarray(params["fc1_w"], f32).T.astype(bf16)    # (128, width)
    pk["fc1_b"] = jnp.asarray(params["fc1_b"], f32).reshape(-1, 1)
    pk["fc2_w"] = jnp.asarray(params["fc2_w"], f32).reshape(-1, 1)     # (128, 1)
    pk["fc2_b"] = jnp.asarray(params["fc2_b"], f32).reshape(1, 1)
    return pk


if __name__ == "__main__":
    B, S, WIDTH = 2, 16, 32
    MODES1, MODES2 = 4, 4

    key = jax.random.PRNGKey(0)
    k_x, k_p = jax.random.split(key)
    x = jax.random.normal(k_x, (B, S, S, 3), jnp.float32)
    params = init_params(k_p, WIDTH, MODES1, MODES2)
    packed = pack_params(params)

    fwd = jax.jit(functools.partial(fno2d_forward, modes1=MODES1, modes2=MODES2))
    out = jax.block_until_ready(fwd(x, packed))
    assert out.shape == (B, S, S, 1) and out.dtype == jnp.float32
    print("KERNEL_OK")
</pallas_src>

<mosaic_0001>
module attributes {stable_mosaic.version = 11 : i64} {
  func.func @_pwcf_kernel(%arg0: i32, %arg1: i32, %arg2: memref<1x3x256xf32, #tpu.memory_space<vmem>>, %arg3: memref<32x3xf32, #tpu.memory_space<vmem>>, %arg4: memref<32x1xf32, #tpu.memory_space<vmem>>, %arg5: memref<1x32x256xbf16, #tpu.memory_space<vmem>>) attributes {dimension_semantics = [#tpu.dimension_semantics<parallel>, #tpu.dimension_semantics<parallel>], iteration_bounds = array<i64: 2, 1>, scalar_prefetch = 0 : i64, scratch_operands = 0 : i64, tpu.core_type = #tpu.core_type<tc>, window_params = [{transform_indices = @transform_0, window_bounds = array<i64: 1, 3, 256>}, {pipeline_mode = #tpu.pipeline_mode<synchronous>, transform_indices = @transform_1, window_bounds = array<i64: 32, 3>}, {pipeline_mode = #tpu.pipeline_mode<synchronous>, transform_indices = @transform_2, window_bounds = array<i64: 32, 1>}, {transform_indices = @transform_3, window_bounds = array<i64: 1, 32, 256>}]} {
    %c0 = arith.constant 0 : index
    %c0_0 = arith.constant 0 : index
    %c0_1 = arith.constant 0 : index
    %0 = vector.load %arg2[%c0, %c0_0, %c0_1] : memref<1x3x256xf32, #tpu.memory_space<vmem>>, vector<1x3x256xf32>
    %1 = vector.shape_cast %0 : vector<1x3x256xf32> to vector<3x256xf32>
    %c0_2 = arith.constant 0 : index
    %c0_3 = arith.constant 0 : index
    %2 = vector.load %arg3[%c0_2, %c0_3] : memref<32x3xf32, #tpu.memory_space<vmem>>, vector<32x3xf32>
    %3 = vector.extract_strided_slice %2 {offsets = [0, 0], sizes = [32, 1], strides = [1, 1]} : vector<32x3xf32> to vector<32x1xf32>
    %4 = vector.extract_strided_slice %1 {offsets = [0, 0], sizes = [1, 256], strides = [1, 1]} : vector<3x256xf32> to vector<1x256xf32>
    %5 = vector.broadcast %3 : vector<32x1xf32> to vector<32x256xf32>
    %6 = vector.broadcast %4 : vector<1x256xf32> to vector<32x256xf32>
    %7 = arith.mulf %5, %6 : vector<32x256xf32>
    %8 = vector.extract_strided_slice %2 {offsets = [0, 1], sizes = [32, 1], strides = [1, 1]} : vector<32x3xf32> to vector<32x1xf32>
    %9 = vector.extract_strided_slice %1 {offsets = [1, 0], sizes = [1, 256], strides = [1, 1]} : vector<3x256xf32> to vector<1x256xf32>
    %10 = vector.broadcast %8 : vector<32x1xf32> to vector<32x256xf32>
    %11 = vector.broadcast %9 : vector<1x256xf32> to vector<32x256xf32>
    %12 = arith.mulf %10, %11 : vector<32x256xf32>
    %13 = arith.addf %7, %12 : vector<32x256xf32>
    %14 = vector.extract_strided_slice %2 {offsets = [0, 2], sizes = [32, 1], strides = [1, 1]} : vector<32x3xf32> to vector<32x1xf32>
    %15 = vector.extract_strided_slice %1 {offsets = [2, 0], sizes = [1, 256], strides = [1, 1]} : vector<3x256xf32> to vector<1x256xf32>
    %16 = vector.broadcast %14 : vector<32x1xf32> to vector<32x256xf32>
    %17 = vector.broadcast %15 : vector<1x256xf32> to vector<32x256xf32>
    %18 = arith.mulf %16, %17 : vector<32x256xf32>
    %19 = arith.addf %13, %18 : vector<32x256xf32>
    %c0_4 = arith.constant 0 : index
    %c0_5 = arith.constant 0 : index
    %20 = vector.load %arg4[%c0_4, %c0_5] : memref<32x1xf32, #tpu.memory_space<vmem>>, vector<32x1xf32>
    %21 = vector.broadcast %20 : vector<32x1xf32> to vector<32x256xf32>
    %22 = arith.addf %19, %21 : vector<32x256xf32>
    %23 = arith.truncf %22 : vector<32x256xf32> to vector<32x256xbf16>
    %c0_6 = arith.constant 0 : index
    %c0_7 = arith.constant 0 : index
    %c0_8 = arith.constant 0 : index
    %24 = vector.load %arg5[%c0_6, %c0_7, %c0_8] : memref<1x32x256xbf16, #tpu.memory_space<vmem>>, vector<1x32x256xbf16>
    %25 = vector.shape_cast %24 : vector<1x32x256xbf16> to vector<32x256xbf16>
    %26 = vector.shape_cast %23 : vector<32x256xbf16> to vector<1x32x256xbf16>
    tpu.vector_store %arg5[%c0_6, %c0_7, %c0_8], %26 {strides = array<i32>} : memref<1x32x256xbf16, #tpu.memory_space<vmem>>, vector<1x32x256xbf16>,
    return
  }
  func.func @transform_0(%arg0: i32, %arg1: i32) -> (i32, i32, i32) {
    %c0_i32 = arith.constant 0 : i32
    %c0_i32_0 = arith.constant 0 : i32
    return %arg0, %c0_i32, %arg1 : i32, i32, i32
  }
  func.func @transform_1(%arg0: i32, %arg1: i32) -> (i32, i32) {
    %c0_i32 = arith.constant 0 : i32
    %c0_i32_0 = arith.constant 0 : i32
    %c0_i32_1 = arith.constant 0 : i32
    return %c0_i32, %c0_i32_0 : i32, i32
  }
  func.func @transform_2(%arg0: i32, %arg1: i32) -> (i32, i32) {
    %c0_i32 = arith.constant 0 : i32
    %c0_i32_0 = arith.constant 0 : i32
    %c0_i32_1 = arith.constant 0 : i32
    return %c0_i32, %c0_i32_0 : i32, i32
  }
  func.func @transform_3(%arg0: i32, %arg1: i32) -> (i32, i32, i32) {
    %c0_i32 = arith.constant 0 : i32
    %c0_i32_0 = arith.constant 0 : i32
    return %arg0, %c0_i32, %arg1 : i32, i32, i32
  }
}

module attributes {stable_mosaic.version = 11 : i64} {
  func.func @_cmul_kernel(%arg0: i32, %arg1: memref<1x2x32x16xf32, #tpu.memory_space<vmem>>, %arg2: memref<1x2x32x16xf32, #tpu.memory_space<vmem>>, %arg3: memref<1x32x32x16xf32, #tpu.memory_space<vmem>>, %arg4: memref<1x32x32x16xf32, #tpu.memory_space<vmem>>, %arg5: memref<1x2x32x16xf32, #tpu.memory_space<vmem>>, %arg6: memref<1x2x32x16xf32, #tpu.memory_space<vmem>>) attributes {dimension_semantics = [#tpu.dimension_semantics<parallel>], iteration_bounds = array<i64: 2>, scalar_prefetch = 0 : i64, scratch_operands = 0 : i64, tpu.core_type = #tpu.core_type<tc>, window_params = [{transform_indices = @transform_0, window_bounds = array<i64: 1, 2, 32, 16>}, {transform_indices = @transform_1, window_bounds = array<i64: 1, 2, 32, 16>}, {transform_indices = @transform_2, window_bounds = array<i64: 1, 32, 32, 16>}, {transform_indices = @transform_3, window_bounds = array<i64: 1, 32, 32, 16>}, {transform_indices = @transform_4, window_bounds = array<i64: 1, 2, 32, 16>}, {transform_indices = @transform_5, window_bounds = array<i64: 1, 2, 32, 16>}]} {
    %c0 = arith.constant 0 : index
    %c0_0 = arith.constant 0 : index
    %c0_1 = arith.constant 0 : index
    %c0_2 = arith.constant 0 : index
    %0 = vector.load %arg1[%c0, %c0_0, %c0_1, %c0_2] : memref<1x2x32x16xf32, #tpu.memory_space<vmem>>, vector<1x2x32x16xf32>
    %1 = vector.shape_cast %0 : vector<1x2x32x16xf32> to vector<2x32x16xf32>
    %c0_3 = arith.constant 0 : index
    %c0_4 = arith.constant 0 : index
    %c0_5 = arith.constant 0 : index
    %c0_6 = arith.constant 0 : index
    %2 = vector.load %arg2[%c0_3, %c0_4, %c0_5, %c0_6] : memref<1x2x32x16xf32, #tpu.memory_space<vmem>>, vector<1x2x32x16xf32>
    %3 = vector.shape_cast %2 : vector<1x2x32x16xf32> to vector<2x32x16xf32>
    %c0_7 = arith.constant 0 : index
    %c0_8 = arith.constant 0 : index
    %c0_9 = arith.constant 0 : index
    %c0_10 = arith.constant 0 : index
    %4 = vector.load %arg3[%c0_7, %c0_8, %c0_9, %c0_10] : memref<1x32x32x16xf32, #tpu.memory_space<vmem>>, vector<1x32x32x16xf32>
    %5 = vector.shape_cast %4 : vector<1x32x32x16xf32> to vector<32x32x16xf32>
    %c0_11 = arith.constant 0 : index
    %c0_12 = arith.constant 0 : index
    %c0_13 = arith.constant 0 : index
    %c0_14 = arith.constant 0 : index
    %6 = vector.load %arg4[%c0_11, %c0_12, %c0_13, %c0_14] : memref<1x32x32x16xf32, #tpu.memory_space<vmem>>, vector<1x32x32x16xf32>
    %7 = vector.shape_cast %6 : vector<1x32x32x16xf32> to vector<32x32x16xf32>
    %8 = arith.addf %1, %3 : vector<2x32x16xf32>
    %9 = arith.addf %5, %7 : vector<32x32x16xf32>
    %10 = vector.extract_strided_slice %1 {offsets = [0, 0, 0], sizes = [2, 1, 16], strides = [1, 1, 1]} : vector<2x32x16xf32> to vector<2x1x16xf32>
    %11 = vector.extract_strided_slice %5 {offsets = [0, 0, 0], sizes = [1, 32, 16], strides = [1, 1, 1]} : vector<32x32x16xf32> to vector<1x32x16xf32>
    %12 = vector.shape_cast %11 : vector<1x32x16xf32> to vector<32x16xf32>
    %13 = vector.shape_cast %12 : vector<32x16xf32> to vector<1x32x16xf32>
    %14 = vector.broadcast %10 : vector<2x1x16xf32> to vector<2x32x16xf32>
    %15 = vector.broadcast %13 : vector<1x32x16xf32> to vector<2x32x16xf32>
    %16 = arith.mulf %14, %15 : vector<2x32x16xf32>
    %17 = vector.extract_strided_slice %3 {offsets = [0, 0, 0], sizes = [2, 1, 16], strides = [1, 1, 1]} : vector<2x32x16xf32> to vector<2x1x16xf32>
    %18 = vector.extract_strided_slice %7 {offsets = [0, 0, 0], sizes = [1, 32, 16], strides = [1, 1, 1]} : vector<32x32x16xf32> to vector<1x32x16xf32>
    %19 = vector.shape_cast %18 : vector<1x32x16xf32> to vector<32x16xf32>
    %20 = vector.shape_cast %19 : vector<32x16xf32> to vector<1x32x16xf32>
    %21 = vector.broadcast %17 : vector<2x1x16xf32> to vector<2x32x16xf32>
    %22 = vector.broadcast %20 : vector<1x32x16xf32> to vector<2x32x16xf32>
    %23 = arith.mulf %21, %22 : vector<2x32x16xf32>
    %24 = vector.extract_strided_slice %8 {offsets = [0, 0, 0], sizes = [2, 1, 16], strides = [1, 1, 1]} : vector<2x32x16xf32> to vector<2x1x16xf32>
    %25 = vector.extract_strided_slice %9 {offsets = [0, 0, 0], sizes = [1, 32, 16], strides = [1, 1, 1]} : vector<32x32x16xf32> to vector<1x32x16xf32>
    %26 = vector.shape_cast %25 : vector<1x32x16xf32> to vector<32x16xf32>
    %27 = vector.shape_cast %26 : vector<32x16xf32> to vector<1x32x16xf32>
    %28 = vector.broadcast %24 : vector<2x1x16xf32> to vector<2x32x16xf32>
    %29 = vector.broadcast %27 : vector<1x32x16xf32> to vector<2x32x16xf32>
    %30 = arith.mulf %28, %29 : vector<2x32x16xf32>
    %31 = vector.extract_strided_slice %1 {offsets = [0, 1, 0], sizes = [2, 1, 16], strides = [1, 1, 1]} : vector<2x32x16xf32> to vector<2x1x16xf32>
    %32 = vector.extract_strided_slice %5 {offsets = [1, 0, 0], sizes = [1, 32, 16], strides = [1, 1, 1]} : vector<32x32x16xf32> to vector<1x32x16xf32>
    %33 = vector.shape_cast %32 : vector<1x32x16xf32> to vector<32x16xf32>
    %34 = vector.shape_cast %33 : vector<32x16xf32> to vector<1x32x16xf32>
    %35 = vector.broadcast %31 : vector<2x1x16xf32> to vector<2x32x16xf32>
    %36 = vector.broadcast %34 : vector<1x32x16xf32> to vector<2x32x16xf32>
    %37 = arith.mulf %35, %36 : vector<2x32x16xf32>
    %38 = arith.addf %16, %37 : vector<2x32x16xf32>
    %39 = vector.extract_strided_slice %3 {offsets = [0, 1, 0], sizes = [2, 1, 16], strides = [1, 1, 1]} : vector<2x32x16xf32> to vector<2x1x16xf32>
    %40 = vector.extract_strided_slice %7 {offsets = [1, 0, 0], sizes = [1, 32, 16], strides = [1, 1, 1]} : vector<32x32x16xf32> to vector<1x32x16xf32>
    %41 = vector.shape_cast %40 : vector<1x32x16xf32> to vector<32x16xf32>
    %42 = vector.shape_cast %41 : vector<32x16xf32> to vector<1x32x16xf32>
    %43 = vector.broadcast %39 : vector<2x1x16xf32> to vector<2x32x16xf32>
    %44 = vector.broadcast %42 : vector<1x32x16xf32> to vector<2x32x16xf32>
    %45 = arith.mulf %43, %44 : vector<2x32x16xf32>
    %46 = arith.addf %23, %45 : vector<2x32x16xf32>
    %47 = vector.extract_strided_slice %8 {offsets = [0, 1, 0], sizes = [2, 1, 16], strides = [1, 1, 1]} : vector<2x32x16xf32> to vector<2x1x16xf32>
    %48 = vector.extract_strided_slice %9 {offsets = [1, 0, 0], sizes = [1, 32, 16], strides = [1, 1, 1]} : vector<32x32x16xf32> to vector<1x32x16xf32>
    %49 = vector.shape_cast %48 : vector<1x32x16xf32> to vector<32x16xf32>
    %50 = vector.shape_cast %49 : vector<32x16xf32> to vector<1x32x16xf32>
    %51 = vector.broadcast %47 : vector<2x1x16xf32> to vector<2x32x16xf32>
    %52 = vector.broadcast %50 : vector<1x32x16xf32> to vector<2x32x16xf32>
    %53 = arith.mulf %51, %52 : vector<2x32x16xf32>
    %54 = arith.addf %30, %53 : vector<2x32x16xf32>
    %55 = vector.extract_strided_slice %1 {offsets = [0, 2, 0], sizes = [2, 1, 16], strides = [1, 1, 1]} : vector<2x32x16xf32> to vector<2x1x16xf32>
    %56 = vector.extract_strided_slice %5 {offsets = [2, 0, 0], sizes = [1, 32, 16], strides = [1, 1, 1]} : vector<32x32x16xf32> to vector<1x32x16xf32>
    %57 = vector.shape_cast %56 : vector<1x32x16xf32> to vector<32x16xf32>
    %58 = vector.shape_cast %57 : vector<32x16xf32> to vector<1x32x16xf32>
    %59 = vector.broadcast %55 : vector<2x1x16xf32> to vector<2x32x16xf32>
    %60 = vector.broadcast %58 : vector<1x32x16xf32> to vector<2x32x16xf32>
    %61 = arith.mulf %59, %60 : vector<2x32x16xf32>
    %62 = arith.addf %38, %61 : vector<2x32x16xf32>
    %63 = vector.extract_strided_slice %3 {offsets = [0, 2, 0], sizes = [2, 1, 16], strides = [1, 1, 1]} : vector<2x32x16xf32> to vector<2x1x16xf32>
    %64 = vector.extract_strided_slice %7 {offsets = [2, 0, 0], sizes = [1, 32, 16], strides = [1, 1, 1]} : vector<32x32x16xf32> to vector<1x32x16xf32>
    %65 = vector.shape_cast %64 : vector<1x32x16xf32> to vector<32x16xf32>
    %66 = vector.shape_cast %65 : vector<32x16xf32> to vector<1x32x16xf32>
    %67 = vector.broadcast %63 : vector<2x1x16xf32> to vector<2x32x16xf32>
    %68 = vector.broadcast %66 : vector<1x32x16xf32> to vector<2x32x16xf32>
    %69 = arith.mulf %67, %68 : vector<2x32x16xf32>
    %70 = arith.addf %46, %69 : vector<2x32x16xf32>
    %71 = vector.extract_strided_slice %8 {offsets = [0, 2, 0], sizes = [2, 1, 16], strides = [1, 1, 1]} : vector<2x32x16xf32> to vector<2x1x16xf32>
    %72 = vector.extract_strided_slice %9 {offsets = [2, 0, 0], sizes = [1, 32, 16], strides = [1, 1, 1]} : vector<32x32x16xf32> to vector<1x32x16xf32>
    %73 = vector.shape_cast %72 : vector<1x32x16xf32> to vector<32x16xf32>
    %74 = vector.shape_cast %73 : vector<32x16xf32> to vector<1x32x16xf32>
    %75 = vector.broadcast %71 : vector<2x1x16xf32> to vector<2x32x16xf32>
    %76 = vector.broadcast %74 : vector<1x32x16xf32> to vector<2x32x16xf32>
    %77 = arith.mulf %75, %76 : vector<2x32x16xf32>
    %78 = arith.addf %54, %77 : vector<2x32x16xf32>
    %79 = vector.extract_strided_slice %1 {offsets = [0, 3, 0], sizes = [2, 1, 16], strides = [1, 1, 1]} : vector<2x32x16xf32> to vector<2x1x16xf32>
    %80 = vector.extract_strided_slice %5 {offsets = [3, 0, 0], sizes = [1, 32, 16], strides = [1, 1, 1]} : vector<32x32x16xf32> to vector<1x32x16xf32>
    %81 = vector.shape_cast %80 : vector<1x32x16xf32> to vector<32x16xf32>
    %82 = vector.shape_cast %81 : vector<32x16xf32> to vector<1x32x16xf32>
    %83 = vector.broadcast %79 : vector<2x1x16xf32> to vector<2x32x16xf32>
    %84 = vector.broadcast %82 : vector<1x32x16xf32> to vector<2x32x16xf32>
    %85 = arith.mulf %83, %84 : vector<2x32x16xf32>
    %86 = arith.addf %62, %85 : vector<2x32x16xf32>
    %87 = vector.extract_strided_slice %3 {offsets = [0, 3, 0], sizes = [2, 1, 16], strides = [1, 1, 1]} : vector<2x32x16xf32> to vector<2x1x16xf32>
    %88 = vector.extract_strided_slice %7 {offsets = [3, 0, 0], sizes = [1, 32, 16], strides = [1, 1, 1]} : vector<32x32x16xf32> to vector<1x32x16xf32>
    %89 = vector.shape_cast %88 : vector<1x32x16xf32> to vector<32x16xf32>
    %90 = vector.shape_cast %89 : vector<32x16xf32> to vector<1x32x16xf32>
    %91 = vector.broadcast %87 : vector<2x1x16xf32> to vector<2x32x16xf32>
    %92 = vector.broadcast %90 : vector<1x32x16xf32> to vector<2x32x16xf32>
    %93 = arith.mulf %91, %92 : vector<2x32x16xf32>
    %94 = arith.addf %70, %93 : vector<2x32x16xf32>
    %95 = vector.extract_strided_slice %8 {offsets = [0, 3, 0], sizes = [2, 1, 16], strides = [1, 1, 1]} : vector<2x32x16xf32> to vector<2x1x16xf32>
    %96 = vector.extract_strided_slice %9 {offsets = [3, 0, 0], sizes = [1, 32, 16], strides = [1, 1, 1]} : vector<32x32x16xf32> to vector<1x32x16xf32>
    %97 = vector.shape_cast %96 : vector<1x32x16xf32> to vector<32x16xf32>
    %98 = vector.shape_cast %97 : vector<32x16xf32> to vector<1x32x16xf32>
    %99 = vector.broadcast %95 : vector<2x1x16xf32> to vector<2x32x16xf32>
    %100 = vector.broadcast %98 : vector<1x32x16xf32> to vector<2x32x16xf32>
    %101 = arith.mulf %99, %100 : vector<2x32x16xf32>
    %102 = arith.addf %78, %101 : vector<2x32x16xf32>
    %103 = vector.extract_strided_slice %1 {offsets = [0, 4, 0], sizes = [2, 1, 16], strides = [1, 1, 1]} : vector<2x32x16xf32> to vector<2x1x16xf32>
    %104 = vector.extract_strided_slice %5 {offsets = [4, 0, 0], sizes = [1, 32, 16], strides = [1, 1, 1]} : vector<32x32x16xf32> to vector<1x32x16xf32>
    %105 = vector.shape_cast %104 : vector<1x32x16xf32> to vector<32x16xf32>
    %106 = vector.shape_cast %105 : vector<32x16xf32> to vector<1x32x16xf32>
    %107 = vector.broadcast %103 : vector<2x1x16xf32> to vector<2x32x16xf32>
    %108 = vector.broadcast %106 : vector<1x32x16xf32> to vector<2x32x16xf32>
    %109 = arith.mulf %107, %108 : vector<2x32x16xf32>
    %110 = arith.addf %86, %109 : vector<2x32x16xf32>
    %111 = vector.extract_strided_slice %3 {offsets = [0, 4, 0], sizes = [2, 1, 16], strides = [1, 1, 1]} : vector<2x32x16xf32> to vector<2x1x16xf32>
    %112 = vector.extract_strided_slice %7 {offsets = [4, 0, 0], sizes = [1, 32, 16], strides = [1, 1, 1]} : vector<32x32x16xf32> to vector<1x32x16xf32>
    %113 = vector.shape_cast %112 : vector<1x32x16xf32> to vector<32x16xf32>
    %114 = vector.shape_cast %113 : vector<32x16xf32> to vector<1x32x16xf32>
    %115 = vector.broadcast %111 : vector<2x1x16xf32> to vector<2x32x16xf32>
    %116 = vector.broadcast %114 : vector<1x32x16xf32> to vector<2x32x16xf32>
    %117 = arith.mulf %115, %116 : vector<2x32x16xf32>
    %118 = arith.addf %94, %117 : vector<2x32x16xf32>
    %119 = vector.extract_strided_slice %8 {offsets = [0, 4, 0], sizes = [2, 1, 16], strides = [1, 1, 1]} : vector<2x32x16xf32> to vector<2x1x16xf32>
    %120 = vector.extract_strided_slice %9 {offsets = [4, 0, 0], sizes = [1, 32, 16], strides = [1, 1, 1]} : vector<32x32x16xf32> to vector<1x32x16xf32>
    %121 = vector.shape_cast %120 : vector<1x32x16xf32> to vector<32x16xf32>
    %122 = vector.shape_cast %121 : vector<32x16xf32> to vector<1x32x16xf32>
    %123 = vector.broadcast %119 : vector<2x1x16xf32> to vector<2x32x16xf32>
    %124 = vector.broadcast %122 : vector<1x32x16xf32> to vector<2x32x16xf32>
    %125 = arith.mulf %123, %124 : vector<2x32x16xf32>
    %126 = arith.addf %102, %125 : vector<2x32x16xf32>
    %127 = vector.extract_strided_slice %1 {offsets = [0, 5, 0], sizes = [2, 1, 16], strides = [1, 1, 1]} : vector<2x32x16xf32> to vector<2x1x16xf32>
    %128 = vector.extract_strided_slice %5 {offsets = [5, 0, 0], sizes = [1, 32, 16], strides = [1, 1, 1]} : vector<32x32x16xf32> to vector<1x32x16xf32>
    %129 = vector.shape_cast %128 : vector<1x32x16xf32> to vector<32x16xf32>
    %130 = vector.shape_cast %129 : vector<32x16xf32> to vector<1x32x16xf32>
    %131 = vector.broadcast %127 : vector<2x1x16xf32> to vector<2x32x16xf32>
    %132 = vector.broadcast %130 : vector<1x32x16xf32> to vector<2x32x16xf32>
    %133 = arith.mulf %131, %132 : vector<2x32x16xf32>
    %134 = arith.addf %110, %133 : vector<2x32x16xf32>
    %135 = vector.extract_strided_slice %3 {offsets = [0, 5, 0], sizes = [2, 1, 16], strides = [1, 1, 1]} : vector<2x32x16xf32> to vector<2x1x16xf32>
    %136 = vector.extract_strided_slice %7 {offsets = [5, 0, 0], sizes = [1, 32, 16], strides = [1, 1, 1]} : vector<32x32x16xf32> to vector<1x32x16xf32>
    %137 = vector.shape_cast %136 : vector<1x32x16xf32> to vector<32x16xf32>
    %138 = vector.shape_cast %137 : vector<32x16xf32> to vector<1x32x16xf32>
    %139 = vector.broadcast %135 : vector<2x1x16xf32> to vector<2x32x16xf32>
    %140 = vector.broadcast %138 : vector<1x32x16xf32> to vector<2x32x16xf32>
    %141 = arith.mulf %139, %140 : vector<2x32x16xf32>
    %142 = arith.addf %118, %141 : vector<2x32x16xf32>
    %143 = vector.extract_strided_slice %8 {offsets = [0, 5, 0], sizes = [2, 1, 16], strides = [1, 1, 1]} : vector<2x32x16xf32> to vector<2x1x16xf32>
    %144 = vector.extract_strided_slice %9 {offsets = [5, 0, 0], sizes = [1, 32, 16], strides = [1, 1, 1]} : vector<32x32x16xf32> to vector<1x32x16xf32>
    %145 = vector.shape_cast %144 : vector<1x32x16xf32> to vector<32x16xf32>
    %146 = vector.shape_cast %145 : vector<32x16xf32> to vector<1x32x16xf32>
    %147 = vector.broadcast %143 : vector<2x1x16xf32> to vector<2x32x16xf32>
    %148 = vector.broadcast %146 : vector<1x32x16xf32> to vector<2x32x16xf32>
    %149 = arith.mulf %147, %148 : vector<2x32x16xf32>
    %150 = arith.addf %126, %149 : vector<2x32x16xf32>
    %151 = vector.extract_strided_slice %1 {offsets = [0, 6, 0], sizes = [2, 1, 16], strides = [1, 1, 1]} : vector<2x32x16xf32> to vector<2x1x16xf32>
    %152 = vector.extract_strided_slice %5 {offsets = [6, 0, 0], sizes = [1, 32, 16], strides = [1, 1, 1]} : vector<32x32x16xf32> to vector<1x32x16xf32>
    %153 = vector.shape_cast %152 : vector<1x32x16xf32> to vector<32x16xf32>
    %154 = vector.shape_cast %153 : vector<32x16xf32> to vector<1x32x16xf32>
    %155 = vector.broadcast %151 : vector<2x1x16xf32> to vector<2x32x16xf32>
    %156 = vector.broadcast %154 : vector<1x32x16xf32> to vector<2x32x16xf32>
    %157 = arith.mulf %155, %156 : vector<2x32x16xf32>
    %158 = arith.addf %134, %157 : vector<2x32x16xf32>
    %159 = vector.extract_strided_slice %3 {offsets = [0, 6, 0], sizes = [2, 1, 16], strides = [1, 1, 1]} : vector<2x32x16xf32> to vector<2x1x16xf32>
    %160 = vector.extract_strided_slice %7 {offsets = [6, 0, 0], sizes = [1, 32, 16], strides = [1, 1, 1]} : vector<32x32x16xf32> to vector<1x32x16xf32>
    %161 = vector.shape_cast %160 : vector<1x32x16xf32> to vector<32x16xf32>
    %162 = vector.shape_cast %161 : vector<32x16xf32> to vector<1x32x16xf32>
    %163 = vector.broadcast %159 : vector<2x1x16xf32> to vector<2x32x16xf32>
    %164 = vector.broadcast %162 : vector<1x32x16xf32> to vector<2x32x16xf32>
    %165 = arith.mulf %163, %164 : vector<2x32x16xf32>
    %166 = arith.addf %142, %165 : vector<2x32x16xf32>
    %167 = vector.extract_strided_slice %8 {offsets = [0, 6, 0], sizes = [2, 1, 16], strides = [1, 1, 1]} : vector<2x32x16xf32> to vector<2x1x16xf32>
    %168 = vector.extract_strided_slice %9 {offsets = [6, 0, 0], sizes = [1, 32, 16], strides = [1, 1, 1]} : vector<32x32x16xf32> to vector<1x32x16xf32>
    %169 = vector.shape_cast %168 : vector<1x32x16xf32> to vector<32x16xf32>
    %170 = vector.shape_cast %169 : vector<32x16xf32> to vector<1x32x16xf32>
    %171 = vector.broadcast %167 : vector<2x1x16xf32> to vector<2x32x16xf32>
    %172 = vector.broadcast %170 : vector<1x32x16xf32> to vector<2x32x16xf32>
    %173 = arith.mulf %171, %172 : vector<2x32x16xf32>
    %174 = arith.addf %150, %173 : vector<2x32x16xf32>
    %175 = vector.extract_strided_slice %1 {offsets = [0, 7, 0], sizes = [2, 1, 16], strides = [1, 1, 1]} : vector<2x32x16xf32> to vector<2x1x16xf32>
    %176 = vector.extract_strided_slice %5 {offsets = [7, 0, 0], sizes = [1, 32, 16], strides = [1, 1, 1]} : vector<32x32x16xf32> to vector<1x32x16xf32>
    %177 = vector.shape_cast %176 : vector<1x32x16xf32> to vector<32x16xf32>
    %178 = vector.shape_cast %177 : vector<32x16xf32> to vector<1x32x16xf32>
    %179 = vector.broadcast %175 : vector<2x1x16xf32> to vector<2x32x16xf32>
    %180 = vector.broadcast %178 : vector<1x32x16xf32> to vector<2x32x16xf32>
    %181 = arith.mulf %179, %180 : vector<2x32x16xf32>
    %182 = arith.addf %158, %181 : vector<2x32x16xf32>
    %183 = vector.extract_strided_slice %3 {offsets = [0, 7, 0], sizes = [2, 1, 16], strides = [1, 1, 1]} : vector<2x32x16xf32> to vector<2x1x16xf32>
    %184 = vector.extract_strided_slice %7 {offsets = [7, 0, 0], sizes = [1, 32, 16], strides = [1, 1, 1]} : vector<32x32x16xf32> to vector<1x32x16xf32>
    %185 = vector.shape_cast %184 : vector<1x32x16xf32> to vector<32x16xf32>
    %186 = vector.shape_cast %185 : vector<32x16xf32> to vector<1x32x16xf32>
    %187 = vector.broadcast %183 : vector<2x1x16xf32> to vector<2x32x16xf32>
    %188 = vector.broadcast %186 : vector<1x32x16xf32> to vector<2x32x16xf32>
    %189 = arith.mulf %187, %188 : vector<2x32x16xf32>
    %190 = arith.addf %166, %189 : vector<2x32x16xf32>
    %191 = vector.extract_strided_slice %8 {offsets = [0, 7, 0], sizes = [2, 1, 16], strides = [1, 1, 1]} : vector<2x32x16xf32> to vector<2x1x16xf32>
    %192 = vector.extract_strided_slice %9 {offsets = [7, 0, 0], sizes = [1, 32, 16], strides = [1, 1, 1]} : vector<32x32x16xf32> to vector<1x32x16xf32>
    %193 = vector.shape_cast %192 : vector<1x32x16xf32> to vector<32x16xf32>
    %194 = vector.shape_cast %193 : vector<32x16xf32> to vector<1x32x16xf32>
    %195 = vector.broadcast %191 : vector<2x1x16xf32> to vector<2x32x16xf32>
    %196 = vector.broadcast %194 : vector<1x32x16xf32> to vector<2x32x16xf32>
    %197 = arith.mulf %195, %196 : vector<2x32x16xf32>
    %198 = arith.addf %174, %197 : vector<2x32x16xf32>
    %199 = vector.extract_strided_slice %1 {offsets = [0, 8, 0], sizes = [2, 1, 16], strides = [1, 1, 1]} : vector<2x32x16xf32> to vector<2x1x16xf32>
    %200 = vector.extract_strided_slice %5 {offsets = [8, 0, 0], sizes = [1, 32, 16], strides = [1, 1, 1]} : vector<32x32x16xf32> to vector<1x32x16xf32>
    %201 = vector.shape_cast %200 : vector<1x32x16xf32> to vector<32x16xf32>
    %202 = vector.shape_cast %201 : vector<32x16xf32> to vector<1x32x16xf32>
    %203 = vector.broadcast %199 : vector<2x1x16xf32> to vector<2x32x16xf32>
    %204 = vector.broadcast %202 : vector<1x32x16xf32> to vector<2x32x16xf32>
    %205 = arith.mulf %203, %204 : vector<2x32x16xf32>
    %206 = arith.addf %182, %205 : vector<2x32x16xf32>
    %207 = vector.extract_strided_slice %3 {offsets = [0, 8, 0], sizes = [2, 1, 16], strides = [1, 1, 1]} : vector<2x32x16xf32> to vector<2x1x16xf32>
    %208 = vector.extract_strided_slice %7 {offsets = [8, 0, 0], sizes = [1, 32, 16], strides = [1, 1, 1]} : vector<32x32x16xf32> to vector<1x32x16xf32>
    %209 = vector.shape_cast %208 : vector<1x32x16xf32> to vector<32x16xf32>
    %210 = vector.shape_cast %209 : vector<32x16xf32> to vector<1x32x16xf32>
    %211 = vector.broadcast %207 : vector<2x1x16xf32> to vector<2x32x16xf32>
    %212 = vector.broadcast %210 : vector<1x32x16xf32> to vector<2x32x16xf32>
    %213 = arith.mulf %211, %212 : vector<2x32x16xf32>
    %214 = arith.addf %190, %213 : vector<2x32x16xf32>
    %215 = vector.extract_strided_slice %8 {offsets = [0, 8, 0], sizes = [2, 1, 16], strides = [1, 1, 1]} : vector<2x32x16xf32> to vector<2x1x16xf32>
    %216 = vector.extract_strided_slice %9 {offsets = [8, 0, 0], sizes = [1, 32, 16], strides = [1, 1, 1]} : vector<32x32x16xf32> to vector<1x32x16xf32>
    %217 = vector.shape_cast %216 : vector<1x32x16xf32> to vector<32x16xf32>
    %218 = vector.shape_cast %217 : vector<32x16xf32> to vector<1x32x16xf32>
    %219 = vector.broadcast %215 : vector<2x1x16xf32> to vector<2x32x16xf32>
    %220 = vector.broadcast %218 : vector<1x32x16xf32> to vector<2x32x16xf32>
    %221 = arith.mulf %219, %220 : vector<2x32x16xf32>
    %222 = arith.addf %198, %221 : vector<2x32x16xf32>
    %223 = vector.extract_strided_slice %1 {offsets = [0, 9, 0], sizes = [2, 1, 16], strides = [1, 1, 1]} : vector<2x32x16xf32> to vector<2x1x16xf32>
    %224 = vector.extract_strided_slice %5 {offsets = [9, 0, 0], sizes = [1, 32, 16], strides = [1, 1, 1]} : vector<32x32x16xf32> to vector<1x32x16xf32>
    %225 = vector.shape_cast %224 : vector<1x32x16xf32> to vector<32x16xf32>
    %226 = vector.shape_cast %225 : vector<32x16xf32> to vector<1x32x16xf32>
    %227 = vector.broadcast %223 : vector<2x1x16xf32> to vector<2x32x16xf32>
    %228 = vector.broadcast %226 : vector<1x32x16xf32> to vector<2x32x16xf32>
    %229 = arith.mulf %227, %228 : vector<2x32x16xf32>
    %230 = arith.addf %206, %229 : vector<2x32x16xf32>
    %231 = vector.extract_strided_slice %3 {offsets = [0, 9, 0], sizes = [2, 1, 16], strides = [1, 1, 1]} : vector<2x32x16xf32> to vector<2x1x16xf32>
    %232 = vector.extract_strided_slice %7 {offsets = [9, 0, 0], sizes = [1, 32, 16], strides = [1, 1, 1]} : vector<32x32x16xf32> to vector<1x32x16xf32>
    %233 = vector.shape_cast %232 : vector<1x32x16xf32> to vector<32x16xf32>
    %234 = vector.shape_cast %233 : vector<32x16xf32> to vector<1x32x16xf32>
    %235 = vector.broadcast %231 : vector<2x1x16xf32> to vector<2x32x16xf32>
    %236 = vector.broadcast %234 : vector<1x32x16xf32> to vector<2x32x16xf32>
    %237 = arith.mulf %235, %236 : vector<2x32x16xf32>
    %238 = arith.addf %214, %237 : vector<2x32x16xf32>
    %239 = vector.extract_strided_slice %8 {offsets = [0, 9, 0], sizes = [2, 1, 16], strides = [1, 1, 1]} : vector<2x32x16xf32> to vector<2x1x16xf32>
    %240 = vector.extract_strided_slice %9 {offsets = [9, 0, 0], sizes = [1, 32, 16], strides = [1, 1, 1]} : vector<32x32x16xf32> to vector<1x32x16xf32>
    %241 = vector.shape_cast %240 : vector<1x32x16xf32> to vector<32x16xf32>
    %242 = vector.shape_cast %241 : vector<32x16xf32> to vector<1x32x16xf32>
    %243 = vector.broadcast %239 : vector<2x1x16xf32> to vector<2x32x16xf32>
    %244 = vector.broadcast %242 : vector<1x32x16xf32> to vector<2x32x16xf32>
    %245 = arith.mulf %243, %244 : vector<2x32x16xf32>
    %246 = arith.addf %222, %245 : vector<2x32x16xf32>
    %247 = vector.extract_strided_slice %1 {offsets = [0, 10, 0], sizes = [2, 1, 16], strides = [1, 1, 1]} : vector<2x32x16xf32> to vector<2x1x16xf32>
    %248 = vector.extract_strided_slice %5 {offsets = [10, 0, 0], sizes = [1, 32, 16], strides = [1, 1, 1]} : vector<32x32x16xf32> to vector<1x32x16xf32>
    %249 = vector.shape_cast %248 : vector<1x32x16xf32> to vector<32x16xf32>
    %250 = vector.shape_cast %249 : vector<32x16xf32> to vector<1x32x16xf32>
    %251 = vector.broadcast %247 : vector<2x1x16xf32> to vector<2x32x16xf32>
    %252 = vector.broadcast %250 : vector<1x32x16xf32> to vector<2x32x16xf32>
    %253 = arith.mulf %251, %252 : vector<2x32x16xf32>
    %254 = arith.addf %230, %253 : vector<2x32x16xf32>
    %255 = vector.extract_strided_slice %3 {offsets = [0, 10, 0], sizes = [2, 1, 16], strides = [1, 1, 1]} : vector<2x32x16xf32> to vector<2x1x16xf32>
    %256 = vector.extract_strided_slice %7 {offsets = [10, 0, 0], sizes = [1, 32, 16], strides = [1, 1, 1]} : vector<32x32x16xf32> to vector<1x32x16xf32>
    %257 = vector.shape_cast %256 : vector<1x32x16xf32> to vector<32x16xf32>
    %258 = vector.shape_cast %257 : vector<32x16xf32> to vector<1x32x16xf32>
    %259 = vector.broadcast %255 : vector<2x1x16xf32> to vector<2x32x16xf32>
    %260 = vector.broadcast %258 : vector<1x32x16xf32> to vector<2x32x16xf32>
    %261 = arith.mulf %259, %260 : vector<2x32x16xf32>
    %262 = arith.addf %238, %261 : vector<2x32x16xf32>
    %263 = vector.extract_strided_slice %8 {offsets = [0, 10, 0], sizes = [2, 1, 16], strides = [1, 1, 1]} : vector<2x32x16xf32> to vector<2x1x16xf32>
    %264 = vector.extract_strided_slice %9 {offsets = [10, 0, 0], sizes = [1, 32, 16], strides = [1, 1, 1]} : vector<32x32x16xf32> to vector<1x32x16xf32>
    %265 = vector.shape_cast %264 : vector<1x32x16xf32> to vector<32x16xf32>
    %266 = vector.shape_cast %265 : vector<32x16xf32> to vector<1x32x16xf32>
    %267 = vector.broadcast %263 : vector<2x1x16xf32> to vector<2x32x16xf32>
    %268 = vector.broadcast %266 : vector<1x32x16xf32> to vector<2x32x16xf32>
    %269 = arith.mulf %267, %268 : vector<2x32x16xf32>
    %270 = arith.addf %246, %269 : vector<2x32x16xf32>
    %271 = vector.extract_strided_slice %1 {offsets = [0, 11, 0], sizes = [2, 1, 16], strides = [1, 1, 1]} : vector<2x32x16xf32> to vector<2x1x16xf32>
    %272 = vector.extract_strided_slice %5 {offsets = [11, 0, 0], sizes = [1, 32, 16], strides = [1, 1, 1]} : vector<32x32x16xf32> to vector<1x32x16xf32>
    %273 = vector.shape_cast %272 : vector<1x32x16xf32> to vector<32x16xf32>
    %274 = vector.shape_cast %273 : vector<32x16xf32> to vector<1x32x16xf32>
    %275 = vector.broadcast %271 : vector<2x1x16xf32> to vector<2x32x16xf32>
    %276 = vector.broadcast %274 : vector<1x32x16xf32> to vector<2x32x16xf32>
    %277 = arith.mulf %275, %276 : vector<2x32x16xf32>
    %278 = arith.addf %254, %277 : vector<2x32x16xf32>
    %279 = vector.extract_strided_slice %3 {offsets = [0, 11, 0], sizes = [2, 1, 16], strides = [1, 1, 1]} : vector<2x32x16xf32> to vector<2x1x16xf32>
    %280 = vector.extract_strided_slice %7 {offsets = [11, 0, 0], sizes = [1, 32, 16], strides = [1, 1, 1]} : vector<32x32x16xf32> to vector<1x32x16xf32>
    %281 = vector.shape_cast %280 : vector<1x32x16xf32> to vector<32x16xf32>
    %282 = vector.shape_cast %281 : vector<32x16xf32> to vector<1x32x16xf32>
    %283 = vector.broadcast %279 : vector<2x1x16xf32> to vector<2x32x16xf32>
    %284 = vector.broadcast %282 : vector<1x32x16xf32> to vector<2x32x16xf32>
    %285 = arith.mulf %283, %284 : vector<2x32x16xf32>
    %286 = arith.addf %262, %285 : vector<2x32x16xf32>
    %287 = vector.extract_strided_slice %8 {offsets = [0, 11, 0], sizes = [2, 1, 16], strides = [1, 1, 1]} : vector<2x32x16xf32> to vector<2x1x16xf32>
    %288 = vector.extract_strided_slice %9 {offsets = [11, 0, 0], sizes = [1, 32, 16], strides = [1, 1, 1]} : vector<32x32x16xf32> to vector<1x32x16xf32>
    %289 = vector.shape_cast %288 : vector<1x32x16xf32> to vector<32x16xf32>
    %290 = vector.shape_cast %289 : vector<32x16xf32> to vector<1x32x16xf32>
    %291 = vector.broadcast %287 : vector<2x1x16xf32> to vector<2x32x16xf32>
    %292 = vector.broadcast %290 : vector<1x32x16xf32> to vector<2x32x16xf32>
    %293 = arith.mulf %291, %292 : vector<2x32x16xf32>
    %294 = arith.addf %270, %293 : vector<2x32x16xf32>
    %295 = vector.extract_strided_slice %1 {offsets = [0, 12, 0], sizes = [2, 1, 16], strides = [1, 1, 1]} : vector<2x32x16xf32> to vector<2x1x16xf32>
    %296 = vector.extract_strided_slice %5 {offsets = [12, 0, 0], sizes = [1, 32, 16], strides = [1, 1, 1]} : vector<32x32x16xf32> to vector<1x32x16xf32>
    %297 = vector.shape_cast %296 : vector<1x32x16xf32> to vector<32x16xf32>
    %298 = vector.shape_cast %297 : vector<32x16xf32> to vector<1x32x16xf32>
    %299 = vector.broadcast %295 : vector<2x1x16xf32> to vector<2x32x16xf32>
    %300 = vector.broadcast %298 : vector<1x32x16xf32> to vector<2x32x16xf32>
    %301 = arith.mulf %299, %300 : vector<2x32x16xf32>
    %302 = arith.addf %278, %301 : vector<2x32x16xf32>
    %303 = vector.extract_strided_slice %3 {offsets = [0, 12, 0], sizes = [2, 1, 16], strides = [1, 1, 1]} : vector<2x32x16xf32> to vector<2x1x16xf32>
    %304 = vector.extract_strided_slice %7 {offsets = [12, 0, 0], sizes = [1, 32, 16], strides = [1, 1, 1]} : vector<32x32x16xf32> to vector<1x32x16xf32>
    %305 = vector.shape_cast %304 : vector<1x32x16xf32> to vector<32x16xf32>
    %306 = vector.shape_cast %305 : vector<32x16xf32> to vector<1x32x16xf32>
    %307 = vector.broadcast %303 : vector<2x1x16xf32> to vector<2x32x16xf32>
    %308 = vector.broadcast %306 : vector<1x32x16xf32> to vector<2x32x16xf32>
    %309 = arith.mulf %307, %308 : vector<2x32x16xf32>
    %310 = arith.addf %286, %309 : vector<2x32x16xf32>
    %311 = vector.extract_strided_slice %8 {offsets = [0, 12, 0], sizes = [2, 1, 16], strides = [1, 1, 1]} : vector<2x32x16xf32> to vector<2x1x16xf32>
    %312 = vector.extract_strided_slice %9 {offsets = [12, 0, 0], sizes = [1, 32, 16], strides = [1, 1, 1]} : vector<32x32x16xf32> to vector<1x32x16xf32>
    %313 = vector.shape_cast %312 : vector<1x32x16xf32> to vector<32x16xf32>
    %314 = vector.shape_cast %313 : vector<32x16xf32> to vector<1x32x16xf32>
    %315 = vector.broadcast %311 : vector<2x1x16xf32> to vector<2x32x16xf32>
    %316 = vector.broadcast %314 : vector<1x32x16xf32> to vector<2x32x16xf32>
    %317 = arith.mulf %315, %316 : vector<2x32x16xf32>
    %318 = arith.addf %294, %317 : vector<2x32x16xf32>
    %319 = vector.extract_strided_slice %1 {offsets = [0, 13, 0], sizes = [2, 1, 16], strides = [1, 1, 1]} : vector<2x32x16xf32> to vector<2x1x16xf32>
    %320 = vector.extract_strided_slice %5 {offsets = [13, 0, 0], sizes = [1, 32, 16], strides = [1, 1, 1]} : vector<32x32x16xf32> to vector<1x32x16xf32>
    %321 = vector.shape_cast %320 : vector<1x32x16xf32> to vector<32x16xf32>
    %322 = vector.shape_cast %321 : vector<32x16xf32> to vector<1x32x16xf32>
    %323 = vector.broadcast %319 : vector<2x1x16xf32> to vector<2x32x16xf32>
    %324 = vector.broadcast %322 : vector<1x32x16xf32> to vector<2x32x16xf32>
    %325 = arith.mulf %323, %324 : vector<2x32x16xf32>
    %326 = arith.addf %302, %325 : vector<2x32x16xf32>
    %327 = vector.extract_strided_slice %3 {offsets = [0, 13, 0], sizes = [2, 1, 16], strides = [1, 1, 1]} : vector<2x32x16xf32> to vector<2x1x16xf32>
    %328 = vector.extract_strided_slice %7 {offsets = [13, 0, 0], sizes = [1, 32, 16], strides = [1, 1, 1]} : vector<32x32x16xf32> to vector<1x32x16xf32>
    %329 = vector.shape_cast %328 : vector<1x32x16xf32> to vector<32x16xf32>
    %330 = vector.shape_cast %329 : vector<32x16xf32> to vector<1x32x16xf32>
    %331 = vector.broadcast %327 : vector<2x1x16xf32> to vector<2x32x16xf32>
    %332 = vector.broadcast %330 : vector<1x32x16xf32> to vector<2x32x16xf32>
    %333 = arith.mulf %331, %332 : vector<2x32x16xf32>
    %334 = arith.addf %310, %333 : vector<2x32x16xf32>
    %335 = vector.extract_strided_slice %8 {offsets = [0, 13, 0], sizes = [2, 1, 16], strides = [1, 1, 1]} : vector<2x32x16xf32> to vector<2x1x16xf32>
    %336 = vector.extract_strided_slice %9 {offsets = [13, 0, 0], sizes = [1, 32, 16], strides = [1, 1, 1]} : vector<32x32x16xf32> to vector<1x32x16xf32>
    %337 = vector.shape_cast %336 : vector<1x32x16xf32> to vector<32x16xf32>
    %338 = vector.shape_cast %337 : vector<32x16xf32> to vector<1x32x16xf32>
    %339 = vector.broadcast %335 : vector<2x1x16xf32> to vector<2x32x16xf32>
    %340 = vector.broadcast %338 : vector<1x32x16xf32> to vector<2x32x16xf32>
    %341 = arith.mulf %339, %340 : vector<2x32x16xf32>
    %342 = arith.addf %318, %341 : vector<2x32x16xf32>
    %343 = vector.extract_strided_slice %1 {offsets = [0, 14, 0], sizes = [2, 1, 16], strides = [1, 1, 1]} : vector<2x32x16xf32> to vector<2x1x16xf32>
    %344 = vector.extract_strided_slice %5 {offsets = [14, 0, 0], sizes = [1, 32, 16], strides = [1, 1, 1]} : vector<32x32x16xf32> to vector<1x32x16xf32>
    %345 = vector.shape_cast %344 : vector<1x32x16xf32> to vector<32x16xf32>
    %346 = vector.shape_cast %345 : vector<32x16xf32> to vector<1x32x16xf32>
    %347 = vector.broadcast %343 : vector<2x1x16xf32> to vector<2x32x16xf32>
    %348 = vector.broadcast %346 : vector<1x32x16xf32> to vector<2x32x16xf32>
    %349 = arith.mulf %347, %348 : vector<2x32x16xf32>
    %350 = arith.addf %326, %349 : vector<2x32x16xf32>
    %351 = vector.extract_strided_slice %3 {offsets = [0, 14, 0], sizes = [2, 1, 16], strides = [1, 1, 1]} : vector<2x32x16xf32> to vector<2x1x16xf32>
    %352 = vector.extract_strided_slice %7 {offsets = [14, 0, 0], sizes = [1, 32, 16], strides = [1, 1, 1]} : vector<32x32x16xf32> to vector<1x32x16xf32>
    %353 = vector.shape_cast %352 : vector<1x32x16xf32> to vector<32x16xf32>
    %354 = vector.shape_cast %353 : vector<32x16xf32> to vector<1x32x16xf32>
    %355 = vector.broadcast %351 : vector<2x1x16xf32> to vector<2x32x16xf32>
    %356 = vector.broadcast %354 : vector<1x32x16xf32> to vector<2x32x16xf32>
    %357 = arith.mulf %355, %356 : vector<2x32x16xf32>
    %358 = arith.addf %334, %357 : vector<2x32x16xf32>
    %359 = vector.extract_strided_slice %8 {offsets = [0, 14, 0], sizes = [2, 1, 16], strides = [1, 1, 1]} : vector<2x32x16xf32> to vector<2x1x16xf32>
    %360 = vector.extract_strided_slice %9 {offsets = [14, 0, 0], sizes = [1, 32, 16], strides = [1, 1, 1]} : vector<32x32x16xf32> to vector<1x32x16xf32>
    %361 = vector.shape_cast %360 : vector<1x32x16xf32> to vector<32x16xf32>
    %362 = vector.shape_cast %361 : vector<32x16xf32> to vector<1x32x16xf32>
    %363 = vector.broadcast %359 : vector<2x1x16xf32> to vector<2x32x16xf32>
    %364 = vector.broadcast %362 : vector<1x32x16xf32> to vector<2x32x16xf32>
    %365 = arith.mulf %363, %364 : vector<2x32x16xf32>
    %366 = arith.addf %342, %365 : vector<2x32x16xf32>
    %367 = vector.extract_strided_slice %1 {offsets = [0, 15, 0], sizes = [2, 1, 16], strides = [1, 1, 1]} : vector<2x32x16xf32> to vector<2x1x16xf32>
    %368 = vector.extract_strided_slice %5 {offsets = [15, 0, 0], sizes = [1, 32, 16], strides = [1, 1, 1]} : vector<32x32x16xf32> to vector<1x32x16xf32>
    %369 = vector.shape_cast %368 : vector<1x32x16xf32> to vector<32x16xf32>
    %370 = vector.shape_cast %369 : vector<32x16xf32> to vector<1x32x16xf32>
    %371 = vector.broadcast %367 : vector<2x1x16xf32> to vector<2x32x16xf32>
    %372 = vector.broadcast %370 : vector<1x32x16xf32> to vector<2x32x16xf32>
    %373 = arith.mulf %371, %372 : vector<2x32x16xf32>
    %374 = arith.addf %350, %373 : vector<2x32x16xf32>
    %375 = vector.extract_strided_slice %3 {offsets = [0, 15, 0], sizes = [2, 1, 16], strides = [1, 1, 1]} : vector<2x32x16xf32> to vector<2x1x16xf32>
    %376 = vector.extract_strided_slice %7 {offsets = [15, 0, 0], sizes = [1, 32, 16], strides = [1, 1, 1]} : vector<32x32x16xf32> to vector<1x32x16xf32>
    %377 = vector.shape_cast %376 : vector<1x32x16xf32> to vector<32x16xf32>
    %378 = vector.shape_cast %377 : vector<32x16xf32> to vector<1x32x16xf32>
    %379 = vector.broadcast %375 : vector<2x1x16xf32> to vector<2x32x16xf32>
    %380 = vector.broadcast %378 : vector<1x32x16xf32> to vector<2x32x16xf32>
    %381 = arith.mulf %379, %380 : vector<2x32x16xf32>
    %382 = arith.addf %358, %381 : vector<2x32x16xf32>
    %383 = vector.extract_strided_slice %8 {offsets = [0, 15, 0], sizes = [2, 1, 16], strides = [1, 1, 1]} : vector<2x32x16xf32> to vector<2x1x16xf32>
    %384 = vector.extract_strided_slice %9 {offsets = [15, 0, 0], sizes = [1, 32, 16], strides = [1, 1, 1]} : vector<32x32x16xf32> to vector<1x32x16xf32>
    %385 = vector.shape_cast %384 : vector<1x32x16xf32> to vector<32x16xf32>
    %386 = vector.shape_cast %385 : vector<32x16xf32> to vector<1x32x16xf32>
    %387 = vector.broadcast %383 : vector<2x1x16xf32> to vector<2x32x16xf32>
    %388 = vector.broadcast %386 : vector<1x32x16xf32> to vector<2x32x16xf32>
    %389 = arith.mulf %387, %388 : vector<2x32x16xf32>
    %390 = arith.addf %366, %389 : vector<2x32x16xf32>
    %391 = vector.extract_strided_slice %1 {offsets = [0, 16, 0], sizes = [2, 1, 16], strides = [1, 1, 1]} : vector<2x32x16xf32> to vector<2x1x16xf32>
    %392 = vector.extract_strided_slice %5 {offsets = [16, 0, 0], sizes = [1, 32, 16], strides = [1, 1, 1]} : vector<32x32x16xf32> to vector<1x32x16xf32>
    %393 = vector.shape_cast %392 : vector<1x32x16xf32> to vector<32x16xf32>
    %394 = vector.shape_cast %393 : vector<32x16xf32> to vector<1x32x16xf32>
    %395 = vector.broadcast %391 : vector<2x1x16xf32> to vector<2x32x16xf32>
    %396 = vector.broadcast %394 : vector<1x32x16xf32> to vector<2x32x16xf32>
    %397 = arith.mulf %395, %396 : vector<2x32x16xf32>
    %398 = arith.addf %374, %397 : vector<2x32x16xf32>
    %399 = vector.extract_strided_slice %3 {offsets = [0, 16, 0], sizes = [2, 1, 16], strides = [1, 1, 1]} : vector<2x32x16xf32> to vector<2x1x16xf32>
    %400 = vector.extract_strided_slice %7 {offsets = [16, 0, 0], sizes = [1, 32, 16], strides = [1, 1, 1]} : vector<32x32x16xf32> to vector<1x32x16xf32>
    %401 = vector.shape_cast %400 : vector<1x32x16xf32> to vector<32x16xf32>
    %402 = vector.shape_cast %401 : vector<32x16xf32> to vector<1x32x16xf32>
    %403 = vector.broadcast %399 : vector<2x1x16xf32> to vector<2x32x16xf32>
    %404 = vector.broadcast %402 : vector<1x32x16xf32> to vector<2x32x16xf32>
    %405 = arith.mulf %403, %404 : vector<2x32x16xf32>
    %406 = arith.addf %382, %405 : vector<2x32x16xf32>
    %407 = vector.extract_strided_slice %8 {offsets = [0, 16, 0], sizes = [2, 1, 16], strides = [1, 1, 1]} : vector<2x32x16xf32> to vector<2x1x16xf32>
    %408 = vector.extract_strided_slice %9 {offsets = [16, 0, 0], sizes = [1, 32, 16], strides = [1, 1, 1]} : vector<32x32x16xf32> to vector<1x32x16xf32>
    %409 = vector.shape_cast %408 : vector<1x32x16xf32> to vector<32x16xf32>
    %410 = vector.shape_cast %409 : vector<32x16xf32> to vector<1x32x16xf32>
    %411 = vector.broadcast %407 : vector<2x1x16xf32> to vector<2x32x16xf32>
    %412 = vector.broadcast %410 : vector<1x32x16xf32> to vector<2x32x16xf32>
    %413 = arith.mulf %411, %412 : vector<2x32x16xf32>
    %414 = arith.addf %390, %413 : vector<2x32x16xf32>
    %415 = vector.extract_strided_slice %1 {offsets = [0, 17, 0], sizes = [2, 1, 16], strides = [1, 1, 1]} : vector<2x32x16xf32> to vector<2x1x16xf32>
    %416 = vector.extract_strided_slice %5 {offsets = [17, 0, 0], sizes = [1, 32, 16], strides = [1, 1, 1]} : vector<32x32x16xf32> to vector<1x32x16xf32>
    %417 = vector.shape_cast %416 : vector<1x32x16xf32> to vector<32x16xf32>
    %418 = vector.shape_cast %417 : vector<32x16xf32> to vector<1x32x16xf32>
    %419 = vector.broadcast %415 : vector<2x1x16xf32> to vector<2x32x16xf32>
    %420 = vector.broadcast %418 : vector<1x32x16xf32> to vector<2x32x16xf32>
    %421 = arith.mulf %419, %420 : vector<2x32x16xf32>
    %422 = arith.addf %398, %421 : vector<2x32x16xf32>
    %423 = vector.extract_strided_slice %3 {offsets = [0, 17, 0], sizes = [2, 1, 16], strides = [1, 1, 1]} : vector<2x32x16xf32> to vector<2x1x16xf32>
    %424 = vector.extract_strided_slice %7 {offsets = [17, 0, 0], sizes = [1, 32, 16], strides = [1, 1, 1]} : vector<32x32x16xf32> to vector<1x32x16xf32>
    %425 = vector.shape_cast %424 : vector<1x32x16xf32> to vector<32x16xf32>
    %426 = vector.shape_cast %425 : vector<32x16xf32> to vector<1x32x16xf32>
    %427 = vector.broadcast %423 : vector<2x1x16xf32> to vector<2x32x16xf32>
    %428 = vector.broadcast %426 : vector<1x32x16xf32> to vector<2x32x16xf32>
    %429 = arith.mulf %427, %428 : vector<2x32x16xf32>
    %430 = arith.addf %406, %429 : vector<2x32x16xf32>
    %431 = vector.extract_strided_slice %8 {offsets = [0, 17, 0], sizes = [2, 1, 16], strides = [1, 1, 1]} : vector<2x32x16xf32> to vector<2x1x16xf32>
    %432 = vector.extract_strided_slice %9 {offsets = [17, 0, 0], sizes = [1, 32, 16], strides = [1, 1, 1]} : vector<32x32x16xf32> to vector<1x32x16xf32>
    %433 = vector.shape_cast %432 : vector<1x32x16xf32> to vector<32x16xf32>
    %434 = vector.shape_cast %433 : vector<32x16xf32> to vector<1x32x16xf32>
    %435 = vector.broadcast %431 : vector<2x1x16xf32> to vector<2x32x16xf32>
    %436 = vector.broadcast %434 : vector<1x32x16xf32> to vector<2x32x16xf32>
    %437 = arith.mulf %435, %436 : vector<2x32x16xf32>
    %438 = arith.addf %414, %437 : vector<2x32x16xf32>
    %439 = vector.extract_strided_slice %1 {offsets = [0, 18, 0], sizes = [2, 1, 16], strides = [1, 1, 1]} : vector<2x32x16xf32> to vector<2x1x16xf32>
    %440 = vector.extract_strided_slice %5 {offsets = [18, 0, 0], sizes = [1, 32, 16], strides = [1, 1, 1]} : vector<32x32x16xf32> to vector<1x32x16xf32>
    %441 = vector.shape_cast %440 : vector<1x32x16xf32> to vector<32x16xf32>
    %442 = vector.shape_cast %441 : vector<32x16xf32> to vector<1x32x16xf32>
    %443 = vector.broadcast %439 : vector<2x1x16xf32> to vector<2x32x16xf32>
    %444 = vector.broadcast %442 : vector<1x32x16xf32> to vector<2x32x16xf32>
    %445 = arith.mulf %443, %444 : vector<2x32x16xf32>
    %446 = arith.addf %422, %445 : vector<2x32x16xf32>
    %447 = vector.extract_strided_slice %3 {offsets = [0, 18, 0], sizes = [2, 1, 16], strides = [1, 1, 1]} : vector<2x32x16xf32> to vector<2x1x16xf32>
    %448 = vector.extract_strided_slice %7 {offsets = [18, 0, 0], sizes = [1, 32, 16], strides = [1, 1, 1]} : vector<32x32x16xf32> to vector<1x32x16xf32>
    %449 = vector.shape_cast %448 : vector<1x32x16xf32> to vector<32x16xf32>
    %450 = vector.shape_cast %449 : vector<32x16xf32> to vector<1x32x16xf32>
    %451 = vector.broadcast %447 : vector<2x1x16xf32> to vector<2x32x16xf32>
    %452 = vector.broadcast %450 : vector<1x32x16xf32> to vector<2x32x16xf32>
    %453 = arith.mulf %451, %452 : vector<2x32x16xf32>
    %454 = arith.addf %430, %453 : vector<2x32x16xf32>
    %455 = vector.extract_strided_slice %8 {offsets = [0, 18, 0], sizes = [2, 1, 16], strides = [1, 1, 1]} : vector<2x32x16xf32> to vector<2x1x16xf32>
    %456 = vector.extract_strided_slice %9 {offsets = [18, 0, 0], sizes = [1, 32, 16], strides = [1, 1, 1]} : vector<32x32x16xf32> to vector<1x32x16xf32>
    %457 = vector.shape_cast %456 : vector<1x32x16xf32> to vector<32x16xf32>
    %458 = vector.shape_cast %457 : vector<32x16xf32> to vector<1x32x16xf32>
    %459 = vector.broadcast %455 : vector<2x1x16xf32> to vector<2x32x16xf32>
    %460 = vector.broadcast %458 : vector<1x32x16xf32> to vector<2x32x16xf32>
    %461 = arith.mulf %459, %460 : vector<2x32x16xf32>
    %462 = arith.addf %438, %461 : vector<2x32x16xf32>
    %463 = vector.extract_strided_slice %1 {offsets = [0, 19, 0], sizes = [2, 1, 16], strides = [1, 1, 1]} : vector<2x32x16xf32> to vector<2x1x16xf32>
    %464 = vector.extract_strided_slice %5 {offsets = [19, 0, 0], sizes = [1, 32, 16], strides = [1, 1, 1]} : vector<32x32x16xf32> to vector<1x32x16xf32>
    %465 = vector.shape_cast %464 : vector<1x32x16xf32> to vector<32x16xf32>
    %466 = vector.shape_cast %465 : vector<32x16xf32> to vector<1x32x16xf32>
    %467 = vector.broadcast %463 : vector<2x1x16xf32> to vector<2x32x16xf32>
    %468 = vector.broadcast %466 : vector<1x32x16xf32> to vector<2x32x16xf32>
    %469 = arith.mulf %467, %468 : vector<2x32x16xf32>
    %470 = arith.addf %446, %469 : vector<2x32x16xf32>
    %471 = vector.extract_strided_slice %3 {offsets = [0, 19, 0], sizes = [2, 1, 16], strides = [1, 1, 1]} : vector<2x32x16xf32> to vector<2x1x16xf32>
    %472 = vector.extract_strided_slice %7 {offsets = [19, 0, 0], sizes = [1, 32, 16], strides = [1, 1, 1]} : vector<32x32x16xf32> to vector<1x32x16xf32>
    %473 = vector.shape_cast %472 : vector<1x32x16xf32> to vector<32x16xf32>
    %474 = vector.shape_cast %473 : vector<32x16xf32> to vector<1x32x16xf32>
    %475 = vector.broadcast %471 : vector<2x1x16xf32> to vector<2x32x16xf32>
    %476 = vector.broadcast %474 : vector<1x32x16xf32> to vector<2x32x16xf32>
    %477 = arith.mulf %475, %476 : vector<2x32x16xf32>
    %478 = arith.addf %454, %477 : vector<2x32x16xf32>
    %479 = vector.extract_strided_slice %8 {offsets = [0, 19, 0], sizes = [2, 1, 16], strides = [1, 1, 1]} : vector<2x32x16xf32> to vector<2x1x16xf32>
    %480 = vector.extract_strided_slice %9 {offsets = [19, 0, 0], sizes = [1, 32, 16], strides = [1, 1, 1]} : vector<32x32x16xf32> to vector<1x32x16xf32>
    %481 = vector.shape_cast %480 : vector<1x32x16xf32> to vector<32x16xf32>
    %482 = vector.shape_cast %481 : vector<32x16xf32> to vector<1x32x16xf32>
    %483 = vector.broadcast %479 : vector<2x1x16xf32> to vector<2x32x16xf32>
    %484 = vector.broadcast %482 : vector<1x32x16xf32> to vector<2x32x16xf32>
    %485 = arith.mulf %483, %484 : vector<2x32x16xf32>
    %486 = arith.addf %462, %485 : vector<2x32x16xf32>
    %487 = vector.extract_strided_slice %1 {offsets = [0, 20, 0], sizes = [2, 1, 16], strides = [1, 1, 1]} : vector<2x32x16xf32> to vector<2x1x16xf32>
    %488 = vector.extract_strided_slice %5 {offsets = [20, 0, 0], sizes = [1, 32, 16], strides = [1, 1, 1]} : vector<32x32x16xf32> to vector<1x32x16xf32>
    %489 = vector.shape_cast %488 : vector<1x32x16xf32> to vector<32x16xf32>
    %490 = vector.shape_cast %489 : vector<32x16xf32> to vector<1x32x16xf32>
    %491 = vector.broadcast %487 : vector<2x1x16xf32> to vector<2x32x16xf32>
    %492 = vector.broadcast %490 : vector<1x32x16xf32> to vector<2x32x16xf32>
    %493 = arith.mulf %491, %492 : vector<2x32x16xf32>
    %494 = arith.addf %470, %493 : vector<2x32x16xf32>
    %495 = vector.extract_strided_slice %3 {offsets = [0, 20, 0], sizes = [2, 1, 16], strides = [1, 1, 1]} : vector<2x32x16xf32> to vector<2x1x16xf32>
    %496 = vector.extract_strided_slice %7 {offsets = [20, 0, 0], sizes = [1, 32, 16], strides = [1, 1, 1]} : vector<32x32x16xf32> to vector<1x32x16xf32>
    %497 = vector.shape_cast %496 : vector<1x32x16xf32> to vector<32x16xf32>
    %498 = vector.shape_cast %497 : vector<32x16xf32> to vector<1x32x16xf32>
    %499 = vector.broadcast %495 : vector<2x1x16xf32> to vector<2x32x16xf32>
    %500 = vector.broadcast %498 : vector<1x32x16xf32> to vector<2x32x16xf32>
    %501 = arith.mulf %499, %500 : vector<2x32x16xf32>
    %502 = arith.addf %478, %501 : vector<2x32x16xf32>
    %503 = vector.extract_strided_slice %8 {offsets = [0, 20, 0], sizes = [2, 1, 16], strides = [1, 1, 1]} : vector<2x32x16xf32> to vector<2x1x16xf32>
    %504 = vector.extract_strided_slice %9 {offsets = [20, 0, 0], sizes = [1, 32, 16], strides = [1, 1, 1]} : vector<32x32x16xf32> to vector<1x32x16xf32>
    %505 = vector.shape_cast %504 : vector<1x32x16xf32> to vector<32x16xf32>
    %506 = vector.shape_cast %505 : vector<32x16xf32> to vector<1x32x16xf32>
    %507 = vector.broadcast %503 : vector<2x1x16xf32> to vector<2x32x16xf32>
    %508 = vector.broadcast %506 : vector<1x32x16xf32> to vector<2x32x16xf32>
    %509 = arith.mulf %507, %508 : vector<2x32x16xf32>
    %510 = arith.addf %486, %509 : vector<2x32x16xf32>
    %511 = vector.extract_strided_slice %1 {offsets = [0, 21, 0], sizes = [2, 1, 16], strides = [1, 1, 1]} : vector<2x32x16xf32> to vector<2x1x16xf32>
    %512 = vector.extract_strided_slice %5 {offsets = [21, 0, 0], sizes = [1, 32, 16], strides = [1, 1, 1]} : vector<32x32x16xf32> to vector<1x32x16xf32>
    %513 = vector.shape_cast %512 : vector<1x32x16xf32> to vector<32x16xf32>
    %514 = vector.shape_cast %513 : vector<32x16xf32> to vector<1x32x16xf32>
    %515 = vector.broadcast %511 : vector<2x1x16xf32> to vector<2x32x16xf32>
    %516 = vector.broadcast %514 : vector<1x32x16xf32> to vector<2x32x16xf32>
    %517 = arith.mulf %515, %516 : vector<2x32x16xf32>
    %518 = arith.addf %494, %517 : vector<2x32x16xf32>
    %519 = vector.extract_strided_slice %3 {offsets = [0, 21, 0], sizes = [2, 1, 16], strides = [1, 1, 1]} : vector<2x32x16xf32> to vector<2x1x16xf32>
    %520 = vector.extract_strided_slice %7 {offsets = [21, 0, 0], sizes = [1, 32, 16], strides = [1, 1, 1]} : vector<32x32x16xf32> to vector<1x32x16xf32>
    %521 = vector.shape_cast %520 : vector<1x32x16xf32> to vector<32x16xf32>
    %522 = vector.shape_cast %521 : vector<32x16xf32> to vector<1x32x16xf32>
    %523 = vector.broadcast %519 : vector<2x1x16xf32> to vector<2x32x16xf32>
    %524 = vector.broadcast %522 : vector<1x32x16xf32> to vector<2x32x16xf32>
    %525 = arith.mulf %523, %524 : vector<2x32x16xf32>
    %526 = arith.addf %502, %525 : vector<2x32x16xf32>
    %527 = vector.extract_strided_slice %8 {offsets = [0, 21, 0], sizes = [2, 1, 16], strides = [1, 1, 1]} : vector<2x32x16xf32> to vector<2x1x16xf32>
    %528 = vector.extract_strided_slice %9 {offsets = [21, 0, 0], sizes = [1, 32, 16], strides = [1, 1, 1]} : vector<32x32x16xf32> to vector<1x32x16xf32>
    %529 = vector.shape_cast %528 : vector<1x32x16xf32> to vector<32x16xf32>
    %530 = vector.shape_cast %529 : vector<32x16xf32> to vector<1x32x16xf32>
    %531 = vector.broadcast %527 : vector<2x1x16xf32> to vector<2x32x16xf32>
    %532 = vector.broadcast %530 : vector<1x32x16xf32> to vector<2x32x16xf32>
    %533 = arith.mulf %531, %532 : vector<2x32x16xf32>
    %534 = arith.addf %510, %533 : vector<2x32x16xf32>
    %535 = vector.extract_strided_slice %1 {offsets = [0, 22, 0], sizes = [2, 1, 16], strides = [1, 1, 1]} : vector<2x32x16xf32> to vector<2x1x16xf32>
    %536 = vector.extract_strided_slice %5 {offsets = [22, 0, 0], sizes = [1, 32, 16], strides = [1, 1, 1]} : vector<32x32x16xf32> to vector<1x32x16xf32>
    %537 = vector.shape_cast %536 : vector<1x32x16xf32> to vector<32x16xf32>
    %538 = vector.shape_cast %537 : vector<32x16xf32> to vector<1x32x16xf32>
    %539 = vector.broadcast %535 : vector<2x1x16xf32> to vector<2x32x16xf32>
    %540 = vector.broadcast %538 : vector<1x32x16xf32> to vector<2x32x16xf32>
    %541 = arith.mulf %539, %540 : vector<2x32x16xf32>
    %542 = arith.addf %518, %541 : vector<2x32x16xf32>
    %543 = vector.extract_strided_slice %3 {offsets = [0, 22, 0], sizes = [2, 1, 16], strides = [1, 1, 1]} : vector<2x32x16xf32> to vector<2x1x16xf32>
    %544 = vector.extract_strided_slice %7 {offsets = [22, 0, 0], sizes = [1, 32, 16], strides = [1, 1, 1]} : vector<32x32x16xf32> to vector<1x32x16xf32>
    %545 = vector.shape_cast %544 : vector<1x32x16xf32> to vector<32x16xf32>
    %546 = vector.shape_cast %545 : vector<32x16xf32> to vector<1x32x16xf32>
    %547 = vector.broadcast %543 : vector<2x1x16xf32> to vector<2x32x16xf32>
    %548 = vector.broadcast %546 : vector<1x32x16xf32> to vector<2x32x16xf32>
    %549 = arith.mulf %547, %548 : vector<2x32x16xf32>
    %550 = arith.addf %526, %549 : vector<2x32x16xf32>
    %551 = vector.extract_strided_slice %8 {offsets = [0, 22, 0], sizes = [2, 1, 16], strides = [1, 1, 1]} : vector<2x32x16xf32> to vector<2x1x16xf32>
    %552 = vector.extract_strided_slice %9 {offsets = [22, 0, 0], sizes = [1, 32, 16], strides = [1, 1, 1]} : vector<32x32x16xf32> to vector<1x32x16xf32>
    %553 = vector.shape_cast %552 : vector<1x32x16xf32> to vector<32x16xf32>
    %554 = vector.shape_cast %553 : vector<32x16xf32> to vector<1x32x16xf32>
    %555 = vector.broadcast %551 : vector<2x1x16xf32> to vector<2x32x16xf32>
    %556 = vector.broadcast %554 : vector<1x32x16xf32> to vector<2x32x16xf32>
    %557 = arith.mulf %555, %556 : vector<2x32x16xf32>
    %558 = arith.addf %534, %557 : vector<2x32x16xf32>
    %559 = vector.extract_strided_slice %1 {offsets = [0, 23, 0], sizes = [2, 1, 16], strides = [1, 1, 1]} : vector<2x32x16xf32> to vector<2x1x16xf32>
    %560 = vector.extract_strided_slice %5 {offsets = [23, 0, 0], sizes = [1, 32, 16], strides = [1, 1, 1]} : vector<32x32x16xf32> to vector<1x32x16xf32>
    %561 = vector.shape_cast %560 : vector<1x32x16xf32> to vector<32x16xf32>
    %562 = vector.shape_cast %561 : vector<32x16xf32> to vector<1x32x16xf32>
    %563 = vector.broadcast %559 : vector<2x1x16xf32> to vector<2x32x16xf32>
    %564 = vector.broadcast %562 : vector<1x32x16xf32> to vector<2x32x16xf32>
    %565 = arith.mulf %563, %564 : vector<2x32x16xf32>
    %566 = arith.addf %542, %565 : vector<2x32x16xf32>
    %567 = vector.extract_strided_slice %3 {offsets = [0, 23, 0], sizes = [2, 1, 16], strides = [1, 1, 1]} : vector<2x32x16xf32> to vector<2x1x16xf32>
    %568 = vector.extract_strided_slice %7 {offsets = [23, 0, 0], sizes = [1, 32, 16], strides = [1, 1, 1]} : vector<32x32x16xf32> to vector<1x32x16xf32>
    %569 = vector.shape_cast %568 : vector<1x32x16xf32> to vector<32x16xf32>
    %570 = vector.shape_cast %569 : vector<32x16xf32> to vector<1x32x16xf32>
    %571 = vector.broadcast %567 : vector<2x1x16xf32> to vector<2x32x16xf32>
    %572 = vector.broadcast %570 : vector<1x32x16xf32> to vector<2x32x16xf32>
    %573 = arith.mulf %571, %572 : vector<2x32x16xf32>
    %574 = arith.addf %550, %573 : vector<2x32x16xf32>
    %575 = vector.extract_strided_slice %8 {offsets = [0, 23, 0], sizes = [2, 1, 16], strides = [1, 1, 1]} : vector<2x32x16xf32> to vector<2x1x16xf32>
    %576 = vector.extract_strided_slice %9 {offsets = [23, 0, 0], sizes = [1, 32, 16], strides = [1, 1, 1]} : vector<32x32x16xf32> to vector<1x32x16xf32>
    %577 = vector.shape_cast %576 : vector<1x32x16xf32> to vector<32x16xf32>
    %578 = vector.shape_cast %577 : vector<32x16xf32> to vector<1x32x16xf32>
    %579 = vector.broadcast %575 : vector<2x1x16xf32> to vector<2x32x16xf32>
    %580 = vector.broadcast %578 : vector<1x32x16xf32> to vector<2x32x16xf32>
    %581 = arith.mulf %579, %580 : vector<2x32x16xf32>
    %582 = arith.addf %558, %581 : vector<2x32x16xf32>
    %583 = vector.extract_strided_slice %1 {offsets = [0, 24, 0], sizes = [2, 1, 16], strides = [1, 1, 1]} : vector<2x32x16xf32> to vector<2x1x16xf32>
    %584 = vector.extract_strided_slice %5 {offsets = [24, 0, 0], sizes = [1, 32, 16], strides = [1, 1, 1]} : vector<32x32x16xf32> to vector<1x32x16xf32>
    %585 = vector.shape_cast %584 : vector<1x32x16xf32> to vector<32x16xf32>
    %586 = vector.shape_cast %585 : vector<32x16xf32> to vector<1x32x16xf32>
    %587 = vector.broadcast %583 : vector<2x1x16xf32> to vector<2x32x16xf32>
    %588 = vector.broadcast %586 : vector<1x32x16xf32> to vector<2x32x16xf32>
    %589 = arith.mulf %587, %588 : vector<2x32x16xf32>
    %590 = arith.addf %566, %589 : vector<2x32x16xf32>
    %591 = vector.extract_strided_slice %3 {offsets = [0, 24, 0], sizes = [2, 1, 16], strides = [1, 1, 1]} : vector<2x32x16xf32> to vector<2x1x16xf32>
    %592 = vector.extract_strided_slice %7 {offsets = [24, 0, 0], sizes = [1, 32, 16], strides = [1, 1, 1]} : vector<32x32x16xf32> to vector<1x32x16xf32>
    %593 = vector.shape_cast %592 : vector<1x32x16xf32> to vector<32x16xf32>
    %594 = vector.shape_cast %593 : vector<32x16xf32> to vector<1x32x16xf32>
    %595 = vector.broadcast %591 : vector<2x1x16xf32> to vector<2x32x16xf32>
    %596 = vector.broadcast %594 : vector<1x32x16xf32> to vector<2x32x16xf32>
    %597 = arith.mulf %595, %596 : vector<2x32x16xf32>
    %598 = arith.addf %574, %597 : vector<2x32x16xf32>
    %599 = vector.extract_strided_slice %8 {offsets = [0, 24, 0], sizes = [2, 1, 16], strides = [1, 1, 1]} : vector<2x32x16xf32> to vector<2x1x16xf32>
    %600 = vector.extract_strided_slice %9 {offsets = [24, 0, 0], sizes = [1, 32, 16], strides = [1, 1, 1]} : vector<32x32x16xf32> to vector<1x32x16xf32>
    %601 = vector.shape_cast %600 : vector<1x32x16xf32> to vector<32x16xf32>
    %602 = vector.shape_cast %601 : vector<32x16xf32> to vector<1x32x16xf32>
    %603 = vector.broadcast %599 : vector<2x1x16xf32> to vector<2x32x16xf32>
    %604 = vector.broadcast %602 : vector<1x32x16xf32> to vector<2x32x16xf32>
    %605 = arith.mulf %603, %604 : vector<2x32x16xf32>
    %606 = arith.addf %582, %605 : vector<2x32x16xf32>
    %607 = vector.extract_strided_slice %1 {offsets = [0, 25, 0], sizes = [2, 1, 16], strides = [1, 1, 1]} : vector<2x32x16xf32> to vector<2x1x16xf32>
    %608 = vector.extract_strided_slice %5 {offsets = [25, 0, 0], sizes = [1, 32, 16], strides = [1, 1, 1]} : vector<32x32x16xf32> to vector<1x32x16xf32>
    %609 = vector.shape_cast %608 : vector<1x32x16xf32> to vector<32x16xf32>
    %610 = vector.shape_cast %609 : vector<32x16xf32> to vector<1x32x16xf32>
    %611 = vector.broadcast %607 : vector<2x1x16xf32> to vector<2x32x16xf32>
    %612 = vector.broadcast %610 : vector<1x32x16xf32> to vector<2x32x16xf32>
    %613 = arith.mulf %611, %612 : vector<2x32x16xf32>
    %614 = arith.addf %590, %613 : vector<2x32x16xf32>
    %615 = vector.extract_strided_slice %3 {offsets = [0, 25, 0], sizes = [2, 1, 16], strides = [1, 1, 1]} : vector<2x32x16xf32> to vector<2x1x16xf32>
    %616 = vector.extract_strided_slice %7 {offsets = [25, 0, 0], sizes = [1, 32, 16], strides = [1, 1, 1]} : vector<32x32x16xf32> to vector<1x32x16xf32>
    %617 = vector.shape_cast %616 : vector<1x32x16xf32> to vector<32x16xf32>
    %618 = vector.shape_cast %617 : vector<32x16xf32> to vector<1x32x16xf32>
    %619 = vector.broadcast %615 : vector<2x1x16xf32> to vector<2x32x16xf32>
    %620 = vector.broadcast %618 : vector<1x32x16xf32> to vector<2x32x16xf32>
    %621 = arith.mulf %619, %620 : vector<2x32x16xf32>
    %622 = arith.addf %598, %621 : vector<2x32x16xf32>
    %623 = vector.extract_strided_slice %8 {offsets = [0, 25, 0], sizes = [2, 1, 16], strides = [1, 1, 1]} : vector<2x32x16xf32> to vector<2x1x16xf32>
    %624 = vector.extract_strided_slice %9 {offsets = [25, 0, 0], sizes = [1, 32, 16], strides = [1, 1, 1]} : vector<32x32x16xf32> to vector<1x32x16xf32>
    %625 = vector.shape_cast %624 : vector<1x32x16xf32> to vector<32x16xf32>
    %626 = vector.shape_cast %625 : vector<32x16xf32> to vector<1x32x16xf32>
    %627 = vector.broadcast %623 : vector<2x1x16xf32> to vector<2x32x16xf32>
    %628 = vector.broadcast %626 : vector<1x32x16xf32> to vector<2x32x16xf32>
    %629 = arith.mulf %627, %628 : vector<2x32x16xf32>
    %630 = arith.addf %606, %629 : vector<2x32x16xf32>
    %631 = vector.extract_strided_slice %1 {offsets = [0, 26, 0], sizes = [2, 1, 16], strides = [1, 1, 1]} : vector<2x32x16xf32> to vector<2x1x16xf32>
    %632 = vector.extract_strided_slice %5 {offsets = [26, 0, 0], sizes = [1, 32, 16], strides = [1, 1, 1]} : vector<32x32x16xf32> to vector<1x32x16xf32>
    %633 = vector.shape_cast %632 : vector<1x32x16xf32> to vector<32x16xf32>
    %634 = vector.shape_cast %633 : vector<32x16xf32> to vector<1x32x16xf32>
    %635 = vector.broadcast %631 : vector<2x1x16xf32> to vector<2x32x16xf32>
    %636 = vector.broadcast %634 : vector<1x32x16xf32> to vector<2x32x16xf32>
    %637 = arith.mulf %635, %636 : vector<2x32x16xf32>
    %638 = arith.addf %614, %637 : vector<2x32x16xf32>
    %639 = vector.extract_strided_slice %3 {offsets = [0, 26, 0], sizes = [2, 1, 16], strides = [1, 1, 1]} : vector<2x32x16xf32> to vector<2x1x16xf32>
    %640 = vector.extract_strided_slice %7 {offsets = [26, 0, 0], sizes = [1, 32, 16], strides = [1, 1, 1]} : vector<32x32x16xf32> to vector<1x32x16xf32>
    %641 = vector.shape_cast %640 : vector<1x32x16xf32> to vector<32x16xf32>
    %642 = vector.shape_cast %641 : vector<32x16xf32> to vector<1x32x16xf32>
    %643 = vector.broadcast %639 : vector<2x1x16xf32> to vector<2x32x16xf32>
    %644 = vector.broadcast %642 : vector<1x32x16xf32> to vector<2x32x16xf32>
    %645 = arith.mulf %643, %644 : vector<2x32x16xf32>
    %646 = arith.addf %622, %645 : vector<2x32x16xf32>
    %647 = vector.extract_strided_slice %8 {offsets = [0, 26, 0], sizes = [2, 1, 16], strides = [1, 1, 1]} : vector<2x32x16xf32> to vector<2x1x16xf32>
    %648 = vector.extract_strided_slice %9 {offsets = [26, 0, 0], sizes = [1, 32, 16], strides = [1, 1, 1]} : vector<32x32x16xf32> to vector<1x32x16xf32>
    %649 = vector.shape_cast %648 : vector<1x32x16xf32> to vector<32x16xf32>
    %650 = vector.shape_cast %649 : vector<32x16xf32> to vector<1x32x16xf32>
    %651 = vector.broadcast %647 : vector<2x1x16xf32> to vector<2x32x16xf32>
    %652 = vector.broadcast %650 : vector<1x32x16xf32> to vector<2x32x16xf32>
    %653 = arith.mulf %651, %652 : vector<2x32x16xf32>
    %654 = arith.addf %630, %653 : vector<2x32x16xf32>
    %655 = vector.extract_strided_slice %1 {offsets = [0, 27, 0], sizes = [2, 1, 16], strides = [1, 1, 1]} : vector<2x32x16xf32> to vector<2x1x16xf32>
    %656 = vector.extract_strided_slice %5 {offsets = [27, 0, 0], sizes = [1, 32, 16], strides = [1, 1, 1]} : vector<32x32x16xf32> to vector<1x32x16xf32>
    %657 = vector.shape_cast %656 : vector<1x32x16xf32> to vector<32x16xf32>
    %658 = vector.shape_cast %657 : vector<32x16xf32> to vector<1x32x16xf32>
    %659 = vector.broadcast %655 : vector<2x1x16xf32> to vector<2x32x16xf32>
    %660 = vector.broadcast %658 : vector<1x32x16xf32> to vector<2x32x16xf32>
    %661 = arith.mulf %659, %660 : vector<2x32x16xf32>
    %662 = arith.addf %638, %661 : vector<2x32x16xf32>
    %663 = vector.extract_strided_slice %3 {offsets = [0, 27, 0], sizes = [2, 1, 16], strides = [1, 1, 1]} : vector<2x32x16xf32> to vector<2x1x16xf32>
    %664 = vector.extract_strided_slice %7 {offsets = [27, 0, 0], sizes = [1, 32, 16], strides = [1, 1, 1]} : vector<32x32x16xf32> to vector<1x32x16xf32>
    %665 = vector.shape_cast %664 : vector<1x32x16xf32> to vector<32x16xf32>
    %666 = vector.shape_cast %665 : vector<32x16xf32> to vector<1x32x16xf32>
    %667 = vector.broadcast %663 : vector<2x1x16xf32> to vector<2x32x16xf32>
    %668 = vector.broadcast %666 : vector<1x32x16xf32> to vector<2x32x16xf32>
    %669 = arith.mulf %667, %668 : vector<2x32x16xf32>
    %670 = arith.addf %646, %669 : vector<2x32x16xf32>
    %671 = vector.extract_strided_slice %8 {offsets = [0, 27, 0], sizes = [2, 1, 16], strides = [1, 1, 1]} : vector<2x32x16xf32> to vector<2x1x16xf32>
    %672 = vector.extract_strided_slice %9 {offsets = [27, 0, 0], sizes = [1, 32, 16], strides = [1, 1, 1]} : vector<32x32x16xf32> to vector<1x32x16xf32>
    %673 = vector.shape_cast %672 : vector<1x32x16xf32> to vector<32x16xf32>
    %674 = vector.shape_cast %673 : vector<32x16xf32> to vector<1x32x16xf32>
    %675 = vector.broadcast %671 : vector<2x1x16xf32> to vector<2x32x16xf32>
    %676 = vector.broadcast %674 : vector<1x32x16xf32> to vector<2x32x16xf32>
    %677 = arith.mulf %675, %676 : vector<2x32x16xf32>
    %678 = arith.addf %654, %677 : vector<2x32x16xf32>
    %679 = vector.extract_strided_slice %1 {offsets = [0, 28, 0], sizes = [2, 1, 16], strides = [1, 1, 1]} : vector<2x32x16xf32> to vector<2x1x16xf32>
    %680 = vector.extract_strided_slice %5 {offsets = [28, 0, 0], sizes = [1, 32, 16], strides = [1, 1, 1]} : vector<32x32x16xf32> to vector<1x32x16xf32>
    %681 = vector.shape_cast %680 : vector<1x32x16xf32> to vector<32x16xf32>
    %682 = vector.shape_cast %681 : vector<32x16xf32> to vector<1x32x16xf32>
    %683 = vector.broadcast %679 : vector<2x1x16xf32> to vector<2x32x16xf32>
    %684 = vector.broadcast %682 : vector<1x32x16xf32> to vector<2x32x16xf32>
    %685 = arith.mulf %683, %684 : vector<2x32x16xf32>
    %686 = arith.addf %662, %685 : vector<2x32x16xf32>
    %687 = vector.extract_strided_slice %3 {offsets = [0, 28, 0], sizes = [2, 1, 16], strides = [1, 1, 1]} : vector<2x32x16xf32> to vector<2x1x16xf32>
    %688 = vector.extract_strided_slice %7 {offsets = [28, 0, 0], sizes = [1, 32, 16], strides = [1, 1, 1]} : vector<32x32x16xf32> to vector<1x32x16xf32>
    %689 = vector.shape_cast %688 : vector<1x32x16xf32> to vector<32x16xf32>
    %690 = vector.shape_cast %689 : vector<32x16xf32> to vector<1x32x16xf32>
    %691 = vector.broadcast %687 : vector<2x1x16xf32> to vector<2x32x16xf32>
    %692 = vector.broadcast %690 : vector<1x32x16xf32> to vector<2x32x16xf32>
    %693 = arith.mulf %691, %692 : vector<2x32x16xf32>
    %694 = arith.addf %670, %693 : vector<2x32x16xf32>
    %695 = vector.extract_strided_slice %8 {offsets = [0, 28, 0], sizes = [2, 1, 16], strides = [1, 1, 1]} : vector<2x32x16xf32> to vector<2x1x16xf32>
    %696 = vector.extract_strided_slice %9 {offsets = [28, 0, 0], sizes = [1, 32, 16], strides = [1, 1, 1]} : vector<32x32x16xf32> to vector<1x32x16xf32>
    %697 = vector.shape_cast %696 : vector<1x32x16xf32> to vector<32x16xf32>
    %698 = vector.shape_cast %697 : vector<32x16xf32> to vector<1x32x16xf32>
    %699 = vector.broadcast %695 : vector<2x1x16xf32> to vector<2x32x16xf32>
    %700 = vector.broadcast %698 : vector<1x32x16xf32> to vector<2x32x16xf32>
    %701 = arith.mulf %699, %700 : vector<2x32x16xf32>
    %702 = arith.addf %678, %701 : vector<2x32x16xf32>
    %703 = vector.extract_strided_slice %1 {offsets = [0, 29, 0], sizes = [2, 1, 16], strides = [1, 1, 1]} : vector<2x32x16xf32> to vector<2x1x16xf32>
    %704 = vector.extract_strided_slice %5 {offsets = [29, 0, 0], sizes = [1, 32, 16], strides = [1, 1, 1]} : vector<32x32x16xf32> to vector<1x32x16xf32>
    %705 = vector.shape_cast %704 : vector<1x32x16xf32> to vector<32x16xf32>
    %706 = vector.shape_cast %705 : vector<32x16xf32> to vector<1x32x16xf32>
    %707 = vector.broadcast %703 : vector<2x1x16xf32> to vector<2x32x16xf32>
    %708 = vector.broadcast %706 : vector<1x32x16xf32> to vector<2x32x16xf32>
    %709 = arith.mulf %707, %708 : vector<2x32x16xf32>
    %710 = arith.addf %686, %709 : vector<2x32x16xf32>
    %711 = vector.extract_strided_slice %3 {offsets = [0, 29, 0], sizes = [2, 1, 16], strides = [1, 1, 1]} : vector<2x32x16xf32> to vector<2x1x16xf32>
    %712 = vector.extract_strided_slice %7 {offsets = [29, 0, 0], sizes = [1, 32, 16], strides = [1, 1, 1]} : vector<32x32x16xf32> to vector<1x32x16xf32>
    %713 = vector.shape_cast %712 : vector<1x32x16xf32> to vector<32x16xf32>
    %714 = vector.shape_cast %713 : vector<32x16xf32> to vector<1x32x16xf32>
    %715 = vector.broadcast %711 : vector<2x1x16xf32> to vector<2x32x16xf32>
    %716 = vector.broadcast %714 : vector<1x32x16xf32> to vector<2x32x16xf32>
    %717 = arith.mulf %715, %716 : vector<2x32x16xf32>
    %718 = arith.addf %694, %717 : vector<2x32x16xf32>
    %719 = vector.extract_strided_slice %8 {offsets = [0, 29, 0], sizes = [2, 1, 16], strides = [1, 1, 1]} : vector<2x32x16xf32> to vector<2x1x16xf32>
    %720 = vector.extract_strided_slice %9 {offsets = [29, 0, 0], sizes = [1, 32, 16], strides = [1, 1, 1]} : vector<32x32x16xf32> to vector<1x32x16xf32>
    %721 = vector.shape_cast %720 : vector<1x32x16xf32> to vector<32x16xf32>
    %722 = vector.shape_cast %721 : vector<32x16xf32> to vector<1x32x16xf32>
    %723 = vector.broadcast %719 : vector<2x1x16xf32> to vector<2x32x16xf32>
    %724 = vector.broadcast %722 : vector<1x32x16xf32> to vector<2x32x16xf32>
    %725 = arith.mulf %723, %724 : vector<2x32x16xf32>
    %726 = arith.addf %702, %725 : vector<2x32x16xf32>
    %727 = vector.extract_strided_slice %1 {offsets = [0, 30, 0], sizes = [2, 1, 16], strides = [1, 1, 1]} : vector<2x32x16xf32> to vector<2x1x16xf32>
    %728 = vector.extract_strided_slice %5 {offsets = [30, 0, 0], sizes = [1, 32, 16], strides = [1, 1, 1]} : vector<32x32x16xf32> to vector<1x32x16xf32>
    %729 = vector.shape_cast %728 : vector<1x32x16xf32> to vector<32x16xf32>
    %730 = vector.shape_cast %729 : vector<32x16xf32> to vector<1x32x16xf32>
    %731 = vector.broadcast %727 : vector<2x1x16xf32> to vector<2x32x16xf32>
    %732 = vector.broadcast %730 : vector<1x32x16xf32> to vector<2x32x16xf32>
    %733 = arith.mulf %731, %732 : vector<2x32x16xf32>
    %734 = arith.addf %710, %733 : vector<2x32x16xf32>
    %735 = vector.extract_strided_slice %3 {offsets = [0, 30, 0], sizes = [2, 1, 16], strides = [1, 1, 1]} : vector<2x32x16xf32> to vector<2x1x16xf32>
    %736 = vector.extract_strided_slice %7 {offsets = [30, 0, 0], sizes = [1, 32, 16], strides = [1, 1, 1]} : vector<32x32x16xf32> to vector<1x32x16xf32>
    %737 = vector.shape_cast %736 : vector<1x32x16xf32> to vector<32x16xf32>
    %738 = vector.shape_cast %737 : vector<32x16xf32> to vector<1x32x16xf32>
    %739 = vector.broadcast %735 : vector<2x1x16xf32> to vector<2x32x16xf32>
    %740 = vector.broadcast %738 : vector<1x32x16xf32> to vector<2x32x16xf32>
    %741 = arith.mulf %739, %740 : vector<2x32x16xf32>
    %742 = arith.addf %718, %741 : vector<2x32x16xf32>
    %743 = vector.extract_strided_slice %8 {offsets = [0, 30, 0], sizes = [2, 1, 16], strides = [1, 1, 1]} : vector<2x32x16xf32> to vector<2x1x16xf32>
    %744 = vector.extract_strided_slice %9 {offsets = [30, 0, 0], sizes = [1, 32, 16], strides = [1, 1, 1]} : vector<32x32x16xf32> to vector<1x32x16xf32>
    %745 = vector.shape_cast %744 : vector<1x32x16xf32> to vector<32x16xf32>
    %746 = vector.shape_cast %745 : vector<32x16xf32> to vector<1x32x16xf32>
    %747 = vector.broadcast %743 : vector<2x1x16xf32> to vector<2x32x16xf32>
    %748 = vector.broadcast %746 : vector<1x32x16xf32> to vector<2x32x16xf32>
    %749 = arith.mulf %747, %748 : vector<2x32x16xf32>
    %750 = arith.addf %726, %749 : vector<2x32x16xf32>
    %751 = vector.extract_strided_slice %1 {offsets = [0, 31, 0], sizes = [2, 1, 16], strides = [1, 1, 1]} : vector<2x32x16xf32> to vector<2x1x16xf32>
    %752 = vector.extract_strided_slice %5 {offsets = [31, 0, 0], sizes = [1, 32, 16], strides = [1, 1, 1]} : vector<32x32x16xf32> to vector<1x32x16xf32>
    %753 = vector.shape_cast %752 : vector<1x32x16xf32> to vector<32x16xf32>
    %754 = vector.shape_cast %753 : vector<32x16xf32> to vector<1x32x16xf32>
    %755 = vector.broadcast %751 : vector<2x1x16xf32> to vector<2x32x16xf32>
    %756 = vector.broadcast %754 : vector<1x32x16xf32> to vector<2x32x16xf32>
    %757 = arith.mulf %755, %756 : vector<2x32x16xf32>
    %758 = arith.addf %734, %757 : vector<2x32x16xf32>
    %759 = vector.extract_strided_slice %3 {offsets = [0, 31, 0], sizes = [2, 1, 16], strides = [1, 1, 1]} : vector<2x32x16xf32> to vector<2x1x16xf32>
    %760 = vector.extract_strided_slice %7 {offsets = [31, 0, 0], sizes = [1, 32, 16], strides = [1, 1, 1]} : vector<32x32x16xf32> to vector<1x32x16xf32>
    %761 = vector.shape_cast %760 : vector<1x32x16xf32> to vector<32x16xf32>
    %762 = vector.shape_cast %761 : vector<32x16xf32> to vector<1x32x16xf32>
    %763 = vector.broadcast %759 : vector<2x1x16xf32> to vector<2x32x16xf32>
    %764 = vector.broadcast %762 : vector<1x32x16xf32> to vector<2x32x16xf32>
    %765 = arith.mulf %763, %764 : vector<2x32x16xf32>
    %766 = arith.addf %742, %765 : vector<2x32x16xf32>
    %767 = vector.extract_strided_slice %8 {offsets = [0, 31, 0], sizes = [2, 1, 16], strides = [1, 1, 1]} : vector<2x32x16xf32> to vector<2x1x16xf32>
    %768 = vector.extract_strided_slice %9 {offsets = [31, 0, 0], sizes = [1, 32, 16], strides = [1, 1, 1]} : vector<32x32x16xf32> to vector<1x32x16xf32>
    %769 = vector.shape_cast %768 : vector<1x32x16xf32> to vector<32x16xf32>
    %770 = vector.shape_cast %769 : vector<32x16xf32> to vector<1x32x16xf32>
    %771 = vector.broadcast %767 : vector<2x1x16xf32> to vector<2x32x16xf32>
    %772 = vector.broadcast %770 : vector<1x32x16xf32> to vector<2x32x16xf32>
    %773 = arith.mulf %771, %772 : vector<2x32x16xf32>
    %774 = arith.addf %750, %773 : vector<2x32x16xf32>
    %775 = arith.subf %758, %766 : vector<2x32x16xf32>
    %c0_15 = arith.constant 0 : index
    %c0_16 = arith.constant 0 : index
    %c0_17 = arith.constant 0 : index
    %c0_18 = arith.constant 0 : index
    %776 = vector.load %arg5[%c0_15, %c0_16, %c0_17, %c0_18] : memref<1x2x32x16xf32, #tpu.memory_space<vmem>>, vector<1x2x32x16xf32>
    %777 = vector.shape_cast %776 : vector<1x2x32x16xf32> to vector<2x32x16xf32>
    %778 = vector.shape_cast %775 : vector<2x32x16xf32> to vector<1x2x32x16xf32>
    tpu.vector_store %arg5[%c0_15, %c0_16, %c0_17, %c0_18], %778 {strides = array<i32>} : memref<1x2x32x16xf32, #tpu.memory_space<vmem>>, vector<1x2x32x16xf32>,
    %779 = arith.subf %774, %758 : vector<2x32x16xf32>
    %780 = arith.subf %779, %766 : vector<2x32x16xf32>
    %c0_19 = arith.constant 0 : index
    %c0_20 = arith.constant 0 : index
    %c0_21 = arith.constant 0 : index
    %c0_22 = arith.constant 0 : index
    %781 = vector.load %arg6[%c0_19, %c0_20, %c0_21, %c0_22] : memref<1x2x32x16xf32, #tpu.memory_space<vmem>>, vector<1x2x32x16xf32>
    %782 = vector.shape_cast %781 : vector<1x2x32x16xf32> to vector<2x32x16xf32>
    %783 = vector.shape_cast %780 : vector<2x32x16xf32> to vector<1x2x32x16xf32>
    tpu.vector_store %arg6[%c0_19, %c0_20, %c0_21, %c0_22], %783 {strides = array<i32>} : memref<1x2x32x16xf32, #tpu.memory_space<vmem>>, vector<1x2x32x16xf32>,
    return
  }
  func.func @transform_0(%arg0: i32) -> (i32, i32, i32, i32) {
    %c0_i32 = arith.constant 0 : i32
    %c0_i32_0 = arith.constant 0 : i32
    %c0_i32_1 = arith.constant 0 : i32
    %c0_i32_2 = arith.constant 0 : i32
    return %arg0, %c0_i32, %c0_i32_0, %c0_i32_1 : i32, i32, i32, i32
  }
  func.func @transform_1(%arg0: i32) -> (i32, i32, i32, i32) {
    %c0_i32 = arith.constant 0 : i32
    %c0_i32_0 = arith.constant 0 : i32
    %c0_i32_1 = arith.constant 0 : i32
    %c0_i32_2 = arith.constant 0 : i32
    return %arg0, %c0_i32, %c0_i32_0, %c0_i32_1 : i32, i32, i32, i32
  }
  func.func @transform_2(%arg0: i32) -> (i32, i32, i32, i32) {
    %c0_i32 = arith.constant 0 : i32
    %c0_i32_0 = arith.constant 0 : i32
    %c0_i32_1 = arith.constant 0 : i32
    %c0_i32_2 = arith.constant 0 : i32
    return %arg0, %c0_i32, %c0_i32_0, %c0_i32_1 : i32, i32, i32, i32
  }
  func.func @transform_3(%arg0: i32) -> (i32, i32, i32, i32) {
    %c0_i32 = arith.constant 0 : i32
    %c0_i32_0 = arith.constant 0 : i32
    %c0_i32_1 = arith.constant 0 : i32
    %c0_i32_2 = arith.constant 0 : i32
    return %arg0, %c0_i32, %c0_i32_0, %c0_i32_1 : i32, i32, i32, i32
  }
  func.func @transform_4(%arg0: i32) -> (i32, i32, i32, i32) {
    %c0_i32 = arith.constant 0 : i32
    %c0_i32_0 = arith.constant 0 : i32
    %c0_i32_1 = arith.constant 0 : i32
    %c0_i32_2 = arith.constant 0 : i32
    return %arg0, %c0_i32, %c0_i32_0, %c0_i32_1 : i32, i32, i32, i32
  }
  func.func @transform_5(%arg0: i32) -> (i32, i32, i32, i32) {
    %c0_i32 = arith.constant 0 : i32
    %c0_i32_0 = arith.constant 0 : i32
    %c0_i32_1 = arith.constant 0 : i32
    %c0_i32_2 = arith.constant 0 : i32
    return %arg0, %c0_i32, %c0_i32_0, %c0_i32_1 : i32, i32, i32, i32
  }
}

module attributes {stable_mosaic.version = 11 : i64} {
  func.func @_pwcf_res_kernel(%arg0: i32, %arg1: i32, %arg2: memref<1x32x256xbf16, #tpu.memory_space<vmem>>, %arg3: memref<32x32xbf16, #tpu.memory_space<vmem>>, %arg4: memref<32x1xf32, #tpu.memory_space<vmem>>, %arg5: memref<1x32x256xbf16, #tpu.memory_space<vmem>>, %arg6: memref<1x32x256xbf16, #tpu.memory_space<vmem>>) attributes {dimension_semantics = [#tpu.dimension_semantics<parallel>, #tpu.dimension_semantics<parallel>], iteration_bounds = array<i64: 2, 1>, scalar_prefetch = 0 : i64, scratch_operands = 0 : i64, tpu.core_type = #tpu.core_type<tc>, window_params = [{transform_indices = @transform_0, window_bounds = array<i64: 1, 32, 256>}, {pipeline_mode = #tpu.pipeline_mode<synchronous>, transform_indices = @transform_1, window_bounds = array<i64: 32, 32>}, {pipeline_mode = #tpu.pipeline_mode<synchronous>, transform_indices = @transform_2, window_bounds = array<i64: 32, 1>}, {transform_indices = @transform_3, window_bounds = array<i64: 1, 32, 256>}, {transform_indices = @transform_4, window_bounds = array<i64: 1, 32, 256>}]} {
    %c0 = arith.constant 0 : index
    %c0_0 = arith.constant 0 : index
    %0 = vector.load %arg3[%c0, %c0_0] : memref<32x32xbf16, #tpu.memory_space<vmem>>, vector<32x32xbf16>
    %c0_1 = arith.constant 0 : index
    %c0_2 = arith.constant 0 : index
    %c0_3 = arith.constant 0 : index
    %1 = vector.load %arg2[%c0_1, %c0_2, %c0_3] : memref<1x32x256xbf16, #tpu.memory_space<vmem>>, vector<1x32x256xbf16>
    %2 = vector.shape_cast %1 : vector<1x32x256xbf16> to vector<32x256xbf16>
    %cst = arith.constant dense<0.000000e+00> : vector<32x256xf32>
    %3 = tpu.matmul %0, %2, %cst {dimension_numbers = #tpu.dot_dimension_numbers<[1], [0], [0], [1], [0, 0, 1, 1], [], []>} : vector<32x32xbf16>, vector<32x256xbf16>, vector<32x256xf32> -> vector<32x256xf32>
    %c0_4 = arith.constant 0 : index
    %c0_5 = arith.constant 0 : index
    %4 = vector.load %arg4[%c0_4, %c0_5] : memref<32x1xf32, #tpu.memory_space<vmem>>, vector<32x1xf32>
    %5 = vector.broadcast %4 : vector<32x1xf32> to vector<32x256xf32>
    %6 = arith.addf %3, %5 : vector<32x256xf32>
    %c0_6 = arith.constant 0 : index
    %c0_7 = arith.constant 0 : index
    %c0_8 = arith.constant 0 : index
    %7 = vector.load %arg5[%c0_6, %c0_7, %c0_8] : memref<1x32x256xbf16, #tpu.memory_space<vmem>>, vector<1x32x256xbf16>
    %8 = vector.shape_cast %7 : vector<1x32x256xbf16> to vector<32x256xbf16>
    %9 = arith.extf %8 : vector<32x256xbf16> to vector<32x256xf32>
    %10 = arith.addf %6, %9 : vector<32x256xf32>
    %cst_9 = arith.constant 0.000000e+00 : f32
    %11 = vector.broadcast %cst_9 : f32 to vector<32x256xf32>
    %12 = arith.maximumf %10, %11 : vector<32x256xf32>
    %13 = arith.truncf %12 : vector<32x256xf32> to vector<32x256xbf16>
    %c0_10 = arith.constant 0 : index
    %c0_11 = arith.constant 0 : index
    %c0_12 = arith.constant 0 : index
    %14 = vector.load %arg6[%c0_10, %c0_11, %c0_12] : memref<1x32x256xbf16, #tpu.memory_space<vmem>>, vector<1x32x256xbf16>
    %15 = vector.shape_cast %14 : vector<1x32x256xbf16> to vector<32x256xbf16>
    %16 = vector.shape_cast %13 : vector<32x256xbf16> to vector<1x32x256xbf16>
    tpu.vector_store %arg6[%c0_10, %c0_11, %c0_12], %16 {strides = array<i32>} : memref<1x32x256xbf16, #tpu.memory_space<vmem>>, vector<1x32x256xbf16>,
    return
  }
  func.func @transform_0(%arg0: i32, %arg1: i32) -> (i32, i32, i32) {
    %c0_i32 = arith.constant 0 : i32
    %c0_i32_0 = arith.constant 0 : i32
    return %arg0, %c0_i32, %arg1 : i32, i32, i32
  }
  func.func @transform_1(%arg0: i32, %arg1: i32) -> (i32, i32) {
    %c0_i32 = arith.constant 0 : i32
    %c0_i32_0 = arith.constant 0 : i32
    %c0_i32_1 = arith.constant 0 : i32
    return %c0_i32, %c0_i32_0 : i32, i32
  }
  func.func @transform_2(%arg0: i32, %arg1: i32) -> (i32, i32) {
    %c0_i32 = arith.constant 0 : i32
    %c0_i32_0 = arith.constant 0 : i32
    %c0_i32_1 = arith.constant 0 : i32
    return %c0_i32, %c0_i32_0 : i32, i32
  }
  func.func @transform_3(%arg0: i32, %arg1: i32) -> (i32, i32, i32) {
    %c0_i32 = arith.constant 0 : i32
    %c0_i32_0 = arith.constant 0 : i32
    return %arg0, %c0_i32, %arg1 : i32, i32, i32
  }
  func.func @transform_4(%arg0: i32, %arg1: i32) -> (i32, i32, i32) {
    %c0_i32 = arith.constant 0 : i32
    %c0_i32_0 = arith.constant 0 : i32
    return %arg0, %c0_i32, %arg1 : i32, i32, i32
  }
}

module attributes {stable_mosaic.version = 11 : i64} {
  func.func @_tail_kernel(%arg0: i32, %arg1: i32, %arg2: memref<1x32x256xbf16, #tpu.memory_space<vmem>>, %arg3: memref<1x32x256xbf16, #tpu.memory_space<vmem>>, %arg4: memref<32x32xbf16, #tpu.memory_space<vmem>>, %arg5: memref<32x1xf32, #tpu.memory_space<vmem>>, %arg6: memref<128x32xbf16, #tpu.memory_space<vmem>>, %arg7: memref<128x1xf32, #tpu.memory_space<vmem>>, %arg8: memref<128x1xf32, #tpu.memory_space<vmem>>, %arg9: memref<1x1xf32, #tpu.memory_space<vmem>>, %arg10: memref<1x1x256xf32, #tpu.memory_space<vmem>>) attributes {dimension_semantics = [#tpu.dimension_semantics<parallel>, #tpu.dimension_semantics<parallel>], iteration_bounds = array<i64: 2, 1>, scalar_prefetch = 0 : i64, scratch_operands = 0 : i64, tpu.core_type = #tpu.core_type<tc>, window_params = [{transform_indices = @transform_0, window_bounds = array<i64: 1, 32, 256>}, {transform_indices = @transform_1, window_bounds = array<i64: 1, 32, 256>}, {pipeline_mode = #tpu.pipeline_mode<synchronous>, transform_indices = @transform_2, window_bounds = array<i64: 32, 32>}, {pipeline_mode = #tpu.pipeline_mode<synchronous>, transform_indices = @transform_3, window_bounds = array<i64: 32, 1>}, {pipeline_mode = #tpu.pipeline_mode<synchronous>, transform_indices = @transform_4, window_bounds = array<i64: 128, 32>}, {pipeline_mode = #tpu.pipeline_mode<synchronous>, transform_indices = @transform_5, window_bounds = array<i64: 128, 1>}, {pipeline_mode = #tpu.pipeline_mode<synchronous>, transform_indices = @transform_6, window_bounds = array<i64: 128, 1>}, {pipeline_mode = #tpu.pipeline_mode<synchronous>, transform_indices = @transform_7, window_bounds = array<i64: 1, 1>}, {transform_indices = @transform_8, window_bounds = array<i64: 1, 1, 256>}]} {
    %c0 = arith.constant 0 : index
    %c0_0 = arith.constant 0 : index
    %0 = vector.load %arg4[%c0, %c0_0] : memref<32x32xbf16, #tpu.memory_space<vmem>>, vector<32x32xbf16>
    %c0_1 = arith.constant 0 : index
    %c0_2 = arith.constant 0 : index
    %c0_3 = arith.constant 0 : index
    %1 = vector.load %arg2[%c0_1, %c0_2, %c0_3] : memref<1x32x256xbf16, #tpu.memory_space<vmem>>, vector<1x32x256xbf16>
    %2 = vector.shape_cast %1 : vector<1x32x256xbf16> to vector<32x256xbf16>
    %cst = arith.constant dense<0.000000e+00> : vector<32x256xf32>
    %3 = tpu.matmul %0, %2, %cst {dimension_numbers = #tpu.dot_dimension_numbers<[1], [0], [0], [1], [0, 0, 1, 1], [], []>} : vector<32x32xbf16>, vector<32x256xbf16>, vector<32x256xf32> -> vector<32x256xf32>
    %c0_4 = arith.constant 0 : index
    %c0_5 = arith.constant 0 : index
    %4 = vector.load %arg5[%c0_4, %c0_5] : memref<32x1xf32, #tpu.memory_space<vmem>>, vector<32x1xf32>
    %5 = vector.broadcast %4 : vector<32x1xf32> to vector<32x256xf32>
    %6 = arith.addf %3, %5 : vector<32x256xf32>
    %c0_6 = arith.constant 0 : index
    %c0_7 = arith.constant 0 : index
    %c0_8 = arith.constant 0 : index
    %7 = vector.load %arg3[%c0_6, %c0_7, %c0_8] : memref<1x32x256xbf16, #tpu.memory_space<vmem>>, vector<1x32x256xbf16>
    %8 = vector.shape_cast %7 : vector<1x32x256xbf16> to vector<32x256xbf16>
    %9 = arith.extf %8 : vector<32x256xbf16> to vector<32x256xf32>
    %10 = arith.addf %6, %9 : vector<32x256xf32>
    %c0_9 = arith.constant 0 : index
    %c0_10 = arith.constant 0 : index
    %11 = vector.load %arg6[%c0_9, %c0_10] : memref<128x32xbf16, #tpu.memory_space<vmem>>, vector<128x32xbf16>
    %12 = arith.truncf %10 : vector<32x256xf32> to vector<32x256xbf16>
    %cst_11 = arith.constant dense<0.000000e+00> : vector<128x256xf32>
    %13 = tpu.matmul %11, %12, %cst_11 {dimension_numbers = #tpu.dot_dimension_numbers<[1], [0], [0], [1], [0, 0, 1, 1], [], []>} : vector<128x32xbf16>, vector<32x256xbf16>, vector<128x256xf32> -> vector<128x256xf32>
    %c0_12 = arith.constant 0 : index
    %c0_13 = arith.constant 0 : index
    %14 = vector.load %arg7[%c0_12, %c0_13] : memref<128x1xf32, #tpu.memory_space<vmem>>, vector<128x1xf32>
    %15 = vector.broadcast %14 : vector<128x1xf32> to vector<128x256xf32>
    %16 = arith.addf %13, %15 : vector<128x256xf32>
    %cst_14 = arith.constant 0.000000e+00 : f32
    %17 = vector.broadcast %cst_14 : f32 to vector<128x256xf32>
    %18 = arith.maximumf %16, %17 : vector<128x256xf32>
    %c0_15 = arith.constant 0 : index
    %c0_16 = arith.constant 0 : index
    %19 = vector.load %arg8[%c0_15, %c0_16] : memref<128x1xf32, #tpu.memory_space<vmem>>, vector<128x1xf32>
    %20 = vector.broadcast %19 : vector<128x1xf32> to vector<128x256xf32>
    %21 = arith.mulf %20, %18 : vector<128x256xf32>
    %cst_17 = arith.constant dense<0.000000e+00> : vector<256xf32>
    %22 = vector.multi_reduction <add>, %21, %cst_17 [0] : vector<128x256xf32> to vector<256xf32>
    %23 = vector.shape_cast %22 : vector<256xf32> to vector<1x256xf32>
    %c0_18 = arith.constant 0 : index
    %c0_19 = arith.constant 0 : index
    %24 = vector.load %arg9[%c0_18, %c0_19] : memref<1x1xf32, #tpu.memory_space<vmem>>, vector<1x1xf32>
    %25 = vector.broadcast %24 : vector<1x1xf32> to vector<1x256xf32>
    %26 = arith.addf %23, %25 : vector<1x256xf32>
    %c0_20 = arith.constant 0 : index
    %c0_21 = arith.constant 0 : index
    %c0_22 = arith.constant 0 : index
    %27 = vector.load %arg10[%c0_20, %c0_21, %c0_22] : memref<1x1x256xf32, #tpu.memory_space<vmem>>, vector<1x1x256xf32>
    %28 = vector.shape_cast %27 : vector<1x1x256xf32> to vector<1x256xf32>
    %29 = vector.shape_cast %26 : vector<1x256xf32> to vector<1x1x256xf32>
    tpu.vector_store %arg10[%c0_20, %c0_21, %c0_22], %29 {strides = array<i32>} : memref<1x1x256xf32, #tpu.memory_space<vmem>>, vector<1x1x256xf32>,
    return
  }
  func.func @transform_0(%arg0: i32, %arg1: i32) -> (i32, i32, i32) {
    %c0_i32 = arith.constant 0 : i32
    %c0_i32_0 = arith.constant 0 : i32
    return %arg0, %c0_i32, %arg1 : i32, i32, i32
  }
  func.func @transform_1(%arg0: i32, %arg1: i32) -> (i32, i32, i32) {
    %c0_i32 = arith.constant 0 : i32
    %c0_i32_0 = arith.constant 0 : i32
    return %arg0, %c0_i32, %arg1 : i32, i32, i32
  }
  func.func @transform_2(%arg0: i32, %arg1: i32) -> (i32, i32) {
    %c0_i32 = arith.constant 0 : i32
    %c0_i32_0 = arith.constant 0 : i32
    %c0_i32_1 = arith.constant 0 : i32
    return %c0_i32, %c0_i32_0 : i32, i32
  }
  func.func @transform_3(%arg0: i32, %arg1: i32) -> (i32, i32) {
    %c0_i32 = arith.constant 0 : i32
    %c0_i32_0 = arith.constant 0 : i32
    %c0_i32_1 = arith.constant 0 : i32
    return %c0_i32, %c0_i32_0 : i32, i32
  }
  func.func @transform_4(%arg0: i32, %arg1: i32) -> (i32, i32) {
    %c0_i32 = arith.constant 0 : i32
    %c0_i32_0 = arith.constant 0 : i32
    %c0_i32_1 = arith.constant 0 : i32
    return %c0_i32, %c0_i32_0 : i32, i32
  }
  func.func @transform_5(%arg0: i32, %arg1: i32) -> (i32, i32) {
    %c0_i32 = arith.constant 0 : i32
    %c0_i32_0 = arith.constant 0 : i32
    %c0_i32_1 = arith.constant 0 : i32
    return %c0_i32, %c0_i32_0 : i32, i32
  }
  func.func @transform_6(%arg0: i32, %arg1: i32) -> (i32, i32) {
    %c0_i32 = arith.constant 0 : i32
    %c0_i32_0 = arith.constant 0 : i32
    %c0_i32_1 = arith.constant 0 : i32
    return %c0_i32, %c0_i32_0 : i32, i32
  }
  func.func @transform_7(%arg0: i32, %arg1: i32) -> (i32, i32) {
    %c0_i32 = arith.constant 0 : i32
    %c0_i32_0 = arith.constant 0 : i32
    %c0_i32_1 = arith.constant 0 : i32
    return %c0_i32, %c0_i32_0 : i32, i32
  }
  func.func @transform_8(%arg0: i32, %arg1: i32) -> (i32, i32, i32) {
    %c0_i32 = arith.constant 0 : i32
    %c0_i32_0 = arith.constant 0 : i32
    return %arg0, %c0_i32, %arg1 : i32, i32, i32
  }
}

</mosaic_0001>

<llo_original>
// kernel: fno2d_forward.9
$region0: #{fno2d_forward.9}
  #allocation0 [shape = 'u32[]', space=smem, size = 0x4, offset = 0x4, fixed_abs, tag = 'smem constant byte address 0x4 - core index']
  #allocation1 [shape = 'u32[144,128]{1,0:T(1,128)}', space=vmem, size = 0x12000, scoped, tag = 'internal scratch']
  %s0 = inlined_call_operand.vmem [shape: f32[2,3,256], index: 0, kind: input, shape index: {}]
  %s1 = inlined_call_operand.vmem [shape: f32[32,3], index: 1, kind: input, shape index: {}]
  %s2 = inlined_call_operand.vmem [shape: f32[32,1], index: 2, kind: input, shape index: {}]
  %s3 = inlined_call_operand.vmem [shape: bf16[2,32,256], index: 3, kind: output, shape index: {}]
  %s4 = sld [smem:[#allocation0]]
  $region45: #{fno2d_forward.9} parent=0
    _
  %s6 = ssub.s32 1, %s4
  %s7 = scalar_select 0, %s6, %s4
  loop: start=0, step=1, limit=4
  $region2: #{fno2d_forward.9} parent=0 // loop_pre_header
    _
  $region3: #{fno2d_forward.9} parent=0 // loop_header
    %s9 = sphi 0, %s13
    %p10 = scmp.ge.s32.totalorder %s9, 4
    %s16 = sphi 0, %s28
    %s17 = sphi 0, %s24
    %s18 = sphi 0, %s16
    %s19 = sphi 0, %s17
    %s20 = sphi 0, %s18
    %s21 = sphi 0, %s19
    %s33 = sphi 0, %s35
    %s36 = sphi 0, %s33
    %s37 = sphi 0, %s36
    %s53 = sphi 0, %s37
    %s57 = sphi 0, %s57
    %s59 = sphi 0, %s57
    %s60 = sphi 0, %s59
    %s74 = sphi 0, %s60
    %s78 = sphi 0, %s78
    %s80 = sphi 0, %s78
    %s81 = sphi 0, %s80
    %s95 = sphi 0, %s81
    %s103 = sphi 0, %s105
    %s106 = sphi 0, %s103
    %s107 = sphi 0, %s106
    %s123 = sphi 0, %s107
  $region4: #{fno2d_forward.9} parent=0 // loop_header_branch
    %12 = sbr.rel (%p10) target = $region8
  $region5: #{fno2d_forward.9} parent=0 // loop_body
    %s14 = ssub.s32 %s9, 1
    %s15 = ssub.s32 %s9, 2
    %s22 = sadd.s32 1, %s17
    %p23 = scmp.ge.s32.totalorder %s22, 1
    %s24 = scalar_select %p23, 0, %s22
    %s25 = sadd.s32 1, %s16
    %s26 = scalar_select %p23, %s25, %s16
    %p27 = scmp.ge.s32.totalorder %s26, 2
    %s28 = scalar_select %p27, 0, %s26
    %s29 = ssub.s32 %s16, %s28
    %s30 = ssub.s32 %s17, %s24
    %s31 = sor.u32 %s29, %s30
    %p32 = scmp.eq.s32.totalorder %s31, 0
    %s34 = sadd.s32 %s33, 1
    %s35 = scalar_select %p32, %s33, %s34
    %p38 = pneg %p32
    %p39 = scmp.eq.s32.totalorder %s9, 1
    %p40 = por %p38, %p39
    %p41 = scmp.ne.s32.totalorder %s33, %s36
    %p42 = scmp.eq.s32.totalorder %s9, 0
    %p43 = por %p41, %p42
    %p44 = scmp.ne.s32.totalorder %s33, %s36
    %p45 = scmp.eq.s32.totalorder %s14, 1
    %p46 = por %p44, %p45
    %p47 = scmp.ne.s32.totalorder %s36, %s37
    %p48 = scmp.eq.s32.totalorder %s14, 0
    %p49 = por %p47, %p48
    %p50 = scmp.ne.s32.totalorder %s36, %s37
    %p51 = scmp.eq.s32.totalorder %s15, 1
    %p52 = por %p50, %p51
    %p54 = scmp.ne.s32.totalorder %s37, %s53
    %p55 = scmp.eq.s32.totalorder %s15, 0
    %p56 = por %p54, %p55
    %s58 = sadd.s32 %s57, 1
    %p61 = scmp.eq.s32.totalorder %s9, 1
    %p62 = scmp.ne.s32.totalorder %s57, %s59
    %p63 = scmp.eq.s32.totalorder %s9, 0
    %p64 = por %p62, %p63
    %p65 = scmp.ne.s32.totalorder %s57, %s59
    %p66 = scmp.eq.s32.totalorder %s14, 1
    %p67 = por %p65, %p66
    %p68 = scmp.ne.s32.totalorder %s59, %s60
    %p69 = scmp.eq.s32.totalorder %s14, 0
    %p70 = por %p68, %p69
    %p71 = scmp.ne.s32.totalorder %s59, %s60
    %p72 = scmp.eq.s32.totalorder %s15, 1
    %p73 = por %p71, %p72
    %p75 = scmp.ne.s32.totalorder %s60, %s74
    %p76 = scmp.eq.s32.totalorder %s15, 0
    %p77 = por %p75, %p76
    %s79 = sadd.s32 %s78, 1
    %p82 = scmp.eq.s32.totalorder %s9, 1
    %p83 = scmp.ne.s32.totalorder %s78, %s80
    %p84 = scmp.eq.s32.totalorder %s9, 0
    %p85 = por %p83, %p84
    %p86 = scmp.ne.s32.totalorder %s78, %s80
    %p87 = scmp.eq.s32.totalorder %s14, 1
    %p88 = por %p86, %p87
    %p89 = scmp.ne.s32.totalorder %s80, %s81
    %p90 = scmp.eq.s32.totalorder %s14, 0
    %p91 = por %p89, %p90
    %p92 = scmp.ne.s32.totalorder %s80, %s81
    %p93 = scmp.eq.s32.totalorder %s15, 1
    %p94 = por %p92, %p93
    %p96 = scmp.ne.s32.totalorder %s81, %s95
    %p97 = scmp.eq.s32.totalorder %s15, 0
    %p98 = por %p96, %p97
    %s99 = ssub.s32 %s16, %s28
    %s100 = ssub.s32 %s17, %s24
    %s101 = sor.u32 %s99, %s100
    %p102 = scmp.eq.s32.totalorder %s101, 0
    %s104 = sadd.s32 %s103, 1
    %s105 = scalar_select %p102, %s103, %s104
    %p108 = pneg %p102
    %p109 = scmp.eq.s32.totalorder %s9, 1
    %p110 = por %p108, %p109
    %p111 = scmp.ne.s32.totalorder %s103, %s106
    %p112 = scmp.eq.s32.totalorder %s9, 0
    %p113 = por %p111, %p112
    %p114 = scmp.ne.s32.totalorder %s103, %s106
    %p115 = scmp.eq.s32.totalorder %s14, 1
    %p116 = por %p114, %p115
    %p117 = scmp.ne.s32.totalorder %s106, %s107
    %p118 = scmp.eq.s32.totalorder %s14, 0
    %p119 = por %p117, %p118
    %p120 = scmp.ne.s32.totalorder %s106, %s107
    %p121 = scmp.eq.s32.totalorder %s15, 1
    %p122 = por %p120, %p121
    %p124 = scmp.ne.s32.totalorder %s107, %s123
    %p125 = scmp.eq.s32.totalorder %s15, 0
    %p126 = por %p124, %p125
    %p127 = scmp.le.s32.totalorder 1, %s9
    %p128 = scmp.lt.s32.totalorder %s9, 3
    %p129 = pnand %p127, %p128
    %p130 = pneg %p129
    // Predicated region
    $region9: #{fno2d_forward.9} parent=5 // pred_check
      _
    $region10: #{fno2d_forward.9} parent=5 // pred_check_branch
      %132 = sbr.rel (%p129) target = $region12
    $region11: #{fno2d_forward.9} parent=5 // pred_region
      %s133 = ssub.s32 %s9, 1
      // Predicated region
      $region13: #{fno2d_forward.9} parent=11 // pred_check
        %p134 = pneg %p70
      $region14: #{fno2d_forward.9} parent=11 // pred_check_branch
        %136 = sbr.rel (%p134) target = $region16
      $region15: #{fno2d_forward.9} parent=11 // pred_region
        _
      $region16: #{fno2d_forward.9} parent=11 // pred_fallthru
        _
      // Predicated region
      $region17: #{fno2d_forward.9} parent=11 // pred_check
        %p137 = pneg %p91
      $region18: #{fno2d_forward.9} parent=11 // pred_check_branch
        %139 = sbr.rel (%p137) target = $region20
      $region19: #{fno2d_forward.9} parent=11 // pred_region
        _
      $region20: #{fno2d_forward.9} parent=11 // pred_fallthru
        _
    $region12: #{fno2d_forward.9} parent=5 // pred_fallthru
      _
    %p140 = scmp.lt.s32.totalorder %s9, 2
    // Predicated region
    $region21: #{fno2d_forward.9} parent=5 // pred_check
      %p141 = pneg %p140
    $region22: #{fno2d_forward.9} parent=5 // pred_check_branch
      %143 = sbr.rel (%p141) target = $region24
    $region23: #{fno2d_forward.9} parent=5 // pred_region
      // Predicated region
      $region25: #{fno2d_forward.9} parent=23 // pred_check
        %p144 = pneg %p43
      $region26: #{fno2d_forward.9} parent=23 // pred_check_branch
        %146 = sbr.rel (%p144) target = $region28
      $region27: #{fno2d_forward.9} parent=23 // pred_region
        %s147 = smul.u32 2, %s17
        %p148 = scmp.lt.s32.totalorder %s16, 1
        %s149 = scalar_select %p148, %s16, 1
        %p150 = scmp.lt.s32.totalorder %s147, 1
        %s151 = scalar_select %p150, %s147, 1
        %s152 = smul.addr %s149, 2
        %s153 = sadd.s32 %s151, %s152
        %s154 = smul.addr %s153, 4
        %s155 = scalar_lea.vmem %s0, %s154
        %s156 = smul.u32 2, %s17
      $region28: #{fno2d_forward.9} parent=23 // pred_fallthru
        _
    $region24: #{fno2d_forward.9} parent=5 // pred_fallthru
      _
    %p157 = scmp.le.s32.totalorder 1, %s9
    %p158 = scmp.lt.s32.totalorder %s9, 3
    %p159 = pnand %p157, %p158
    %p160 = pneg %p159
    // Predicated region
    $region29: #{fno2d_forward.9} parent=5 // pred_check
      _
    $region30: #{fno2d_forward.9} parent=5 // pred_check_branch
      %162 = sbr.rel (%p159) target = $region32
    $region31: #{fno2d_forward.9} parent=5 // pred_region
      %s163 = ssub.s32 %s9, 1
      %s164 = smul.u32 2, %s19
      %p165 = scmp.lt.s32.totalorder %s18, 1
      %s166 = scalar_select %p165, %s18, 1
      %p167 = scmp.lt.s32.totalorder %s164, 1
      %s168 = scalar_select %p167, %s164, 1
      %s169 = smul.addr %s166, 2
      %s170 = sadd.s32 %s168, %s169
      %s171 = smul.addr %s170, 4
      %s172 = scalar_lea.vmem %s0, %s171
      %p173 = pneg %p49
      %p174 = pneg %p46
      %p175 = pneg %p70
      %p176 = pneg %p67
      %p177 = pneg %p91
      %p178 = pneg %p88
      %p179 = pneg %p119
      %p180 = pneg %p116
      %s181 = smul.u32 2, %s19
      %p182 = scmp.lt.s32.totalorder %s18, 1
      %s183 = scalar_select %p182, %s18, 1
      %p184 = scmp.lt.s32.totalorder %s181, 1
      %s185 = scalar_select %p184, %s181, 1
      %s186 = smul.addr %s183, 8
      %s187 = sadd.s32 %s185, %s186
      %s188 = smul.addr %s187, 4
      %s189 = scalar_lea.vmem %s3, %s188
      %s190 = smul.u32 2, %s19
      %p191 = scmp.lt.s32.totalorder %s18, 1
      %s192 = scalar_select %p191, %s18, 1
      %p193 = scmp.lt.s32.totalorder %s190, 1
      %s194 = scalar_select %p193, %s190, 1
      %s195 = smul.addr %s192, 2
      %s196 = sadd.s32 %s194, %s195
      %s197 = smul.addr %s196, 4
      %s198 = scalar_lea.vmem %s0, %s197
      %s199 = smul.u32 2, %s19
      %s200 = smul.u32 2, %s19
      %p201 = scmp.lt.s32.totalorder %s18, 1
      %s202 = scalar_select %p201, %s18, 1
      %p203 = scmp.lt.s32.totalorder %s200, 1
      %s204 = scalar_select %p203, %s200, 1
      %s205 = smul.addr %s202, 8
      %s206 = sadd.s32 %s204, %s205
      %s207 = smul.addr %s206, 4
      %s208 = scalar_lea.vmem %s3, %s207
      %s209 = smul.u32 2, %s19
      %v210 = vld [vmem:[%s198] sm:$0x77]
      %v211 = vld [vmem:[%s1] sm:$0xff]
      %v212 = vld [vmem:[%s1 + $0x8] sm:$0xff]
      %v213 = vld [vmem:[%s1 + $0x10] sm:$0xff]
      %v214 = vld [vmem:[%s1 + $0x18] sm:$0xff]
      %216 = vset.pattern.permute.xlu0 0
      %217 = vperm.xlu0 %216, %v211
      %v218 = vpop.permute.xlu0 %217
      %221 = vset.pattern.permute.xlu0 0
      %222 = vperm.xlu0 %221, %v212
      %v223 = vpop.permute.xlu0 %222
      %226 = vset.pattern.permute.xlu0 0
      %227 = vperm.xlu0 %226, %v213
      %v228 = vpop.permute.xlu0 %227
      %231 = vset.pattern.permute.xlu0 0
      %232 = vperm.xlu0 %231, %v214
      %v233 = vpop.permute.xlu0 %232
      %v236 = vlaneseq
      %v237 = vshrl.u32 %v236, 7
      %v238 = vsub.s32 0, %v237
      %v239 = vrot.slane %v210, %v238
      %v240 = vlaneseq
      %v241 = vshrl.u32 %v240, 7
      %v242 = vsub.s32 4, %v241
      %v243 = vrot.slane %v210, %v242
      %v246 = vlaneseq
      %v247 = vshrl.u32 %v246, 7
      %v248 = vsub.s32 0, %v247
      %v249 = vrot.slane %v239, %v248
      %v250 = vlaneseq
      %v251 = vshrl.u32 %v250, 7
      %v252 = vsub.s32 0, %v251
      %v253 = vrot.slane %v243, %v252
      %v254 = vmul.f32 %v218, %v249
      %v255 = vmul.f32 %v218, %v253
      %v256 = vmul.f32 %v223, %v249
      %v257 = vmul.f32 %v223, %v253
      %v258 = vmul.f32 %v228, %v249
      %v259 = vmul.f32 %v228, %v253
      %v260 = vmul.f32 %v233, %v249
      %v261 = vmul.f32 %v233, %v253
      %262 = vset.pattern.permute.xlu0 1
      %263 = vperm.xlu0 %262, %v211
      %v264 = vpop.permute.xlu0 %263
      %266 = vset.pattern.permute.xlu0 1
      %267 = vperm.xlu0 %266, %v212
      %v268 = vpop.permute.xlu0 %267
      %270 = vset.pattern.permute.xlu0 1
      %271 = vperm.xlu0 %270, %v213
      %v272 = vpop.permute.xlu0 %271
      %274 = vset.pattern.permute.xlu0 1
      %275 = vperm.xlu0 %274, %v214
      %v276 = vpop.permute.xlu0 %275
      %v278 = vlaneseq
      %v279 = vshrl.u32 %v278, 7
      %v280 = vsub.s32 1, %v279
      %v281 = vrot.slane %v210, %v280
      %v282 = vlaneseq
      %v283 = vshrl.u32 %v282, 7
      %v284 = vsub.s32 5, %v283
      %v285 = vrot.slane %v210, %v284
      %v288 = vlaneseq
      %v289 = vshrl.u32 %v288, 7
      %v290 = vsub.s32 1, %v289
      %v291 = vrot.slane %v281, %v290
      %v292 = vlaneseq
      %v293 = vshrl.u32 %v292, 7
      %v294 = vsub.s32 1, %v293
      %v295 = vrot.slane %v285, %v294
      %v296 = vmul.f32 %v264, %v291
      %v297 = vmul.f32 %v264, %v295
      %v298 = vmul.f32 %v268, %v291
      %v299 = vmul.f32 %v268, %v295
      %v300 = vmul.f32 %v272, %v291
      %v301 = vmul.f32 %v272, %v295
      %v302 = vmul.f32 %v276, %v291
      %v303 = vmul.f32 %v276, %v295
      %v304 = vadd.f32 %v254, %v296
      %v305 = vadd.f32 %v255, %v297
      %v306 = vadd.f32 %v256, %v298
      %v307 = vadd.f32 %v257, %v299
      %v308 = vadd.f32 %v258, %v300
      %v309 = vadd.f32 %v259, %v301
      %v310 = vadd.f32 %v260, %v302
      %v311 = vadd.f32 %v261, %v303
      %312 = vset.pattern.permute.xlu0 2
      %313 = vperm.xlu0 %312, %v211
      %v314 = vpop.permute.xlu0 %313
      %316 = vset.pattern.permute.xlu0 2
      %317 = vperm.xlu0 %316, %v212
      %v318 = vpop.permute.xlu0 %317
      %320 = vset.pattern.permute.xlu0 2
      %321 = vperm.xlu0 %320, %v213
      %v322 = vpop.permute.xlu0 %321
      %324 = vset.pattern.permute.xlu0 2
      %325 = vperm.xlu0 %324, %v214
      %v326 = vpop.permute.xlu0 %325
      %v328 = vlaneseq
      %v329 = vshrl.u32 %v328, 7
      %v330 = vsub.s32 2, %v329
      %v331 = vrot.slane %v210, %v330
      %v332 = vlaneseq
      %v333 = vshrl.u32 %v332, 7
      %v334 = vsub.s32 6, %v333
      %v335 = vrot.slane %v210, %v334
      %v338 = vlaneseq
      %v339 = vshrl.u32 %v338, 7
      %v340 = vsub.s32 2, %v339
      %v341 = vrot.slane %v331, %v340
      %v342 = vlaneseq
      %v343 = vshrl.u32 %v342, 7
      %v344 = vsub.s32 2, %v343
      %v345 = vrot.slane %v335, %v344
      %v346 = vmul.f32 %v314, %v341
      %v347 = vmul.f32 %v314, %v345
      %v348 = vmul.f32 %v318, %v341
      %v349 = vmul.f32 %v318, %v345
      %v350 = vmul.f32 %v322, %v341
      %v351 = vmul.f32 %v322, %v345
      %v352 = vmul.f32 %v326, %v341
      %v353 = vmul.f32 %v326, %v345
      %v354 = vadd.f32 %v304, %v346
      %v355 = vadd.f32 %v305, %v347
      %v356 = vadd.f32 %v306, %v348
      %v357 = vadd.f32 %v307, %v349
      %v358 = vadd.f32 %v308, %v350
      %v359 = vadd.f32 %v309, %v351
      %v360 = vadd.f32 %v310, %v352
      %v361 = vadd.f32 %v311, %v353
      %v362 = vld [vmem:[%s2] sm:$0xff]
      %v363 = vld [vmem:[%s2 + $0x8] sm:$0xff]
      %v364 = vld [vmem:[%s2 + $0x10] sm:$0xff]
      %v365 = vld [vmem:[%s2 + $0x18] sm:$0xff]
      %367 = vset.pattern.permute.xlu0 0
      %368 = vperm.xlu0 %367, %v362
      %v369 = vpop.permute.xlu0 %368
      %372 = vset.pattern.permute.xlu0 0
      %373 = vperm.xlu0 %372, %v363
      %v374 = vpop.permute.xlu0 %373
      %377 = vset.pattern.permute.xlu0 0
      %378 = vperm.xlu0 %377, %v364
      %v379 = vpop.permute.xlu0 %378
      %382 = vset.pattern.permute.xlu0 0
      %383 = vperm.xlu0 %382, %v365
      %v384 = vpop.permute.xlu0 %383
      %v386 = vadd.f32 %v354, %v369
      %v387 = vadd.f32 %v355, %v369
      %v388 = vadd.f32 %v356, %v374
      %v389 = vadd.f32 %v357, %v374
      %v390 = vadd.f32 %v358, %v379
      %v391 = vadd.f32 %v359, %v379
      %v392 = vadd.f32 %v360, %v384
      %v393 = vadd.f32 %v361, %v384
      %v394 = vpack.c.bf16 %v388, %v386
      %v395 = vpack.c.bf16 %v389, %v387
      %v396 = vpack.c.bf16 %v392, %v390
      %v397 = vpack.c.bf16 %v393, %v391
      %v402 = vunpack.c.l.b16 %v394
      %v403 = vunpack.c.l.b16 %v395
      %v404 = vunpack.c.h.b16 %v394
      %v405 = vunpack.c.h.b16 %v395
      %v406 = vunpack.c.l.b16 %v396
      %v407 = vunpack.c.l.b16 %v397
      %v408 = vunpack.c.h.b16 %v396
      %v409 = vunpack.c.h.b16 %v397
      %v410 = vpack.c.b16 %v403, %v402
      %v411 = vpack.c.b16 %v405, %v404
      %v412 = vpack.c.b16 %v407, %v406
      %v413 = vpack.c.b16 %v409, %v408
      %418 = vst [vmem:[%s208] sm:$0xff] %v410
      %419 = vst [vmem:[%s208 + $0x8] sm:$0xff] %v411
      %420 = vst [vmem:[%s208 + $0x10] sm:$0xff] %v412
      %421 = vst [vmem:[%s208 + $0x18] sm:$0xff] %v413
      %s422 = smul.u32 2, %s19
      %p423 = scmp.lt.s32.totalorder %s18, 1
      %s424 = scalar_select %p423, %s18, 1
      %p425 = scmp.lt.s32.totalorder %s422, 1
      %s426 = scalar_select %p425, %s422, 1
      %s427 = smul.addr %s424, 8
      %s428 = sadd.s32 %s426, %s427
      %s429 = smul.addr %s428, 4
      %s430 = scalar_lea.vmem %s3, %s429
      // Predicated region
      $region33: #{fno2d_forward.9} parent=31 // pred_check
        %p431 = pneg %p116
      $region34: #{fno2d_forward.9} parent=31 // pred_check_branch
        %433 = sbr.rel (%p431) target = $region36
      $region35: #{fno2d_forward.9} parent=31 // pred_region
        %s434 = smul.u32 2, %s19
      $region36: #{fno2d_forward.9} parent=31 // pred_fallthru
        _
    $region32: #{fno2d_forward.9} parent=5 // pred_fallthru
      _
    %p435 = scmp.le.s32.totalorder 2, %s9
    // Predicated region
    $region37: #{fno2d_forward.9} parent=5 // pred_check
      %p436 = pneg %p435
    $region38: #{fno2d_forward.9} parent=5 // pred_check_branch
      %438 = sbr.rel (%p436) target = $region40
    $region39: #{fno2d_forward.9} parent=5 // pred_region
      %s439 = ssub.s32 %s9, 2
      // Predicated region
      $region41: #{fno2d_forward.9} parent=39 // pred_check
        %p440 = pneg %p122
      $region42: #{fno2d_forward.9} parent=39 // pred_check_branch
        %442 = sbr.rel (%p440) target = $region44
      $region43: #{fno2d_forward.9} parent=39 // pred_region
        %s443 = smul.u32 2, %s21
        %p444 = scmp.lt.s32.totalorder %s20, 1
        %s445 = scalar_select %p444, %s20, 1
        %p446 = scmp.lt.s32.totalorder %s443, 1
        %s447 = scalar_select %p446, %s443, 1
        %s448 = smul.addr %s445, 8
        %s449 = sadd.s32 %s447, %s448
        %s450 = smul.addr %s449, 4
        %s451 = scalar_lea.vmem %s3, %s450
      $region44: #{fno2d_forward.9} parent=39 // pred_fallthru
        _
    $region40: #{fno2d_forward.9} parent=5 // pred_fallthru
      _
  $region6: #{fno2d_forward.9} parent=0 // loop_footer
    %s13 = sadd.s32 1, %s9
  $region7: #{fno2d_forward.9} parent=0 // loop_footer_branch
    %8 = sbr.rel target = $region3
  $region8: #{fno2d_forward.9} parent=0 // loop_exit
    _

// kernel: reverse.8
$region0: #{reverse.8}
  #allocation0 [shape = 's32[1]{0}', space=sflag, size = 0x4, scoped, tag = 'scoped memory for reverse.8']
  %s0 = inlined_call_operand.vmem [shape: f32[2,32,16,7], index: 0, kind: input, shape index: {}]
  %s1 = inlined_call_operand.vmem [shape: f32[2,32,16,7], index: 1, kind: output, shape index: {}]
  %s2 = scalar_lea.vmem %s0, 96
  %v3 = vld [vmem:[%s2] sm:$0xff]
  %4 = vst [vmem:[%s1] sm:$0xff] %v3
  %s5 = scalar_lea.vmem %s0, 208
  %v6 = vld [vmem:[%s5] sm:$0xff]
  %s7 = scalar_lea.vmem %s1, 112
  %8 = vst [vmem:[%s7] sm:$0xff] %v6
  %s9 = scalar_lea.vmem %s0, 80
  %v10 = vld [vmem:[%s9] sm:$0xff]
  %s11 = scalar_lea.vmem %s1, 16
  %12 = vst [vmem:[%s11] sm:$0xff] %v10
  %s13 = scalar_lea.vmem %s0, 192
  %v14 = vld [vmem:[%s13] sm:$0xff]
  %s15 = scalar_lea.vmem %s1, 128
  %16 = vst [vmem:[%s15] sm:$0xff] %v14
  %s17 = scalar_lea.vmem %s0, 64
  %v18 = vld [vmem:[%s17] sm:$0xff]
  %s19 = scalar_lea.vmem %s1, 32
  %20 = vst [vmem:[%s19] sm:$0xff] %v18
  %s21 = scalar_lea.vmem %s0, 176
  %v22 = vld [vmem:[%s21] sm:$0xff]
  %s23 = scalar_lea.vmem %s1, 144
  %24 = vst [vmem:[%s23] sm:$0xff] %v22
  %s25 = scalar_lea.vmem %s0, 48
  %v26 = vld [vmem:[%s25] sm:$0xff]
  %s27 = scalar_lea.vmem %s1, 48
  %28 = vst [vmem:[%s27] sm:$0xff] %v26
  %s29 = scalar_lea.vmem %s0, 160
  %v30 = vld [vmem:[%s29] sm:$0xff]
  %s31 = scalar_lea.vmem %s1, 160
  %32 = vst [vmem:[%s31] sm:$0xff] %v30
  %s33 = scalar_lea.vmem %s0, 32
  %v34 = vld [vmem:[%s33] sm:$0xff]
  %s35 = scalar_lea.vmem %s1, 64
  %36 = vst [vmem:[%s35] sm:$0xff] %v34
  %s37 = scalar_lea.vmem %s0, 144
  %v38 = vld [vmem:[%s37] sm:$0xff]
  %s39 = scalar_lea.vmem %s1, 176
  %40 = vst [vmem:[%s39] sm:$0xff] %v38
  %s41 = scalar_lea.vmem %s0, 16
  %v42 = vld [vmem:[%s41] sm:$0xff]
  %s43 = scalar_lea.vmem %s1, 80
  %44 = vst [vmem:[%s43] sm:$0xff] %v42
  %s45 = scalar_lea.vmem %s0, 128
  %v46 = vld [vmem:[%s45] sm:$0xff]
  %s47 = scalar_lea.vmem %s1, 192
  %48 = vst [vmem:[%s47] sm:$0xff] %v46
  %v49 = vld [vmem:[%s0] sm:$0xff]
  %s50 = scalar_lea.vmem %s1, 96
  %51 = vst [vmem:[%s50] sm:$0xff] %v49
  %s52 = scalar_lea.vmem %s0, 112
  %v53 = vld [vmem:[%s52] sm:$0xff]
  %s54 = scalar_lea.vmem %s1, 208
  %55 = vst [vmem:[%s54] sm:$0xff] %v53
  %s56 = scalar_lea.vmem %s0, 104
  %v57 = vld [vmem:[%s56] sm:$0xff]
  %s58 = scalar_lea.vmem %s1, 8
  %59 = vst [vmem:[%s58] sm:$0xff] %v57
  %s60 = scalar_lea.vmem %s0, 216
  %v61 = vld [vmem:[%s60] sm:$0xff]
  %s62 = scalar_lea.vmem %s1, 120
  %63 = vst [vmem:[%s62] sm:$0xff] %v61
  %s64 = scalar_lea.vmem %s0, 88
  %v65 = vld [vmem:[%s64] sm:$0xff]
  %s66 = scalar_lea.vmem %s1, 24
  %67 = vst [vmem:[%s66] sm:$0xff] %v65
  %s68 = scalar_lea.vmem %s0, 200
  %v69 = vld [vmem:[%s68] sm:$0xff]
  %s70 = scalar_lea.vmem %s1, 136
  %71 = vst [vmem:[%s70] sm:$0xff] %v69
  %s72 = scalar_lea.vmem %s0, 72
  %v73 = vld [vmem:[%s72] sm:$0xff]
  %s74 = scalar_lea.vmem %s1, 40
  %75 = vst [vmem:[%s74] sm:$0xff] %v73
  %s76 = scalar_lea.vmem %s0, 184
  %v77 = vld [vmem:[%s76] sm:$0xff]
  %s78 = scalar_lea.vmem %s1, 152
  %79 = vst [vmem:[%s78] sm:$0xff] %v77
  %s80 = scalar_lea.vmem %s0, 56
  %v81 = vld [vmem:[%s80] sm:$0xff]
  %s82 = scalar_lea.vmem %s1, 56
  %83 = vst [vmem:[%s82] sm:$0xff] %v81
  %s84 = scalar_lea.vmem %s0, 168
  %v85 = vld [vmem:[%s84] sm:$0xff]
  %s86 = scalar_lea.vmem %s1, 168
  %87 = vst [vmem:[%s86] sm:$0xff] %v85
  %s88 = scalar_lea.vmem %s0, 40
  %v89 = vld [vmem:[%s88] sm:$0xff]
  %s90 = scalar_lea.vmem %s1, 72
  %91 = vst [vmem:[%s90] sm:$0xff] %v89
  %s92 = scalar_lea.vmem %s0, 152
  %v93 = vld [vmem:[%s92] sm:$0xff]
  %s94 = scalar_lea.vmem %s1, 184
  %95 = vst [vmem:[%s94] sm:$0xff] %v93
  %s96 = scalar_lea.vmem %s0, 24
  %v97 = vld [vmem:[%s96] sm:$0xff]
  %s98 = scalar_lea.vmem %s1, 88
  %99 = vst [vmem:[%s98] sm:$0xff] %v97
  %s100 = scalar_lea.vmem %s0, 136
  %v101 = vld [vmem:[%s100] sm:$0xff]
  %s102 = scalar_lea.vmem %s1, 200
  %103 = vst [vmem:[%s102] sm:$0xff] %v101
  %s104 = scalar_lea.vmem %s0, 8
  %v105 = vld [vmem:[%s104] sm:$0xff]
  %s106 = scalar_lea.vmem %s1, 104
  %107 = vst [vmem:[%s106] sm:$0xff] %v105
  %s108 = scalar_lea.vmem %s0, 120
  %v109 = vld [vmem:[%s108] sm:$0xff]
  %s110 = scalar_lea.vmem %s1, 216
  %111 = vst [vmem:[%s110] sm:$0xff] %v109

// kernel: fno2d_forward.10
$region0: #{fno2d_forward.10}
  #allocation0 [shape = 'u32[]', space=smem, size = 0x4, offset = 0x4, fixed_abs, tag = 'smem constant byte address 0x4 - core index']
  #allocation1 [shape = 'u32[144,128]{1,0:T(1,128)}', space=vmem, size = 0x12000, scoped, tag = 'internal scratch']
  %s0 = inlined_call_operand.vmem [shape: f32[2,2,32,16], index: 0, kind: input, shape index: {}]
  %s1 = inlined_call_operand.vmem [shape: f32[2,2,32,16], index: 1, kind: input, shape index: {}]
  %s2 = inlined_call_operand.vmem [shape: f32[2,32,32,16], index: 2, kind: input, shape index: {}]
  %s3 = inlined_call_operand.vmem [shape: f32[2,32,32,16], index: 3, kind: input, shape index: {}]
  %s4 = inlined_call_operand.vmem [shape: f32[2,2,32,16], index: 4, kind: output, shape index: {0}]
  %s5 = inlined_call_operand.vmem [shape: f32[2,2,32,16], index: 5, kind: output, shape index: {1}]
  %6 = xla_tuple %s4, %s5
  %s7 = sld [smem:[#allocation0]]
  $region57: #{fno2d_forward.10} parent=0
    _
  %s9 = ssub.s32 1, %s7
  %s10 = scalar_select 0, %s9, %s7
  loop: start=0, step=1, limit=4
  $region2: #{fno2d_forward.10} parent=0 // loop_pre_header
    _
  $region3: #{fno2d_forward.10} parent=0 // loop_header
    %s12 = sphi 0, %s16
    %p13 = scmp.ge.s32.totalorder %s12, 4
    %s22 = sphi 0, %s24
    %s25 = sphi 0, %s22
    %s26 = sphi 0, %s25
    %s42 = sphi 0, %s26
    %s48 = sphi 0, %s50
    %s51 = sphi 0, %s48
    %s52 = sphi 0, %s51
    %s68 = sphi 0, %s52
    %s74 = sphi 0, %s76
    %s77 = sphi 0, %s74
    %s78 = sphi 0, %s77
    %s94 = sphi 0, %s78
    %s100 = sphi 0, %s102
    %s103 = sphi 0, %s100
    %s104 = sphi 0, %s103
    %s120 = sphi 0, %s104
    %s126 = sphi 0, %s128
    %s129 = sphi 0, %s126
    %s130 = sphi 0, %s129
    %s146 = sphi 0, %s130
    %s152 = sphi 0, %s154
    %s155 = sphi 0, %s152
    %s156 = sphi 0, %s155
    %s172 = sphi 0, %s156
  $region4: #{fno2d_forward.10} parent=0 // loop_header_branch
    %15 = sbr.rel (%p13) target = $region8
  $region5: #{fno2d_forward.10} parent=0 // loop_body
    %s17 = ssub.s32 %s12, 1
    %s18 = ssub.s32 %s12, 2
    %s19 = sadd.s32 %s12, 1
    %s20 = ssub.s32 %s12, %s19
    %p21 = scmp.eq.s32.totalorder %s20, 0
    %s23 = sadd.s32 %s22, 1
    %s24 = scalar_select %p21, %s22, %s23
    %p27 = pneg %p21
    %p28 = scmp.eq.s32.totalorder %s12, 1
    %p29 = por %p27, %p28
    %p30 = scmp.ne.s32.totalorder %s22, %s25
    %p31 = scmp.eq.s32.totalorder %s12, 0
    %p32 = por %p30, %p31
    %p33 = scmp.ne.s32.totalorder %s22, %s25
    %p34 = scmp.eq.s32.totalorder %s17, 1
    %p35 = por %p33, %p34
    %p36 = scmp.ne.s32.totalorder %s25, %s26
    %p37 = scmp.eq.s32.totalorder %s17, 0
    %p38 = por %p36, %p37
    %p39 = scmp.ne.s32.totalorder %s25, %s26
    %p40 = scmp.eq.s32.totalorder %s18, 1
    %p41 = por %p39, %p40
    %p43 = scmp.ne.s32.totalorder %s26, %s42
    %p44 = scmp.eq.s32.totalorder %s18, 0
    %p45 = por %p43, %p44
    %s46 = ssub.s32 %s12, %s19
    %p47 = scmp.eq.s32.totalorder %s46, 0
    %s49 = sadd.s32 %s48, 1
    %s50 = scalar_select %p47, %s48, %s49
    %p53 = pneg %p47
    %p54 = scmp.eq.s32.totalorder %s12, 1
    %p55 = por %p53, %p54
    %p56 = scmp.ne.s32.totalorder %s48, %s51
    %p57 = scmp.eq.s32.totalorder %s12, 0
    %p58 = por %p56, %p57
    %p59 = scmp.ne.s32.totalorder %s48, %s51
    %p60 = scmp.eq.s32.totalorder %s17, 1
    %p61 = por %p59, %p60
    %p62 = scmp.ne.s32.totalorder %s51, %s52
    %p63 = scmp.eq.s32.totalorder %s17, 0
    %p64 = por %p62, %p63
    %p65 = scmp.ne.s32.totalorder %s51, %s52
    %p66 = scmp.eq.s32.totalorder %s18, 1
    %p67 = por %p65, %p66
    %p69 = scmp.ne.s32.totalorder %s52, %s68
    %p70 = scmp.eq.s32.totalorder %s18, 0
    %p71 = por %p69, %p70
    %s72 = ssub.s32 %s12, %s19
    %p73 = scmp.eq.s32.totalorder %s72, 0
    %s75 = sadd.s32 %s74, 1
    %s76 = scalar_select %p73, %s74, %s75
    %p79 = pneg %p73
    %p80 = scmp.eq.s32.totalorder %s12, 1
    %p81 = por %p79, %p80
    %p82 = scmp.ne.s32.totalorder %s74, %s77
    %p83 = scmp.eq.s32.totalorder %s12, 0
    %p84 = por %p82, %p83
    %p85 = scmp.ne.s32.totalorder %s74, %s77
    %p86 = scmp.eq.s32.totalorder %s17, 1
    %p87 = por %p85, %p86
    %p88 = scmp.ne.s32.totalorder %s77, %s78
    %p89 = scmp.eq.s32.totalorder %s17, 0
    %p90 = por %p88, %p89
    %p91 = scmp.ne.s32.totalorder %s77, %s78
    %p92 = scmp.eq.s32.totalorder %s18, 1
    %p93 = por %p91, %p92
    %p95 = scmp.ne.s32.totalorder %s78, %s94
    %p96 = scmp.eq.s32.totalorder %s18, 0
    %p97 = por %p95, %p96
    %s98 = ssub.s32 %s12, %s19
    %p99 = scmp.eq.s32.totalorder %s98, 0
    %s101 = sadd.s32 %s100, 1
    %s102 = scalar_select %p99, %s100, %s101
    %p105 = pneg %p99
    %p106 = scmp.eq.s32.totalorder %s12, 1
    %p107 = por %p105, %p106
    %p108 = scmp.ne.s32.totalorder %s100, %s103
    %p109 = scmp.eq.s32.totalorder %s12, 0
    %p110 = por %p108, %p109
    %p111 = scmp.ne.s32.totalorder %s100, %s103
    %p112 = scmp.eq.s32.totalorder %s17, 1
    %p113 = por %p111, %p112
    %p114 = scmp.ne.s32.totalorder %s103, %s104
    %p115 = scmp.eq.s32.totalorder %s17, 0
    %p116 = por %p114, %p115
    %p117 = scmp.ne.s32.totalorder %s103, %s104
    %p118 = scmp.eq.s32.totalorder %s18, 1
    %p119 = por %p117, %p118
    %p121 = scmp.ne.s32.totalorder %s104, %s120
    %p122 = scmp.eq.s32.totalorder %s18, 0
    %p123 = por %p121, %p122
    %s124 = ssub.s32 %s12, %s19
    %p125 = scmp.eq.s32.totalorder %s124, 0
    %s127 = sadd.s32 %s126, 1
    %s128 = scalar_select %p125, %s126, %s127
    %p131 = pneg %p125
    %p132 = scmp.eq.s32.totalorder %s12, 1
    %p133 = por %p131, %p132
    %p134 = scmp.ne.s32.totalorder %s126, %s129
    %p135 = scmp.eq.s32.totalorder %s12, 0
    %p136 = por %p134, %p135
    %p137 = scmp.ne.s32.totalorder %s126, %s129
    %p138 = scmp.eq.s32.totalorder %s17, 1
    %p139 = por %p137, %p138
    %p140 = scmp.ne.s32.totalorder %s129, %s130
    %p141 = scmp.eq.s32.totalorder %s17, 0
    %p142 = por %p140, %p141
    %p143 = scmp.ne.s32.totalorder %s129, %s130
    %p144 = scmp.eq.s32.totalorder %s18, 1
    %p145 = por %p143, %p144
    %p147 = scmp.ne.s32.totalorder %s130, %s146
    %p148 = scmp.eq.s32.totalorder %s18, 0
    %p149 = por %p147, %p148
    %s150 = ssub.s32 %s12, %s19
    %p151 = scmp.eq.s32.totalorder %s150, 0
    %s153 = sadd.s32 %s152, 1
    %s154 = scalar_select %p151, %s152, %s153
    %p157 = pneg %p151
    %p158 = scmp.eq.s32.totalorder %s12, 1
    %p159 = por %p157, %p158
    %p160 = scmp.ne.s32.totalorder %s152, %s155
    %p161 = scmp.eq.s32.totalorder %s12, 0
    %p162 = por %p160, %p161
    %p163 = scmp.ne.s32.totalorder %s152, %s155
    %p164 = scmp.eq.s32.totalorder %s17, 1
    %p165 = por %p163, %p164
    %p166 = scmp.ne.s32.totalorder %s155, %s156
    %p167 = scmp.eq.s32.totalorder %s17, 0
    %p168 = por %p166, %p167
    %p169 = scmp.ne.s32.totalorder %s155, %s156
    %p170 = scmp.eq.s32.totalorder %s18, 1
    %p171 = por %p169, %p170
    %p173 = scmp.ne.s32.totalorder %s156, %s172
    %p174 = scmp.eq.s32.totalorder %s18, 0
    %p175 = por %p173, %p174
    %p176 = scmp.le.s32.totalorder 1, %s12
    %p177 = scmp.lt.s32.totalorder %s12, 3
    %p178 = pnand %p176, %p177
    %p179 = pneg %p178
    // Predicated region
    $region9: #{fno2d_forward.10} parent=5 // pred_check
      _
    $region10: #{fno2d_forward.10} parent=5 // pred_check_branch
      %181 = sbr.rel (%p178) target = $region12
    $region11: #{fno2d_forward.10} parent=5 // pred_region
      %s182 = ssub.s32 %s12, 1
    $region12: #{fno2d_forward.10} parent=5 // pred_fallthru
      _
    %p183 = scmp.lt.s32.totalorder %s12, 2
    // Predicated region
    $region13: #{fno2d_forward.10} parent=5 // pred_check
      %p184 = pneg %p183
    $region14: #{fno2d_forward.10} parent=5 // pred_check_branch
      %186 = sbr.rel (%p184) target = $region16
    $region15: #{fno2d_forward.10} parent=5 // pred_region
      // Predicated region
      $region17: #{fno2d_forward.10} parent=15 // pred_check
        %p187 = pneg %p32
      $region18: #{fno2d_forward.10} parent=15 // pred_check_branch
        %189 = sbr.rel (%p187) target = $region20
      $region19: #{fno2d_forward.10} parent=15 // pred_region
        %p190 = scmp.lt.s32.totalorder %s12, 1
        %s191 = scalar_select %p190, %s12, 1
        %s192 = smul.addr %s191, 8
        %s193 = smul.addr %s192, 8
        %s194 = scalar_lea.vmem %s0, %s193
      $region20: #{fno2d_forward.10} parent=15 // pred_fallthru
        _
      // Predicated region
      $region21: #{fno2d_forward.10} parent=15 // pred_check
        %p195 = pneg %p58
      $region22: #{fno2d_forward.10} parent=15 // pred_check_branch
        %197 = sbr.rel (%p195) target = $region24
      $region23: #{fno2d_forward.10} parent=15 // pred_region
        %p198 = scmp.lt.s32.totalorder %s12, 1
        %s199 = scalar_select %p198, %s12, 1
        %s200 = smul.addr %s199, 8
        %s201 = smul.addr %s200, 8
        %s202 = scalar_lea.vmem %s1, %s201
      $region24: #{fno2d_forward.10} parent=15 // pred_fallthru
        _
      // Predicated region
      $region25: #{fno2d_forward.10} parent=15 // pred_check
        %p203 = pneg %p84
      $region26: #{fno2d_forward.10} parent=15 // pred_check_branch
        %205 = sbr.rel (%p203) target = $region28
      $region27: #{fno2d_forward.10} parent=15 // pred_region
        %p206 = scmp.lt.s32.totalorder %s12, 1
        %s207 = scalar_select %p206, %s12, 1
        %s208 = smul.addr %s207, 128
        %s209 = smul.addr %s208, 8
        %s210 = scalar_lea.vmem %s2, %s209
      $region28: #{fno2d_forward.10} parent=15 // pred_fallthru
        _
      // Predicated region
      $region29: #{fno2d_forward.10} parent=15 // pred_check
        %p211 = pneg %p110
      $region30: #{fno2d_forward.10} parent=15 // pred_check_branch
        %213 = sbr.rel (%p211) target = $region32
      $region31: #{fno2d_forward.10} parent=15 // pred_region
        %p214 = scmp.lt.s32.totalorder %s12, 1
        %s215 = scalar_select %p214, %s12, 1
        %s216 = smul.addr %s215, 128
        %s217 = smul.addr %s216, 8
        %s218 = scalar_lea.vmem %s3, %s217
      $region32: #{fno2d_forward.10} parent=15 // pred_fallthru
        _
    $region16: #{fno2d_forward.10} parent=5 // pred_fallthru
      _
    %p219 = scmp.le.s32.totalorder 1, %s12
    %p220 = scmp.lt.s32.totalorder %s12, 3
    %p221 = pnand %p219, %p220
    %p222 = pneg %p221
    // Predicated region
    $region33: #{fno2d_forward.10} parent=5 // pred_check
      _
    $region34: #{fno2d_forward.10} parent=5 // pred_check_branch
      %224 = sbr.rel (%p221) target = $region36
    $region35: #{fno2d_forward.10} parent=5 // pred_region
      %s225 = ssub.s32 %s12, 1
      %p226 = scmp.lt.s32.totalorder %s17, 1
      %s227 = scalar_select %p226, %s17, 1
      %s228 = smul.addr %s227, 8
      %s229 = smul.addr %s228, 8
      %s230 = scalar_lea.vmem %s0, %s229
      %p231 = pneg %p38
      %p232 = pneg %p35
      %p233 = scmp.lt.s32.totalorder %s17, 1
      %s234 = scalar_select %p233, %s17, 1
      %s235 = smul.addr %s234, 8
      %s236 = smul.addr %s235, 8
      %s237 = scalar_lea.vmem %s1, %s236
      %p238 = pneg %p64
      %p239 = pneg %p61
      %p240 = scmp.lt.s32.totalorder %s17, 1
      %s241 = scalar_select %p240, %s17, 1
      %s242 = smul.addr %s241, 128
      %s243 = smul.addr %s242, 8
      %s244 = scalar_lea.vmem %s2, %s243
      %p245 = pneg %p90
      %p246 = pneg %p87
      %p247 = scmp.lt.s32.totalorder %s17, 1
      %s248 = scalar_select %p247, %s17, 1
      %s249 = smul.addr %s248, 128
      %s250 = smul.addr %s249, 8
      %s251 = scalar_lea.vmem %s3, %s250
      %p252 = pneg %p116
      %p253 = pneg %p113
      %p254 = pneg %p142
      %p255 = pneg %p139
      %p256 = scmp.lt.s32.totalorder %s17, 1
      %s257 = scalar_select %p256, %s17, 1
      %s258 = smul.addr %s257, 8
      %s259 = smul.addr %s258, 8
      %s260 = scalar_lea.vmem %s4, %s259
      %p261 = pneg %p168
      %p262 = pneg %p165
      %p263 = scmp.lt.s32.totalorder %s17, 1
      %s264 = scalar_select %p263, %s17, 1
      %s265 = smul.addr %s264, 8
      %s266 = smul.addr %s265, 8
      %s267 = scalar_lea.vmem %s5, %s266
      %p268 = scmp.lt.s32.totalorder %s17, 1
      %s269 = scalar_select %p268, %s17, 1
      %s270 = smul.addr %s269, 8
      %s271 = smul.addr %s270, 8
      %s272 = scalar_lea.vmem %s0, %s271
      %p273 = scmp.lt.s32.totalorder %s17, 1
      %s274 = scalar_select %p273, %s17, 1
      %s275 = smul.addr %s274, 8
      %s276 = smul.addr %s275, 8
      %s277 = scalar_lea.vmem %s1, %s276
      %p278 = scmp.lt.s32.totalorder %s17, 1
      %s279 = scalar_select %p278, %s17, 1
      %s280 = smul.addr %s279, 128
      %s281 = smul.addr %s280, 8
      %s282 = scalar_lea.vmem %s2, %s281
      %p283 = scmp.lt.s32.totalorder %s17, 1
      %s284 = scalar_select %p283, %s17, 1
      %s285 = smul.addr %s284, 128
      %s286 = smul.addr %s285, 8
      %s287 = scalar_lea.vmem %s3, %s286
      %p288 = scmp.lt.s32.totalorder %s17, 1
      %s289 = scalar_select %p288, %s17, 1
      %s290 = smul.addr %s289, 8
      %s291 = smul.addr %s290, 8
      %s292 = scalar_lea.vmem %s4, %s291
      %p293 = scmp.lt.s32.totalorder %s17, 1
      %s294 = scalar_select %p293, %s17, 1
      %s295 = smul.addr %s294, 8
      %s296 = smul.addr %s295, 8
      %s297 = scalar_lea.vmem %s5, %s296
      %v298 = vld [vmem:[%s272] sm:$0xff]
      %v299 = vld [vmem:[%s272 + $0x8] sm:$0xff]
      %v300 = vld [vmem:[%s272 + $0x10] sm:$0xff]
      %v301 = vld [vmem:[%s272 + $0x18] sm:$0xff]
      %v302 = vld [vmem:[%s272 + $0x20] sm:$0xff]
      %v303 = vld [vmem:[%s272 + $0x28] sm:$0xff]
      %v304 = vld [vmem:[%s272 + $0x30] sm:$0xff]
      %v305 = vld [vmem:[%s272 + $0x38] sm:$0xff]
      %v306 = vld [vmem:[%s277] sm:$0xff]
      %v307 = vld [vmem:[%s277 + $0x8] sm:$0xff]
      %v308 = vld [vmem:[%s277 + $0x10] sm:$0xff]
      %v309 = vld [vmem:[%s277 + $0x18] sm:$0xff]
      %v310 = vld [vmem:[%s277 + $0x20] sm:$0xff]
      %v311 = vld [vmem:[%s277 + $0x28] sm:$0xff]
      %v312 = vld [vmem:[%s277 + $0x30] sm:$0xff]
      %v313 = vld [vmem:[%s277 + $0x38] sm:$0xff]
      %v314 = vld [vmem:[%s282] sm:$0xff]
      %v315 = vld [vmem:[%s282 + $0x8] sm:$0xff]
      %v316 = vld [vmem:[%s282 + $0x10] sm:$0xff]
      %v317 = vld [vmem:[%s282 + $0x18] sm:$0xff]
      %v318 = vld [vmem:[%s282 + $0x20] sm:$0xff]
      %v319 = vld [vmem:[%s282 + $0x28] sm:$0xff]
      %v320 = vld [vmem:[%s282 + $0x30] sm:$0xff]
      %v321 = vld [vmem:[%s282 + $0x38] sm:$0xff]
      %v322 = vld [vmem:[%s282 + $0x40] sm:$0xff]
      %v323 = vld [vmem:[%s282 + $0x48] sm:$0xff]
      %v324 = vld [vmem:[%s282 + $0x50] sm:$0xff]
      %v325 = vld [vmem:[%s282 + $0x58] sm:$0xff]
      %v326 = vld [vmem:[%s282 + $0x60] sm:$0xff]
      %v327 = vld [vmem:[%s282 + $0x68] sm:$0xff]
      %v328 = vld [vmem:[%s282 + $0x70] sm:$0xff]
      %v329 = vld [vmem:[%s282 + $0x78] sm:$0xff]
      %v330 = vld [vmem:[%s282 + $0x80] sm:$0xff]
      %v331 = vld [vmem:[%s282 + $0x88] sm:$0xff]
      %v332 = vld [vmem:[%s282 + $0x90] sm:$0xff]
      %v333 = vld [vmem:[%s282 + $0x98] sm:$0xff]
      %v334 = vld [vmem:[%s282 + $0xa0] sm:$0xff]
      %v335 = vld [vmem:[%s282 + $0xa8] sm:$0xff]
      %v336 = vld [vmem:[%s282 + $0xb0] sm:$0xff]
      %v337 = vld [vmem:[%s282 + $0xb8] sm:$0xff]
      %v338 = vld [vmem:[%s282 + $0xc0] sm:$0xff]
      %v339 = vld [vmem:[%s282 + $0xc8] sm:$0xff]
      %v340 = vld [vmem:[%s282 + $0xd0] sm:$0xff]
      %v341 = vld [vmem:[%s282 + $0xd8] sm:$0xff]
      %v342 = vld [vmem:[%s282 + $0xe0] sm:$0xff]
      %v343 = vld [vmem:[%s282 + $0xe8] sm:$0xff]
      %v344 = vld [vmem:[%s282 + $0xf0] sm:$0xff]
      %v345 = vld [vmem:[%s282 + $0xf8] sm:$0xff]
      %v346 = vld [vmem:[%s282 + $0x100] sm:$0xff]
      %v347 = vld [vmem:[%s282 + $0x108] sm:$0xff]
      %v348 = vld [vmem:[%s282 + $0x110] sm:$0xff]
      %v349 = vld [vmem:[%s282 + $0x118] sm:$0xff]
      %v350 = vld [vmem:[%s282 + $0x120] sm:$0xff]
      %v351 = vld [vmem:[%s282 + $0x128] sm:$0xff]
      %v352 = vld [vmem:[%s282 + $0x130] sm:$0xff]
      %v353 = vld [vmem:[%s282 + $0x138] sm:$0xff]
      %v354 = vld [vmem:[%s282 + $0x140] sm:$0xff]
      %v355 = vld [vmem:[%s282 + $0x148] sm:$0xff]
      %v356 = vld [vmem:[%s282 + $0x150] sm:$0xff]
      %v357 = vld [vmem:[%s282 + $0x158] sm:$0xff]
      %v358 = vld [vmem:[%s282 + $0x160] sm:$0xff]
      %v359 = vld [vmem:[%s282 + $0x168] sm:$0xff]
      %v360 = vld [vmem:[%s282 + $0x170] sm:$0xff]
      %v361 = vld [vmem:[%s282 + $0x178] sm:$0xff]
      %v362 = vld [vmem:[%s282 + $0x180] sm:$0xff]
      %v363 = vld [vmem:[%s282 + $0x188] sm:$0xff]
      %v364 = vld [vmem:[%s282 + $0x190] sm:$0xff]
      %v365 = vld [vmem:[%s282 + $0x198] sm:$0xff]
      %v366 = vld [vmem:[%s282 + $0x1a0] sm:$0xff]
      %v367 = vld [vmem:[%s282 + $0x1a8] sm:$0xff]
      %v368 = vld [vmem:[%s282 + $0x1b0] sm:$0xff]
      %v369 = vld [vmem:[%s282 + $0x1b8] sm:$0xff]
      %v370 = vld [vmem:[%s282 + $0x1c0] sm:$0xff]
      %v371 = vld [vmem:[%s282 + $0x1c8] sm:$0xff]
      %v372 = vld [vmem:[%s282 + $0x1d0] sm:$0xff]
      %v373 = vld [vmem:[%s282 + $0x1d8] sm:$0xff]
      %v374 = vld [vmem:[%s282 + $0x1e0] sm:$0xff]
      %v375 = vld [vmem:[%s282 + $0x1e8] sm:$0xff]
      %v376 = vld [vmem:[%s282 + $0x1f0] sm:$0xff]
      %v377 = vld [vmem:[%s282 + $0x1f8] sm:$0xff]
      %v378 = vld [vmem:[%s282 + $0x200] sm:$0xff]
      %v379 = vld [vmem:[%s282 + $0x208] sm:$0xff]
      %v380 = vld [vmem:[%s282 + $0x210] sm:$0xff]
      %v381 = vld [vmem:[%s282 + $0x218] sm:$0xff]
      %v382 = vld [vmem:[%s282 + $0x220] sm:$0xff]
      %v383 = vld [vmem:[%s282 + $0x228] sm:$0xff]
      %v384 = vld [vmem:[%s282 + $0x230] sm:$0xff]
      %v385 = vld [vmem:[%s282 + $0x238] sm:$0xff]
      %v386 = vld [vmem:[%s282 + $0x240] sm:$0xff]
      %v387 = vld [vmem:[%s282 + $0x248] sm:$0xff]
      %v388 = vld [vmem:[%s282 + $0x250] sm:$0xff]
      %v389 = vld [vmem:[%s282 + $0x258] sm:$0xff]
      %v390 = vld [vmem:[%s282 + $0x260] sm:$0xff]
      %v391 = vld [vmem:[%s282 + $0x268] sm:$0xff]
      %v392 = vld [vmem:[%s282 + $0x270] sm:$0xff]
      %v393 = vld [vmem:[%s282 + $0x278] sm:$0xff]
      %v394 = vld [vmem:[%s282 + $0x280] sm:$0xff]
      %v395 = vld [vmem:[%s282 + $0x288] sm:$0xff]
      %v396 = vld [vmem:[%s282 + $0x290] sm:$0xff]
      %v397 = vld [vmem:[%s282 + $0x298] sm:$0xff]
      %v398 = vld [vmem:[%s282 + $0x2a0] sm:$0xff]
      %v399 = vld [vmem:[%s282 + $0x2a8] sm:$0xff]
      %v400 = vld [vmem:[%s282 + $0x2b0] sm:$0xff]
      %v401 = vld [vmem:[%s282 + $0x2b8] sm:$0xff]
      %v402 = vld [vmem:[%s282 + $0x2c0] sm:$0xff]
      %v403 = vld [vmem:[%s282 + $0x2c8] sm:$0xff]
      %v404 = vld [vmem:[%s282 + $0x2d0] sm:$0xff]
      %v405 = vld [vmem:[%s282 + $0x2d8] sm:$0xff]
      %v406 = vld [vmem:[%s282 + $0x2e0] sm:$0xff]
      %v407 = vld [vmem:[%s282 + $0x2e8] sm:$0xff]
      %v408 = vld [vmem:[%s282 + $0x2f0] sm:$0xff]
      %v409 = vld [vmem:[%s282 + $0x2f8] sm:$0xff]
      %v410 = vld [vmem:[%s282 + $0x300] sm:$0xff]
      %v411 = vld [vmem:[%s282 + $0x308] sm:$0xff]
      %v412 = vld [vmem:[%s282 + $0x310] sm:$0xff]
      %v413 = vld [vmem:[%s282 + $0x318] sm:$0xff]
      %v414 = vld [vmem:[%s282 + $0x320] sm:$0xff]
      %v415 = vld [vmem:[%s282 + $0x328] sm:$0xff]
      %v416 = vld [vmem:[%s282 + $0x330] sm:$0xff]
      %v417 = vld [vmem:[%s282 + $0x338] sm:$0xff]
      %v418 = vld [vmem:[%s282 + $0x340] sm:$0xff]
      %v419 = vld [vmem:[%s282 + $0x348] sm:$0xff]
      %v420 = vld [vmem:[%s282 + $0x350] sm:$0xff]
      %v421 = vld [vmem:[%s282 + $0x358] sm:$0xff]
      %v422 = vld [vmem:[%s282 + $0x360] sm:$0xff]
      %v423 = vld [vmem:[%s282 + $0x368] sm:$0xff]
      %v424 = vld [vmem:[%s282 + $0x370] sm:$0xff]
      %v425 = vld [vmem:[%s282 + $0x378] sm:$0xff]
      %v426 = vld [vmem:[%s282 + $0x380] sm:$0xff]
      %v427 = vld [vmem:[%s282 + $0x388] sm:$0xff]
      %v428 = vld [vmem:[%s282 + $0x390] sm:$0xff]
      %v429 = vld [vmem:[%s282 + $0x398] sm:$0xff]
      %v430 = vld [vmem:[%s282 + $0x3a0] sm:$0xff]
      %v431 = vld [vmem:[%s282 + $0x3a8] sm:$0xff]
      %v432 = vld [vmem:[%s282 + $0x3b0] sm:$0xff]
      %v433 = vld [vmem:[%s282 + $0x3b8] sm:$0xff]
      %v434 = vld [vmem:[%s282 + $0x3c0] sm:$0xff]
      %v435 = vld [vmem:[%s282 + $0x3c8] sm:$0xff]
      %v436 = vld [vmem:[%s282 + $0x3d0] sm:$0xff]
      %v437 = vld [vmem:[%s282 + $0x3d8] sm:$0xff]
      %v438 = vld [vmem:[%s282 + $0x3e0] sm:$0xff]
      %v439 = vld [vmem:[%s282 + $0x3e8] sm:$0xff]
      %v440 = vld [vmem:[%s282 + $0x3f0] sm:$0xff]
      %v441 = vld [vmem:[%s282 + $0x3f8] sm:$0xff]
      %v442 = vld [vmem:[%s287] sm:$0xff]
      %v443 = vld [vmem:[%s287 + $0x8] sm:$0xff]
      %v444 = vld [vmem:[%s287 + $0x10] sm:$0xff]
      %v445 = vld [vmem:[%s287 + $0x18] sm:$0xff]
      %v446 = vld [vmem:[%s287 + $0x20] sm:$0xff]
      %v447 = vld [vmem:[%s287 + $0x28] sm:$0xff]
      %v448 = vld [vmem:[%s287 + $0x30] sm:$0xff]
      %v449 = vld [vmem:[%s287 + $0x38] sm:$0xff]
      %v450 = vld [vmem:[%s287 + $0x40] sm:$0xff]
      %v451 = vld [vmem:[%s287 + $0x48] sm:$0xff]
      %v452 = vld [vmem:[%s287 + $0x50] sm:$0xff]
      %v453 = vld [vmem:[%s287 + $0x58] sm:$0xff]
      %v454 = vld [vmem:[%s287 + $0x60] sm:$0xff]
      %v455 = vld [vmem:[%s287 + $0x68] sm:$0xff]
      %v456 = vld [vmem:[%s287 + $0x70] sm:$0xff]
      %v457 = vld [vmem:[%s287 + $0x78] sm:$0xff]
      %v458 = vld [vmem:[%s287 + $0x80] sm:$0xff]
      %v459 = vld [vmem:[%s287 + $0x88] sm:$0xff]
      %v460 = vld [vmem:[%s287 + $0x90] sm:$0xff]
      %v461 = vld [vmem:[%s287 + $0x98] sm:$0xff]
      %v462 = vld [vmem:[%s287 + $0xa0] sm:$0xff]
      %v463 = vld [vmem:[%s287 + $0xa8] sm:$0xff]
      %v464 = vld [vmem:[%s287 + $0xb0] sm:$0xff]
      %v465 = vld [vmem:[%s287 + $0xb8] sm:$0xff]
      %v466 = vld [vmem:[%s287 + $0xc0] sm:$0xff]
      %v467 = vld [vmem:[%s287 + $0xc8] sm:$0xff]
      %v468 = vld [vmem:[%s287 + $0xd0] sm:$0xff]
      %v469 = vld [vmem:[%s287 + $0xd8] sm:$0xff]
      %v470 = vld [vmem:[%s287 + $0xe0] sm:$0xff]
      %v471 = vld [vmem:[%s287 + $0xe8] sm:$0xff]
      %v472 = vld [vmem:[%s287 + $0xf0] sm:$0xff]
      %v473 = vld [vmem:[%s287 + $0xf8] sm:$0xff]
      %v474 = vld [vmem:[%s287 + $0x100] sm:$0xff]
      %v475 = vld [vmem:[%s287 + $0x108] sm:$0xff]
      %v476 = vld [vmem:[%s287 + $0x110] sm:$0xff]
      %v477 = vld [vmem:[%s287 + $0x118] sm:$0xff]
      %v478 = vld [vmem:[%s287 + $0x120] sm:$0xff]
      %v479 = vld [vmem:[%s287 + $0x128] sm:$0xff]
      %v480 = vld [vmem:[%s287 + $0x130] sm:$0xff]
      %v481 = vld [vmem:[%s287 + $0x138] sm:$0xff]
      %v482 = vld [vmem:[%s287 + $0x140] sm:$0xff]
      %v483 = vld [vmem:[%s287 + $0x148] sm:$0xff]
      %v484 = vld [vmem:[%s287 + $0x150] sm:$0xff]
      %v485 = vld [vmem:[%s287 + $0x158] sm:$0xff]
      %v486 = vld [vmem:[%s287 + $0x160] sm:$0xff]
      %v487 = vld [vmem:[%s287 + $0x168] sm:$0xff]
      %v488 = vld [vmem:[%s287 + $0x170] sm:$0xff]
      %v489 = vld [vmem:[%s287 + $0x178] sm:$0xff]
      %v490 = vld [vmem:[%s287 + $0x180] sm:$0xff]
      %v491 = vld [vmem:[%s287 + $0x188] sm:$0xff]
      %v492 = vld [vmem:[%s287 + $0x190] sm:$0xff]
      %v493 = vld [vmem:[%s287 + $0x198] sm:$0xff]
      %v494 = vld [vmem:[%s287 + $0x1a0] sm:$0xff]
      %v495 = vld [vmem:[%s287 + $0x1a8] sm:$0xff]
      %v496 = vld [vmem:[%s287 + $0x1b0] sm:$0xff]
      %v497 = vld [vmem:[%s287 + $0x1b8] sm:$0xff]
      %v498 = vld [vmem:[%s287 + $0x1c0] sm:$0xff]
      %v499 = vld [vmem:[%s287 + $0x1c8] sm:$0xff]
      %v500 = vld [vmem:[%s287 + $0x1d0] sm:$0xff]
      %v501 = vld [vmem:[%s287 + $0x1d8] sm:$0xff]
      %v502 = vld [vmem:[%s287 + $0x1e0] sm:$0xff]
      %v503 = vld [vmem:[%s287 + $0x1e8] sm:$0xff]
      %v504 = vld [vmem:[%s287 + $0x1f0] sm:$0xff]
      %v505 = vld [vmem:[%s287 + $0x1f8] sm:$0xff]
      %v506 = vld [vmem:[%s287 + $0x200] sm:$0xff]
      %v507 = vld [vmem:[%s287 + $0x208] sm:$0xff]
      %v508 = vld [vmem:[%s287 + $0x210] sm:$0xff]
      %v509 = vld [vmem:[%s287 + $0x218] sm:$0xff]
      %v510 = vld [vmem:[%s287 + $0x220] sm:$0xff]
      %v511 = vld [vmem:[%s287 + $0x228] sm:$0xff]
      %v512 = vld [vmem:[%s287 + $0x230] sm:$0xff]
      %v513 = vld [vmem:[%s287 + $0x238] sm:$0xff]
      %v514 = vld [vmem:[%s287 + $0x240] sm:$0xff]
      %v515 = vld [vmem:[%s287 + $0x248] sm:$0xff]
      %v516 = vld [vmem:[%s287 + $0x250] sm:$0xff]
      %v517 = vld [vmem:[%s287 + $0x258] sm:$0xff]
      %v518 = vld [vmem:[%s287 + $0x260] sm:$0xff]
      %v519 = vld [vmem:[%s287 + $0x268] sm:$0xff]
      %v520 = vld [vmem:[%s287 + $0x270] sm:$0xff]
      %v521 = vld [vmem:[%s287 + $0x278] sm:$0xff]
      %v522 = vld [vmem:[%s287 + $0x280] sm:$0xff]
      %v523 = vld [vmem:[%s287 + $0x288] sm:$0xff]
      %v524 = vld [vmem:[%s287 + $0x290] sm:$0xff]
      %v525 = vld [vmem:[%s287 + $0x298] sm:$0xff]
      %v526 = vld [vmem:[%s287 + $0x2a0] sm:$0xff]
      %v527 = vld [vmem:[%s287 + $0x2a8] sm:$0xff]
      %v528 = vld [vmem:[%s287 + $0x2b0] sm:$0xff]
      %v529 = vld [vmem:[%s287 + $0x2b8] sm:$0xff]
      %v530 = vld [vmem:[%s287 + $0x2c0] sm:$0xff]
      %v531 = vld [vmem:[%s287 + $0x2c8] sm:$0xff]
      %v532 = vld [vmem:[%s287 + $0x2d0] sm:$0xff]
      %v533 = vld [vmem:[%s287 + $0x2d8] sm:$0xff]
      %v534 = vld [vmem:[%s287 + $0x2e0] sm:$0xff]
      %v535 = vld [vmem:[%s287 + $0x2e8] sm:$0xff]
      %v536 = vld [vmem:[%s287 + $0x2f0] sm:$0xff]
      %v537 = vld [vmem:[%s287 + $0x2f8] sm:$0xff]
      %v538 = vld [vmem:[%s287 + $0x300] sm:$0xff]
      %v539 = vld [vmem:[%s287 + $0x308] sm:$0xff]
      %v540 = vld [vmem:[%s287 + $0x310] sm:$0xff]
      %v541 = vld [vmem:[%s287 + $0x318] sm:$0xff]
      %v542 = vld [vmem:[%s287 + $0x320] sm:$0xff]
      %v543 = vld [vmem:[%s287 + $0x328] sm:$0xff]
      %v544 = vld [vmem:[%s287 + $0x330] sm:$0xff]
      %v545 = vld [vmem:[%s287 + $0x338] sm:$0xff]
      %v546 = vld [vmem:[%s287 + $0x340] sm:$0xff]
      %v547 = vld [vmem:[%s287 + $0x348] sm:$0xff]
      %v548 = vld [vmem:[%s287 + $0x350] sm:$0xff]
      %v549 = vld [vmem:[%s287 + $0x358] sm:$0xff]
      %v550 = vld [vmem:[%s287 + $0x360] sm:$0xff]
      %v551 = vld [vmem:[%s287 + $0x368] sm:$0xff]
      %v552 = vld [vmem:[%s287 + $0x370] sm:$0xff]
      %v553 = vld [vmem:[%s287 + $0x378] sm:$0xff]
      %v554 = vld [vmem:[%s287 + $0x380] sm:$0xff]
      %v555 = vld [vmem:[%s287 + $0x388] sm:$0xff]
      %v556 = vld [vmem:[%s287 + $0x390] sm:$0xff]
      %v557 = vld [vmem:[%s287 + $0x398] sm:$0xff]
      %v558 = vld [vmem:[%s287 + $0x3a0] sm:$0xff]
      %v559 = vld [vmem:[%s287 + $0x3a8] sm:$0xff]
      %v560 = vld [vmem:[%s287 + $0x3b0] sm:$0xff]
      %v561 = vld [vmem:[%s287 + $0x3b8] sm:$0xff]
      %v562 = vld [vmem:[%s287 + $0x3c0] sm:$0xff]
      %v563 = vld [vmem:[%s287 + $0x3c8] sm:$0xff]
      %v564 = vld [vmem:[%s287 + $0x3d0] sm:$0xff]
      %v565 = vld [vmem:[%s287 + $0x3d8] sm:$0xff]
      %v566 = vld [vmem:[%s287 + $0x3e0] sm:$0xff]
      %v567 = vld [vmem:[%s287 + $0x3e8] sm:$0xff]
      %v568 = vld [vmem:[%s287 + $0x3f0] sm:$0xff]
      %v569 = vld [vmem:[%s287 + $0x3f8] sm:$0xff]
      %v570 = vadd.f32 %v298, %v306
      %v571 = vadd.f32 %v299, %v307
      %v572 = vadd.f32 %v300, %v308
      %v573 = vadd.f32 %v301, %v309
      %v574 = vadd.f32 %v302, %v310
      %v575 = vadd.f32 %v303, %v311
      %v576 = vadd.f32 %v304, %v312
      %v577 = vadd.f32 %v305, %v313
      %v578 = vadd.f32 %v314, %v442
      %v579 = vadd.f32 %v315, %v443
      %v580 = vadd.f32 %v316, %v444
      %v581 = vadd.f32 %v317, %v445
      %v582 = vadd.f32 %v318, %v446
      %v583 = vadd.f32 %v319, %v447
      %v584 = vadd.f32 %v320, %v448
      %v585 = vadd.f32 %v321, %v449
      %v586 = vadd.f32 %v322, %v450
      %v587 = vadd.f32 %v323, %v451
      %v588 = vadd.f32 %v324, %v452
      %v589 = vadd.f32 %v325, %v453
      %v590 = vadd.f32 %v326, %v454
      %v591 = vadd.f32 %v327, %v455
      %v592 = vadd.f32 %v328, %v456
      %v593 = vadd.f32 %v329, %v457
      %v594 = vadd.f32 %v330, %v458
      %v595 = vadd.f32 %v331, %v459
      %v596 = vadd.f32 %v332, %v460
      %v597 = vadd.f32 %v333, %v461
      %v598 = vadd.f32 %v334, %v462
      %v599 = vadd.f32 %v335, %v463
      %v600 = vadd.f32 %v336, %v464
      %v601 = vadd.f32 %v337, %v465
      %v602 = vadd.f32 %v338, %v466
      %v603 = vadd.f32 %v339, %v467
      %v604 = vadd.f32 %v340, %v468
      %v605 = vadd.f32 %v341, %v469
      %v606 = vadd.f32 %v342, %v470
      %v607 = vadd.f32 %v343, %v471
      %v608 = vadd.f32 %v344, %v472
      %v609 = vadd.f32 %v345, %v473
      %v610 = vadd.f32 %v346, %v474
      %v611 = vadd.f32 %v347, %v475
      %v612 = vadd.f32 %v348, %v476
      %v613 = vadd.f32 %v349, %v477
      %v614 = vadd.f32 %v350, %v478
      %v615 = vadd.f32 %v351, %v479
      %v616 = vadd.f32 %v352, %v480
      %v617 = vadd.f32 %v353, %v481
      %v618 = vadd.f32 %v354, %v482
      %v619 = vadd.f32 %v355, %v483
      %v620 = vadd.f32 %v356, %v484
      %v621 = vadd.f32 %v357, %v485
      %v622 = vadd.f32 %v358, %v486
      %v623 = vadd.f32 %v359, %v487
      %v624 = vadd.f32 %v360, %v488
      %v625 = vadd.f32 %v361, %v489
      %v626 = vadd.f32 %v362, %v490
      %v627 = vadd.f32 %v363, %v491
      %v628 = vadd.f32 %v364, %v492
      %v629 = vadd.f32 %v365, %v493
      %v630 = vadd.f32 %v366, %v494
      %v631 = vadd.f32 %v367, %v495
      %v632 = vadd.f32 %v368, %v496
      %v633 = vadd.f32 %v369, %v497
      %v634 = vadd.f32 %v370, %v498
      %v635 = vadd.f32 %v371, %v499
      %v636 = vadd.f32 %v372, %v500
      %v637 = vadd.f32 %v373, %v501
      %v638 = vadd.f32 %v374, %v502
      %v639 = vadd.f32 %v375, %v503
      %v640 = vadd.f32 %v376, %v504
      %v641 = vadd.f32 %v377, %v505
      %v642 = vadd.f32 %v378, %v506
      %v643 = vadd.f32 %v379, %v507
      %v644 = vadd.f32 %v380, %v508
      %v645 = vadd.f32 %v381, %v509
      %v646 = vadd.f32 %v382, %v510
      %v647 = vadd.f32 %v383, %v511
      %v648 = vadd.f32 %v384, %v512
      %v649 = vadd.f32 %v385, %v513
      %v650 = vadd.f32 %v386, %v514
      %v651 = vadd.f32 %v387, %v515
      %v652 = vadd.f32 %v388, %v516
      %v653 = vadd.f32 %v389, %v517
      %v654 = vadd.f32 %v390, %v518
      %v655 = vadd.f32 %v391, %v519
      %v656 = vadd.f32 %v392, %v520
      %v657 = vadd.f32 %v393, %v521
      %v658 = vadd.f32 %v394, %v522
      %v659 = vadd.f32 %v395, %v523
      %v660 = vadd.f32 %v396, %v524
      %v661 = vadd.f32 %v397, %v525
      %v662 = vadd.f32 %v398, %v526
      %v663 = vadd.f32 %v399, %v527
      %v664 = vadd.f32 %v400, %v528
      %v665 = vadd.f32 %v401, %v529
      %v666 = vadd.f32 %v402, %v530
      %v667 = vadd.f32 %v403, %v531
      %v668 = vadd.f32 %v404, %v532
      %v669 = vadd.f32 %v405, %v533
      %v670 = vadd.f32 %v406, %v534
      %v671 = vadd.f32 %v407, %v535
      %v672 = vadd.f32 %v408, %v536
      %v673 = vadd.f32 %v409, %v537
      %v674 = vadd.f32 %v410, %v538
      %v675 = vadd.f32 %v411, %v539
      %v676 = vadd.f32 %v412, %v540
      %v677 = vadd.f32 %v413, %v541
      %v678 = vadd.f32 %v414, %v542
      %v679 = vadd.f32 %v415, %v543
      %v680 = vadd.f32 %v416, %v544
      %v681 = vadd.f32 %v417, %v545
      %v682 = vadd.f32 %v418, %v546
      %v683 = vadd.f32 %v419, %v547
      %v684 = vadd.f32 %v420, %v548
      %v685 = vadd.f32 %v421, %v549
      %v686 = vadd.f32 %v422, %v550
      %v687 = vadd.f32 %v423, %v551
      %v688 = vadd.f32 %v424, %v552
      %v689 = vadd.f32 %v425, %v553
      %v690 = vadd.f32 %v426, %v554
      %v691 = vadd.f32 %v427, %v555
      %v692 = vadd.f32 %v428, %v556
      %v693 = vadd.f32 %v429, %v557
      %v694 = vadd.f32 %v430, %v558
      %v695 = vadd.f32 %v431, %v559
      %v696 = vadd.f32 %v432, %v560
      %v697 = vadd.f32 %v433, %v561
      %v698 = vadd.f32 %v434, %v562
      %v699 = vadd.f32 %v435, %v563
      %v700 = vadd.f32 %v436, %v564
      %v701 = vadd.f32 %v437, %v565
      %v702 = vadd.f32 %v438, %v566
      %v703 = vadd.f32 %v439, %v567
      %v704 = vadd.f32 %v440, %v568
      %v705 = vadd.f32 %v441, %v569
      %v706 = vlaneseq
      %v707 = vshrl.u32 %v706, 7
      %v708 = vsub.s32 0, %v707
      %v709 = vrot.slane %v298, %v708
      %v710 = vlaneseq
      %v711 = vshrl.u32 %v710, 7
      %v712 = vsub.s32 0, %v711
      %v713 = vrot.slane %v302, %v712
      %v714 = vmul.f32 %v709, %v314
      %v715 = vmul.f32 %v709, %v315
      %v716 = vmul.f32 %v709, %v316
      %v717 = vmul.f32 %v709, %v317
      %v718 = vmul.f32 %v713, %v314
      %v719 = vmul.f32 %v713, %v315
      %v720 = vmul.f32 %v713, %v316
      %v721 = vmul.f32 %v713, %v317
      %v722 = vlaneseq
      %v723 = vshrl.u32 %v722, 7
      %v724 = vsub.s32 0, %v723
      %v725 = vrot.slane %v306, %v724
      %v726 = vlaneseq
      %v727 = vshrl.u32 %v726, 7
      %v728 = vsub.s32 0, %v727
      %v729 = vrot.slane %v310, %v728
      %v730 = vmul.f32 %v725, %v442
      %v731 = vmul.f32 %v725, %v443
      %v732 = vmul.f32 %v725, %v444
      %v733 = vmul.f32 %v725, %v445
      %v734 = vmul.f32 %v729, %v442
      %v735 = vmul.f32 %v729, %v443
      %v736 = vmul.f32 %v729, %v444
      %v737 = vmul.f32 %v729, %v445
      %v738 = vlaneseq
      %v739 = vshrl.u32 %v738, 7
      %v740 = vsub.s32 0, %v739
      %v741 = vrot.slane %v570, %v740
      %v742 = vlaneseq
      %v743 = vshrl.u32 %v742, 7
      %v744 = vsub.s32 0, %v743
      %v745 = vrot.slane %v574, %v744
      %v746 = vmul.f32 %v741, %v578
      %v747 = vmul.f32 %v741, %v579
      %v748 = vmul.f32 %v741, %v580
      %v749 = vmul.f32 %v741, %v581
      %v750 = vmul.f32 %v745, %v578
      %v751 = vmul.f32 %v745, %v579
      %v752 = vmul.f32 %v745, %v580
      %v753 = vmul.f32 %v745, %v581
      %v754 = vlaneseq
      %v755 = vshrl.u32 %v754, 7
      %v756 = vsub.s32 1, %v755
      %v757 = vrot.slane %v298, %v756
      %v758 = vlaneseq
      %v759 = vshrl.u32 %v758, 7
      %v760 = vsub.s32 1, %v759
      %v761 = vrot.slane %v302, %v760
      %v762 = vmul.f32 %v757, %v318
      %v763 = vmul.f32 %v757, %v319
      %v764 = vmul.f32 %v757, %v320
      %v765 = vmul.f32 %v757, %v321
      %v766 = vmul.f32 %v761, %v318
      %v767 = vmul.f32 %v761, %v319
      %v768 = vmul.f32 %v761, %v320
      %v769 = vmul.f32 %v761, %v321
      %v770 = vadd.f32 %v714, %v762
      %v771 = vadd.f32 %v715, %v763
      %v772 = vadd.f32 %v716, %v764
      %v773 = vadd.f32 %v717, %v765
      %v774 = vadd.f32 %v718, %v766
      %v775 = vadd.f32 %v719, %v767
      %v776 = vadd.f32 %v720, %v768
      %v777 = vadd.f32 %v721, %v769
      %v778 = vlaneseq
      %v779 = vshrl.u32 %v778, 7
      %v780 = vsub.s32 1, %v779
      %v781 = vrot.slane %v306, %v780
      %v782 = vlaneseq
      %v783 = vshrl.u32 %v782, 7
      %v784 = vsub.s32 1, %v783
      %v785 = vrot.slane %v310, %v784
      %v786 = vmul.f32 %v781, %v446
      %v787 = vmul.f32 %v781, %v447
      %v788 = vmul.f32 %v781, %v448
      %v789 = vmul.f32 %v781, %v449
      %v790 = vmul.f32 %v785, %v446
      %v791 = vmul.f32 %v785, %v447
      %v792 = vmul.f32 %v785, %v448
      %v793 = vmul.f32 %v785, %v449
      %v794 = vadd.f32 %v730, %v786
      %v795 = vadd.f32 %v731, %v787
      %v796 = vadd.f32 %v732, %v788
      %v797 = vadd.f32 %v733, %v789
      %v798 = vadd.f32 %v734, %v790
      %v799 = vadd.f32 %v735, %v791
      %v800 = vadd.f32 %v736, %v792
      %v801 = vadd.f32 %v737, %v793
      %v802 = vlaneseq
      %v803 = vshrl.u32 %v802, 7
      %v804 = vsub.s32 1, %v803
      %v805 = vrot.slane %v570, %v804
      %v806 = vlaneseq
      %v807 = vshrl.u32 %v806, 7
      %v808 = vsub.s32 1, %v807
      %v809 = vrot.slane %v574, %v808
      %v810 = vmul.f32 %v805, %v582
      %v811 = vmul.f32 %v805, %v583
      %v812 = vmul.f32 %v805, %v584
      %v813 = vmul.f32 %v805, %v585
      %v814 = vmul.f32 %v809, %v582
      %v815 = vmul.f32 %v809, %v583
      %v816 = vmul.f32 %v809, %v584
      %v817 = vmul.f32 %v809, %v585
      %v818 = vadd.f32 %v746, %v810
      %v819 = vadd.f32 %v747, %v811
      %v820 = vadd.f32 %v748, %v812
      %v821 = vadd.f32 %v749, %v813
      %v822 = vadd.f32 %v750, %v814
      %v823 = vadd.f32 %v751, %v815
      %v824 = vadd.f32 %v752, %v816
      %v825 = vadd.f32 %v753, %v817
      %v826 = vlaneseq
      %v827 = vshrl.u32 %v826, 7
      %v828 = vsub.s32 2, %v827
      %v829 = vrot.slane %v298, %v828
      %v830 = vlaneseq
      %v831 = vshrl.u32 %v830, 7
      %v832 = vsub.s32 2, %v831
      %v833 = vrot.slane %v302, %v832
      %v834 = vmul.f32 %v829, %v322
      %v835 = vmul.f32 %v829, %v323
      %v836 = vmul.f32 %v829, %v324
      %v837 = vmul.f32 %v829, %v325
      %v838 = vmul.f32 %v833, %v322
      %v839 = vmul.f32 %v833, %v323
      %v840 = vmul.f32 %v833, %v324
      %v841 = vmul.f32 %v833, %v325
      %v842 = vadd.f32 %v770, %v834
      %v843 = vadd.f32 %v771, %v835
      %v844 = vadd.f32 %v772, %v836
      %v845 = vadd.f32 %v773, %v837
      %v846 = vadd.f32 %v774, %v838
      %v847 = vadd.f32 %v775, %v839
      %v848 = vadd.f32 %v776, %v840
      %v849 = vadd.f32 %v777, %v841
      %v850 = vlaneseq
      %v851 = vshrl.u32 %v850, 7
      %v852 = vsub.s32 2, %v851
      %v853 = vrot.slane %v306, %v852
      %v854 = vlaneseq
      %v855 = vshrl.u32 %v854, 7
      %v856 = vsub.s32 2, %v855
      %v857 = vrot.slane %v310, %v856
      %v858 = vmul.f32 %v853, %v450
      %v859 = vmul.f32 %v853, %v451
      %v860 = vmul.f32 %v853, %v452
      %v861 = vmul.f32 %v853, %v453
      %v862 = vmul.f32 %v857, %v450
      %v863 = vmul.f32 %v857, %v451
      %v864 = vmul.f32 %v857, %v452
      %v865 = vmul.f32 %v857, %v453
      %v866 = vadd.f32 %v794, %v858
      %v867 = vadd.f32 %v795, %v859
      %v868 = vadd.f32 %v796, %v860
      %v869 = vadd.f32 %v797, %v861
      %v870 = vadd.f32 %v798, %v862
      %v871 = vadd.f32 %v799, %v863
      %v872 = vadd.f32 %v800, %v864
      %v873 = vadd.f32 %v801, %v865
      %v874 = vlaneseq
      %v875 = vshrl.u32 %v874, 7
      %v876 = vsub.s32 2, %v875
      %v877 = vrot.slane %v570, %v876
      %v878 = vlaneseq
      %v879 = vshrl.u32 %v878, 7
      %v880 = vsub.s32 2, %v879
      %v881 = vrot.slane %v574, %v880
      %v882 = vmul.f32 %v877, %v586
      %v883 = vmul.f32 %v877, %v587
      %v884 = vmul.f32 %v877, %v588
      %v885 = vmul.f32 %v877, %v589
      %v886 = vmul.f32 %v881, %v586
      %v887 = vmul.f32 %v881, %v587
      %v888 = vmul.f32 %v881, %v588
      %v889 = vmul.f32 %v881, %v589
      %v890 = vadd.f32 %v818, %v882
      %v891 = vadd.f32 %v819, %v883
      %v892 = vadd.f32 %v820, %v884
      %v893 = vadd.f32 %v821, %v885
      %v894 = vadd.f32 %v822, %v886
      %v895 = vadd.f32 %v823, %v887
      %v896 = vadd.f32 %v824, %v888
      %v897 = vadd.f32 %v825, %v889
      %v898 = vlaneseq
      %v899 = vshrl.u32 %v898, 7
      %v900 = vsub.s32 3, %v899
      %v901 = vrot.slane %v298, %v900
      %v902 = vlaneseq
      %v903 = vshrl.u32 %v902, 7
      %v904 = vsub.s32 3, %v903
      %v905 = vrot.slane %v302, %v904
      %v906 = vmul.f32 %v901, %v326
      %v907 = vmul.f32 %v901, %v327
      %v908 = vmul.f32 %v901, %v328
      %v909 = vmul.f32 %v901, %v329
      %v910 = vmul.f32 %v905, %v326
      %v911 = vmul.f32 %v905, %v327
      %v912 = vmul.f32 %v905, %v328
      %v913 = vmul.f32 %v905, %v329
      %v914 = vadd.f32 %v842, %v906
      %v915 = vadd.f32 %v843, %v907
      %v916 = vadd.f32 %v844, %v908
      %v917 = vadd.f32 %v845, %v909
      %v918 = vadd.f32 %v846, %v910
      %v919 = vadd.f32 %v847, %v911
      %v920 = vadd.f32 %v848, %v912
      %v921 = vadd.f32 %v849, %v913
      %v922 = vlaneseq
      %v923 = vshrl.u32 %v922, 7
      %v924 = vsub.s32 3, %v923
      %v925 = vrot.slane %v306, %v924
      %v926 = vlaneseq
      %v927 = vshrl.u32 %v926, 7
      %v928 = vsub.s32 3, %v927
      %v929 = vrot.slane %v310, %v928
      %v930 = vmul.f32 %v925, %v454
      %v931 = vmul.f32 %v925, %v455
      %v932 = vmul.f32 %v925, %v456
      %v933 = vmul.f32 %v925, %v457
      %v934 = vmul.f32 %v929, %v454
      %v935 = vmul.f32 %v929, %v455
      %v936 = vmul.f32 %v929, %v456
      %v937 = vmul.f32 %v929, %v457
      %v938 = vadd.f32 %v866, %v930
      %v939 = vadd.f32 %v867, %v931
      %v940 = vadd.f32 %v868, %v932
      %v941 = vadd.f32 %v869, %v933
      %v942 = vadd.f32 %v870, %v934
      %v943 = vadd.f32 %v871, %v935
      %v944 = vadd.f32 %v872, %v936
      %v945 = vadd.f32 %v873, %v937
      %v946 = vlaneseq
      %v947 = vshrl.u32 %v946, 7
      %v948 = vsub.s32 3, %v947
      %v949 = vrot.slane %v570, %v948
      %v950 = vlaneseq
      %v951 = vshrl.u32 %v950, 7
      %v952 = vsub.s32 3, %v951
      %v953 = vrot.slane %v574, %v952
      %v954 = vmul.f32 %v949, %v590
      %v955 = vmul.f32 %v949, %v591
      %v956 = vmul.f32 %v949, %v592
      %v957 = vmul.f32 %v949, %v593
      %v958 = vmul.f32 %v953, %v590
      %v959 = vmul.f32 %v953, %v591
      %v960 = vmul.f32 %v953, %v592
      %v961 = vmul.f32 %v953, %v593
      %v962 = vadd.f32 %v890, %v954
      %v963 = vadd.f32 %v891, %v955
      %v964 = vadd.f32 %v892, %v956
      %v965 = vadd.f32 %v893, %v957
      %v966 = vadd.f32 %v894, %v958
      %v967 = vadd.f32 %v895, %v959
      %v968 = vadd.f32 %v896, %v960
      %v969 = vadd.f32 %v897, %v961
      %v970 = vlaneseq
      %v971 = vshrl.u32 %v970, 7
      %v972 = vsub.s32 4, %v971
      %v973 = vrot.slane %v298, %v972
      %v974 = vlaneseq
      %v975 = vshrl.u32 %v974, 7
      %v976 = vsub.s32 4, %v975
      %v977 = vrot.slane %v302, %v976
      %v978 = vmul.f32 %v973, %v330
      %v979 = vmul.f32 %v973, %v331
      %v980 = vmul.f32 %v973, %v332
      %v981 = vmul.f32 %v973, %v333
      %v982 = vmul.f32 %v977, %v330
      %v983 = vmul.f32 %v977, %v331
      %v984 = vmul.f32 %v977, %v332
      %v985 = vmul.f32 %v977, %v333
      %v986 = vadd.f32 %v914, %v978
      %v987 = vadd.f32 %v915, %v979
      %v988 = vadd.f32 %v916, %v980
      %v989 = vadd.f32 %v917, %v981
      %v990 = vadd.f32 %v918, %v982
      %v991 = vadd.f32 %v919, %v983
      %v992 = vadd.f32 %v920, %v984
      %v993 = vadd.f32 %v921, %v985
      %v994 = vlaneseq
      %v995 = vshrl.u32 %v994, 7
      %v996 = vsub.s32 4, %v995
      %v997 = vrot.slane %v306, %v996
      %v998 = vlaneseq
      %v999 = vshrl.u32 %v998, 7
      %v1000 = vsub.s32 4, %v999
      %v1001 = vrot.slane %v310, %v1000
      %v1002 = vmul.f32 %v997, %v458
      %v1003 = vmul.f32 %v997, %v459
      %v1004 = vmul.f32 %v997, %v460
      %v1005 = vmul.f32 %v997, %v461
      %v1006 = vmul.f32 %v1001, %v458
      %v1007 = vmul.f32 %v1001, %v459
      %v1008 = vmul.f32 %v1001, %v460
      %v1009 = vmul.f32 %v1001, %v461
      %v1010 = vadd.f32 %v938, %v1002
      %v1011 = vadd.f32 %v939, %v1003
      %v1012 = vadd.f32 %v940, %v1004
      %v1013 = vadd.f32 %v941, %v1005
      %v1014 = vadd.f32 %v942, %v1006
      %v1015 = vadd.f32 %v943, %v1007
      %v1016 = vadd.f32 %v944, %v1008
      %v1017 = vadd.f32 %v945, %v1009
      %v1018 = vlaneseq
      %v1019 = vshrl.u32 %v1018, 7
      %v1020 = vsub.s32 4, %v1019
      %v1021 = vrot.slane %v570, %v1020
      %v1022 = vlaneseq
      %v1023 = vshrl.u32 %v1022, 7
      %v1024 = vsub.s32 4, %v1023
      %v1025 = vrot.slane %v574, %v1024
      %v1026 = vmul.f32 %v1021, %v594
      %v1027 = vmul.f32 %v1021, %v595
      %v1028 = vmul.f32 %v1021, %v596
      %v1029 = vmul.f32 %v1021, %v597
      %v1030 = vmul.f32 %v1025, %v594
      %v1031 = vmul.f32 %v1025, %v595
      %v1032 = vmul.f32 %v1025, %v596
      %v1033 = vmul.f32 %v1025, %v597
      %v1034 = vadd.f32 %v962, %v1026
      %v1035 = vadd.f32 %v963, %v1027
      %v1036 = vadd.f32 %v964, %v1028
      %v1037 = vadd.f32 %v965, %v1029
      %v1038 = vadd.f32 %v966, %v1030
      %v1039 = vadd.f32 %v967, %v1031
      %v1040 = vadd.f32 %v968, %v1032
      %v1041 = vadd.f32 %v969, %v1033
      %v1042 = vlaneseq
      %v1043 = vshrl.u32 %v1042, 7
      %v1044 = vsub.s32 5, %v1043
      %v1045 = vrot.slane %v298, %v1044
      %v1046 = vlaneseq
      %v1047 = vshrl.u32 %v1046, 7
      %v1048 = vsub.s32 5, %v1047
      %v1049 = vrot.slane %v302, %v1048
      %v1050 = vmul.f32 %v1045, %v334
      %v1051 = vmul.f32 %v1045, %v335
      %v1052 = vmul.f32 %v1045, %v336
      %v1053 = vmul.f32 %v1045, %v337
      %v1054 = vmul.f32 %v1049, %v334
      %v1055 = vmul.f32 %v1049, %v335
      %v1056 = vmul.f32 %v1049, %v336
      %v1057 = vmul.f32 %v1049, %v337
      %v1058 = vadd.f32 %v986, %v1050
      %v1059 = vadd.f32 %v987, %v1051
      %v1060 = vadd.f32 %v988, %v1052
      %v1061 = vadd.f32 %v989, %v1053
      %v1062 = vadd.f32 %v990, %v1054
      %v1063 = vadd.f32 %v991, %v1055
      %v1064 = vadd.f32 %v992, %v1056
      %v1065 = vadd.f32 %v993, %v1057
      %v1066 = vlaneseq
      %v1067 = vshrl.u32 %v1066, 7
      %v1068 = vsub.s32 5, %v1067
      %v1069 = vrot.slane %v306, %v1068
      %v1070 = vlaneseq
      %v1071 = vshrl.u32 %v1070, 7
      %v1072 = vsub.s32 5, %v1071
      %v1073 = vrot.slane %v310, %v1072
      %v1074 = vmul.f32 %v1069, %v462
      %v1075 = vmul.f32 %v1069, %v463
      %v1076 = vmul.f32 %v1069, %v464
      %v1077 = vmul.f32 %v1069, %v465
      %v1078 = vmul.f32 %v1073, %v462
      %v1079 = vmul.f32 %v1073, %v463
      %v1080 = vmul.f32 %v1073, %v464
      %v1081 = vmul.f32 %v1073, %v465
      %v1082 = vadd.f32 %v1010, %v1074
      %v1083 = vadd.f32 %v1011, %v1075
      %v1084 = vadd.f32 %v1012, %v1076
      %v1085 = vadd.f32 %v1013, %v1077
      %v1086 = vadd.f32 %v1014, %v1078
      %v1087 = vadd.f32 %v1015, %v1079
      %v1088 = vadd.f32 %v1016, %v1080
      %v1089 = vadd.f32 %v1017, %v1081
      %v1090 = vlaneseq
      %v1091 = vshrl.u32 %v1090, 7
      %v1092 = vsub.s32 5, %v1091
      %v1093 = vrot.slane %v570, %v1092
      %v1094 = vlaneseq
      %v1095 = vshrl.u32 %v1094, 7
      %v1096 = vsub.s32 5, %v1095
      %v1097 = vrot.slane %v574, %v1096
      %v1098 = vmul.f32 %v1093, %v598
      %v1099 = vmul.f32 %v1093, %v599
      %v1100 = vmul.f32 %v1093, %v600
      %v1101 = vmul.f32 %v1093, %v601
      %v1102 = vmul.f32 %v1097, %v598
      %v1103 = vmul.f32 %v1097, %v599
      %v1104 = vmul.f32 %v1097, %v600
      %v1105 = vmul.f32 %v1097, %v601
      %v1106 = vadd.f32 %v1034, %v1098
      %v1107 = vadd.f32 %v1035, %v1099
      %v1108 = vadd.f32 %v1036, %v1100
      %v1109 = vadd.f32 %v1037, %v1101
      %v1110 = vadd.f32 %v1038, %v1102
      %v1111 = vadd.f32 %v1039, %v1103
      %v1112 = vadd.f32 %v1040, %v1104
      %v1113 = vadd.f32 %v1041, %v1105
      %v1114 = vlaneseq
      %v1115 = vshrl.u32 %v1114, 7
      %v1116 = vsub.s32 6, %v1115
      %v1117 = vrot.slane %v298, %v1116
      %v1118 = vlaneseq
      %v1119 = vshrl.u32 %v1118, 7
      %v1120 = vsub.s32 6, %v1119
      %v1121 = vrot.slane %v302, %v1120
      %v1122 = vmul.f32 %v1117, %v338
      %v1123 = vmul.f32 %v1117, %v339
      %v1124 = vmul.f32 %v1117, %v340
      %v1125 = vmul.f32 %v1117, %v341
      %v1126 = vmul.f32 %v1121, %v338
      %v1127 = vmul.f32 %v1121, %v339
      %v1128 = vmul.f32 %v1121, %v340
      %v1129 = vmul.f32 %v1121, %v341
      %v1130 = vadd.f32 %v1058, %v1122
      %v1131 = vadd.f32 %v1059, %v1123
      %v1132 = vadd.f32 %v1060, %v1124
      %v1133 = vadd.f32 %v1061, %v1125
      %v1134 = vadd.f32 %v1062, %v1126
      %v1135 = vadd.f32 %v1063, %v1127
      %v1136 = vadd.f32 %v1064, %v1128
      %v1137 = vadd.f32 %v1065, %v1129
      %v1138 = vlaneseq
      %v1139 = vshrl.u32 %v1138, 7
      %v1140 = vsub.s32 6, %v1139
      %v1141 = vrot.slane %v306, %v1140
      %v1142 = vlaneseq
      %v1143 = vshrl.u32 %v1142, 7
      %v1144 = vsub.s32 6, %v1143
      %v1145 = vrot.slane %v310, %v1144
      %v1146 = vmul.f32 %v1141, %v466
      %v1147 = vmul.f32 %v1141, %v467
      %v1148 = vmul.f32 %v1141, %v468
      %v1149 = vmul.f32 %v1141, %v469
      %v1150 = vmul.f32 %v1145, %v466
      %v1151 = vmul.f32 %v1145, %v467
      %v1152 = vmul.f32 %v1145, %v468
      %v1153 = vmul.f32 %v1145, %v469
      %v1154 = vadd.f32 %v1082, %v1146
      %v1155 = vadd.f32 %v1083, %v1147
      %v1156 = vadd.f32 %v1084, %v1148
      %v1157 = vadd.f32 %v1085, %v1149
      %v1158 = vadd.f32 %v1086, %v1150
      %v1159 = vadd.f32 %v1087, %v1151
      %v1160 = vadd.f32 %v1088, %v1152
      %v1161 = vadd.f32 %v1089, %v1153
      %v1162 = vlaneseq
      %v1163 = vshrl.u32 %v1162, 7
      %v1164 = vsub.s32 6, %v1163
      %v1165 = vrot.slane %v570, %v1164
      %v1166 = vlaneseq
      %v1167 = vshrl.u32 %v1166, 7
      %v1168 = vsub.s32 6, %v1167
      %v1169 = vrot.slane %v574, %v1168
      %v1170 = vmul.f32 %v1165, %v602
      %v1171 = vmul.f32 %v1165, %v603
      %v1172 = vmul.f32 %v1165, %v604
      %v1173 = vmul.f32 %v1165, %v605
      %v1174 = vmul.f32 %v1169, %v602
      %v1175 = vmul.f32 %v1169, %v603
      %v1176 = vmul.f32 %v1169, %v604
      %v1177 = vmul.f32 %v1169, %v605
      %v1178 = vadd.f32 %v1106, %v1170
      %v1179 = vadd.f32 %v1107, %v1171
      %v1180 = vadd.f32 %v1108, %v1172
      %v1181 = vadd.f32 %v1109, %v1173
      %v1182 = vadd.f32 %v1110, %v1174
      %v1183 = vadd.f32 %v1111, %v1175
      %v1184 = vadd.f32 %v1112, %v1176
      %v1185 = vadd.f32 %v1113, %v1177
      %v1186 = vlaneseq
      %v1187 = vshrl.u32 %v1186, 7
      %v1188 = vsub.s32 7, %v1187
      %v1189 = vrot.slane %v298, %v1188
      %v1190 = vlaneseq
      %v1191 = vshrl.u32 %v1190, 7
      %v1192 = vsub.s32 7, %v1191
      %v1193 = vrot.slane %v302, %v1192
      %v1194 = vmul.f32 %v1189, %v342
      %v1195 = vmul.f32 %v1189, %v343
      %v1196 = vmul.f32 %v1189, %v344
      %v1197 = vmul.f32 %v1189, %v345
      %v1198 = vmul.f32 %v1193, %v342
      %v1199 = vmul.f32 %v1193, %v343
      %v1200 = vmul.f32 %v1193, %v344
      %v1201 = vmul.f32 %v1193, %v345
      %v1202 = vadd.f32 %v1130, %v1194
      %v1203 = vadd.f32 %v1131, %v1195
      %v1204 = vadd.f32 %v1132, %v1196
      %v1205 = vadd.f32 %v1133, %v1197
      %v1206 = vadd.f32 %v1134, %v1198
      %v1207 = vadd.f32 %v1135, %v1199
      %v1208 = vadd.f32 %v1136, %v1200
      %v1209 = vadd.f32 %v1137, %v1201
      %v1210 = vlaneseq
      %v1211 = vshrl.u32 %v1210, 7
      %v1212 = vsub.s32 7, %v1211
      %v1213 = vrot.slane %v306, %v1212
      %v1214 = vlaneseq
      %v1215 = vshrl.u32 %v1214, 7
      %v1216 = vsub.s32 7, %v1215
      %v1217 = vrot.slane %v310, %v1216
      %v1218 = vmul.f32 %v1213, %v470
      %v1219 = vmul.f32 %v1213, %v471
      %v1220 = vmul.f32 %v1213, %v472
      %v1221 = vmul.f32 %v1213, %v473
      %v1222 = vmul.f32 %v1217, %v470
      %v1223 = vmul.f32 %v1217, %v471
      %v1224 = vmul.f32 %v1217, %v472
      %v1225 = vmul.f32 %v1217, %v473
      %v1226 = vadd.f32 %v1154, %v1218
      %v1227 = vadd.f32 %v1155, %v1219
      %v1228 = vadd.f32 %v1156, %v1220
      %v1229 = vadd.f32 %v1157, %v1221
      %v1230 = vadd.f32 %v1158, %v1222
      %v1231 = vadd.f32 %v1159, %v1223
      %v1232 = vadd.f32 %v1160, %v1224
      %v1233 = vadd.f32 %v1161, %v1225
      %v1234 = vlaneseq
      %v1235 = vshrl.u32 %v1234, 7
      %v1236 = vsub.s32 7, %v1235
      %v1237 = vrot.slane %v570, %v1236
      %v1238 = vlaneseq
      %v1239 = vshrl.u32 %v1238, 7
      %v1240 = vsub.s32 7, %v1239
      %v1241 = vrot.slane %v574, %v1240
      %v1242 = vmul.f32 %v1237, %v606
      %v1243 = vmul.f32 %v1237, %v607
      %v1244 = vmul.f32 %v1237, %v608
      %v1245 = vmul.f32 %v1237, %v609
      %v1246 = vmul.f32 %v1241, %v606
      %v1247 = vmul.f32 %v1241, %v607
      %v1248 = vmul.f32 %v1241, %v608
      %v1249 = vmul.f32 %v1241, %v609
      %v1250 = vadd.f32 %v1178, %v1242
      %v1251 = vadd.f32 %v1179, %v1243
      %v1252 = vadd.f32 %v1180, %v1244
      %v1253 = vadd.f32 %v1181, %v1245
      %v1254 = vadd.f32 %v1182, %v1246
      %v1255 = vadd.f32 %v1183, %v1247
      %v1256 = vadd.f32 %v1184, %v1248
      %v1257 = vadd.f32 %v1185, %v1249
      %v1258 = vlaneseq
      %v1259 = vshrl.u32 %v1258, 7
      %v1260 = vsub.s32 0, %v1259
      %v1261 = vrot.slane %v299, %v1260
      %v1262 = vlaneseq
      %v1263 = vshrl.u32 %v1262, 7
      %v1264 = vsub.s32 0, %v1263
      %v1265 = vrot.slane %v303, %v1264
      %v1266 = vmul.f32 %v1261, %v346
      %v1267 = vmul.f32 %v1261, %v347
      %v1268 = vmul.f32 %v1261, %v348
      %v1269 = vmul.f32 %v1261, %v349
      %v1270 = vmul.f32 %v1265, %v346
      %v1271 = vmul.f32 %v1265, %v347
      %v1272 = vmul.f32 %v1265, %v348
      %v1273 = vmul.f32 %v1265, %v349
      %v1274 = vadd.f32 %v1202, %v1266
      %v1275 = vadd.f32 %v1203, %v1267
      %v1276 = vadd.f32 %v1204, %v1268
      %v1277 = vadd.f32 %v1205, %v1269
      %v1278 = vadd.f32 %v1206, %v1270
      %v1279 = vadd.f32 %v1207, %v1271
      %v1280 = vadd.f32 %v1208, %v1272
      %v1281 = vadd.f32 %v1209, %v1273
      %v1282 = vlaneseq
      %v1283 = vshrl.u32 %v1282, 7
      %v1284 = vsub.s32 0, %v1283
      %v1285 = vrot.slane %v307, %v1284
      %v1286 = vlaneseq
      %v1287 = vshrl.u32 %v1286, 7
      %v1288 = vsub.s32 0, %v1287
      %v1289 = vrot.slane %v311, %v1288
      %v1290 = vmul.f32 %v1285, %v474
      %v1291 = vmul.f32 %v1285, %v475
      %v1292 = vmul.f32 %v1285, %v476
      %v1293 = vmul.f32 %v1285, %v477
      %v1294 = vmul.f32 %v1289, %v474
      %v1295 = vmul.f32 %v1289, %v475
      %v1296 = vmul.f32 %v1289, %v476
      %v1297 = vmul.f32 %v1289, %v477
      %v1298 = vadd.f32 %v1226, %v1290
      %v1299 = vadd.f32 %v1227, %v1291
      %v1300 = vadd.f32 %v1228, %v1292
      %v1301 = vadd.f32 %v1229, %v1293
      %v1302 = vadd.f32 %v1230, %v1294
      %v1303 = vadd.f32 %v1231, %v1295
      %v1304 = vadd.f32 %v1232, %v1296
      %v1305 = vadd.f32 %v1233, %v1297
      %v1306 = vlaneseq
      %v1307 = vshrl.u32 %v1306, 7
      %v1308 = vsub.s32 0, %v1307
      %v1309 = vrot.slane %v571, %v1308
      %v1310 = vlaneseq
      %v1311 = vshrl.u32 %v1310, 7
      %v1312 = vsub.s32 0, %v1311
      %v1313 = vrot.slane %v575, %v1312
      %v1314 = vmul.f32 %v1309, %v610
      %v1315 = vmul.f32 %v1309, %v611
      %v1316 = vmul.f32 %v1309, %v612
      %v1317 = vmul.f32 %v1309, %v613
      %v1318 = vmul.f32 %v1313, %v610
      %v1319 = vmul.f32 %v1313, %v611
      %v1320 = vmul.f32 %v1313, %v612
      %v1321 = vmul.f32 %v1313, %v613
      %v1322 = vadd.f32 %v1250, %v1314
      %v1323 = vadd.f32 %v1251, %v1315
      %v1324 = vadd.f32 %v1252, %v1316
      %v1325 = vadd.f32 %v1253, %v1317
      %v1326 = vadd.f32 %v1254, %v1318
      %v1327 = vadd.f32 %v1255, %v1319
      %v1328 = vadd.f32 %v1256, %v1320
      %v1329 = vadd.f32 %v1257, %v1321
      %v1330 = vlaneseq
      %v1331 = vshrl.u32 %v1330, 7
      %v1332 = vsub.s32 1, %v1331
      %v1333 = vrot.slane %v299, %v1332
      %v1334 = vlaneseq
      %v1335 = vshrl.u32 %v1334, 7
      %v1336 = vsub.s32 1, %v1335
      %v1337 = vrot.slane %v303, %v1336
      %v1338 = vmul.f32 %v1333, %v350
      %v1339 = vmul.f32 %v1333, %v351
      %v1340 = vmul.f32 %v1333, %v352
      %v1341 = vmul.f32 %v1333, %v353
      %v1342 = vmul.f32 %v1337, %v350
      %v1343 = vmul.f32 %v1337, %v351
      %v1344 = vmul.f32 %v1337, %v352
      %v1345 = vmul.f32 %v1337, %v353
      %v1346 = vadd.f32 %v1274, %v1338
      %v1347 = vadd.f32 %v1275, %v1339
      %v1348 = vadd.f32 %v1276, %v1340
      %v1349 = vadd.f32 %v1277, %v1341
      %v1350 = vadd.f32 %v1278, %v1342
      %v1351 = vadd.f32 %v1279, %v1343
      %v1352 = vadd.f32 %v1280, %v1344
      %v1353 = vadd.f32 %v1281, %v1345
      %v1354 = vlaneseq
      %v1355 = vshrl.u32 %v1354, 7
      %v1356 = vsub.s32 1, %v1355
      %v1357 = vrot.slane %v307, %v1356
      %v1358 = vlaneseq
      %v1359 = vshrl.u32 %v1358, 7
      %v1360 = vsub.s32 1, %v1359
      %v1361 = vrot.slane %v311, %v1360
      %v1362 = vmul.f32 %v1357, %v478
      %v1363 = vmul.f32 %v1357, %v479
      %v1364 = vmul.f32 %v1357, %v480
      %v1365 = vmul.f32 %v1357, %v481
      %v1366 = vmul.f32 %v1361, %v478
      %v1367 = vmul.f32 %v1361, %v479
      %v1368 = vmul.f32 %v1361, %v480
      %v1369 = vmul.f32 %v1361, %v481
      %v1370 = vadd.f32 %v1298, %v1362
      %v1371 = vadd.f32 %v1299, %v1363
      %v1372 = vadd.f32 %v1300, %v1364
      %v1373 = vadd.f32 %v1301, %v1365
      %v1374 = vadd.f32 %v1302, %v1366
      %v1375 = vadd.f32 %v1303, %v1367
      %v1376 = vadd.f32 %v1304, %v1368
      %v1377 = vadd.f32 %v1305, %v1369
      %v1378 = vlaneseq
      %v1379 = vshrl.u32 %v1378, 7
      %v1380 = vsub.s32 1, %v1379
      %v1381 = vrot.slane %v571, %v1380
      %v1382 = vlaneseq
      %v1383 = vshrl.u32 %v1382, 7
      %v1384 = vsub.s32 1, %v1383
      %v1385 = vrot.slane %v575, %v1384
      %v1386 = vmul.f32 %v1381, %v614
      %v1387 = vmul.f32 %v1381, %v615
      %v1388 = vmul.f32 %v1381, %v616
      %v1389 = vmul.f32 %v1381, %v617
      %v1390 = vmul.f32 %v1385, %v614
      %v1391 = vmul.f32 %v1385, %v615
      %v1392 = vmul.f32 %v1385, %v616
      %v1393 = vmul.f32 %v1385, %v617
      %v1394 = vadd.f32 %v1322, %v1386
      %v1395 = vadd.f32 %v1323, %v1387
      %v1396 = vadd.f32 %v1324, %v1388
      %v1397 = vadd.f32 %v1325, %v1389
      %v1398 = vadd.f32 %v1326, %v1390
      %v1399 = vadd.f32 %v1327, %v1391
      %v1400 = vadd.f32 %v1328, %v1392
      %v1401 = vadd.f32 %v1329, %v1393
      %v1402 = vlaneseq
      %v1403 = vshrl.u32 %v1402, 7
      %v1404 = vsub.s32 2, %v1403
      %v1405 = vrot.slane %v299, %v1404
      %v1406 = vlaneseq
      %v1407 = vshrl.u32 %v1406, 7
      %v1408 = vsub.s32 2, %v1407
      %v1409 = vrot.slane %v303, %v1408
      %v1410 = vmul.f32 %v1405, %v354
      %v1411 = vmul.f32 %v1405, %v355
      %v1412 = vmul.f32 %v1405, %v356
      %v1413 = vmul.f32 %v1405, %v357
      %v1414 = vmul.f32 %v1409, %v354
      %v1415 = vmul.f32 %v1409, %v355
      %v1416 = vmul.f32 %v1409, %v356
      %v1417 = vmul.f32 %v1409, %v357
      %v1418 = vadd.f32 %v1346, %v1410
      %v1419 = vadd.f32 %v1347, %v1411
      %v1420 = vadd.f32 %v1348, %v1412
      %v1421 = vadd.f32 %v1349, %v1413
      %v1422 = vadd.f32 %v1350, %v1414
      %v1423 = vadd.f32 %v1351, %v1415
      %v1424 = vadd.f32 %v1352, %v1416
      %v1425 = vadd.f32 %v1353, %v1417
      %v1426 = vlaneseq
      %v1427 = vshrl.u32 %v1426, 7
      %v1428 = vsub.s32 2, %v1427
      %v1429 = vrot.slane %v307, %v1428
      %v1430 = vlaneseq
      %v1431 = vshrl.u32 %v1430, 7
      %v1432 = vsub.s32 2, %v1431
      %v1433 = vrot.slane %v311, %v1432
      %v1434 = vmul.f32 %v1429, %v482
      %v1435 = vmul.f32 %v1429, %v483
      %v1436 = vmul.f32 %v1429, %v484
      %v1437 = vmul.f32 %v1429, %v485
      %v1438 = vmul.f32 %v1433, %v482
      %v1439 = vmul.f32 %v1433, %v483
      %v1440 = vmul.f32 %v1433, %v484
      %v1441 = vmul.f32 %v1433, %v485
      %v1442 = vadd.f32 %v1370, %v1434
      %v1443 = vadd.f32 %v1371, %v1435
      %v1444 = vadd.f32 %v1372, %v1436
      %v1445 = vadd.f32 %v1373, %v1437
      %v1446 = vadd.f32 %v1374, %v1438
      %v1447 = vadd.f32 %v1375, %v1439
      %v1448 = vadd.f32 %v1376, %v1440
      %v1449 = vadd.f32 %v1377, %v1441
      %v1450 = vlaneseq
      %v1451 = vshrl.u32 %v1450, 7
      %v1452 = vsub.s32 2, %v1451
      %v1453 = vrot.slane %v571, %v1452
      %v1454 = vlaneseq
      %v1455 = vshrl.u32 %v1454, 7
      %v1456 = vsub.s32 2, %v1455
      %v1457 = vrot.slane %v575, %v1456
      %v1458 = vmul.f32 %v1453, %v618
      %v1459 = vmul.f32 %v1453, %v619
      %v1460 = vmul.f32 %v1453, %v620
      %v1461 = vmul.f32 %v1453, %v621
      %v1462 = vmul.f32 %v1457, %v618
      %v1463 = vmul.f32 %v1457, %v619
      %v1464 = vmul.f32 %v1457, %v620
      %v1465 = vmul.f32 %v1457, %v621
      %v1466 = vadd.f32 %v1394, %v1458
      %v1467 = vadd.f32 %v1395, %v1459
      %v1468 = vadd.f32 %v1396, %v1460
      %v1469 = vadd.f32 %v1397, %v1461
      %v1470 = vadd.f32 %v1398, %v1462
      %v1471 = vadd.f32 %v1399, %v1463
      %v1472 = vadd.f32 %v1400, %v1464
      %v1473 = vadd.f32 %v1401, %v1465
      %v1474 = vlaneseq
      %v1475 = vshrl.u32 %v1474, 7
      %v1476 = vsub.s32 3, %v1475
      %v1477 = vrot.slane %v299, %v1476
      %v1478 = vlaneseq
      %v1479 = vshrl.u32 %v1478, 7
      %v1480 = vsub.s32 3, %v1479
      %v1481 = vrot.slane %v303, %v1480
      %v1482 = vmul.f32 %v1477, %v358
      %v1483 = vmul.f32 %v1477, %v359
      %v1484 = vmul.f32 %v1477, %v360
      %v1485 = vmul.f32 %v1477, %v361
      %v1486 = vmul.f32 %v1481, %v358
      %v1487 = vmul.f32 %v1481, %v359
      %v1488 = vmul.f32 %v1481, %v360
      %v1489 = vmul.f32 %v1481, %v361
      %v1490 = vadd.f32 %v1418, %v1482
      %v1491 = vadd.f32 %v1419, %v1483
      %v1492 = vadd.f32 %v1420, %v1484
      %v1493 = vadd.f32 %v1421, %v1485
      %v1494 = vadd.f32 %v1422, %v1486
      %v1495 = vadd.f32 %v1423, %v1487
      %v1496 = vadd.f32 %v1424, %v1488
      %v1497 = vadd.f32 %v1425, %v1489
      %v1498 = vlaneseq
      %v1499 = vshrl.u32 %v1498, 7
      %v1500 = vsub.s32 3, %v1499
      %v1501 = vrot.slane %v307, %v1500
      %v1502 = vlaneseq
      %v1503 = vshrl.u32 %v1502, 7
      %v1504 = vsub.s32 3, %v1503
      %v1505 = vrot.slane %v311, %v1504
      %v1506 = vmul.f32 %v1501, %v486
      %v1507 = vmul.f32 %v1501, %v487
      %v1508 = vmul.f32 %v1501, %v488
      %v1509 = vmul.f32 %v1501, %v489
      %v1510 = vmul.f32 %v1505, %v486
      %v1511 = vmul.f32 %v1505, %v487
      %v1512 = vmul.f32 %v1505, %v488
      %v1513 = vmul.f32 %v1505, %v489
      %v1514 = vadd.f32 %v1442, %v1506
      %v1515 = vadd.f32 %v1443, %v1507
      %v1516 = vadd.f32 %v1444, %v1508
      %v1517 = vadd.f32 %v1445, %v1509
      %v1518 = vadd.f32 %v1446, %v1510
      %v1519 = vadd.f32 %v1447, %v1511
      %v1520 = vadd.f32 %v1448, %v1512
      %v1521 = vadd.f32 %v1449, %v1513
      %v1522 = vlaneseq
      %v1523 = vshrl.u32 %v1522, 7
      %v1524 = vsub.s32 3, %v1523
      %v1525 = vrot.slane %v571, %v1524
      %v1526 = vlaneseq
      %v1527 = vshrl.u32 %v1526, 7
      %v1528 = vsub.s32 3, %v1527
      %v1529 = vrot.slane %v575, %v1528
      %v1530 = vmul.f32 %v1525, %v622
      %v1531 = vmul.f32 %v1525, %v623
      %v1532 = vmul.f32 %v1525, %v624
      %v1533 = vmul.f32 %v1525, %v625
      %v1534 = vmul.f32 %v1529, %v622
      %v1535 = vmul.f32 %v1529, %v623
      %v1536 = vmul.f32 %v1529, %v624
      %v1537 = vmul.f32 %v1529, %v625
      %v1538 = vadd.f32 %v1466, %v1530
      %v1539 = vadd.f32 %v1467, %v1531
      %v1540 = vadd.f32 %v1468, %v1532
      %v1541 = vadd.f32 %v1469, %v1533
      %v1542 = vadd.f32 %v1470, %v1534
      %v1543 = vadd.f32 %v1471, %v1535
      %v1544 = vadd.f32 %v1472, %v1536
      %v1545 = vadd.f32 %v1473, %v1537
      %v1546 = vlaneseq
      %v1547 = vshrl.u32 %v1546, 7
      %v1548 = vsub.s32 4, %v1547
      %v1549 = vrot.slane %v299, %v1548
      %v1550 = vlaneseq
      %v1551 = vshrl.u32 %v1550, 7
      %v1552 = vsub.s32 4, %v1551
      %v1553 = vrot.slane %v303, %v1552
      %v1554 = vmul.f32 %v1549, %v362
      %v1555 = vmul.f32 %v1549, %v363
      %v1556 = vmul.f32 %v1549, %v364
      %v1557 = vmul.f32 %v1549, %v365
      %v1558 = vmul.f32 %v1553, %v362
      %v1559 = vmul.f32 %v1553, %v363
      %v1560 = vmul.f32 %v1553, %v364
      %v1561 = vmul.f32 %v1553, %v365
      %v1562 = vadd.f32 %v1490, %v1554
      %v1563 = vadd.f32 %v1491, %v1555
      %v1564 = vadd.f32 %v1492, %v1556
      %v1565 = vadd.f32 %v1493, %v1557
      %v1566 = vadd.f32 %v1494, %v1558
      %v1567 = vadd.f32 %v1495, %v1559
      %v1568 = vadd.f32 %v1496, %v1560
      %v1569 = vadd.f32 %v1497, %v1561
      %v1570 = vlaneseq
      %v1571 = vshrl.u32 %v1570, 7
      %v1572 = vsub.s32 4, %v1571
      %v1573 = vrot.slane %v307, %v1572
      %v1574 = vlaneseq
      %v1575 = vshrl.u32 %v1574, 7
      %v1576 = vsub.s32 4, %v1575
      %v1577 = vrot.slane %v311, %v1576
      %v1578 = vmul.f32 %v1573, %v490
      %v1579 = vmul.f32 %v1573, %v491
      %v1580 = vmul.f32 %v1573, %v492
      %v1581 = vmul.f32 %v1573, %v493
      %v1582 = vmul.f32 %v1577, %v490
      %v1583 = vmul.f32 %v1577, %v491
      %v1584 = vmul.f32 %v1577, %v492
      %v1585 = vmul.f32 %v1577, %v493
      %v1586 = vadd.f32 %v1514, %v1578
      %v1587 = vadd.f32 %v1515, %v1579
      %v1588 = vadd.f32 %v1516, %v1580
      %v1589 = vadd.f32 %v1517, %v1581
      %v1590 = vadd.f32 %v1518, %v1582
      %v1591 = vadd.f32 %v1519, %v1583
      %v1592 = vadd.f32 %v1520, %v1584
      %v1593 = vadd.f32 %v1521, %v1585
      %v1594 = vlaneseq
      %v1595 = vshrl.u32 %v1594, 7
      %v1596 = vsub.s32 4, %v1595
      %v1597 = vrot.slane %v571, %v1596
      %v1598 = vlaneseq
      %v1599 = vshrl.u32 %v1598, 7
      %v1600 = vsub.s32 4, %v1599
      %v1601 = vrot.slane %v575, %v1600
      %v1602 = vmul.f32 %v1597, %v626
      %v1603 = vmul.f32 %v1597, %v627
      %v1604 = vmul.f32 %v1597, %v628
      %v1605 = vmul.f32 %v1597, %v629
      %v1606 = vmul.f32 %v1601, %v626
      %v1607 = vmul.f32 %v1601, %v627
      %v1608 = vmul.f32 %v1601, %v628
      %v1609 = vmul.f32 %v1601, %v629
      %v1610 = vadd.f32 %v1538, %v1602
      %v1611 = vadd.f32 %v1539, %v1603
      %v1612 = vadd.f32 %v1540, %v1604
      %v1613 = vadd.f32 %v1541, %v1605
      %v1614 = vadd.f32 %v1542, %v1606
      %v1615 = vadd.f32 %v1543, %v1607
      %v1616 = vadd.f32 %v1544, %v1608
      %v1617 = vadd.f32 %v1545, %v1609
      %v1618 = vlaneseq
      %v1619 = vshrl.u32 %v1618, 7
      %v1620 = vsub.s32 5, %v1619
      %v1621 = vrot.slane %v299, %v1620
      %v1622 = vlaneseq
      %v1623 = vshrl.u32 %v1622, 7
      %v1624 = vsub.s32 5, %v1623
      %v1625 = vrot.slane %v303, %v1624
      %v1626 = vmul.f32 %v1621, %v366
      %v1627 = vmul.f32 %v1621, %v367
      %v1628 = vmul.f32 %v1621, %v368
      %v1629 = vmul.f32 %v1621, %v369
      %v1630 = vmul.f32 %v1625, %v366
      %v1631 = vmul.f32 %v1625, %v367
      %v1632 = vmul.f32 %v1625, %v368
      %v1633 = vmul.f32 %v1625, %v369
      %v1634 = vadd.f32 %v1562, %v1626
      %v1635 = vadd.f32 %v1563, %v1627
      %v1636 = vadd.f32 %v1564, %v1628
      %v1637 = vadd.f32 %v1565, %v1629
      %v1638 = vadd.f32 %v1566, %v1630
      %v1639 = vadd.f32 %v1567, %v1631
      %v1640 = vadd.f32 %v1568, %v1632
      %v1641 = vadd.f32 %v1569, %v1633
      %v1642 = vlaneseq
      %v1643 = vshrl.u32 %v1642, 7
      %v1644 = vsub.s32 5, %v1643
      %v1645 = vrot.slane %v307, %v1644
      %v1646 = vlaneseq
      %v1647 = vshrl.u32 %v1646, 7
      %v1648 = vsub.s32 5, %v1647
      %v1649 = vrot.slane %v311, %v1648
      %v1650 = vmul.f32 %v1645, %v494
      %v1651 = vmul.f32 %v1645, %v495
      %v1652 = vmul.f32 %v1645, %v496
      %v1653 = vmul.f32 %v1645, %v497
      %v1654 = vmul.f32 %v1649, %v494
      %v1655 = vmul.f32 %v1649, %v495
      %v1656 = vmul.f32 %v1649, %v496
      %v1657 = vmul.f32 %v1649, %v497
      %v1658 = vadd.f32 %v1586, %v1650
      %v1659 = vadd.f32 %v1587, %v1651
      %v1660 = vadd.f32 %v1588, %v1652
      %v1661 = vadd.f32 %v1589, %v1653
      %v1662 = vadd.f32 %v1590, %v1654
      %v1663 = vadd.f32 %v1591, %v1655
      %v1664 = vadd.f32 %v1592, %v1656
      %v1665 = vadd.f32 %v1593, %v1657
      %v1666 = vlaneseq
      %v1667 = vshrl.u32 %v1666, 7
      %v1668 = vsub.s32 5, %v1667
      %v1669 = vrot.slane %v571, %v1668
      %v1670 = vlaneseq
      %v1671 = vshrl.u32 %v1670, 7
      %v1672 = vsub.s32 5, %v1671
      %v1673 = vrot.slane %v575, %v1672
      %v1674 = vmul.f32 %v1669, %v630
      %v1675 = vmul.f32 %v1669, %v631
      %v1676 = vmul.f32 %v1669, %v632
      %v1677 = vmul.f32 %v1669, %v633
      %v1678 = vmul.f32 %v1673, %v630
      %v1679 = vmul.f32 %v1673, %v631
      %v1680 = vmul.f32 %v1673, %v632
      %v1681 = vmul.f32 %v1673, %v633
      %v1682 = vadd.f32 %v1610, %v1674
      %v1683 = vadd.f32 %v1611, %v1675
      %v1684 = vadd.f32 %v1612, %v1676
      %v1685 = vadd.f32 %v1613, %v1677
      %v1686 = vadd.f32 %v1614, %v1678
      %v1687 = vadd.f32 %v1615, %v1679
      %v1688 = vadd.f32 %v1616, %v1680
      %v1689 = vadd.f32 %v1617, %v1681
      %v1690 = vlaneseq
      %v1691 = vshrl.u32 %v1690, 7
      %v1692 = vsub.s32 6, %v1691
      %v1693 = vrot.slane %v299, %v1692
      %v1694 = vlaneseq
      %v1695 = vshrl.u32 %v1694, 7
      %v1696 = vsub.s32 6, %v1695
      %v1697 = vrot.slane %v303, %v1696
      %v1698 = vmul.f32 %v1693, %v370
      %v1699 = vmul.f32 %v1693, %v371
      %v1700 = vmul.f32 %v1693, %v372
      %v1701 = vmul.f32 %v1693, %v373
      %v1702 = vmul.f32 %v1697, %v370
      %v1703 = vmul.f32 %v1697, %v371
      %v1704 = vmul.f32 %v1697, %v372
      %v1705 = vmul.f32 %v1697, %v373
      %v1706 = vadd.f32 %v1634, %v1698
      %v1707 = vadd.f32 %v1635, %v1699
      %v1708 = vadd.f32 %v1636, %v1700
      %v1709 = vadd.f32 %v1637, %v1701
      %v1710 = vadd.f32 %v1638, %v1702
      %v1711 = vadd.f32 %v1639, %v1703
      %v1712 = vadd.f32 %v1640, %v1704
      %v1713 = vadd.f32 %v1641, %v1705
      %v1714 = vlaneseq
      %v1715 = vshrl.u32 %v1714, 7
      %v1716 = vsub.s32 6, %v1715
      %v1717 = vrot.slane %v307, %v1716
      %v1718 = vlaneseq
      %v1719 = vshrl.u32 %v1718, 7
      %v1720 = vsub.s32 6, %v1719
      %v1721 = vrot.slane %v311, %v1720
      %v1722 = vmul.f32 %v1717, %v498
      %v1723 = vmul.f32 %v1717, %v499
      %v1724 = vmul.f32 %v1717, %v500
      %v1725 = vmul.f32 %v1717, %v501
      %v1726 = vmul.f32 %v1721, %v498
      %v1727 = vmul.f32 %v1721, %v499
      %v1728 = vmul.f32 %v1721, %v500
      %v1729 = vmul.f32 %v1721, %v501
      %v1730 = vadd.f32 %v1658, %v1722
      %v1731 = vadd.f32 %v1659, %v1723
      %v1732 = vadd.f32 %v1660, %v1724
      %v1733 = vadd.f32 %v1661, %v1725
      %v1734 = vadd.f32 %v1662, %v1726
      %v1735 = vadd.f32 %v1663, %v1727
      %v1736 = vadd.f32 %v1664, %v1728
      %v1737 = vadd.f32 %v1665, %v1729
      %v1738 = vlaneseq
      %v1739 = vshrl.u32 %v1738, 7
      %v1740 = vsub.s32 6, %v1739
      %v1741 = vrot.slane %v571, %v1740
      %v1742 = vlaneseq
      %v1743 = vshrl.u32 %v1742, 7
      %v1744 = vsub.s32 6, %v1743
      %v1745 = vrot.slane %v575, %v1744
      %v1746 = vmul.f32 %v1741, %v634
      %v1747 = vmul.f32 %v1741, %v635
      %v1748 = vmul.f32 %v1741, %v636
      %v1749 = vmul.f32 %v1741, %v637
      %v1750 = vmul.f32 %v1745, %v634
      %v1751 = vmul.f32 %v1745, %v635
      %v1752 = vmul.f32 %v1745, %v636
      %v1753 = vmul.f32 %v1745, %v637
      %v1754 = vadd.f32 %v1682, %v1746
      %v1755 = vadd.f32 %v1683, %v1747
      %v1756 = vadd.f32 %v1684, %v1748
      %v1757 = vadd.f32 %v1685, %v1749
      %v1758 = vadd.f32 %v1686, %v1750
      %v1759 = vadd.f32 %v1687, %v1751
      %v1760 = vadd.f32 %v1688, %v1752
      %v1761 = vadd.f32 %v1689, %v1753
      %v1762 = vlaneseq
      %v1763 = vshrl.u32 %v1762, 7
      %v1764 = vsub.s32 7, %v1763
      %v1765 = vrot.slane %v299, %v1764
      %v1766 = vlaneseq
      %v1767 = vshrl.u32 %v1766, 7
      %v1768 = vsub.s32 7, %v1767
      %v1769 = vrot.slane %v303, %v1768
      %v1770 = vmul.f32 %v1765, %v374
      %v1771 = vmul.f32 %v1765, %v375
      %v1772 = vmul.f32 %v1765, %v376
      %v1773 = vmul.f32 %v1765, %v377
      %v1774 = vmul.f32 %v1769, %v374
      %v1775 = vmul.f32 %v1769, %v375
      %v1776 = vmul.f32 %v1769, %v376
      %v1777 = vmul.f32 %v1769, %v377
      %v1778 = vadd.f32 %v1706, %v1770
      %v1779 = vadd.f32 %v1707, %v1771
      %v1780 = vadd.f32 %v1708, %v1772
      %v1781 = vadd.f32 %v1709, %v1773
      %v1782 = vadd.f32 %v1710, %v1774
      %v1783 = vadd.f32 %v1711, %v1775
      %v1784 = vadd.f32 %v1712, %v1776
      %v1785 = vadd.f32 %v1713, %v1777
      %v1786 = vlaneseq
      %v1787 = vshrl.u32 %v1786, 7
      %v1788 = vsub.s32 7, %v1787
      %v1789 = vrot.slane %v307, %v1788
      %v1790 = vlaneseq
      %v1791 = vshrl.u32 %v1790, 7
      %v1792 = vsub.s32 7, %v1791
      %v1793 = vrot.slane %v311, %v1792
      %v1794 = vmul.f32 %v1789, %v502
      %v1795 = vmul.f32 %v1789, %v503
      %v1796 = vmul.f32 %v1789, %v504
      %v1797 = vmul.f32 %v1789, %v505
      %v1798 = vmul.f32 %v1793, %v502
      %v1799 = vmul.f32 %v1793, %v503
      %v1800 = vmul.f32 %v1793, %v504
      %v1801 = vmul.f32 %v1793, %v505
      %v1802 = vadd.f32 %v1730, %v1794
      %v1803 = vadd.f32 %v1731, %v1795
      %v1804 = vadd.f32 %v1732, %v1796
      %v1805 = vadd.f32 %v1733, %v1797
      %v1806 = vadd.f32 %v1734, %v1798
      %v1807 = vadd.f32 %v1735, %v1799
      %v1808 = vadd.f32 %v1736, %v1800
      %v1809 = vadd.f32 %v1737, %v1801
      %v1810 = vlaneseq
      %v1811 = vshrl.u32 %v1810, 7
      %v1812 = vsub.s32 7, %v1811
      %v1813 = vrot.slane %v571, %v1812
      %v1814 = vlaneseq
      %v1815 = vshrl.u32 %v1814, 7
      %v1816 = vsub.s32 7, %v1815
      %v1817 = vrot.slane %v575, %v1816
      %v1818 = vmul.f32 %v1813, %v638
      %v1819 = vmul.f32 %v1813, %v639
      %v1820 = vmul.f32 %v1813, %v640
      %v1821 = vmul.f32 %v1813, %v641
      %v1822 = vmul.f32 %v1817, %v638
      %v1823 = vmul.f32 %v1817, %v639
      %v1824 = vmul.f32 %v1817, %v640
      %v1825 = vmul.f32 %v1817, %v641
      %v1826 = vadd.f32 %v1754, %v1818
      %v1827 = vadd.f32 %v1755, %v1819
      %v1828 = vadd.f32 %v1756, %v1820
      %v1829 = vadd.f32 %v1757, %v1821
      %v1830 = vadd.f32 %v1758, %v1822
      %v1831 = vadd.f32 %v1759, %v1823
      %v1832 = vadd.f32 %v1760, %v1824
      %v1833 = vadd.f32 %v1761, %v1825
      %v1834 = vlaneseq
      %v1835 = vshrl.u32 %v1834, 7
      %v1836 = vsub.s32 0, %v1835
      %v1837 = vrot.slane %v300, %v1836
      %v1838 = vlaneseq
      %v1839 = vshrl.u32 %v1838, 7
      %v1840 = vsub.s32 0, %v1839
      %v1841 = vrot.slane %v304, %v1840
      %v1842 = vmul.f32 %v1837, %v378
      %v1843 = vmul.f32 %v1837, %v379
      %v1844 = vmul.f32 %v1837, %v380
      %v1845 = vmul.f32 %v1837, %v381
      %v1846 = vmul.f32 %v1841, %v378
      %v1847 = vmul.f32 %v1841, %v379
      %v1848 = vmul.f32 %v1841, %v380
      %v1849 = vmul.f32 %v1841, %v381
      %v1850 = vadd.f32 %v1778, %v1842
      %v1851 = vadd.f32 %v1779, %v1843
      %v1852 = vadd.f32 %v1780, %v1844
      %v1853 = vadd.f32 %v1781, %v1845
      %v1854 = vadd.f32 %v1782, %v1846
      %v1855 = vadd.f32 %v1783, %v1847
      %v1856 = vadd.f32 %v1784, %v1848
      %v1857 = vadd.f32 %v1785, %v1849
      %v1858 = vlaneseq
      %v1859 = vshrl.u32 %v1858, 7
      %v1860 = vsub.s32 0, %v1859
      %v1861 = vrot.slane %v308, %v1860
      %v1862 = vlaneseq
      %v1863 = vshrl.u32 %v1862, 7
      %v1864 = vsub.s32 0, %v1863
      %v1865 = vrot.slane %v312, %v1864
      %v1866 = vmul.f32 %v1861, %v506
      %v1867 = vmul.f32 %v1861, %v507
      %v1868 = vmul.f32 %v1861, %v508
      %v1869 = vmul.f32 %v1861, %v509
      %v1870 = vmul.f32 %v1865, %v506
      %v1871 = vmul.f32 %v1865, %v507
      %v1872 = vmul.f32 %v1865, %v508
      %v1873 = vmul.f32 %v1865, %v509
      %v1874 = vadd.f32 %v1802, %v1866
      %v1875 = vadd.f32 %v1803, %v1867
      %v1876 = vadd.f32 %v1804, %v1868
      %v1877 = vadd.f32 %v1805, %v1869
      %v1878 = vadd.f32 %v1806, %v1870
      %v1879 = vadd.f32 %v1807, %v1871
      %v1880 = vadd.f32 %v1808, %v1872
      %v1881 = vadd.f32 %v1809, %v1873
      %v1882 = vlaneseq
      %v1883 = vshrl.u32 %v1882, 7
      %v1884 = vsub.s32 0, %v1883
      %v1885 = vrot.slane %v572, %v1884
      %v1886 = vlaneseq
      %v1887 = vshrl.u32 %v1886, 7
      %v1888 = vsub.s32 0, %v1887
      %v1889 = vrot.slane %v576, %v1888
      %v1890 = vmul.f32 %v1885, %v642
      %v1891 = vmul.f32 %v1885, %v643
      %v1892 = vmul.f32 %v1885, %v644
      %v1893 = vmul.f32 %v1885, %v645
      %v1894 = vmul.f32 %v1889, %v642
      %v1895 = vmul.f32 %v1889, %v643
      %v1896 = vmul.f32 %v1889, %v644
      %v1897 = vmul.f32 %v1889, %v645
      %v1898 = vadd.f32 %v1826, %v1890
      %v1899 = vadd.f32 %v1827, %v1891
      %v1900 = vadd.f32 %v1828, %v1892
      %v1901 = vadd.f32 %v1829, %v1893
      %v1902 = vadd.f32 %v1830, %v1894
      %v1903 = vadd.f32 %v1831, %v1895
      %v1904 = vadd.f32 %v1832, %v1896
      %v1905 = vadd.f32 %v1833, %v1897
      %v1906 = vlaneseq
      %v1907 = vshrl.u32 %v1906, 7
      %v1908 = vsub.s32 1, %v1907
      %v1909 = vrot.slane %v300, %v1908
      %v1910 = vlaneseq
      %v1911 = vshrl.u32 %v1910, 7
      %v1912 = vsub.s32 1, %v1911
      %v1913 = vrot.slane %v304, %v1912
      %v1914 = vmul.f32 %v1909, %v382
      %v1915 = vmul.f32 %v1909, %v383
      %v1916 = vmul.f32 %v1909, %v384
      %v1917 = vmul.f32 %v1909, %v385
      %v1918 = vmul.f32 %v1913, %v382
      %v1919 = vmul.f32 %v1913, %v383
      %v1920 = vmul.f32 %v1913, %v384
      %v1921 = vmul.f32 %v1913, %v385
      %v1922 = vadd.f32 %v1850, %v1914
      %v1923 = vadd.f32 %v1851, %v1915
      %v1924 = vadd.f32 %v1852, %v1916
      %v1925 = vadd.f32 %v1853, %v1917
      %v1926 = vadd.f32 %v1854, %v1918
      %v1927 = vadd.f32 %v1855, %v1919
      %v1928 = vadd.f32 %v1856, %v1920
      %v1929 = vadd.f32 %v1857, %v1921
      %v1930 = vlaneseq
      %v1931 = vshrl.u32 %v1930, 7
      %v1932 = vsub.s32 1, %v1931
      %v1933 = vrot.slane %v308, %v1932
      %v1934 = vlaneseq
      %v1935 = vshrl.u32 %v1934, 7
      %v1936 = vsub.s32 1, %v1935
      %v1937 = vrot.slane %v312, %v1936
      %v1938 = vmul.f32 %v1933, %v510
      %v1939 = vmul.f32 %v1933, %v511
      %v1940 = vmul.f32 %v1933, %v512
      %v1941 = vmul.f32 %v1933, %v513
      %v1942 = vmul.f32 %v1937, %v510
      %v1943 = vmul.f32 %v1937, %v511
      %v1944 = vmul.f32 %v1937, %v512
      %v1945 = vmul.f32 %v1937, %v513
      %v1946 = vadd.f32 %v1874, %v1938
      %v1947 = vadd.f32 %v1875, %v1939
      %v1948 = vadd.f32 %v1876, %v1940
      %v1949 = vadd.f32 %v1877, %v1941
      %v1950 = vadd.f32 %v1878, %v1942
      %v1951 = vadd.f32 %v1879, %v1943
      %v1952 = vadd.f32 %v1880, %v1944
      %v1953 = vadd.f32 %v1881, %v1945
      %v1954 = vlaneseq
      %v1955 = vshrl.u32 %v1954, 7
      %v1956 = vsub.s32 1, %v1955
      %v1957 = vrot.slane %v572, %v1956
      %v1958 = vlaneseq
      %v1959 = vshrl.u32 %v1958, 7
      %v1960 = vsub.s32 1, %v1959
      %v1961 = vrot.slane %v576, %v1960
      %v1962 = vmul.f32 %v1957, %v646
      %v1963 = vmul.f32 %v1957, %v647
      %v1964 = vmul.f32 %v1957, %v648
      %v1965 = vmul.f32 %v1957, %v649
      %v1966 = vmul.f32 %v1961, %v646
      %v1967 = vmul.f32 %v1961, %v647
      %v1968 = vmul.f32 %v1961, %v648
      %v1969 = vmul.f32 %v1961, %v649
      %v1970 = vadd.f32 %v1898, %v1962
      %v1971 = vadd.f32 %v1899, %v1963
      %v1972 = vadd.f32 %v1900, %v1964
      %v1973 = vadd.f32 %v1901, %v1965
      %v1974 = vadd.f32 %v1902, %v1966
      %v1975 = vadd.f32 %v1903, %v1967
      %v1976 = vadd.f32 %v1904, %v1968
      %v1977 = vadd.f32 %v1905, %v1969
      %v1978 = vlaneseq
      %v1979 = vshrl.u32 %v1978, 7
      %v1980 = vsub.s32 2, %v1979
      %v1981 = vrot.slane %v300, %v1980
      %v1982 = vlaneseq
      %v1983 = vshrl.u32 %v1982, 7
      %v1984 = vsub.s32 2, %v1983
      %v1985 = vrot.slane %v304, %v1984
      %v1986 = vmul.f32 %v1981, %v386
      %v1987 = vmul.f32 %v1981, %v387
      %v1988 = vmul.f32 %v1981, %v388
      %v1989 = vmul.f32 %v1981, %v389
      %v1990 = vmul.f32 %v1985, %v386
      %v1991 = vmul.f32 %v1985, %v387
      %v1992 = vmul.f32 %v1985, %v388
      %v1993 = vmul.f32 %v1985, %v389
      %v1994 = vadd.f32 %v1922, %v1986
      %v1995 = vadd.f32 %v1923, %v1987
      %v1996 = vadd.f32 %v1924, %v1988
      %v1997 = vadd.f32 %v1925, %v1989
      %v1998 = vadd.f32 %v1926, %v1990
      %v1999 = vadd.f32 %v1927, %v1991
      %v2000 = vadd.f32 %v1928, %v1992
      %v2001 = vadd.f32 %v1929, %v1993
      %v2002 = vlaneseq
      %v2003 = vshrl.u32 %v2002, 7
      %v2004 = vsub.s32 2, %v2003
      %v2005 = vrot.slane %v308, %v2004
      %v2006 = vlaneseq
      %v2007 = vshrl.u32 %v2006, 7
      %v2008 = vsub.s32 2, %v2007
      %v2009 = vrot.slane %v312, %v2008
      %v2010 = vmul.f32 %v2005, %v514
      %v2011 = vmul.f32 %v2005, %v515
      %v2012 = vmul.f32 %v2005, %v516
      %v2013 = vmul.f32 %v2005, %v517
      %v2014 = vmul.f32 %v2009, %v514
      %v2015 = vmul.f32 %v2009, %v515
      %v2016 = vmul.f32 %v2009, %v516
      %v2017 = vmul.f32 %v2009, %v517
      %v2018 = vadd.f32 %v1946, %v2010
      %v2019 = vadd.f32 %v1947, %v2011
      %v2020 = vadd.f32 %v1948, %v2012
      %v2021 = vadd.f32 %v1949, %v2013
      %v2022 = vadd.f32 %v1950, %v2014
      %v2023 = vadd.f32 %v1951, %v2015
      %v2024 = vadd.f32 %v1952, %v2016
      %v2025 = vadd.f32 %v1953, %v2017
      %v2026 = vlaneseq
      %v2027 = vshrl.u32 %v2026, 7
      %v2028 = vsub.s32 2, %v2027
      %v2029 = vrot.slane %v572, %v2028
      %v2030 = vlaneseq
      %v2031 = vshrl.u32 %v2030, 7
      %v2032 = vsub.s32 2, %v2031
      %v2033 = vrot.slane %v576, %v2032
      %v2034 = vmul.f32 %v2029, %v650
      %v2035 = vmul.f32 %v2029, %v651
      %v2036 = vmul.f32 %v2029, %v652
      %v2037 = vmul.f32 %v2029, %v653
      %v2038 = vmul.f32 %v2033, %v650
      %v2039 = vmul.f32 %v2033, %v651
      %v2040 = vmul.f32 %v2033, %v652
      %v2041 = vmul.f32 %v2033, %v653
      %v2042 = vadd.f32 %v1970, %v2034
      %v2043 = vadd.f32 %v1971, %v2035
      %v2044 = vadd.f32 %v1972, %v2036
      %v2045 = vadd.f32 %v1973, %v2037
      %v2046 = vadd.f32 %v1974, %v2038
      %v2047 = vadd.f32 %v1975, %v2039
      %v2048 = vadd.f32 %v1976, %v2040
      %v2049 = vadd.f32 %v1977, %v2041
      %v2050 = vlaneseq
      %v2051 = vshrl.u32 %v2050, 7
      %v2052 = vsub.s32 3, %v2051
      %v2053 = vrot.slane %v300, %v2052
      %v2054 = vlaneseq
      %v2055 = vshrl.u32 %v2054, 7
      %v2056 = vsub.s32 3, %v2055
      %v2057 = vrot.slane %v304, %v2056
      %v2058 = vmul.f32 %v2053, %v390
      %v2059 = vmul.f32 %v2053, %v391
      %v2060 = vmul.f32 %v2053, %v392
      %v2061 = vmul.f32 %v2053, %v393
      %v2062 = vmul.f32 %v2057, %v390
      %v2063 = vmul.f32 %v2057, %v391
      %v2064 = vmul.f32 %v2057, %v392
      %v2065 = vmul.f32 %v2057, %v393
      %v2066 = vadd.f32 %v1994, %v2058
      %v2067 = vadd.f32 %v1995, %v2059
      %v2068 = vadd.f32 %v1996, %v2060
      %v2069 = vadd.f32 %v1997, %v2061
      %v2070 = vadd.f32 %v1998, %v2062
      %v2071 = vadd.f32 %v1999, %v2063
      %v2072 = vadd.f32 %v2000, %v2064
      %v2073 = vadd.f32 %v2001, %v2065
      %v2074 = vlaneseq
      %v2075 = vshrl.u32 %v2074, 7
      %v2076 = vsub.s32 3, %v2075
      %v2077 = vrot.slane %v308, %v2076
      %v2078 = vlaneseq
      %v2079 = vshrl.u32 %v2078, 7
      %v2080 = vsub.s32 3, %v2079
      %v2081 = vrot.slane %v312, %v2080
      %v2082 = vmul.f32 %v2077, %v518
      %v2083 = vmul.f32 %v2077, %v519
      %v2084 = vmul.f32 %v2077, %v520
      %v2085 = vmul.f32 %v2077, %v521
      %v2086 = vmul.f32 %v2081, %v518
      %v2087 = vmul.f32 %v2081, %v519
      %v2088 = vmul.f32 %v2081, %v520
      %v2089 = vmul.f32 %v2081, %v521
      %v2090 = vadd.f32 %v2018, %v2082
      %v2091 = vadd.f32 %v2019, %v2083
      %v2092 = vadd.f32 %v2020, %v2084
      %v2093 = vadd.f32 %v2021, %v2085
      %v2094 = vadd.f32 %v2022, %v2086
      %v2095 = vadd.f32 %v2023, %v2087
      %v2096 = vadd.f32 %v2024, %v2088
      %v2097 = vadd.f32 %v2025, %v2089
      %v2098 = vlaneseq
      %v2099 = vshrl.u32 %v2098, 7
      %v2100 = vsub.s32 3, %v2099
      %v2101 = vrot.slane %v572, %v2100
      %v2102 = vlaneseq
      %v2103 = vshrl.u32 %v2102, 7
      %v2104 = vsub.s32 3, %v2103
      %v2105 = vrot.slane %v576, %v2104
      %v2106 = vmul.f32 %v2101, %v654
      %v2107 = vmul.f32 %v2101, %v655
      %v2108 = vmul.f32 %v2101, %v656
      %v2109 = vmul.f32 %v2101, %v657
      %v2110 = vmul.f32 %v2105, %v654
      %v2111 = vmul.f32 %v2105, %v655
      %v2112 = vmul.f32 %v2105, %v656
      %v2113 = vmul.f32 %v2105, %v657
      %v2114 = vadd.f32 %v2042, %v2106
      %v2115 = vadd.f32 %v2043, %v2107
      %v2116 = vadd.f32 %v2044, %v2108
      %v2117 = vadd.f32 %v2045, %v2109
      %v2118 = vadd.f32 %v2046, %v2110
      %v2119 = vadd.f32 %v2047, %v2111
      %v2120 = vadd.f32 %v2048, %v2112
      %v2121 = vadd.f32 %v2049, %v2113
      %v2122 = vlaneseq
      %v2123 = vshrl.u32 %v2122, 7
      %v2124 = vsub.s32 4, %v2123
      %v2125 = vrot.slane %v300, %v2124
      %v2126 = vlaneseq
      %v2127 = vshrl.u32 %v2126, 7
      %v2128 = vsub.s32 4, %v2127
      %v2129 = vrot.slane %v304, %v2128
      %v2130 = vmul.f32 %v2125, %v394
      %v2131 = vmul.f32 %v2125, %v395
      %v2132 = vmul.f32 %v2125, %v396
      %v2133 = vmul.f32 %v2125, %v397
      %v2134 = vmul.f32 %v2129, %v394
      %v2135 = vmul.f32 %v2129, %v395
      %v2136 = vmul.f32 %v2129, %v396
      %v2137 = vmul.f32 %v2129, %v397
      %v2138 = vadd.f32 %v2066, %v2130
      %v2139 = vadd.f32 %v2067, %v2131
      %v2140 = vadd.f32 %v2068, %v2132
      %v2141 = vadd.f32 %v2069, %v2133
      %v2142 = vadd.f32 %v2070, %v2134
      %v2143 = vadd.f32 %v2071, %v2135
      %v2144 = vadd.f32 %v2072, %v2136
      %v2145 = vadd.f32 %v2073, %v2137
      %v2146 = vlaneseq
      %v2147 = vshrl.u32 %v2146, 7
      %v2148 = vsub.s32 4, %v2147
      %v2149 = vrot.slane %v308, %v2148
      %v2150 = vlaneseq
      %v2151 = vshrl.u32 %v2150, 7
      %v2152 = vsub.s32 4, %v2151
      %v2153 = vrot.slane %v312, %v2152
      %v2154 = vmul.f32 %v2149, %v522
      %v2155 = vmul.f32 %v2149, %v523
      %v2156 = vmul.f32 %v2149, %v524
      %v2157 = vmul.f32 %v2149, %v525
      %v2158 = vmul.f32 %v2153, %v522
      %v2159 = vmul.f32 %v2153, %v523
      %v2160 = vmul.f32 %v2153, %v524
      %v2161 = vmul.f32 %v2153, %v525
      %v2162 = vadd.f32 %v2090, %v2154
      %v2163 = vadd.f32 %v2091, %v2155
      %v2164 = vadd.f32 %v2092, %v2156
      %v2165 = vadd.f32 %v2093, %v2157
      %v2166 = vadd.f32 %v2094, %v2158
      %v2167 = vadd.f32 %v2095, %v2159
      %v2168 = vadd.f32 %v2096, %v2160
      %v2169 = vadd.f32 %v2097, %v2161
      %v2170 = vlaneseq
      %v2171 = vshrl.u32 %v2170, 7
      %v2172 = vsub.s32 4, %v2171
      %v2173 = vrot.slane %v572, %v2172
      %v2174 = vlaneseq
      %v2175 = vshrl.u32 %v2174, 7
      %v2176 = vsub.s32 4, %v2175
      %v2177 = vrot.slane %v576, %v2176
      %v2178 = vmul.f32 %v2173, %v658
      %v2179 = vmul.f32 %v2173, %v659
      %v2180 = vmul.f32 %v2173, %v660
      %v2181 = vmul.f32 %v2173, %v661
      %v2182 = vmul.f32 %v2177, %v658
      %v2183 = vmul.f32 %v2177, %v659
      %v2184 = vmul.f32 %v2177, %v660
      %v2185 = vmul.f32 %v2177, %v661
      %v2186 = vadd.f32 %v2114, %v2178
      %v2187 = vadd.f32 %v2115, %v2179
      %v2188 = vadd.f32 %v2116, %v2180
      %v2189 = vadd.f32 %v2117, %v2181
      %v2190 = vadd.f32 %v2118, %v2182
      %v2191 = vadd.f32 %v2119, %v2183
      %v2192 = vadd.f32 %v2120, %v2184
      %v2193 = vadd.f32 %v2121, %v2185
      %v2194 = vlaneseq
      %v2195 = vshrl.u32 %v2194, 7
      %v2196 = vsub.s32 5, %v2195
      %v2197 = vrot.slane %v300, %v2196
      %v2198 = vlaneseq
      %v2199 = vshrl.u32 %v2198, 7
      %v2200 = vsub.s32 5, %v2199
      %v2201 = vrot.slane %v304, %v2200
      %v2202 = vmul.f32 %v2197, %v398
      %v2203 = vmul.f32 %v2197, %v399
      %v2204 = vmul.f32 %v2197, %v400
      %v2205 = vmul.f32 %v2197, %v401
      %v2206 = vmul.f32 %v2201, %v398
      %v2207 = vmul.f32 %v2201, %v399
      %v2208 = vmul.f32 %v2201, %v400
      %v2209 = vmul.f32 %v2201, %v401
      %v2210 = vadd.f32 %v2138, %v2202
      %v2211 = vadd.f32 %v2139, %v2203
      %v2212 = vadd.f32 %v2140, %v2204
      %v2213 = vadd.f32 %v2141, %v2205
      %v2214 = vadd.f32 %v2142, %v2206
      %v2215 = vadd.f32 %v2143, %v2207
      %v2216 = vadd.f32 %v2144, %v2208
      %v2217 = vadd.f32 %v2145, %v2209
      %v2218 = vlaneseq
      %v2219 = vshrl.u32 %v2218, 7
      %v2220 = vsub.s32 5, %v2219
      %v2221 = vrot.slane %v308, %v2220
      %v2222 = vlaneseq
      %v2223 = vshrl.u32 %v2222, 7
      %v2224 = vsub.s32 5, %v2223
      %v2225 = vrot.slane %v312, %v2224
      %v2226 = vmul.f32 %v2221, %v526
      %v2227 = vmul.f32 %v2221, %v527
      %v2228 = vmul.f32 %v2221, %v528
      %v2229 = vmul.f32 %v2221, %v529
      %v2230 = vmul.f32 %v2225, %v526
      %v2231 = vmul.f32 %v2225, %v527
      %v2232 = vmul.f32 %v2225, %v528
      %v2233 = vmul.f32 %v2225, %v529
      %v2234 = vadd.f32 %v2162, %v2226
      %v2235 = vadd.f32 %v2163, %v2227
      %v2236 = vadd.f32 %v2164, %v2228
      %v2237 = vadd.f32 %v2165, %v2229
      %v2238 = vadd.f32 %v2166, %v2230
      %v2239 = vadd.f32 %v2167, %v2231
      %v2240 = vadd.f32 %v2168, %v2232
      %v2241 = vadd.f32 %v2169, %v2233
      %v2242 = vlaneseq
      %v2243 = vshrl.u32 %v2242, 7
      %v2244 = vsub.s32 5, %v2243
      %v2245 = vrot.slane %v572, %v2244
      %v2246 = vlaneseq
      %v2247 = vshrl.u32 %v2246, 7
      %v2248 = vsub.s32 5, %v2247
      %v2249 = vrot.slane %v576, %v2248
      %v2250 = vmul.f32 %v2245, %v662
      %v2251 = vmul.f32 %v2245, %v663
      %v2252 = vmul.f32 %v2245, %v664
      %v2253 = vmul.f32 %v2245, %v665
      %v2254 = vmul.f32 %v2249, %v662
      %v2255 = vmul.f32 %v2249, %v663
      %v2256 = vmul.f32 %v2249, %v664
      %v2257 = vmul.f32 %v2249, %v665
      %v2258 = vadd.f32 %v2186, %v2250
      %v2259 = vadd.f32 %v2187, %v2251
      %v2260 = vadd.f32 %v2188, %v2252
      %v2261 = vadd.f32 %v2189, %v2253
      %v2262 = vadd.f32 %v2190, %v2254
      %v2263 = vadd.f32 %v2191, %v2255
      %v2264 = vadd.f32 %v2192, %v2256
      %v2265 = vadd.f32 %v2193, %v2257
      %v2266 = vlaneseq
      %v2267 = vshrl.u32 %v2266, 7
      %v2268 = vsub.s32 6, %v2267
      %v2269 = vrot.slane %v300, %v2268
      %v2270 = vlaneseq
      %v2271 = vshrl.u32 %v2270, 7
      %v2272 = vsub.s32 6, %v2271
      %v2273 = vrot.slane %v304, %v2272
      %v2274 = vmul.f32 %v2269, %v402
      %v2275 = vmul.f32 %v2269, %v403
      %v2276 = vmul.f32 %v2269, %v404
      %v2277 = vmul.f32 %v2269, %v405
      %v2278 = vmul.f32 %v2273, %v402
      %v2279 = vmul.f32 %v2273, %v403
      %v2280 = vmul.f32 %v2273, %v404
      %v2281 = vmul.f32 %v2273, %v405
      %v2282 = vadd.f32 %v2210, %v2274
      %v2283 = vadd.f32 %v2211, %v2275
      %v2284 = vadd.f32 %v2212, %v2276
      %v2285 = vadd.f32 %v2213, %v2277
      %v2286 = vadd.f32 %v2214, %v2278
      %v2287 = vadd.f32 %v2215, %v2279
      %v2288 = vadd.f32 %v2216, %v2280
      %v2289 = vadd.f32 %v2217, %v2281
      %v2290 = vlaneseq
      %v2291 = vshrl.u32 %v2290, 7
      %v2292 = vsub.s32 6, %v2291
      %v2293 = vrot.slane %v308, %v2292
      %v2294 = vlaneseq
      %v2295 = vshrl.u32 %v2294, 7
      %v2296 = vsub.s32 6, %v2295
      %v2297 = vrot.slane %v312, %v2296
      %v2298 = vmul.f32 %v2293, %v530
      %v2299 = vmul.f32 %v2293, %v531
      %v2300 = vmul.f32 %v2293, %v532
      %v2301 = vmul.f32 %v2293, %v533
      %v2302 = vmul.f32 %v2297, %v530
      %v2303 = vmul.f32 %v2297, %v531
      %v2304 = vmul.f32 %v2297, %v532
      %v2305 = vmul.f32 %v2297, %v533
      %v2306 = vadd.f32 %v2234, %v2298
      %v2307 = vadd.f32 %v2235, %v2299
      %v2308 = vadd.f32 %v2236, %v2300
      %v2309 = vadd.f32 %v2237, %v2301
      %v2310 = vadd.f32 %v2238, %v2302
      %v2311 = vadd.f32 %v2239, %v2303
      %v2312 = vadd.f32 %v2240, %v2304
      %v2313 = vadd.f32 %v2241, %v2305
      %v2314 = vlaneseq
      %v2315 = vshrl.u32 %v2314, 7
      %v2316 = vsub.s32 6, %v2315
      %v2317 = vrot.slane %v572, %v2316
      %v2318 = vlaneseq
      %v2319 = vshrl.u32 %v2318, 7
      %v2320 = vsub.s32 6, %v2319
      %v2321 = vrot.slane %v576, %v2320
      %v2322 = vmul.f32 %v2317, %v666
      %v2323 = vmul.f32 %v2317, %v667
      %v2324 = vmul.f32 %v2317, %v668
      %v2325 = vmul.f32 %v2317, %v669
      %v2326 = vmul.f32 %v2321, %v666
      %v2327 = vmul.f32 %v2321, %v667
      %v2328 = vmul.f32 %v2321, %v668
      %v2329 = vmul.f32 %v2321, %v669
      %v2330 = vadd.f32 %v2258, %v2322
      %v2331 = vadd.f32 %v2259, %v2323
      %v2332 = vadd.f32 %v2260, %v2324
      %v2333 = vadd.f32 %v2261, %v2325
      %v2334 = vadd.f32 %v2262, %v2326
      %v2335 = vadd.f32 %v2263, %v2327
      %v2336 = vadd.f32 %v2264, %v2328
      %v2337 = vadd.f32 %v2265, %v2329
      %v2338 = vlaneseq
      %v2339 = vshrl.u32 %v2338, 7
      %v2340 = vsub.s32 7, %v2339
      %v2341 = vrot.slane %v300, %v2340
      %v2342 = vlaneseq
      %v2343 = vshrl.u32 %v2342, 7
      %v2344 = vsub.s32 7, %v2343
      %v2345 = vrot.slane %v304, %v2344
      %v2346 = vmul.f32 %v2341, %v406
      %v2347 = vmul.f32 %v2341, %v407
      %v2348 = vmul.f32 %v2341, %v408
      %v2349 = vmul.f32 %v2341, %v409
      %v2350 = vmul.f32 %v2345, %v406
      %v2351 = vmul.f32 %v2345, %v407
      %v2352 = vmul.f32 %v2345, %v408
      %v2353 = vmul.f32 %v2345, %v409
      %v2354 = vadd.f32 %v2282, %v2346
      %v2355 = vadd.f32 %v2283, %v2347
      %v2356 = vadd.f32 %v2284, %v2348
      %v2357 = vadd.f32 %v2285, %v2349
      %v2358 = vadd.f32 %v2286, %v2350
      %v2359 = vadd.f32 %v2287, %v2351
      %v2360 = vadd.f32 %v2288, %v2352
      %v2361 = vadd.f32 %v2289, %v2353
      %v2362 = vlaneseq
      %v2363 = vshrl.u32 %v2362, 7
      %v2364 = vsub.s32 7, %v2363
      %v2365 = vrot.slane %v308, %v2364
      %v2366 = vlaneseq
      %v2367 = vshrl.u32 %v2366, 7
      %v2368 = vsub.s32 7, %v2367
      %v2369 = vrot.slane %v312, %v2368
      %v2370 = vmul.f32 %v2365, %v534
      %v2371 = vmul.f32 %v2365, %v535
      %v2372 = vmul.f32 %v2365, %v536
      %v2373 = vmul.f32 %v2365, %v537
      %v2374 = vmul.f32 %v2369, %v534
      %v2375 = vmul.f32 %v2369, %v535
      %v2376 = vmul.f32 %v2369, %v536
      %v2377 = vmul.f32 %v2369, %v537
      %v2378 = vadd.f32 %v2306, %v2370
      %v2379 = vadd.f32 %v2307, %v2371
      %v2380 = vadd.f32 %v2308, %v2372
      %v2381 = vadd.f32 %v2309, %v2373
      %v2382 = vadd.f32 %v2310, %v2374
      %v2383 = vadd.f32 %v2311, %v2375
      %v2384 = vadd.f32 %v2312, %v2376
      %v2385 = vadd.f32 %v2313, %v2377
      %v2386 = vlaneseq
      %v2387 = vshrl.u32 %v2386, 7
      %v2388 = vsub.s32 7, %v2387
      %v2389 = vrot.slane %v572, %v2388
      %v2390 = vlaneseq
      %v2391 = vshrl.u32 %v2390, 7
      %v2392 = vsub.s32 7, %v2391
      %v2393 = vrot.slane %v576, %v2392
      %v2394 = vmul.f32 %v2389, %v670
      %v2395 = vmul.f32 %v2389, %v671
      %v2396 = vmul.f32 %v2389, %v672
      %v2397 = vmul.f32 %v2389, %v673
      %v2398 = vmul.f32 %v2393, %v670
      %v2399 = vmul.f32 %v2393, %v671
      %v2400 = vmul.f32 %v2393, %v672
      %v2401 = vmul.f32 %v2393, %v673
      %v2402 = vadd.f32 %v2330, %v2394
      %v2403 = vadd.f32 %v2331, %v2395
      %v2404 = vadd.f32 %v2332, %v2396
      %v2405 = vadd.f32 %v2333, %v2397
      %v2406 = vadd.f32 %v2334, %v2398
      %v2407 = vadd.f32 %v2335, %v2399
      %v2408 = vadd.f32 %v2336, %v2400
      %v2409 = vadd.f32 %v2337, %v2401
      %v2410 = vlaneseq
      %v2411 = vshrl.u32 %v2410, 7
      %v2412 = vsub.s32 0, %v2411
      %v2413 = vrot.slane %v301, %v2412
      %v2414 = vlaneseq
      %v2415 = vshrl.u32 %v2414, 7
      %v2416 = vsub.s32 0, %v2415
      %v2417 = vrot.slane %v305, %v2416
      %v2418 = vmul.f32 %v2413, %v410
      %v2419 = vmul.f32 %v2413, %v411
      %v2420 = vmul.f32 %v2413, %v412
      %v2421 = vmul.f32 %v2413, %v413
      %v2422 = vmul.f32 %v2417, %v410
      %v2423 = vmul.f32 %v2417, %v411
      %v2424 = vmul.f32 %v2417, %v412
      %v2425 = vmul.f32 %v2417, %v413
      %v2426 = vadd.f32 %v2354, %v2418
      %v2427 = vadd.f32 %v2355, %v2419
      %v2428 = vadd.f32 %v2356, %v2420
      %v2429 = vadd.f32 %v2357, %v2421
      %v2430 = vadd.f32 %v2358, %v2422
      %v2431 = vadd.f32 %v2359, %v2423
      %v2432 = vadd.f32 %v2360, %v2424
      %v2433 = vadd.f32 %v2361, %v2425
      %v2434 = vlaneseq
      %v2435 = vshrl.u32 %v2434, 7
      %v2436 = vsub.s32 0, %v2435
      %v2437 = vrot.slane %v309, %v2436
      %v2438 = vlaneseq
      %v2439 = vshrl.u32 %v2438, 7
      %v2440 = vsub.s32 0, %v2439
      %v2441 = vrot.slane %v313, %v2440
      %v2442 = vmul.f32 %v2437, %v538
      %v2443 = vmul.f32 %v2437, %v539
      %v2444 = vmul.f32 %v2437, %v540
      %v2445 = vmul.f32 %v2437, %v541
      %v2446 = vmul.f32 %v2441, %v538
      %v2447 = vmul.f32 %v2441, %v539
      %v2448 = vmul.f32 %v2441, %v540
      %v2449 = vmul.f32 %v2441, %v541
      %v2450 = vadd.f32 %v2378, %v2442
      %v2451 = vadd.f32 %v2379, %v2443
      %v2452 = vadd.f32 %v2380, %v2444
      %v2453 = vadd.f32 %v2381, %v2445
      %v2454 = vadd.f32 %v2382, %v2446
      %v2455 = vadd.f32 %v2383, %v2447
      %v2456 = vadd.f32 %v2384, %v2448
      %v2457 = vadd.f32 %v2385, %v2449
      %v2458 = vlaneseq
      %v2459 = vshrl.u32 %v2458, 7
      %v2460 = vsub.s32 0, %v2459
      %v2461 = vrot.slane %v573, %v2460
      %v2462 = vlaneseq
      %v2463 = vshrl.u32 %v2462, 7
      %v2464 = vsub.s32 0, %v2463
      %v2465 = vrot.slane %v577, %v2464
      %v2466 = vmul.f32 %v2461, %v674
      %v2467 = vmul.f32 %v2461, %v675
      %v2468 = vmul.f32 %v2461, %v676
      %v2469 = vmul.f32 %v2461, %v677
      %v2470 = vmul.f32 %v2465, %v674
      %v2471 = vmul.f32 %v2465, %v675
      %v2472 = vmul.f32 %v2465, %v676
      %v2473 = vmul.f32 %v2465, %v677
      %v2474 = vadd.f32 %v2402, %v2466
      %v2475 = vadd.f32 %v2403, %v2467
      %v2476 = vadd.f32 %v2404, %v2468
      %v2477 = vadd.f32 %v2405, %v2469
      %v2478 = vadd.f32 %v2406, %v2470
      %v2479 = vadd.f32 %v2407, %v2471
      %v2480 = vadd.f32 %v2408, %v2472
      %v2481 = vadd.f32 %v2409, %v2473
      %v2482 = vlaneseq
      %v2483 = vshrl.u32 %v2482, 7
      %v2484 = vsub.s32 1, %v2483
      %v2485 = vrot.slane %v301, %v2484
      %v2486 = vlaneseq
      %v2487 = vshrl.u32 %v2486, 7
      %v2488 = vsub.s32 1, %v2487
      %v2489 = vrot.slane %v305, %v2488
      %v2490 = vmul.f32 %v2485, %v414
      %v2491 = vmul.f32 %v2485, %v415
      %v2492 = vmul.f32 %v2485, %v416
      %v2493 = vmul.f32 %v2485, %v417
      %v2494 = vmul.f32 %v2489, %v414
      %v2495 = vmul.f32 %v2489, %v415
      %v2496 = vmul.f32 %v2489, %v416
      %v2497 = vmul.f32 %v2489, %v417
      %v2498 = vadd.f32 %v2426, %v2490
      %v2499 = vadd.f32 %v2427, %v2491
      %v2500 = vadd.f32 %v2428, %v2492
      %v2501 = vadd.f32 %v2429, %v2493
      %v2502 = vadd.f32 %v2430, %v2494
      %v2503 = vadd.f32 %v2431, %v2495
      %v2504 = vadd.f32 %v2432, %v2496
      %v2505 = vadd.f32 %v2433, %v2497
      %v2506 = vlaneseq
      %v2507 = vshrl.u32 %v2506, 7
      %v2508 = vsub.s32 1, %v2507
      %v2509 = vrot.slane %v309, %v2508
      %v2510 = vlaneseq
      %v2511 = vshrl.u32 %v2510, 7
      %v2512 = vsub.s32 1, %v2511
      %v2513 = vrot.slane %v313, %v2512
      %v2514 = vmul.f32 %v2509, %v542
      %v2515 = vmul.f32 %v2509, %v543
      %v2516 = vmul.f32 %v2509, %v544
      %v2517 = vmul.f32 %v2509, %v545
      %v2518 = vmul.f32 %v2513, %v542
      %v2519 = vmul.f32 %v2513, %v543
      %v2520 = vmul.f32 %v2513, %v544
      %v2521 = vmul.f32 %v2513, %v545
      %v2522 = vadd.f32 %v2450, %v2514
      %v2523 = vadd.f32 %v2451, %v2515
      %v2524 = vadd.f32 %v2452, %v2516
      %v2525 = vadd.f32 %v2453, %v2517
      %v2526 = vadd.f32 %v2454, %v2518
      %v2527 = vadd.f32 %v2455, %v2519
      %v2528 = vadd.f32 %v2456, %v2520
      %v2529 = vadd.f32 %v2457, %v2521
      %v2530 = vlaneseq
      %v2531 = vshrl.u32 %v2530, 7
      %v2532 = vsub.s32 1, %v2531
      %v2533 = vrot.slane %v573, %v2532
      %v2534 = vlaneseq
      %v2535 = vshrl.u32 %v2534, 7
      %v2536 = vsub.s32 1, %v2535
      %v2537 = vrot.slane %v577, %v2536
      %v2538 = vmul.f32 %v2533, %v678
      %v2539 = vmul.f32 %v2533, %v679
      %v2540 = vmul.f32 %v2533, %v680
      %v2541 = vmul.f32 %v2533, %v681
      %v2542 = vmul.f32 %v2537, %v678
      %v2543 = vmul.f32 %v2537, %v679
      %v2544 = vmul.f32 %v2537, %v680
      %v2545 = vmul.f32 %v2537, %v681
      %v2546 = vadd.f32 %v2474, %v2538
      %v2547 = vadd.f32 %v2475, %v2539
      %v2548 = vadd.f32 %v2476, %v2540
      %v2549 = vadd.f32 %v2477, %v2541
      %v2550 = vadd.f32 %v2478, %v2542
      %v2551 = vadd.f32 %v2479, %v2543
      %v2552 = vadd.f32 %v2480, %v2544
      %v2553 = vadd.f32 %v2481, %v2545
      %v2554 = vlaneseq
      %v2555 = vshrl.u32 %v2554, 7
      %v2556 = vsub.s32 2, %v2555
      %v2557 = vrot.slane %v301, %v2556
      %v2558 = vlaneseq
      %v2559 = vshrl.u32 %v2558, 7
      %v2560 = vsub.s32 2, %v2559
      %v2561 = vrot.slane %v305, %v2560
      %v2562 = vmul.f32 %v2557, %v418
      %v2563 = vmul.f32 %v2557, %v419
      %v2564 = vmul.f32 %v2557, %v420
      %v2565 = vmul.f32 %v2557, %v421
      %v2566 = vmul.f32 %v2561, %v418
      %v2567 = vmul.f32 %v2561, %v419
      %v2568 = vmul.f32 %v2561, %v420
      %v2569 = vmul.f32 %v2561, %v421
      %v2570 = vadd.f32 %v2498, %v2562
      %v2571 = vadd.f32 %v2499, %v2563
      %v2572 = vadd.f32 %v2500, %v2564
      %v2573 = vadd.f32 %v2501, %v2565
      %v2574 = vadd.f32 %v2502, %v2566
      %v2575 = vadd.f32 %v2503, %v2567
      %v2576 = vadd.f32 %v2504, %v2568
      %v2577 = vadd.f32 %v2505, %v2569
      %v2578 = vlaneseq
      %v2579 = vshrl.u32 %v2578, 7
      %v2580 = vsub.s32 2, %v2579
      %v2581 = vrot.slane %v309, %v2580
      %v2582 = vlaneseq
      %v2583 = vshrl.u32 %v2582, 7
      %v2584 = vsub.s32 2, %v2583
      %v2585 = vrot.slane %v313, %v2584
      %v2586 = vmul.f32 %v2581, %v546
      %v2587 = vmul.f32 %v2581, %v547
      %v2588 = vmul.f32 %v2581, %v548
      %v2589 = vmul.f32 %v2581, %v549
      %v2590 = vmul.f32 %v2585, %v546
      %v2591 = vmul.f32 %v2585, %v547
      %v2592 = vmul.f32 %v2585, %v548
      %v2593 = vmul.f32 %v2585, %v549
      %v2594 = vadd.f32 %v2522, %v2586
      %v2595 = vadd.f32 %v2523, %v2587
      %v2596 = vadd.f32 %v2524, %v2588
      %v2597 = vadd.f32 %v2525, %v2589
      %v2598 = vadd.f32 %v2526, %v2590
      %v2599 = vadd.f32 %v2527, %v2591
      %v2600 = vadd.f32 %v2528, %v2592
      %v2601 = vadd.f32 %v2529, %v2593
      %v2602 = vlaneseq
      %v2603 = vshrl.u32 %v2602, 7
      %v2604 = vsub.s32 2, %v2603
      %v2605 = vrot.slane %v573, %v2604
      %v2606 = vlaneseq
      %v2607 = vshrl.u32 %v2606, 7
      %v2608 = vsub.s32 2, %v2607
      %v2609 = vrot.slane %v577, %v2608
      %v2610 = vmul.f32 %v2605, %v682
      %v2611 = vmul.f32 %v2605, %v683
      %v2612 = vmul.f32 %v2605, %v684
      %v2613 = vmul.f32 %v2605, %v685
      %v2614 = vmul.f32 %v2609, %v682
      %v2615 = vmul.f32 %v2609, %v683
      %v2616 = vmul.f32 %v2609, %v684
      %v2617 = vmul.f32 %v2609, %v685
      %v2618 = vadd.f32 %v2546, %v2610
      %v2619 = vadd.f32 %v2547, %v2611
      %v2620 = vadd.f32 %v2548, %v2612
      %v2621 = vadd.f32 %v2549, %v2613
      %v2622 = vadd.f32 %v2550, %v2614
      %v2623 = vadd.f32 %v2551, %v2615
      %v2624 = vadd.f32 %v2552, %v2616
      %v2625 = vadd.f32 %v2553, %v2617
      %v2626 = vlaneseq
      %v2627 = vshrl.u32 %v2626, 7
      %v2628 = vsub.s32 3, %v2627
      %v2629 = vrot.slane %v301, %v2628
      %v2630 = vlaneseq
      %v2631 = vshrl.u32 %v2630, 7
      %v2632 = vsub.s32 3, %v2631
      %v2633 = vrot.slane %v305, %v2632
      %v2634 = vmul.f32 %v2629, %v422
      %v2635 = vmul.f32 %v2629, %v423
      %v2636 = vmul.f32 %v2629, %v424
      %v2637 = vmul.f32 %v2629, %v425
      %v2638 = vmul.f32 %v2633, %v422
      %v2639 = vmul.f32 %v2633, %v423
      %v2640 = vmul.f32 %v2633, %v424
      %v2641 = vmul.f32 %v2633, %v425
      %v2642 = vadd.f32 %v2570, %v2634
      %v2643 = vadd.f32 %v2571, %v2635
      %v2644 = vadd.f32 %v2572, %v2636
      %v2645 = vadd.f32 %v2573, %v2637
      %v2646 = vadd.f32 %v2574, %v2638
      %v2647 = vadd.f32 %v2575, %v2639
      %v2648 = vadd.f32 %v2576, %v2640
      %v2649 = vadd.f32 %v2577, %v2641
      %v2650 = vlaneseq
      %v2651 = vshrl.u32 %v2650, 7
      %v2652 = vsub.s32 3, %v2651
      %v2653 = vrot.slane %v309, %v2652
      %v2654 = vlaneseq
      %v2655 = vshrl.u32 %v2654, 7
      %v2656 = vsub.s32 3, %v2655
      %v2657 = vrot.slane %v313, %v2656
      %v2658 = vmul.f32 %v2653, %v550
      %v2659 = vmul.f32 %v2653, %v551
      %v2660 = vmul.f32 %v2653, %v552
      %v2661 = vmul.f32 %v2653, %v553
      %v2662 = vmul.f32 %v2657, %v550
      %v2663 = vmul.f32 %v2657, %v551
      %v2664 = vmul.f32 %v2657, %v552
      %v2665 = vmul.f32 %v2657, %v553
      %v2666 = vadd.f32 %v2594, %v2658
      %v2667 = vadd.f32 %v2595, %v2659
      %v2668 = vadd.f32 %v2596, %v2660
      %v2669 = vadd.f32 %v2597, %v2661
      %v2670 = vadd.f32 %v2598, %v2662
      %v2671 = vadd.f32 %v2599, %v2663
      %v2672 = vadd.f32 %v2600, %v2664
      %v2673 = vadd.f32 %v2601, %v2665
      %v2674 = vlaneseq
      %v2675 = vshrl.u32 %v2674, 7
      %v2676 = vsub.s32 3, %v2675
      %v2677 = vrot.slane %v573, %v2676
      %v2678 = vlaneseq
      %v2679 = vshrl.u32 %v2678, 7
      %v2680 = vsub.s32 3, %v2679
      %v2681 = vrot.slane %v577, %v2680
      %v2682 = vmul.f32 %v2677, %v686
      %v2683 = vmul.f32 %v2677, %v687
      %v2684 = vmul.f32 %v2677, %v688
      %v2685 = vmul.f32 %v2677, %v689
      %v2686 = vmul.f32 %v2681, %v686
      %v2687 = vmul.f32 %v2681, %v687
      %v2688 = vmul.f32 %v2681, %v688
      %v2689 = vmul.f32 %v2681, %v689
      %v2690 = vadd.f32 %v2618, %v2682
      %v2691 = vadd.f32 %v2619, %v2683
      %v2692 = vadd.f32 %v2620, %v2684
      %v2693 = vadd.f32 %v2621, %v2685
      %v2694 = vadd.f32 %v2622, %v2686
      %v2695 = vadd.f32 %v2623, %v2687
      %v2696 = vadd.f32 %v2624, %v2688
      %v2697 = vadd.f32 %v2625, %v2689
      %v2698 = vlaneseq
      %v2699 = vshrl.u32 %v2698, 7
      %v2700 = vsub.s32 4, %v2699
      %v2701 = vrot.slane %v301, %v2700
      %v2702 = vlaneseq
      %v2703 = vshrl.u32 %v2702, 7
      %v2704 = vsub.s32 4, %v2703
      %v2705 = vrot.slane %v305, %v2704
      %v2706 = vmul.f32 %v2701, %v426
      %v2707 = vmul.f32 %v2701, %v427
      %v2708 = vmul.f32 %v2701, %v428
      %v2709 = vmul.f32 %v2701, %v429
      %v2710 = vmul.f32 %v2705, %v426
      %v2711 = vmul.f32 %v2705, %v427
      %v2712 = vmul.f32 %v2705, %v428
      %v2713 = vmul.f32 %v2705, %v429
      %v2714 = vadd.f32 %v2642, %v2706
      %v2715 = vadd.f32 %v2643, %v2707
      %v2716 = vadd.f32 %v2644, %v2708
      %v2717 = vadd.f32 %v2645, %v2709
      %v2718 = vadd.f32 %v2646, %v2710
      %v2719 = vadd.f32 %v2647, %v2711
      %v2720 = vadd.f32 %v2648, %v2712
      %v2721 = vadd.f32 %v2649, %v2713
      %v2722 = vlaneseq
      %v2723 = vshrl.u32 %v2722, 7
      %v2724 = vsub.s32 4, %v2723
      %v2725 = vrot.slane %v309, %v2724
      %v2726 = vlaneseq
      %v2727 = vshrl.u32 %v2726, 7
      %v2728 = vsub.s32 4, %v2727
      %v2729 = vrot.slane %v313, %v2728
      %v2730 = vmul.f32 %v2725, %v554
      %v2731 = vmul.f32 %v2725, %v555
      %v2732 = vmul.f32 %v2725, %v556
      %v2733 = vmul.f32 %v2725, %v557
      %v2734 = vmul.f32 %v2729, %v554
      %v2735 = vmul.f32 %v2729, %v555
      %v2736 = vmul.f32 %v2729, %v556
      %v2737 = vmul.f32 %v2729, %v557
      %v2738 = vadd.f32 %v2666, %v2730
      %v2739 = vadd.f32 %v2667, %v2731
      %v2740 = vadd.f32 %v2668, %v2732
      %v2741 = vadd.f32 %v2669, %v2733
      %v2742 = vadd.f32 %v2670, %v2734
      %v2743 = vadd.f32 %v2671, %v2735
      %v2744 = vadd.f32 %v2672, %v2736
      %v2745 = vadd.f32 %v2673, %v2737
      %v2746 = vlaneseq
      %v2747 = vshrl.u32 %v2746, 7
      %v2748 = vsub.s32 4, %v2747
      %v2749 = vrot.slane %v573, %v2748
      %v2750 = vlaneseq
      %v2751 = vshrl.u32 %v2750, 7
      %v2752 = vsub.s32 4, %v2751
      %v2753 = vrot.slane %v577, %v2752
      %v2754 = vmul.f32 %v2749, %v690
      %v2755 = vmul.f32 %v2749, %v691
      %v2756 = vmul.f32 %v2749, %v692
      %v2757 = vmul.f32 %v2749, %v693
      %v2758 = vmul.f32 %v2753, %v690
      %v2759 = vmul.f32 %v2753, %v691
      %v2760 = vmul.f32 %v2753, %v692
      %v2761 = vmul.f32 %v2753, %v693
      %v2762 = vadd.f32 %v2690, %v2754
      %v2763 = vadd.f32 %v2691, %v2755
      %v2764 = vadd.f32 %v2692, %v2756
      %v2765 = vadd.f32 %v2693, %v2757
      %v2766 = vadd.f32 %v2694, %v2758
      %v2767 = vadd.f32 %v2695, %v2759
      %v2768 = vadd.f32 %v2696, %v2760
      %v2769 = vadd.f32 %v2697, %v2761
      %v2770 = vlaneseq
      %v2771 = vshrl.u32 %v2770, 7
      %v2772 = vsub.s32 5, %v2771
      %v2773 = vrot.slane %v301, %v2772
      %v2774 = vlaneseq
      %v2775 = vshrl.u32 %v2774, 7
      %v2776 = vsub.s32 5, %v2775
      %v2777 = vrot.slane %v305, %v2776
      %v2778 = vmul.f32 %v2773, %v430
      %v2779 = vmul.f32 %v2773, %v431
      %v2780 = vmul.f32 %v2773, %v432
      %v2781 = vmul.f32 %v2773, %v433
      %v2782 = vmul.f32 %v2777, %v430
      %v2783 = vmul.f32 %v2777, %v431
      %v2784 = vmul.f32 %v2777, %v432
      %v2785 = vmul.f32 %v2777, %v433
      %v2786 = vadd.f32 %v2714, %v2778
      %v2787 = vadd.f32 %v2715, %v2779
      %v2788 = vadd.f32 %v2716, %v2780
      %v2789 = vadd.f32 %v2717, %v2781
      %v2790 = vadd.f32 %v2718, %v2782
      %v2791 = vadd.f32 %v2719, %v2783
      %v2792 = vadd.f32 %v2720, %v2784
      %v2793 = vadd.f32 %v2721, %v2785
      %v2794 = vlaneseq
      %v2795 = vshrl.u32 %v2794, 7
      %v2796 = vsub.s32 5, %v2795
      %v2797 = vrot.slane %v309, %v2796
      %v2798 = vlaneseq
      %v2799 = vshrl.u32 %v2798, 7
      %v2800 = vsub.s32 5, %v2799
      %v2801 = vrot.slane %v313, %v2800
      %v2802 = vmul.f32 %v2797, %v558
      %v2803 = vmul.f32 %v2797, %v559
      %v2804 = vmul.f32 %v2797, %v560
      %v2805 = vmul.f32 %v2797, %v561
      %v2806 = vmul.f32 %v2801, %v558
      %v2807 = vmul.f32 %v2801, %v559
      %v2808 = vmul.f32 %v2801, %v560
      %v2809 = vmul.f32 %v2801, %v561
      %v2810 = vadd.f32 %v2738, %v2802
      %v2811 = vadd.f32 %v2739, %v2803
      %v2812 = vadd.f32 %v2740, %v2804
      %v2813 = vadd.f32 %v2741, %v2805
      %v2814 = vadd.f32 %v2742, %v2806
      %v2815 = vadd.f32 %v2743, %v2807
      %v2816 = vadd.f32 %v2744, %v2808
      %v2817 = vadd.f32 %v2745, %v2809
      %v2818 = vlaneseq
      %v2819 = vshrl.u32 %v2818, 7
      %v2820 = vsub.s32 5, %v2819
      %v2821 = vrot.slane %v573, %v2820
      %v2822 = vlaneseq
      %v2823 = vshrl.u32 %v2822, 7
      %v2824 = vsub.s32 5, %v2823
      %v2825 = vrot.slane %v577, %v2824
      %v2826 = vmul.f32 %v2821, %v694
      %v2827 = vmul.f32 %v2821, %v695
      %v2828 = vmul.f32 %v2821, %v696
      %v2829 = vmul.f32 %v2821, %v697
      %v2830 = vmul.f32 %v2825, %v694
      %v2831 = vmul.f32 %v2825, %v695
      %v2832 = vmul.f32 %v2825, %v696
      %v2833 = vmul.f32 %v2825, %v697
      %v2834 = vadd.f32 %v2762, %v2826
      %v2835 = vadd.f32 %v2763, %v2827
      %v2836 = vadd.f32 %v2764, %v2828
      %v2837 = vadd.f32 %v2765, %v2829
      %v2838 = vadd.f32 %v2766, %v2830
      %v2839 = vadd.f32 %v2767, %v2831
      %v2840 = vadd.f32 %v2768, %v2832
      %v2841 = vadd.f32 %v2769, %v2833
      %v2842 = vlaneseq
      %v2843 = vshrl.u32 %v2842, 7
      %v2844 = vsub.s32 6, %v2843
      %v2845 = vrot.slane %v301, %v2844
      %v2846 = vlaneseq
      %v2847 = vshrl.u32 %v2846, 7
      %v2848 = vsub.s32 6, %v2847
      %v2849 = vrot.slane %v305, %v2848
      %v2850 = vmul.f32 %v2845, %v434
      %v2851 = vmul.f32 %v2845, %v435
      %v2852 = vmul.f32 %v2845, %v436
      %v2853 = vmul.f32 %v2845, %v437
      %v2854 = vmul.f32 %v2849, %v434
      %v2855 = vmul.f32 %v2849, %v435
      %v2856 = vmul.f32 %v2849, %v436
      %v2857 = vmul.f32 %v2849, %v437
      %v2858 = vadd.f32 %v2786, %v2850
      %v2859 = vadd.f32 %v2787, %v2851
      %v2860 = vadd.f32 %v2788, %v2852
      %v2861 = vadd.f32 %v2789, %v2853
      %v2862 = vadd.f32 %v2790, %v2854
      %v2863 = vadd.f32 %v2791, %v2855
      %v2864 = vadd.f32 %v2792, %v2856
      %v2865 = vadd.f32 %v2793, %v2857
      %v2866 = vlaneseq
      %v2867 = vshrl.u32 %v2866, 7
      %v2868 = vsub.s32 6, %v2867
      %v2869 = vrot.slane %v309, %v2868
      %v2870 = vlaneseq
      %v2871 = vshrl.u32 %v2870, 7
      %v2872 = vsub.s32 6, %v2871
      %v2873 = vrot.slane %v313, %v2872
      %v2874 = vmul.f32 %v2869, %v562
      %v2875 = vmul.f32 %v2869, %v563
      %v2876 = vmul.f32 %v2869, %v564
      %v2877 = vmul.f32 %v2869, %v565
      %v2878 = vmul.f32 %v2873, %v562
      %v2879 = vmul.f32 %v2873, %v563
      %v2880 = vmul.f32 %v2873, %v564
      %v2881 = vmul.f32 %v2873, %v565
      %v2882 = vadd.f32 %v2810, %v2874
      %v2883 = vadd.f32 %v2811, %v2875
      %v2884 = vadd.f32 %v2812, %v2876
      %v2885 = vadd.f32 %v2813, %v2877
      %v2886 = vadd.f32 %v2814, %v2878
      %v2887 = vadd.f32 %v2815, %v2879
      %v2888 = vadd.f32 %v2816, %v2880
      %v2889 = vadd.f32 %v2817, %v2881
      %v2890 = vlaneseq
      %v2891 = vshrl.u32 %v2890, 7
      %v2892 = vsub.s32 6, %v2891
      %v2893 = vrot.slane %v573, %v2892
      %v2894 = vlaneseq
      %v2895 = vshrl.u32 %v2894, 7
      %v2896 = vsub.s32 6, %v2895
      %v2897 = vrot.slane %v577, %v2896
      %v2898 = vmul.f32 %v2893, %v698
      %v2899 = vmul.f32 %v2893, %v699
      %v2900 = vmul.f32 %v2893, %v700
      %v2901 = vmul.f32 %v2893, %v701
      %v2902 = vmul.f32 %v2897, %v698
      %v2903 = vmul.f32 %v2897, %v699
      %v2904 = vmul.f32 %v2897, %v700
      %v2905 = vmul.f32 %v2897, %v701
      %v2906 = vadd.f32 %v2834, %v2898
      %v2907 = vadd.f32 %v2835, %v2899
      %v2908 = vadd.f32 %v2836, %v2900
      %v2909 = vadd.f32 %v2837, %v2901
      %v2910 = vadd.f32 %v2838, %v2902
      %v2911 = vadd.f32 %v2839, %v2903
      %v2912 = vadd.f32 %v2840, %v2904
      %v2913 = vadd.f32 %v2841, %v2905
      %v2914 = vlaneseq
      %v2915 = vshrl.u32 %v2914, 7
      %v2916 = vsub.s32 7, %v2915
      %v2917 = vrot.slane %v301, %v2916
      %v2918 = vlaneseq
      %v2919 = vshrl.u32 %v2918, 7
      %v2920 = vsub.s32 7, %v2919
      %v2921 = vrot.slane %v305, %v2920
      %v2922 = vmul.f32 %v2917, %v438
      %v2923 = vmul.f32 %v2917, %v439
      %v2924 = vmul.f32 %v2917, %v440
      %v2925 = vmul.f32 %v2917, %v441
      %v2926 = vmul.f32 %v2921, %v438
      %v2927 = vmul.f32 %v2921, %v439
      %v2928 = vmul.f32 %v2921, %v440
      %v2929 = vmul.f32 %v2921, %v441
      %v2930 = vadd.f32 %v2858, %v2922
      %v2931 = vadd.f32 %v2859, %v2923
      %v2932 = vadd.f32 %v2860, %v2924
      %v2933 = vadd.f32 %v2861, %v2925
      %v2934 = vadd.f32 %v2862, %v2926
      %v2935 = vadd.f32 %v2863, %v2927
      %v2936 = vadd.f32 %v2864, %v2928
      %v2937 = vadd.f32 %v2865, %v2929
      %v2938 = vlaneseq
      %v2939 = vshrl.u32 %v2938, 7
      %v2940 = vsub.s32 7, %v2939
      %v2941 = vrot.slane %v309, %v2940
      %v2942 = vlaneseq
      %v2943 = vshrl.u32 %v2942, 7
      %v2944 = vsub.s32 7, %v2943
      %v2945 = vrot.slane %v313, %v2944
      %v2946 = vmul.f32 %v2941, %v566
      %v2947 = vmul.f32 %v2941, %v567
      %v2948 = vmul.f32 %v2941, %v568
      %v2949 = vmul.f32 %v2941, %v569
      %v2950 = vmul.f32 %v2945, %v566
      %v2951 = vmul.f32 %v2945, %v567
      %v2952 = vmul.f32 %v2945, %v568
      %v2953 = vmul.f32 %v2945, %v569
      %v2954 = vadd.f32 %v2882, %v2946
      %v2955 = vadd.f32 %v2883, %v2947
      %v2956 = vadd.f32 %v2884, %v2948
      %v2957 = vadd.f32 %v2885, %v2949
      %v2958 = vadd.f32 %v2886, %v2950
      %v2959 = vadd.f32 %v2887, %v2951
      %v2960 = vadd.f32 %v2888, %v2952
      %v2961 = vadd.f32 %v2889, %v2953
      %v2962 = vlaneseq
      %v2963 = vshrl.u32 %v2962, 7
      %v2964 = vsub.s32 7, %v2963
      %v2965 = vrot.slane %v573, %v2964
      %v2966 = vlaneseq
      %v2967 = vshrl.u32 %v2966, 7
      %v2968 = vsub.s32 7, %v2967
      %v2969 = vrot.slane %v577, %v2968
      %v2970 = vmul.f32 %v2965, %v702
      %v2971 = vmul.f32 %v2965, %v703
      %v2972 = vmul.f32 %v2965, %v704
      %v2973 = vmul.f32 %v2965, %v705
      %v2974 = vmul.f32 %v2969, %v702
      %v2975 = vmul.f32 %v2969, %v703
      %v2976 = vmul.f32 %v2969, %v704
      %v2977 = vmul.f32 %v2969, %v705
      %v2978 = vadd.f32 %v2906, %v2970
      %v2979 = vadd.f32 %v2907, %v2971
      %v2980 = vadd.f32 %v2908, %v2972
      %v2981 = vadd.f32 %v2909, %v2973
      %v2982 = vadd.f32 %v2910, %v2974
      %v2983 = vadd.f32 %v2911, %v2975
      %v2984 = vadd.f32 %v2912, %v2976
      %v2985 = vadd.f32 %v2913, %v2977
      %v2986 = vsub.f32 %v2930, %v2954
      %v2987 = vsub.f32 %v2931, %v2955
      %v2988 = vsub.f32 %v2932, %v2956
      %v2989 = vsub.f32 %v2933, %v2957
      %v2990 = vsub.f32 %v2934, %v2958
      %v2991 = vsub.f32 %v2935, %v2959
      %v2992 = vsub.f32 %v2936, %v2960
      %v2993 = vsub.f32 %v2937, %v2961
      %vm2994 = vcmask 130048
      %2995 = vst.msk [vmem:[%s292] sm:$0xff] %vm2994, %v2986
      %2996 = vst.msk [vmem:[%s292 + $0x8] sm:$0xff] %vm2994, %v2987
      %2997 = vst.msk [vmem:[%s292 + $0x10] sm:$0xff] %vm2994, %v2988
      %2998 = vst.msk [vmem:[%s292 + $0x18] sm:$0xff] %vm2994, %v2989
      %2999 = vst.msk [vmem:[%s292 + $0x20] sm:$0xff] %vm2994, %v2990
      %3000 = vst.msk [vmem:[%s292 + $0x28] sm:$0xff] %vm2994, %v2991
      %3001 = vst.msk [vmem:[%s292 + $0x30] sm:$0xff] %vm2994, %v2992
      %3002 = vst.msk [vmem:[%s292 + $0x38] sm:$0xff] %vm2994, %v2993
      %v3003 = vsub.f32 %v2978, %v2930
      %v3004 = vsub.f32 %v2979, %v2931
      %v3005 = vsub.f32 %v2980, %v2932
      %v3006 = vsub.f32 %v2981, %v2933
      %v3007 = vsub.f32 %v2982, %v2934
      %v3008 = vsub.f32 %v2983, %v2935
      %v3009 = vsub.f32 %v2984, %v2936
      %v3010 = vsub.f32 %v2985, %v2937
      %v3011 = vsub.f32 %v3003, %v2954
      %v3012 = vsub.f32 %v3004, %v2955
      %v3013 = vsub.f32 %v3005, %v2956
      %v3014 = vsub.f32 %v3006, %v2957
      %v3015 = vsub.f32 %v3007, %v2958
      %v3016 = vsub.f32 %v3008, %v2959
      %v3017 = vsub.f32 %v3009, %v2960
      %v3018 = vsub.f32 %v3010, %v2961
      %3019 = vst.msk [vmem:[%s297] sm:$0xff] %vm2994, %v3011
      %3020 = vst.msk [vmem:[%s297 + $0x8] sm:$0xff] %vm2994, %v3012
      %3021 = vst.msk [vmem:[%s297 + $0x10] sm:$0xff] %vm2994, %v3013
      %3022 = vst.msk [vmem:[%s297 + $0x18] sm:$0xff] %vm2994, %v3014
      %3023 = vst.msk [vmem:[%s297 + $0x20] sm:$0xff] %vm2994, %v3015
      %3024 = vst.msk [vmem:[%s297 + $0x28] sm:$0xff] %vm2994, %v3016
      %3025 = vst.msk [vmem:[%s297 + $0x30] sm:$0xff] %vm2994, %v3017
      %3026 = vst.msk [vmem:[%s297 + $0x38] sm:$0xff] %vm2994, %v3018
      %p3027 = scmp.lt.s32.totalorder %s17, 1
      %s3028 = scalar_select %p3027, %s17, 1
      %s3029 = smul.addr %s3028, 8
      %s3030 = smul.addr %s3029, 8
      %s3031 = scalar_lea.vmem %s4, %s3030
      %p3032 = scmp.lt.s32.totalorder %s17, 1
      %s3033 = scalar_select %p3032, %s17, 1
      %s3034 = smul.addr %s3033, 8
      %s3035 = smul.addr %s3034, 8
      %s3036 = scalar_lea.vmem %s5, %s3035
      // Predicated region
      $region37: #{fno2d_forward.10} parent=35 // pred_check
        %p3037 = pneg %p139
      $region38: #{fno2d_forward.10} parent=35 // pred_check_branch
        %3039 = sbr.rel (%p3037) target = $region40
      $region39: #{fno2d_forward.10} parent=35 // pred_region
        _
      $region40: #{fno2d_forward.10} parent=35 // pred_fallthru
        _
      // Predicated region
      $region41: #{fno2d_forward.10} parent=35 // pred_check
        %p3040 = pneg %p165
      $region42: #{fno2d_forward.10} parent=35 // pred_check_branch
        %3042 = sbr.rel (%p3040) target = $region44
      $region43: #{fno2d_forward.10} parent=35 // pred_region
        _
      $region44: #{fno2d_forward.10} parent=35 // pred_fallthru
        _
    $region36: #{fno2d_forward.10} parent=5 // pred_fallthru
      _
    %p3043 = scmp.le.s32.totalorder 2, %s12
    // Predicated region
    $region45: #{fno2d_forward.10} parent=5 // pred_check
      %p3044 = pneg %p3043
    $region46: #{fno2d_forward.10} parent=5 // pred_check_branch
      %3046 = sbr.rel (%p3044) target = $region48
    $region47: #{fno2d_forward.10} parent=5 // pred_region
      %s3047 = ssub.s32 %s12, 2
      // Predicated region
      $region49: #{fno2d_forward.10} parent=47 // pred_check
        %p3048 = pneg %p145
      $region50: #{fno2d_forward.10} parent=47 // pred_check_branch
        %3050 = sbr.rel (%p3048) target = $region52
      $region51: #{fno2d_forward.10} parent=47 // pred_region
        %p3051 = scmp.lt.s32.totalorder %s18, 1
        %s3052 = scalar_select %p3051, %s18, 1
        %s3053 = smul.addr %s3052, 8
        %s3054 = smul.addr %s3053, 8
        %s3055 = scalar_lea.vmem %s4, %s3054
      $region52: #{fno2d_forward.10} parent=47 // pred_fallthru
        _
      // Predicated region
      $region53: #{fno2d_forward.10} parent=47 // pred_check
        %p3056 = pneg %p171
      $region54: #{fno2d_forward.10} parent=47 // pred_check_branch
        %3058 = sbr.rel (%p3056) target = $region56
      $region55: #{fno2d_forward.10} parent=47 // pred_region
        %p3059 = scmp.lt.s32.totalorder %s18, 1
        %s3060 = scalar_select %p3059, %s18, 1
        %s3061 = smul.addr %s3060, 8
        %s3062 = smul.addr %s3061, 8
        %s3063 = scalar_lea.vmem %s5, %s3062
      $region56: #{fno2d_forward.10} parent=47 // pred_fallthru
        _
    $region48: #{fno2d_forward.10} parent=5 // pred_fallthru
      _
  $region6: #{fno2d_forward.10} parent=0 // loop_footer
    %s16 = sadd.s32 1, %s12
  $region7: #{fno2d_forward.10} parent=0 // loop_footer_branch
    %11 = sbr.rel target = $region3
  $region8: #{fno2d_forward.10} parent=0 // loop_exit
    _

// kernel: fno2d_forward.11
$region0: #{fno2d_forward.11}
  #allocation0 [shape = 'u32[]', space=smem, size = 0x4, offset = 0x4, fixed_abs, tag = 'smem constant byte address 0x4 - core index']
  #allocation1 [shape = 'u32[144,128]{1,0:T(1,128)}', space=vmem, size = 0x12000, scoped, tag = 'internal scratch']
  %s0 = inlined_call_operand.vmem [shape: bf16[2,32,256], index: 0, kind: input, shape index: {}]
  %s1 = inlined_call_operand.vmem [shape: bf16[32,32], index: 1, kind: input, shape index: {}]
  %s2 = inlined_call_operand.vmem [shape: f32[32,1], index: 2, kind: input, shape index: {}]
  %s3 = inlined_call_operand.vmem [shape: bf16[2,32,256], index: 3, kind: input, shape index: {}]
  %s4 = inlined_call_operand.vmem [shape: bf16[2,32,256], index: 4, kind: output, shape index: {}]
  %s5 = sld [smem:[#allocation0]]
  $region49: #{fno2d_forward.11} parent=0
    _
  %s7 = ssub.s32 1, %s5
  %s8 = scalar_select 0, %s7, %s5
  loop: start=0, step=1, limit=4
  $region2: #{fno2d_forward.11} parent=0 // loop_pre_header
    _
  $region3: #{fno2d_forward.11} parent=0 // loop_header
    %s10 = sphi 0, %s14
    %p11 = scmp.ge.s32.totalorder %s10, 4
    %s17 = sphi 0, %s29
    %s18 = sphi 0, %s25
    %s19 = sphi 0, %s17
    %s20 = sphi 0, %s18
    %s21 = sphi 0, %s19
    %s22 = sphi 0, %s20
    %s34 = sphi 0, %s36
    %s37 = sphi 0, %s34
    %s38 = sphi 0, %s37
    %s54 = sphi 0, %s38
    %s58 = sphi 0, %s58
    %s60 = sphi 0, %s58
    %s61 = sphi 0, %s60
    %s75 = sphi 0, %s61
    %s79 = sphi 0, %s79
    %s81 = sphi 0, %s79
    %s82 = sphi 0, %s81
    %s96 = sphi 0, %s82
    %s104 = sphi 0, %s106
    %s107 = sphi 0, %s104
    %s108 = sphi 0, %s107
    %s124 = sphi 0, %s108
    %s132 = sphi 0, %s134
    %s135 = sphi 0, %s132
    %s136 = sphi 0, %s135
    %s152 = sphi 0, %s136
  $region4: #{fno2d_forward.11} parent=0 // loop_header_branch
    %13 = sbr.rel (%p11) target = $region8
  $region5: #{fno2d_forward.11} parent=0 // loop_body
    %s15 = ssub.s32 %s10, 1
    %s16 = ssub.s32 %s10, 2
    %s23 = sadd.s32 1, %s18
    %p24 = scmp.ge.s32.totalorder %s23, 1
    %s25 = scalar_select %p24, 0, %s23
    %s26 = sadd.s32 1, %s17
    %s27 = scalar_select %p24, %s26, %s17
    %p28 = scmp.ge.s32.totalorder %s27, 2
    %s29 = scalar_select %p28, 0, %s27
    %s30 = ssub.s32 %s17, %s29
    %s31 = ssub.s32 %s18, %s25
    %s32 = sor.u32 %s30, %s31
    %p33 = scmp.eq.s32.totalorder %s32, 0
    %s35 = sadd.s32 %s34, 1
    %s36 = scalar_select %p33, %s34, %s35
    %p39 = pneg %p33
    %p40 = scmp.eq.s32.totalorder %s10, 1
    %p41 = por %p39, %p40
    %p42 = scmp.ne.s32.totalorder %s34, %s37
    %p43 = scmp.eq.s32.totalorder %s10, 0
    %p44 = por %p42, %p43
    %p45 = scmp.ne.s32.totalorder %s34, %s37
    %p46 = scmp.eq.s32.totalorder %s15, 1
    %p47 = por %p45, %p46
    %p48 = scmp.ne.s32.totalorder %s37, %s38
    %p49 = scmp.eq.s32.totalorder %s15, 0
    %p50 = por %p48, %p49
    %p51 = scmp.ne.s32.totalorder %s37, %s38
    %p52 = scmp.eq.s32.totalorder %s16, 1
    %p53 = por %p51, %p52
    %p55 = scmp.ne.s32.totalorder %s38, %s54
    %p56 = scmp.eq.s32.totalorder %s16, 0
    %p57 = por %p55, %p56
    %s59 = sadd.s32 %s58, 1
    %p62 = scmp.eq.s32.totalorder %s10, 1
    %p63 = scmp.ne.s32.totalorder %s58, %s60
    %p64 = scmp.eq.s32.totalorder %s10, 0
    %p65 = por %p63, %p64
    %p66 = scmp.ne.s32.totalorder %s58, %s60
    %p67 = scmp.eq.s32.totalorder %s15, 1
    %p68 = por %p66, %p67
    %p69 = scmp.ne.s32.totalorder %s60, %s61
    %p70 = scmp.eq.s32.totalorder %s15, 0
    %p71 = por %p69, %p70
    %p72 = scmp.ne.s32.totalorder %s60, %s61
    %p73 = scmp.eq.s32.totalorder %s16, 1
    %p74 = por %p72, %p73
    %p76 = scmp.ne.s32.totalorder %s61, %s75
    %p77 = scmp.eq.s32.totalorder %s16, 0
    %p78 = por %p76, %p77
    %s80 = sadd.s32 %s79, 1
    %p83 = scmp.eq.s32.totalorder %s10, 1
    %p84 = scmp.ne.s32.totalorder %s79, %s81
    %p85 = scmp.eq.s32.totalorder %s10, 0
    %p86 = por %p84, %p85
    %p87 = scmp.ne.s32.totalorder %s79, %s81
    %p88 = scmp.eq.s32.totalorder %s15, 1
    %p89 = por %p87, %p88
    %p90 = scmp.ne.s32.totalorder %s81, %s82
    %p91 = scmp.eq.s32.totalorder %s15, 0
    %p92 = por %p90, %p91
    %p93 = scmp.ne.s32.totalorder %s81, %s82
    %p94 = scmp.eq.s32.totalorder %s16, 1
    %p95 = por %p93, %p94
    %p97 = scmp.ne.s32.totalorder %s82, %s96
    %p98 = scmp.eq.s32.totalorder %s16, 0
    %p99 = por %p97, %p98
    %s100 = ssub.s32 %s17, %s29
    %s101 = ssub.s32 %s18, %s25
    %s102 = sor.u32 %s100, %s101
    %p103 = scmp.eq.s32.totalorder %s102, 0
    %s105 = sadd.s32 %s104, 1
    %s106 = scalar_select %p103, %s104, %s105
    %p109 = pneg %p103
    %p110 = scmp.eq.s32.totalorder %s10, 1
    %p111 = por %p109, %p110
    %p112 = scmp.ne.s32.totalorder %s104, %s107
    %p113 = scmp.eq.s32.totalorder %s10, 0
    %p114 = por %p112, %p113
    %p115 = scmp.ne.s32.totalorder %s104, %s107
    %p116 = scmp.eq.s32.totalorder %s15, 1
    %p117 = por %p115, %p116
    %p118 = scmp.ne.s32.totalorder %s107, %s108
    %p119 = scmp.eq.s32.totalorder %s15, 0
    %p120 = por %p118, %p119
    %p121 = scmp.ne.s32.totalorder %s107, %s108
    %p122 = scmp.eq.s32.totalorder %s16, 1
    %p123 = por %p121, %p122
    %p125 = scmp.ne.s32.totalorder %s108, %s124
    %p126 = scmp.eq.s32.totalorder %s16, 0
    %p127 = por %p125, %p126
    %s128 = ssub.s32 %s17, %s29
    %s129 = ssub.s32 %s18, %s25
    %s130 = sor.u32 %s128, %s129
    %p131 = scmp.eq.s32.totalorder %s130, 0
    %s133 = sadd.s32 %s132, 1
    %s134 = scalar_select %p131, %s132, %s133
    %p137 = pneg %p131
    %p138 = scmp.eq.s32.totalorder %s10, 1
    %p139 = por %p137, %p138
    %p140 = scmp.ne.s32.totalorder %s132, %s135
    %p141 = scmp.eq.s32.totalorder %s10, 0
    %p142 = por %p140, %p141
    %p143 = scmp.ne.s32.totalorder %s132, %s135
    %p144 = scmp.eq.s32.totalorder %s15, 1
    %p145 = por %p143, %p144
    %p146 = scmp.ne.s32.totalorder %s135, %s136
    %p147 = scmp.eq.s32.totalorder %s15, 0
    %p148 = por %p146, %p147
    %p149 = scmp.ne.s32.totalorder %s135, %s136
    %p150 = scmp.eq.s32.totalorder %s16, 1
    %p151 = por %p149, %p150
    %p153 = scmp.ne.s32.totalorder %s136, %s152
    %p154 = scmp.eq.s32.totalorder %s16, 0
    %p155 = por %p153, %p154
    %p156 = scmp.le.s32.totalorder 1, %s10
    %p157 = scmp.lt.s32.totalorder %s10, 3
    %p158 = pnand %p156, %p157
    %p159 = pneg %p158
    // Predicated region
    $region9: #{fno2d_forward.11} parent=5 // pred_check
      _
    $region10: #{fno2d_forward.11} parent=5 // pred_check_branch
      %161 = sbr.rel (%p158) target = $region12
    $region11: #{fno2d_forward.11} parent=5 // pred_region
      %s162 = ssub.s32 %s10, 1
      // Predicated region
      $region13: #{fno2d_forward.11} parent=11 // pred_check
        %p163 = pneg %p71
      $region14: #{fno2d_forward.11} parent=11 // pred_check_branch
        %165 = sbr.rel (%p163) target = $region16
      $region15: #{fno2d_forward.11} parent=11 // pred_region
        _
      $region16: #{fno2d_forward.11} parent=11 // pred_fallthru
        _
      // Predicated region
      $region17: #{fno2d_forward.11} parent=11 // pred_check
        %p166 = pneg %p92
      $region18: #{fno2d_forward.11} parent=11 // pred_check_branch
        %168 = sbr.rel (%p166) target = $region20
      $region19: #{fno2d_forward.11} parent=11 // pred_region
        _
      $region20: #{fno2d_forward.11} parent=11 // pred_fallthru
        _
    $region12: #{fno2d_forward.11} parent=5 // pred_fallthru
      _
    %p169 = scmp.lt.s32.totalorder %s10, 2
    // Predicated region
    $region21: #{fno2d_forward.11} parent=5 // pred_check
      %p170 = pneg %p169
    $region22: #{fno2d_forward.11} parent=5 // pred_check_branch
      %172 = sbr.rel (%p170) target = $region24
    $region23: #{fno2d_forward.11} parent=5 // pred_region
      // Predicated region
      $region25: #{fno2d_forward.11} parent=23 // pred_check
        %p173 = pneg %p44
      $region26: #{fno2d_forward.11} parent=23 // pred_check_branch
        %175 = sbr.rel (%p173) target = $region28
      $region27: #{fno2d_forward.11} parent=23 // pred_region
        %s176 = smul.u32 2, %s18
        %p177 = scmp.lt.s32.totalorder %s17, 1
        %s178 = scalar_select %p177, %s17, 1
        %p179 = scmp.lt.s32.totalorder %s176, 1
        %s180 = scalar_select %p179, %s176, 1
        %s181 = smul.addr %s178, 8
        %s182 = sadd.s32 %s180, %s181
        %s183 = smul.addr %s182, 4
        %s184 = scalar_lea.vmem %s0, %s183
        %s185 = smul.u32 2, %s18
      $region28: #{fno2d_forward.11} parent=23 // pred_fallthru
        _
      // Predicated region
      $region29: #{fno2d_forward.11} parent=23 // pred_check
        %p186 = pneg %p114
      $region30: #{fno2d_forward.11} parent=23 // pred_check_branch
        %188 = sbr.rel (%p186) target = $region32
      $region31: #{fno2d_forward.11} parent=23 // pred_region
        %s189 = smul.u32 2, %s18
        %p190 = scmp.lt.s32.totalorder %s17, 1
        %s191 = scalar_select %p190, %s17, 1
        %p192 = scmp.lt.s32.totalorder %s189, 1
        %s193 = scalar_select %p192, %s189, 1
        %s194 = smul.addr %s191, 8
        %s195 = sadd.s32 %s193, %s194
        %s196 = smul.addr %s195, 4
        %s197 = scalar_lea.vmem %s3, %s196
        %s198 = smul.u32 2, %s18
      $region32: #{fno2d_forward.11} parent=23 // pred_fallthru
        _
    $region24: #{fno2d_forward.11} parent=5 // pred_fallthru
      _
    %p199 = scmp.le.s32.totalorder 1, %s10
    %p200 = scmp.lt.s32.totalorder %s10, 3
    %p201 = pnand %p199, %p200
    %p202 = pneg %p201
    // Predicated region
    $region33: #{fno2d_forward.11} parent=5 // pred_check
      _
    $region34: #{fno2d_forward.11} parent=5 // pred_check_branch
      %204 = sbr.rel (%p201) target = $region36
    $region35: #{fno2d_forward.11} parent=5 // pred_region
      %s205 = ssub.s32 %s10, 1
      %s206 = smul.u32 2, %s20
      %p207 = scmp.lt.s32.totalorder %s19, 1
      %s208 = scalar_select %p207, %s19, 1
      %p209 = scmp.lt.s32.totalorder %s206, 1
      %s210 = scalar_select %p209, %s206, 1
      %s211 = smul.addr %s208, 8
      %s212 = sadd.s32 %s210, %s211
      %s213 = smul.addr %s212, 4
      %s214 = scalar_lea.vmem %s0, %s213
      %p215 = pneg %p50
      %p216 = pneg %p47
      %p217 = pneg %p71
      %p218 = pneg %p68
      %p219 = pneg %p92
      %p220 = pneg %p89
      %s221 = smul.u32 2, %s20
      %p222 = scmp.lt.s32.totalorder %s19, 1
      %s223 = scalar_select %p222, %s19, 1
      %p224 = scmp.lt.s32.totalorder %s221, 1
      %s225 = scalar_select %p224, %s221, 1
      %s226 = smul.addr %s223, 8
      %s227 = sadd.s32 %s225, %s226
      %s228 = smul.addr %s227, 4
      %s229 = scalar_lea.vmem %s3, %s228
      %p230 = pneg %p120
      %p231 = pneg %p117
      %p232 = pneg %p148
      %p233 = pneg %p145
      %s234 = smul.u32 2, %s20
      %p235 = scmp.lt.s32.totalorder %s19, 1
      %s236 = scalar_select %p235, %s19, 1
      %p237 = scmp.lt.s32.totalorder %s234, 1
      %s238 = scalar_select %p237, %s234, 1
      %s239 = smul.addr %s236, 8
      %s240 = sadd.s32 %s238, %s239
      %s241 = smul.addr %s240, 4
      %s242 = scalar_lea.vmem %s4, %s241
      %s243 = smul.u32 2, %s20
      %p244 = scmp.lt.s32.totalorder %s19, 1
      %s245 = scalar_select %p244, %s19, 1
      %p246 = scmp.lt.s32.totalorder %s243, 1
      %s247 = scalar_select %p246, %s243, 1
      %s248 = smul.addr %s245, 8
      %s249 = sadd.s32 %s247, %s248
      %s250 = smul.addr %s249, 4
      %s251 = scalar_lea.vmem %s0, %s250
      %s252 = smul.u32 2, %s20
      %s253 = smul.u32 2, %s20
      %p254 = scmp.lt.s32.totalorder %s19, 1
      %s255 = scalar_select %p254, %s19, 1
      %p256 = scmp.lt.s32.totalorder %s253, 1
      %s257 = scalar_select %p256, %s253, 1
      %s258 = smul.addr %s255, 8
      %s259 = sadd.s32 %s257, %s258
      %s260 = smul.addr %s259, 4
      %s261 = scalar_lea.vmem %s3, %s260
      %s262 = smul.u32 2, %s20
      %s263 = smul.u32 2, %s20
      %p264 = scmp.lt.s32.totalorder %s19, 1
      %s265 = scalar_select %p264, %s19, 1
      %p266 = scmp.lt.s32.totalorder %s263, 1
      %s267 = scalar_select %p266, %s263, 1
      %s268 = smul.addr %s265, 8
      %s269 = sadd.s32 %s267, %s268
      %s270 = smul.addr %s269, 4
      %s271 = scalar_lea.vmem %s4, %s270
      %s272 = smul.u32 2, %s20
      %v274 = vld [vmem:[%s1] sm:$0xf]
      %v275 = vld [vmem:[%s1 + $0x4] sm:$0xf]
      %v276 = vld [vmem:[%s1 + $0x8] sm:$0xf]
      %v277 = vld [vmem:[%s1 + $0xc] sm:$0xf]
      %v278 = vld [vmem:[%s251] sm:$0xff]
      %v279 = vld [vmem:[%s251 + $0x8] sm:$0xff]
      %v280 = vld [vmem:[%s251 + $0x10] sm:$0xff]
      %v281 = vld [vmem:[%s251 + $0x18] sm:$0xff]
      %v282 = vld [vmem:[%s2] sm:$0xff]
      %v283 = vld [vmem:[%s2 + $0x8] sm:$0xff]
      %v284 = vld [vmem:[%s2 + $0x10] sm:$0xff]
      %v285 = vld [vmem:[%s2 + $0x18] sm:$0xff]
      %287 = vset.pattern.permute.xlu0 0
      %288 = vperm.xlu0 %287, %v282
      %v289 = vpop.permute.xlu0 %288
      %292 = vset.pattern.permute.xlu0 0
      %293 = vperm.xlu0 %292, %v283
      %v294 = vpop.permute.xlu0 %293
      %297 = vset.pattern.permute.xlu0 0
      %298 = vperm.xlu0 %297, %v284
      %v299 = vpop.permute.xlu0 %298
      %302 = vset.pattern.permute.xlu0 0
      %303 = vperm.xlu0 %302, %v285
      %v304 = vpop.permute.xlu0 %303
      %v310 = vunpack.c.l.b16 %v274
      %v311 = vunpack.c.l.b16 %v275
      %v312 = vunpack.c.l.b16 %v276
      %v313 = vunpack.c.l.b16 %v277
      %v314 = vpack.c.b16 %v311, %v310
      %v315 = vpack.c.b16 %v313, %v312
      %v320 = vunpack.c.l.b16 %v278
      %v321 = vunpack.c.h.b16 %v278
      %v322 = vunpack.c.l.b16 %v279
      %v323 = vunpack.c.h.b16 %v279
      %v324 = vunpack.c.l.b16 %v280
      %v325 = vunpack.c.h.b16 %v280
      %v326 = vunpack.c.l.b16 %v281
      %v327 = vunpack.c.h.b16 %v281
      %v328 = vpack.c.b16 %v322, %v320
      %v329 = vpack.c.b16 %v323, %v321
      %v330 = vpack.c.b16 %v326, %v324
      %v331 = vpack.c.b16 %v327, %v325
      %vm336 = vcmask 261120
      %v338 = vsel %vm336, %v314, 0
      %v341 = vsel %vm336, %v315, 0
      %343 = vmatprep.subr.bf16.mxu0 %v329
      %344 = vmatpush1.bf16.msra.mxu0 %v328
      %345 = vmatprep.subr.bf16.mxu0 %v331
      %346 = vmatpush1.bf16.msra.mxu0 %v330
      %347 = vmatprep.subr.bf16.mxu0 0
      %348 = vmatpush1.bf16.msra.mxu0 0
      %349 = vmatprep.subr.bf16.mxu0 0
      %350 = vmatpush1.bf16.msra.mxu0 0
      %351 = vmatprep.subr.bf16.mxu0 0
      %352 = vmatpush1.bf16.msra.mxu0 0
      %353 = vmatprep.subr.bf16.mxu0 0
      %354 = vmatpush1.bf16.msra.mxu0 0
      %355 = vmatprep.subr.bf16.mxu0 0
      %356 = vmatpush1.bf16.msra.mxu0 0
      %357 = vmatprep.subr.bf16.mxu0 0
      %358 = vmatpush1.bf16.msra.mxu0 0
      %359 = vmatprep.subr.bf16.mxu0 0
      %360 = vmatpush1.bf16.msra.mxu0 0
      %361 = vmatprep.subr.bf16.mxu0 0
      %362 = vmatpush1.bf16.msra.mxu0 0
      %363 = vmatprep.subr.bf16.mxu0 0
      %364 = vmatpush1.bf16.msra.mxu0 0
      %365 = vmatprep.subr.bf16.mxu0 0
      %366 = vmatpush1.bf16.msra.mxu0 0
      %367 = vmatprep.subr.bf16.mxu0 0
      %368 = vmatpush1.bf16.msra.mxu0 0
      %369 = vmatprep.subr.bf16.mxu0 0
      %370 = vmatpush1.bf16.msra.mxu0 0
      %371 = vmatprep.subr.bf16.mxu0 0
      %372 = vmatpush1.bf16.msra.mxu0 0
      %373 = vmatprep.subr.bf16.mxu0 0
      %374 = vmatpush1.bf16.msra.mxu0 0
      %375 = vmatprep.mubr.bf16.mxu0 0
      %376 = vmatmul.mubr.bf16.gmra.mrb[0].mxu0 %v338
      %v377 = vpop.f32.mrb[0].mxu0
      %v378 = vadd.f32 %v289, %v377
      %v379 = vpop.f32.mrb[0].mxu0
      %v380 = vadd.f32 %v289, %v379
      %v381 = vpop.f32.mrb[0].mxu0
      %v382 = vadd.f32 %v294, %v381
      %v383 = vpop.f32.mrb[0].mxu0
      %v384 = vadd.f32 %v294, %v383
      %385 = vmatprep.mubr.bf16.mxu0 0
      %386 = vmatmul.mubr.bf16.gmra.mrb[0].mxu0 %v341
      %v387 = vpop.f32.mrb[0].mxu0
      %v388 = vadd.f32 %v299, %v387
      %v389 = vpop.f32.mrb[0].mxu0
      %v390 = vadd.f32 %v299, %v389
      %v391 = vpop.f32.mrb[0].mxu0
      %v392 = vadd.f32 %v304, %v391
      %v393 = vpop.f32.mrb[0].mxu0
      %v394 = vadd.f32 %v304, %v393
      %395 = vdwg.mxu0
      %v396 = vld [vmem:[%s261] sm:$0xff]
      %v397 = vld [vmem:[%s261 + $0x8] sm:$0xff]
      %v398 = vld [vmem:[%s261 + $0x10] sm:$0xff]
      %v399 = vld [vmem:[%s261 + $0x18] sm:$0xff]
      %v400 = vunpack.c.l.bf16 %v396
      %v401 = vunpack.c.h.bf16 %v396
      %v402 = vunpack.c.l.bf16 %v397
      %v403 = vunpack.c.h.bf16 %v397
      %v404 = vunpack.c.l.bf16 %v398
      %v405 = vunpack.c.h.bf16 %v398
      %v406 = vunpack.c.l.bf16 %v399
      %v407 = vunpack.c.h.bf16 %v399
      %v408 = vadd.f32 %v378, %v400
      %v409 = vadd.f32 %v380, %v401
      %v410 = vadd.f32 %v382, %v402
      %v411 = vadd.f32 %v384, %v403
      %v412 = vadd.f32 %v388, %v404
      %v413 = vadd.f32 %v390, %v405
      %v414 = vadd.f32 %v392, %v406
      %v415 = vadd.f32 %v394, %v407
      %v416 = vmax.f32 %v408, 0.0
      %v417 = vmax.f32 %v409, 0.0
      %v418 = vmax.f32 %v410, 0.0
      %v419 = vmax.f32 %v411, 0.0
      %v420 = vmax.f32 %v412, 0.0
      %v421 = vmax.f32 %v413, 0.0
      %v422 = vmax.f32 %v414, 0.0
      %v423 = vmax.f32 %v415, 0.0
      %v424 = vpack.c.bf16 %v418, %v416
      %v425 = vpack.c.bf16 %v419, %v417
      %v426 = vpack.c.bf16 %v422, %v420
      %v427 = vpack.c.bf16 %v423, %v421
      %v432 = vunpack.c.l.b16 %v424
      %v433 = vunpack.c.l.b16 %v425
      %v434 = vunpack.c.h.b16 %v424
      %v435 = vunpack.c.h.b16 %v425
      %v436 = vunpack.c.l.b16 %v426
      %v437 = vunpack.c.l.b16 %v427
      %v438 = vunpack.c.h.b16 %v426
      %v439 = vunpack.c.h.b16 %v427
      %v440 = vpack.c.b16 %v433, %v432
      %v441 = vpack.c.b16 %v435, %v434
      %v442 = vpack.c.b16 %v437, %v436
      %v443 = vpack.c.b16 %v439, %v438
      %448 = vst [vmem:[%s271] sm:$0xff] %v440
      %449 = vst [vmem:[%s271 + $0x8] sm:$0xff] %v441
      %450 = vst [vmem:[%s271 + $0x10] sm:$0xff] %v442
      %451 = vst [vmem:[%s271 + $0x18] sm:$0xff] %v443
      %s452 = smul.u32 2, %s20
      %p453 = scmp.lt.s32.totalorder %s19, 1
      %s454 = scalar_select %p453, %s19, 1
      %p455 = scmp.lt.s32.totalorder %s452, 1
      %s456 = scalar_select %p455, %s452, 1
      %s457 = smul.addr %s454, 8
      %s458 = sadd.s32 %s456, %s457
      %s459 = smul.addr %s458, 4
      %s460 = scalar_lea.vmem %s4, %s459
      // Predicated region
      $region37: #{fno2d_forward.11} parent=35 // pred_check
        %p461 = pneg %p145
      $region38: #{fno2d_forward.11} parent=35 // pred_check_branch
        %463 = sbr.rel (%p461) target = $region40
      $region39: #{fno2d_forward.11} parent=35 // pred_region
        %s464 = smul.u32 2, %s20
      $region40: #{fno2d_forward.11} parent=35 // pred_fallthru
        _
    $region36: #{fno2d_forward.11} parent=5 // pred_fallthru
      _
    %p465 = scmp.le.s32.totalorder 2, %s10
    // Predicated region
    $region41: #{fno2d_forward.11} parent=5 // pred_check
      %p466 = pneg %p465
    $region42: #{fno2d_forward.11} parent=5 // pred_check_branch
      %468 = sbr.rel (%p466) target = $region44
    $region43: #{fno2d_forward.11} parent=5 // pred_region
      %s469 = ssub.s32 %s10, 2
      // Predicated region
      $region45: #{fno2d_forward.11} parent=43 // pred_check
        %p470 = pneg %p151
      $region46: #{fno2d_forward.11} parent=43 // pred_check_branch
        %472 = sbr.rel (%p470) target = $region48
      $region47: #{fno2d_forward.11} parent=43 // pred_region
        %s473 = smul.u32 2, %s22
        %p474 = scmp.lt.s32.totalorder %s21, 1
        %s475 = scalar_select %p474, %s21, 1
        %p476 = scmp.lt.s32.totalorder %s473, 1
        %s477 = scalar_select %p476, %s473, 1
        %s478 = smul.addr %s475, 8
        %s479 = sadd.s32 %s477, %s478
        %s480 = smul.addr %s479, 4
        %s481 = scalar_lea.vmem %s4, %s480
      $region48: #{fno2d_forward.11} parent=43 // pred_fallthru
        _
    $region44: #{fno2d_forward.11} parent=5 // pred_fallthru
      _
  $region6: #{fno2d_forward.11} parent=0 // loop_footer
    %s14 = sadd.s32 1, %s10
  $region7: #{fno2d_forward.11} parent=0 // loop_footer_branch
    %9 = sbr.rel target = $region3
  $region8: #{fno2d_forward.11} parent=0 // loop_exit
    _

// kernel: fno2d_forward.17
$region0: #{fno2d_forward.17}
  #allocation0 [shape = 'u32[]', space=smem, size = 0x4, offset = 0x4, fixed_abs, tag = 'smem constant byte address 0x4 - core index']
  #allocation1 [shape = 'u32[144,128]{1,0:T(1,128)}', space=vmem, size = 0x12000, scoped, tag = 'internal scratch']
  #allocation2 [shape = 'f32[1,1]{1,0:T(1,128)S(1)}', space=vmem, size = 0x200, scoped, tag = 'scoped memory for fno2d_forward.17']
  %s0 = inlined_call_operand.vmem [shape: bf16[2,32,256], index: 0, kind: input, shape index: {}]
  %s1 = inlined_call_operand.vmem [shape: bf16[2,32,256], index: 1, kind: input, shape index: {}]
  %s2 = inlined_call_operand.vmem [shape: bf16[32,32], index: 2, kind: input, shape index: {}]
  %s3 = inlined_call_operand.vmem [shape: f32[32,1], index: 3, kind: input, shape index: {}]
  %s4 = inlined_call_operand.vmem [shape: bf16[128,32], index: 4, kind: input, shape index: {}]
  %s5 = inlined_call_operand.vmem [shape: f32[128,1], index: 5, kind: input, shape index: {}]
  %s6 = inlined_call_operand.vmem [shape: f32[128,1], index: 6, kind: input, shape index: {}]
  %s7 = inlined_call_operand.<no memory space> [shape: f32[1,1], index: 7, kind: input, shape index: {}]
  %s8 = inlined_call_operand.vmem [shape: f32[2,1,256], index: 8, kind: output, shape index: {}]
  %s9 = sld [smem:[#allocation0]]
  $region65: #{fno2d_forward.17} parent=0
    _
  %s11 = ssub.s32 1, %s9
  %s12 = scalar_select 0, %s11, %s9
  %v13 = vstv %s7
  %14 = vst [vmem:[#allocation2] sm:$0x1] %v13
  loop: start=0, step=1, limit=4
  $region2: #{fno2d_forward.17} parent=0 // loop_pre_header
    _
  $region3: #{fno2d_forward.17} parent=0 // loop_header
    %s16 = sphi 0, %s20
    %p17 = scmp.ge.s32.totalorder %s16, 4
    %s23 = sphi 0, %s35
    %s24 = sphi 0, %s31
    %s25 = sphi 0, %s23
    %s26 = sphi 0, %s24
    %s27 = sphi 0, %s25
    %s28 = sphi 0, %s26
    %s40 = sphi 0, %s42
    %s43 = sphi 0, %s40
    %s44 = sphi 0, %s43
    %s60 = sphi 0, %s44
    %s68 = sphi 0, %s70
    %s71 = sphi 0, %s68
    %s72 = sphi 0, %s71
    %s88 = sphi 0, %s72
    %s92 = sphi 0, %s92
    %s94 = sphi 0, %s92
    %s95 = sphi 0, %s94
    %s109 = sphi 0, %s95
    %s113 = sphi 0, %s113
    %s115 = sphi 0, %s113
    %s116 = sphi 0, %s115
    %s130 = sphi 0, %s116
    %s134 = sphi 0, %s134
    %s136 = sphi 0, %s134
    %s137 = sphi 0, %s136
    %s151 = sphi 0, %s137
    %s155 = sphi 0, %s155
    %s157 = sphi 0, %s155
    %s158 = sphi 0, %s157
    %s172 = sphi 0, %s158
    %s176 = sphi 0, %s176
    %s178 = sphi 0, %s176
    %s179 = sphi 0, %s178
    %s193 = sphi 0, %s179
    %s197 = sphi 0, %s197
    %s199 = sphi 0, %s197
    %s200 = sphi 0, %s199
    %s214 = sphi 0, %s200
    %s222 = sphi 0, %s224
    %s225 = sphi 0, %s222
    %s226 = sphi 0, %s225
    %s242 = sphi 0, %s226
  $region4: #{fno2d_forward.17} parent=0 // loop_header_branch
    %19 = sbr.rel (%p17) target = $region8
  $region5: #{fno2d_forward.17} parent=0 // loop_body
    %s21 = ssub.s32 %s16, 1
    %s22 = ssub.s32 %s16, 2
    %s29 = sadd.s32 1, %s24
    %p30 = scmp.ge.s32.totalorder %s29, 1
    %s31 = scalar_select %p30, 0, %s29
    %s32 = sadd.s32 1, %s23
    %s33 = scalar_select %p30, %s32, %s23
    %p34 = scmp.ge.s32.totalorder %s33, 2
    %s35 = scalar_select %p34, 0, %s33
    %s36 = ssub.s32 %s23, %s35
    %s37 = ssub.s32 %s24, %s31
    %s38 = sor.u32 %s36, %s37
    %p39 = scmp.eq.s32.totalorder %s38, 0
    %s41 = sadd.s32 %s40, 1
    %s42 = scalar_select %p39, %s40, %s41
    %p45 = pneg %p39
    %p46 = scmp.eq.s32.totalorder %s16, 1
    %p47 = por %p45, %p46
    %p48 = scmp.ne.s32.totalorder %s40, %s43
    %p49 = scmp.eq.s32.totalorder %s16, 0
    %p50 = por %p48, %p49
    %p51 = scmp.ne.s32.totalorder %s40, %s43
    %p52 = scmp.eq.s32.totalorder %s21, 1
    %p53 = por %p51, %p52
    %p54 = scmp.ne.s32.totalorder %s43, %s44
    %p55 = scmp.eq.s32.totalorder %s21, 0
    %p56 = por %p54, %p55
    %p57 = scmp.ne.s32.totalorder %s43, %s44
    %p58 = scmp.eq.s32.totalorder %s22, 1
    %p59 = por %p57, %p58
    %p61 = scmp.ne.s32.totalorder %s44, %s60
    %p62 = scmp.eq.s32.totalorder %s22, 0
    %p63 = por %p61, %p62
    %s64 = ssub.s32 %s23, %s35
    %s65 = ssub.s32 %s24, %s31
    %s66 = sor.u32 %s64, %s65
    %p67 = scmp.eq.s32.totalorder %s66, 0
    %s69 = sadd.s32 %s68, 1
    %s70 = scalar_select %p67, %s68, %s69
    %p73 = pneg %p67
    %p74 = scmp.eq.s32.totalorder %s16, 1
    %p75 = por %p73, %p74
    %p76 = scmp.ne.s32.totalorder %s68, %s71
    %p77 = scmp.eq.s32.totalorder %s16, 0
    %p78 = por %p76, %p77
    %p79 = scmp.ne.s32.totalorder %s68, %s71
    %p80 = scmp.eq.s32.totalorder %s21, 1
    %p81 = por %p79, %p80
    %p82 = scmp.ne.s32.totalorder %s71, %s72
    %p83 = scmp.eq.s32.totalorder %s21, 0
    %p84 = por %p82, %p83
    %p85 = scmp.ne.s32.totalorder %s71, %s72
    %p86 = scmp.eq.s32.totalorder %s22, 1
    %p87 = por %p85, %p86
    %p89 = scmp.ne.s32.totalorder %s72, %s88
    %p90 = scmp.eq.s32.totalorder %s22, 0
    %p91 = por %p89, %p90
    %s93 = sadd.s32 %s92, 1
    %p96 = scmp.eq.s32.totalorder %s16, 1
    %p97 = scmp.ne.s32.totalorder %s92, %s94
    %p98 = scmp.eq.s32.totalorder %s16, 0
    %p99 = por %p97, %p98
    %p100 = scmp.ne.s32.totalorder %s92, %s94
    %p101 = scmp.eq.s32.totalorder %s21, 1
    %p102 = por %p100, %p101
    %p103 = scmp.ne.s32.totalorder %s94, %s95
    %p104 = scmp.eq.s32.totalorder %s21, 0
    %p105 = por %p103, %p104
    %p106 = scmp.ne.s32.totalorder %s94, %s95
    %p107 = scmp.eq.s32.totalorder %s22, 1
    %p108 = por %p106, %p107
    %p110 = scmp.ne.s32.totalorder %s95, %s109
    %p111 = scmp.eq.s32.totalorder %s22, 0
    %p112 = por %p110, %p111
    %s114 = sadd.s32 %s113, 1
    %p117 = scmp.eq.s32.totalorder %s16, 1
    %p118 = scmp.ne.s32.totalorder %s113, %s115
    %p119 = scmp.eq.s32.totalorder %s16, 0
    %p120 = por %p118, %p119
    %p121 = scmp.ne.s32.totalorder %s113, %s115
    %p122 = scmp.eq.s32.totalorder %s21, 1
    %p123 = por %p121, %p122
    %p124 = scmp.ne.s32.totalorder %s115, %s116
    %p125 = scmp.eq.s32.totalorder %s21, 0
    %p126 = por %p124, %p125
    %p127 = scmp.ne.s32.totalorder %s115, %s116
    %p128 = scmp.eq.s32.totalorder %s22, 1
    %p129 = por %p127, %p128
    %p131 = scmp.ne.s32.totalorder %s116, %s130
    %p132 = scmp.eq.s32.totalorder %s22, 0
    %p133 = por %p131, %p132
    %s135 = sadd.s32 %s134, 1
    %p138 = scmp.eq.s32.totalorder %s16, 1
    %p139 = scmp.ne.s32.totalorder %s134, %s136
    %p140 = scmp.eq.s32.totalorder %s16, 0
    %p141 = por %p139, %p140
    %p142 = scmp.ne.s32.totalorder %s134, %s136
    %p143 = scmp.eq.s32.totalorder %s21, 1
    %p144 = por %p142, %p143
    %p145 = scmp.ne.s32.totalorder %s136, %s137
    %p146 = scmp.eq.s32.totalorder %s21, 0
    %p147 = por %p145, %p146
    %p148 = scmp.ne.s32.totalorder %s136, %s137
    %p149 = scmp.eq.s32.totalorder %s22, 1
    %p150 = por %p148, %p149
    %p152 = scmp.ne.s32.totalorder %s137, %s151
    %p153 = scmp.eq.s32.totalorder %s22, 0
    %p154 = por %p152, %p153
    %s156 = sadd.s32 %s155, 1
    %p159 = scmp.eq.s32.totalorder %s16, 1
    %p160 = scmp.ne.s32.totalorder %s155, %s157
    %p161 = scmp.eq.s32.totalorder %s16, 0
    %p162 = por %p160, %p161
    %p163 = scmp.ne.s32.totalorder %s155, %s157
    %p164 = scmp.eq.s32.totalorder %s21, 1
    %p165 = por %p163, %p164
    %p166 = scmp.ne.s32.totalorder %s157, %s158
    %p167 = scmp.eq.s32.totalorder %s21, 0
    %p168 = por %p166, %p167
    %p169 = scmp.ne.s32.totalorder %s157, %s158
    %p170 = scmp.eq.s32.totalorder %s22, 1
    %p171 = por %p169, %p170
    %p173 = scmp.ne.s32.totalorder %s158, %s172
    %p174 = scmp.eq.s32.totalorder %s22, 0
    %p175 = por %p173, %p174
    %s177 = sadd.s32 %s176, 1
    %p180 = scmp.eq.s32.totalorder %s16, 1
    %p181 = scmp.ne.s32.totalorder %s176, %s178
    %p182 = scmp.eq.s32.totalorder %s16, 0
    %p183 = por %p181, %p182
    %p184 = scmp.ne.s32.totalorder %s176, %s178
    %p185 = scmp.eq.s32.totalorder %s21, 1
    %p186 = por %p184, %p185
    %p187 = scmp.ne.s32.totalorder %s178, %s179
    %p188 = scmp.eq.s32.totalorder %s21, 0
    %p189 = por %p187, %p188
    %p190 = scmp.ne.s32.totalorder %s178, %s179
    %p191 = scmp.eq.s32.totalorder %s22, 1
    %p192 = por %p190, %p191
    %p194 = scmp.ne.s32.totalorder %s179, %s193
    %p195 = scmp.eq.s32.totalorder %s22, 0
    %p196 = por %p194, %p195
    %s198 = sadd.s32 %s197, 1
    %p201 = scmp.eq.s32.totalorder %s16, 1
    %p202 = scmp.ne.s32.totalorder %s197, %s199
    %p203 = scmp.eq.s32.totalorder %s16, 0
    %p204 = por %p202, %p203
    %p205 = scmp.ne.s32.totalorder %s197, %s199
    %p206 = scmp.eq.s32.totalorder %s21, 1
    %p207 = por %p205, %p206
    %p208 = scmp.ne.s32.totalorder %s199, %s200
    %p209 = scmp.eq.s32.totalorder %s21, 0
    %p210 = por %p208, %p209
    %p211 = scmp.ne.s32.totalorder %s199, %s200
    %p212 = scmp.eq.s32.totalorder %s22, 1
    %p213 = por %p211, %p212
    %p215 = scmp.ne.s32.totalorder %s200, %s214
    %p216 = scmp.eq.s32.totalorder %s22, 0
    %p217 = por %p215, %p216
    %s218 = ssub.s32 %s23, %s35
    %s219 = ssub.s32 %s24, %s31
    %s220 = sor.u32 %s218, %s219
    %p221 = scmp.eq.s32.totalorder %s220, 0
    %s223 = sadd.s32 %s222, 1
    %s224 = scalar_select %p221, %s222, %s223
    %p227 = pneg %p221
    %p228 = scmp.eq.s32.totalorder %s16, 1
    %p229 = por %p227, %p228
    %p230 = scmp.ne.s32.totalorder %s222, %s225
    %p231 = scmp.eq.s32.totalorder %s16, 0
    %p232 = por %p230, %p231
    %p233 = scmp.ne.s32.totalorder %s222, %s225
    %p234 = scmp.eq.s32.totalorder %s21, 1
    %p235 = por %p233, %p234
    %p236 = scmp.ne.s32.totalorder %s225, %s226
    %p237 = scmp.eq.s32.totalorder %s21, 0
    %p238 = por %p236, %p237
    %p239 = scmp.ne.s32.totalorder %s225, %s226
    %p240 = scmp.eq.s32.totalorder %s22, 1
    %p241 = por %p239, %p240
    %p243 = scmp.ne.s32.totalorder %s226, %s242
    %p244 = scmp.eq.s32.totalorder %s22, 0
    %p245 = por %p243, %p244
    %p246 = scmp.le.s32.totalorder 1, %s16
    %p247 = scmp.lt.s32.totalorder %s16, 3
    %p248 = pnand %p246, %p247
    %p249 = pneg %p248
    // Predicated region
    $region9: #{fno2d_forward.17} parent=5 // pred_check
      _
    $region10: #{fno2d_forward.17} parent=5 // pred_check_branch
      %251 = sbr.rel (%p248) target = $region12
    $region11: #{fno2d_forward.17} parent=5 // pred_region
      %s252 = ssub.s32 %s16, 1
      // Predicated region
      $region13: #{fno2d_forward.17} parent=11 // pred_check
        %p253 = pneg %p105
      $region14: #{fno2d_forward.17} parent=11 // pred_check_branch
        %255 = sbr.rel (%p253) target = $region16
      $region15: #{fno2d_forward.17} parent=11 // pred_region
        _
      $region16: #{fno2d_forward.17} parent=11 // pred_fallthru
        _
      // Predicated region
      $region17: #{fno2d_forward.17} parent=11 // pred_check
        %p256 = pneg %p126
      $region18: #{fno2d_forward.17} parent=11 // pred_check_branch
        %258 = sbr.rel (%p256) target = $region20
      $region19: #{fno2d_forward.17} parent=11 // pred_region
        _
      $region20: #{fno2d_forward.17} parent=11 // pred_fallthru
        _
      // Predicated region
      $region21: #{fno2d_forward.17} parent=11 // pred_check
        %p259 = pneg %p147
      $region22: #{fno2d_forward.17} parent=11 // pred_check_branch
        %261 = sbr.rel (%p259) target = $region24
      $region23: #{fno2d_forward.17} parent=11 // pred_region
        _
      $region24: #{fno2d_forward.17} parent=11 // pred_fallthru
        _
      // Predicated region
      $region25: #{fno2d_forward.17} parent=11 // pred_check
        %p262 = pneg %p168
      $region26: #{fno2d_forward.17} parent=11 // pred_check_branch
        %264 = sbr.rel (%p262) target = $region28
      $region27: #{fno2d_forward.17} parent=11 // pred_region
        _
      $region28: #{fno2d_forward.17} parent=11 // pred_fallthru
        _
      // Predicated region
      $region29: #{fno2d_forward.17} parent=11 // pred_check
        %p265 = pneg %p189
      $region30: #{fno2d_forward.17} parent=11 // pred_check_branch
        %267 = sbr.rel (%p265) target = $region32
      $region31: #{fno2d_forward.17} parent=11 // pred_region
        _
      $region32: #{fno2d_forward.17} parent=11 // pred_fallthru
        _
      // Predicated region
      $region33: #{fno2d_forward.17} parent=11 // pred_check
        %p268 = pneg %p210
      $region34: #{fno2d_forward.17} parent=11 // pred_check_branch
        %270 = sbr.rel (%p268) target = $region36
      $region35: #{fno2d_forward.17} parent=11 // pred_region
        _
      $region36: #{fno2d_forward.17} parent=11 // pred_fallthru
        _
    $region12: #{fno2d_forward.17} parent=5 // pred_fallthru
      _
    %p271 = scmp.lt.s32.totalorder %s16, 2
    // Predicated region
    $region37: #{fno2d_forward.17} parent=5 // pred_check
      %p272 = pneg %p271
    $region38: #{fno2d_forward.17} parent=5 // pred_check_branch
      %274 = sbr.rel (%p272) target = $region40
    $region39: #{fno2d_forward.17} parent=5 // pred_region
      // Predicated region
      $region41: #{fno2d_forward.17} parent=39 // pred_check
        %p275 = pneg %p50
      $region42: #{fno2d_forward.17} parent=39 // pred_check_branch
        %277 = sbr.rel (%p275) target = $region44
      $region43: #{fno2d_forward.17} parent=39 // pred_region
        %s278 = smul.u32 2, %s24
        %p279 = scmp.lt.s32.totalorder %s23, 1
        %s280 = scalar_select %p279, %s23, 1
        %p281 = scmp.lt.s32.totalorder %s278, 1
        %s282 = scalar_select %p281, %s278, 1
        %s283 = smul.addr %s280, 8
        %s284 = sadd.s32 %s282, %s283
        %s285 = smul.addr %s284, 4
        %s286 = scalar_lea.vmem %s0, %s285
        %s287 = smul.u32 2, %s24
      $region44: #{fno2d_forward.17} parent=39 // pred_fallthru
        _
      // Predicated region
      $region45: #{fno2d_forward.17} parent=39 // pred_check
        %p288 = pneg %p78
      $region46: #{fno2d_forward.17} parent=39 // pred_check_branch
        %290 = sbr.rel (%p288) target = $region48
      $region47: #{fno2d_forward.17} parent=39 // pred_region
        %s291 = smul.u32 2, %s24
        %p292 = scmp.lt.s32.totalorder %s23, 1
        %s293 = scalar_select %p292, %s23, 1
        %p294 = scmp.lt.s32.totalorder %s291, 1
        %s295 = scalar_select %p294, %s291, 1
        %s296 = smul.addr %s293, 8
        %s297 = sadd.s32 %s295, %s296
        %s298 = smul.addr %s297, 4
        %s299 = scalar_lea.vmem %s1, %s298
        %s300 = smul.u32 2, %s24
      $region48: #{fno2d_forward.17} parent=39 // pred_fallthru
        _
    $region40: #{fno2d_forward.17} parent=5 // pred_fallthru
      _
    %p301 = scmp.le.s32.totalorder 1, %s16
    %p302 = scmp.lt.s32.totalorder %s16, 3
    %p303 = pnand %p301, %p302
    %p304 = pneg %p303
    // Predicated region
    $region49: #{fno2d_forward.17} parent=5 // pred_check
      _
    $region50: #{fno2d_forward.17} parent=5 // pred_check_branch
      %306 = sbr.rel (%p303) target = $region52
    $region51: #{fno2d_forward.17} parent=5 // pred_region
      %s307 = ssub.s32 %s16, 1
      %s308 = smul.u32 2, %s26
      %p309 = scmp.lt.s32.totalorder %s25, 1
      %s310 = scalar_select %p309, %s25, 1
      %p311 = scmp.lt.s32.totalorder %s308, 1
      %s312 = scalar_select %p311, %s308, 1
      %s313 = smul.addr %s310, 8
      %s314 = sadd.s32 %s312, %s313
      %s315 = smul.addr %s314, 4
      %s316 = scalar_lea.vmem %s0, %s315
      %p317 = pneg %p56
      %p318 = pneg %p53
      %s319 = smul.u32 2, %s26
      %p320 = scmp.lt.s32.totalorder %s25, 1
      %s321 = scalar_select %p320, %s25, 1
      %p322 = scmp.lt.s32.totalorder %s319, 1
      %s323 = scalar_select %p322, %s319, 1
      %s324 = smul.addr %s321, 8
      %s325 = sadd.s32 %s323, %s324
      %s326 = smul.addr %s325, 4
      %s327 = scalar_lea.vmem %s1, %s326
      %p328 = pneg %p84
      %p329 = pneg %p81
      %p330 = pneg %p105
      %p331 = pneg %p102
      %p332 = pneg %p126
      %p333 = pneg %p123
      %p334 = pneg %p147
      %p335 = pneg %p144
      %p336 = pneg %p168
      %p337 = pneg %p165
      %p338 = pneg %p189
      %p339 = pneg %p186
      %p340 = pneg %p210
      %p341 = pneg %p207
      %p342 = pneg %p238
      %p343 = pneg %p235
      %s344 = smul.u32 2, %s26
      %p345 = scmp.lt.s32.totalorder %s25, 1
      %s346 = scalar_select %p345, %s25, 1
      %p347 = scmp.lt.s32.totalorder %s344, 1
      %s348 = scalar_select %p347, %s344, 1
      %s349 = smul.addr %s346, 2
      %s350 = sadd.s32 %s348, %s349
      %s351 = scalar_lea.vmem %s8, %s350
      %s352 = smul.u32 2, %s26
      %p353 = scmp.lt.s32.totalorder %s25, 1
      %s354 = scalar_select %p353, %s25, 1
      %p355 = scmp.lt.s32.totalorder %s352, 1
      %s356 = scalar_select %p355, %s352, 1
      %s357 = smul.addr %s354, 8
      %s358 = sadd.s32 %s356, %s357
      %s359 = smul.addr %s358, 4
      %s360 = scalar_lea.vmem %s0, %s359
      %s361 = smul.u32 2, %s26
      %s362 = smul.u32 2, %s26
      %p363 = scmp.lt.s32.totalorder %s25, 1
      %s364 = scalar_select %p363, %s25, 1
      %p365 = scmp.lt.s32.totalorder %s362, 1
      %s366 = scalar_select %p365, %s362, 1
      %s367 = smul.addr %s364, 8
      %s368 = sadd.s32 %s366, %s367
      %s369 = smul.addr %s368, 4
      %s370 = scalar_lea.vmem %s1, %s369
      %s371 = smul.u32 2, %s26
      %s372 = smul.u32 2, %s26
      %p373 = scmp.lt.s32.totalorder %s25, 1
      %s374 = scalar_select %p373, %s25, 1
      %p375 = scmp.lt.s32.totalorder %s372, 1
      %s376 = scalar_select %p375, %s372, 1
      %s377 = smul.addr %s374, 2
      %s378 = sadd.s32 %s376, %s377
      %s379 = scalar_lea.vmem %s8, %s378
      %s380 = smul.u32 2, %s26
      %v382 = vld [vmem:[%s2] sm:$0xf]
      %v383 = vld [vmem:[%s2 + $0x4] sm:$0xf]
      %v384 = vld [vmem:[%s2 + $0x8] sm:$0xf]
      %v385 = vld [vmem:[%s2 + $0xc] sm:$0xf]
      %v386 = vld [vmem:[%s360] sm:$0xff]
      %v387 = vld [vmem:[%s360 + $0x8] sm:$0xff]
      %v388 = vld [vmem:[%s360 + $0x10] sm:$0xff]
      %v389 = vld [vmem:[%s360 + $0x18] sm:$0xff]
      %v390 = vld [vmem:[%s3] sm:$0xff]
      %v391 = vld [vmem:[%s3 + $0x8] sm:$0xff]
      %v392 = vld [vmem:[%s3 + $0x10] sm:$0xff]
      %v393 = vld [vmem:[%s3 + $0x18] sm:$0xff]
      %395 = vset.pattern.permute.xlu0 0
      %396 = vperm.xlu0 %395, %v390
      %v397 = vpop.permute.xlu0 %396
      %400 = vset.pattern.permute.xlu0 0
      %401 = vperm.xlu0 %400, %v391
      %v402 = vpop.permute.xlu0 %401
      %405 = vset.pattern.permute.xlu0 0
      %406 = vperm.xlu0 %405, %v392
      %v407 = vpop.permute.xlu0 %406
      %410 = vset.pattern.permute.xlu0 0
      %411 = vperm.xlu0 %410, %v393
      %v412 = vpop.permute.xlu0 %411
      %v418 = vunpack.c.l.b16 %v382
      %v419 = vunpack.c.l.b16 %v383
      %v420 = vunpack.c.l.b16 %v384
      %v421 = vunpack.c.l.b16 %v385
      %v422 = vpack.c.b16 %v419, %v418
      %v423 = vpack.c.b16 %v421, %v420
      %v428 = vunpack.c.l.b16 %v386
      %v429 = vunpack.c.h.b16 %v386
      %v430 = vunpack.c.l.b16 %v387
      %v431 = vunpack.c.h.b16 %v387
      %v432 = vunpack.c.l.b16 %v388
      %v433 = vunpack.c.h.b16 %v388
      %v434 = vunpack.c.l.b16 %v389
      %v435 = vunpack.c.h.b16 %v389
      %v436 = vpack.c.b16 %v430, %v428
      %v437 = vpack.c.b16 %v431, %v429
      %v438 = vpack.c.b16 %v434, %v432
      %v439 = vpack.c.b16 %v435, %v433
      %vm444 = vcmask 261120
      %v446 = vsel %vm444, %v422, 0
      %v449 = vsel %vm444, %v423, 0
      %451 = vmatprep.subr.bf16.mxu0 %v437
      %452 = vmatpush1.bf16.msra.mxu0 %v436
      %453 = vmatprep.subr.bf16.mxu0 %v439
      %454 = vmatpush1.bf16.msra.mxu0 %v438
      %455 = vmatprep.subr.bf16.mxu0 0
      %456 = vmatpush1.bf16.msra.mxu0 0
      %457 = vmatprep.subr.bf16.mxu0 0
      %458 = vmatpush1.bf16.msra.mxu0 0
      %459 = vmatprep.subr.bf16.mxu0 0
      %460 = vmatpush1.bf16.msra.mxu0 0
      %461 = vmatprep.subr.bf16.mxu0 0
      %462 = vmatpush1.bf16.msra.mxu0 0
      %463 = vmatprep.subr.bf16.mxu0 0
      %464 = vmatpush1.bf16.msra.mxu0 0
      %465 = vmatprep.subr.bf16.mxu0 0
      %466 = vmatpush1.bf16.msra.mxu0 0
      %467 = vmatprep.subr.bf16.mxu0 0
      %468 = vmatpush1.bf16.msra.mxu0 0
      %469 = vmatprep.subr.bf16.mxu0 0
      %470 = vmatpush1.bf16.msra.mxu0 0
      %471 = vmatprep.subr.bf16.mxu0 0
      %472 = vmatpush1.bf16.msra.mxu0 0
      %473 = vmatprep.subr.bf16.mxu0 0
      %474 = vmatpush1.bf16.msra.mxu0 0
      %475 = vmatprep.subr.bf16.mxu0 0
      %476 = vmatpush1.bf16.msra.mxu0 0
      %477 = vmatprep.subr.bf16.mxu0 0
      %478 = vmatpush1.bf16.msra.mxu0 0
      %479 = vmatprep.subr.bf16.mxu0 0
      %480 = vmatpush1.bf16.msra.mxu0 0
      %481 = vmatprep.subr.bf16.mxu0 0
      %482 = vmatpush1.bf16.msra.mxu0 0
      %483 = vmatprep.mubr.bf16.mxu0 0
      %484 = vmatmul.mubr.bf16.gmra.mrb[0].mxu0 %v446
      %v485 = vpop.f32.mrb[0].mxu0
      %v486 = vadd.f32 %v397, %v485
      %v487 = vpop.f32.mrb[0].mxu0
      %v488 = vadd.f32 %v397, %v487
      %v489 = vpop.f32.mrb[0].mxu0
      %v490 = vadd.f32 %v402, %v489
      %v491 = vpop.f32.mrb[0].mxu0
      %v492 = vadd.f32 %v402, %v491
      %493 = vmatprep.mubr.bf16.mxu0 0
      %494 = vmatmul.mubr.bf16.gmra.mrb[0].mxu0 %v449
      %v495 = vpop.f32.mrb[0].mxu0
      %v496 = vadd.f32 %v407, %v495
      %v497 = vpop.f32.mrb[0].mxu0
      %v498 = vadd.f32 %v407, %v497
      %v499 = vpop.f32.mrb[0].mxu0
      %v500 = vadd.f32 %v412, %v499
      %v501 = vpop.f32.mrb[0].mxu0
      %v502 = vadd.f32 %v412, %v501
      %503 = vdwg.mxu0
      %v504 = vld [vmem:[%s370] sm:$0xff]
      %v505 = vld [vmem:[%s370 + $0x8] sm:$0xff]
      %v506 = vld [vmem:[%s370 + $0x10] sm:$0xff]
      %v507 = vld [vmem:[%s370 + $0x18] sm:$0xff]
      %v508 = vunpack.c.l.bf16 %v504
      %v509 = vunpack.c.h.bf16 %v504
      %v510 = vunpack.c.l.bf16 %v505
      %v511 = vunpack.c.h.bf16 %v505
      %v512 = vunpack.c.l.bf16 %v506
      %v513 = vunpack.c.h.bf16 %v506
      %v514 = vunpack.c.l.bf16 %v507
      %v515 = vunpack.c.h.bf16 %v507
      %v516 = vadd.f32 %v486, %v508
      %v517 = vadd.f32 %v488, %v509
      %v518 = vadd.f32 %v490, %v510
      %v519 = vadd.f32 %v492, %v511
      %v520 = vadd.f32 %v496, %v512
      %v521 = vadd.f32 %v498, %v513
      %v522 = vadd.f32 %v500, %v514
      %v523 = vadd.f32 %v502, %v515
      %v524 = vld [vmem:[%s4] sm:$0xf]
      %v525 = vld [vmem:[%s4 + $0x4] sm:$0xf]
      %v526 = vld [vmem:[%s4 + $0x8] sm:$0xf]
      %v527 = vld [vmem:[%s4 + $0xc] sm:$0xf]
      %v528 = vld [vmem:[%s4 + $0x10] sm:$0xf]
      %v529 = vld [vmem:[%s4 + $0x14] sm:$0xf]
      %v530 = vld [vmem:[%s4 + $0x18] sm:$0xf]
      %v531 = vld [vmem:[%s4 + $0x1c] sm:$0xf]
      %v532 = vld [vmem:[%s4 + $0x20] sm:$0xf]
      %v533 = vld [vmem:[%s4 + $0x24] sm:$0xf]
      %v534 = vld [vmem:[%s4 + $0x28] sm:$0xf]
      %v535 = vld [vmem:[%s4 + $0x2c] sm:$0xf]
      %v536 = vld [vmem:[%s4 + $0x30] sm:$0xf]
      %v537 = vld [vmem:[%s4 + $0x34] sm:$0xf]
      %v538 = vld [vmem:[%s4 + $0x38] sm:$0xf]
      %v539 = vld [vmem:[%s4 + $0x3c] sm:$0xf]
      %v540 = vpack.c.bf16 %v518, %v516
      %v541 = vpack.c.bf16 %v519, %v517
      %v542 = vpack.c.bf16 %v522, %v520
      %v543 = vpack.c.bf16 %v523, %v521
      %v544 = vld [vmem:[%s5] sm:$0xff]
      %v545 = vld [vmem:[%s5 + $0x8] sm:$0xff]
      %v546 = vld [vmem:[%s5 + $0x10] sm:$0xff]
      %v547 = vld [vmem:[%s5 + $0x18] sm:$0xff]
      %v548 = vld [vmem:[%s5 + $0x20] sm:$0xff]
      %v549 = vld [vmem:[%s5 + $0x28] sm:$0xff]
      %v550 = vld [vmem:[%s5 + $0x30] sm:$0xff]
      %v551 = vld [vmem:[%s5 + $0x38] sm:$0xff]
      %v552 = vld [vmem:[%s5 + $0x40] sm:$0xff]
      %v553 = vld [vmem:[%s5 + $0x48] sm:$0xff]
      %v554 = vld [vmem:[%s5 + $0x50] sm:$0xff]
      %v555 = vld [vmem:[%s5 + $0x58] sm:$0xff]
      %v556 = vld [vmem:[%s5 + $0x60] sm:$0xff]
      %v557 = vld [vmem:[%s5 + $0x68] sm:$0xff]
      %v558 = vld [vmem:[%s5 + $0x70] sm:$0xff]
      %v559 = vld [vmem:[%s5 + $0x78] sm:$0xff]
      %561 = vset.pattern.permute.xlu0 0
      %562 = vperm.xlu0 %561, %v544
      %v563 = vpop.permute.xlu0 %562
      %566 = vset.pattern.permute.xlu0 0
      %567 = vperm.xlu0 %566, %v545
      %v568 = vpop.permute.xlu0 %567
      %571 = vset.pattern.permute.xlu0 0
      %572 = vperm.xlu0 %571, %v546
      %v573 = vpop.permute.xlu0 %572
      %576 = vset.pattern.permute.xlu0 0
      %577 = vperm.xlu0 %576, %v547
      %v578 = vpop.permute.xlu0 %577
      %581 = vset.pattern.permute.xlu0 0
      %582 = vperm.xlu0 %581, %v548
      %v583 = vpop.permute.xlu0 %582
      %586 = vset.pattern.permute.xlu0 0
      %587 = vperm.xlu0 %586, %v549
      %v588 = vpop.permute.xlu0 %587
      %591 = vset.pattern.permute.xlu0 0
      %592 = vperm.xlu0 %591, %v550
      %v593 = vpop.permute.xlu0 %592
      %596 = vset.pattern.permute.xlu0 0
      %597 = vperm.xlu0 %596, %v551
      %v598 = vpop.permute.xlu0 %597
      %601 = vset.pattern.permute.xlu0 0
      %602 = vperm.xlu0 %601, %v552
      %v603 = vpop.permute.xlu0 %602
      %606 = vset.pattern.permute.xlu0 0
      %607 = vperm.xlu0 %606, %v553
      %v608 = vpop.permute.xlu0 %607
      %611 = vset.pattern.permute.xlu0 0
      %612 = vperm.xlu0 %611, %v554
      %v613 = vpop.permute.xlu0 %612
      %616 = vset.pattern.permute.xlu0 0
      %617 = vperm.xlu0 %616, %v555
      %v618 = vpop.permute.xlu0 %617
      %621 = vset.pattern.permute.xlu0 0
      %622 = vperm.xlu0 %621, %v556
      %v623 = vpop.permute.xlu0 %622
      %626 = vset.pattern.permute.xlu0 0
      %627 = vperm.xlu0 %626, %v557
      %v628 = vpop.permute.xlu0 %627
      %631 = vset.pattern.permute.xlu0 0
      %632 = vperm.xlu0 %631, %v558
      %v633 = vpop.permute.xlu0 %632
      %636 = vset.pattern.permute.xlu0 0
      %637 = vperm.xlu0 %636, %v559
      %v638 = vpop.permute.xlu0 %637
      %v656 = vunpack.c.l.b16 %v524
      %v657 = vunpack.c.l.b16 %v525
      %v658 = vunpack.c.l.b16 %v526
      %v659 = vunpack.c.l.b16 %v527
      %v660 = vunpack.c.l.b16 %v528
      %v661 = vunpack.c.l.b16 %v529
      %v662 = vunpack.c.l.b16 %v530
      %v663 = vunpack.c.l.b16 %v531
      %v664 = vunpack.c.l.b16 %v532
      %v665 = vunpack.c.l.b16 %v533
      %v666 = vunpack.c.l.b16 %v534
      %v667 = vunpack.c.l.b16 %v535
      %v668 = vunpack.c.l.b16 %v536
      %v669 = vunpack.c.l.b16 %v537
      %v670 = vunpack.c.l.b16 %v538
      %v671 = vunpack.c.l.b16 %v539
      %v672 = vpack.c.b16 %v657, %v656
      %v673 = vpack.c.b16 %v659, %v658
      %v674 = vpack.c.b16 %v661, %v660
      %v675 = vpack.c.b16 %v663, %v662
      %v676 = vpack.c.b16 %v665, %v664
      %v677 = vpack.c.b16 %v667, %v666
      %v678 = vpack.c.b16 %v669, %v668
      %v679 = vpack.c.b16 %v671, %v670
      %v681 = vsel %vm444, %v672, 0
      %v684 = vsel %vm444, %v673, 0
      %v687 = vsel %vm444, %v674, 0
      %v690 = vsel %vm444, %v675, 0
      %v693 = vsel %vm444, %v676, 0
      %v696 = vsel %vm444, %v677, 0
      %v699 = vsel %vm444, %v678, 0
      %v702 = vsel %vm444, %v679, 0
      %704 = vmatprep.subr.bf16.mxu0 %v541
      %705 = vmatpush1.bf16.msra.mxu0 %v540
      %706 = vmatprep.subr.bf16.mxu0 %v543
      %707 = vmatpush1.bf16.msra.mxu0 %v542
      %708 = vmatprep.subr.bf16.mxu0 0
      %709 = vmatpush1.bf16.msra.mxu0 0
      %710 = vmatprep.subr.bf16.mxu0 0
      %711 = vmatpush1.bf16.msra.mxu0 0
      %712 = vmatprep.subr.bf16.mxu0 0
      %713 = vmatpush1.bf16.msra.mxu0 0
      %714 = vmatprep.subr.bf16.mxu0 0
      %715 = vmatpush1.bf16.msra.mxu0 0
      %716 = vmatprep.subr.bf16.mxu0 0
      %717 = vmatpush1.bf16.msra.mxu0 0
      %718 = vmatprep.subr.bf16.mxu0 0
      %719 = vmatpush1.bf16.msra.mxu0 0
      %720 = vmatprep.subr.bf16.mxu0 0
      %721 = vmatpush1.bf16.msra.mxu0 0
      %722 = vmatprep.subr.bf16.mxu0 0
      %723 = vmatpush1.bf16.msra.mxu0 0
      %724 = vmatprep.subr.bf16.mxu0 0
      %725 = vmatpush1.bf16.msra.mxu0 0
      %726 = vmatprep.subr.bf16.mxu0 0
      %727 = vmatpush1.bf16.msra.mxu0 0
      %728 = vmatprep.subr.bf16.mxu0 0
      %729 = vmatpush1.bf16.msra.mxu0 0
      %730 = vmatprep.subr.bf16.mxu0 0
      %731 = vmatpush1.bf16.msra.mxu0 0
      %732 = vmatprep.subr.bf16.mxu0 0
      %733 = vmatpush1.bf16.msra.mxu0 0
      %734 = vmatprep.subr.bf16.mxu0 0
      %735 = vmatpush1.bf16.msra.mxu0 0
      %736 = vmatprep.mubr.bf16.mxu0 0
      %737 = vmatmul.mubr.bf16.gmra.mrb[0].mxu0 %v681
      %v738 = vpop.f32.mrb[0].mxu0
      %v739 = vadd.f32 %v563, %v738
      %v740 = vpop.f32.mrb[0].mxu0
      %v741 = vadd.f32 %v563, %v740
      %v742 = vpop.f32.mrb[0].mxu0
      %v743 = vadd.f32 %v568, %v742
      %v744 = vpop.f32.mrb[0].mxu0
      %v745 = vadd.f32 %v568, %v744
      %746 = vmatprep.mubr.bf16.mxu0 0
      %747 = vmatmul.mubr.bf16.gmra.mrb[0].mxu0 %v684
      %v748 = vpop.f32.mrb[0].mxu0
      %v749 = vadd.f32 %v573, %v748
      %v750 = vpop.f32.mrb[0].mxu0
      %v751 = vadd.f32 %v573, %v750
      %v752 = vpop.f32.mrb[0].mxu0
      %v753 = vadd.f32 %v578, %v752
      %v754 = vpop.f32.mrb[0].mxu0
      %v755 = vadd.f32 %v578, %v754
      %756 = vmatprep.mubr.bf16.mxu0 0
      %757 = vmatmul.mubr.bf16.gmra.mrb[0].mxu0 %v687
      %v758 = vpop.f32.mrb[0].mxu0
      %v759 = vadd.f32 %v583, %v758
      %v760 = vpop.f32.mrb[0].mxu0
      %v761 = vadd.f32 %v583, %v760
      %v762 = vpop.f32.mrb[0].mxu0
      %v763 = vadd.f32 %v588, %v762
      %v764 = vpop.f32.mrb[0].mxu0
      %v765 = vadd.f32 %v588, %v764
      %766 = vmatprep.mubr.bf16.mxu0 0
      %767 = vmatmul.mubr.bf16.gmra.mrb[0].mxu0 %v690
      %v768 = vpop.f32.mrb[0].mxu0
      %v769 = vadd.f32 %v593, %v768
      %v770 = vpop.f32.mrb[0].mxu0
      %v771 = vadd.f32 %v593, %v770
      %v772 = vpop.f32.mrb[0].mxu0
      %v773 = vadd.f32 %v598, %v772
      %v774 = vpop.f32.mrb[0].mxu0
      %v775 = vadd.f32 %v598, %v774
      %776 = vmatprep.mubr.bf16.mxu0 0
      %777 = vmatmul.mubr.bf16.gmra.mrb[0].mxu0 %v693
      %v778 = vpop.f32.mrb[0].mxu0
      %v779 = vadd.f32 %v603, %v778
      %v780 = vpop.f32.mrb[0].mxu0
      %v781 = vadd.f32 %v603, %v780
      %v782 = vpop.f32.mrb[0].mxu0
      %v783 = vadd.f32 %v608, %v782
      %v784 = vpop.f32.mrb[0].mxu0
      %v785 = vadd.f32 %v608, %v784
      %786 = vmatprep.mubr.bf16.mxu0 0
      %787 = vmatmul.mubr.bf16.gmra.mrb[0].mxu0 %v696
      %v788 = vpop.f32.mrb[0].mxu0
      %v789 = vadd.f32 %v613, %v788
      %v790 = vpop.f32.mrb[0].mxu0
      %v791 = vadd.f32 %v613, %v790
      %v792 = vpop.f32.mrb[0].mxu0
      %v793 = vadd.f32 %v618, %v792
      %v794 = vpop.f32.mrb[0].mxu0
      %v795 = vadd.f32 %v618, %v794
      %796 = vmatprep.mubr.bf16.mxu0 0
      %797 = vmatmul.mubr.bf16.gmra.mrb[0].mxu0 %v699
      %v798 = vpop.f32.mrb[0].mxu0
      %v799 = vadd.f32 %v623, %v798
      %v800 = vpop.f32.mrb[0].mxu0
      %v801 = vadd.f32 %v623, %v800
      %v802 = vpop.f32.mrb[0].mxu0
      %v803 = vadd.f32 %v628, %v802
      %v804 = vpop.f32.mrb[0].mxu0
      %v805 = vadd.f32 %v628, %v804
      %806 = vmatprep.mubr.bf16.mxu0 0
      %807 = vmatmul.mubr.bf16.gmra.mrb[0].mxu0 %v702
      %v808 = vpop.f32.mrb[0].mxu0
      %v809 = vadd.f32 %v633, %v808
      %v810 = vpop.f32.mrb[0].mxu0
      %v811 = vadd.f32 %v633, %v810
      %v812 = vpop.f32.mrb[0].mxu0
      %v813 = vadd.f32 %v638, %v812
      %v814 = vpop.f32.mrb[0].mxu0
      %v815 = vadd.f32 %v638, %v814
      %816 = vdwg.mxu0
      %v817 = vmax.f32 %v739, 0.0
      %v818 = vmax.f32 %v741, 0.0
      %v819 = vmax.f32 %v743, 0.0
      %v820 = vmax.f32 %v745, 0.0
      %v821 = vmax.f32 %v749, 0.0
      %v822 = vmax.f32 %v751, 0.0
      %v823 = vmax.f32 %v753, 0.0
      %v824 = vmax.f32 %v755, 0.0
      %v825 = vmax.f32 %v759, 0.0
      %v826 = vmax.f32 %v761, 0.0
      %v827 = vmax.f32 %v763, 0.0
      %v828 = vmax.f32 %v765, 0.0
      %v829 = vmax.f32 %v769, 0.0
      %v830 = vmax.f32 %v771, 0.0
      %v831 = vmax.f32 %v773, 0.0
      %v832 = vmax.f32 %v775, 0.0
      %v833 = vmax.f32 %v779, 0.0
      %v834 = vmax.f32 %v781, 0.0
      %v835 = vmax.f32 %v783, 0.0
      %v836 = vmax.f32 %v785, 0.0
      %v837 = vmax.f32 %v789, 0.0
      %v838 = vmax.f32 %v791, 0.0
      %v839 = vmax.f32 %v793, 0.0
      %v840 = vmax.f32 %v795, 0.0
      %v841 = vmax.f32 %v799, 0.0
      %v842 = vmax.f32 %v801, 0.0
      %v843 = vmax.f32 %v803, 0.0
      %v844 = vmax.f32 %v805, 0.0
      %v845 = vmax.f32 %v809, 0.0
      %v846 = vmax.f32 %v811, 0.0
      %v847 = vmax.f32 %v813, 0.0
      %v848 = vmax.f32 %v815, 0.0
      %v849 = vld [vmem:[%s6] sm:$0xff]
      %v850 = vld [vmem:[%s6 + $0x8] sm:$0xff]
      %v851 = vld [vmem:[%s6 + $0x10] sm:$0xff]
      %v852 = vld [vmem:[%s6 + $0x18] sm:$0xff]
      %v853 = vld [vmem:[%s6 + $0x20] sm:$0xff]
      %v854 = vld [vmem:[%s6 + $0x28] sm:$0xff]
      %v855 = vld [vmem:[%s6 + $0x30] sm:$0xff]
      %v856 = vld [vmem:[%s6 + $0x38] sm:$0xff]
      %v857 = vld [vmem:[%s6 + $0x40] sm:$0xff]
      %v858 = vld [vmem:[%s6 + $0x48] sm:$0xff]
      %v859 = vld [vmem:[%s6 + $0x50] sm:$0xff]
      %v860 = vld [vmem:[%s6 + $0x58] sm:$0xff]
      %v861 = vld [vmem:[%s6 + $0x60] sm:$0xff]
      %v862 = vld [vmem:[%s6 + $0x68] sm:$0xff]
      %v863 = vld [vmem:[%s6 + $0x70] sm:$0xff]
      %v864 = vld [vmem:[%s6 + $0x78] sm:$0xff]
      %866 = vset.pattern.permute.xlu0 0
      %867 = vperm.xlu0 %866, %v849
      %v868 = vpop.permute.xlu0 %867
      %871 = vset.pattern.permute.xlu0 0
      %872 = vperm.xlu0 %871, %v850
      %v873 = vpop.permute.xlu0 %872
      %876 = vset.pattern.permute.xlu0 0
      %877 = vperm.xlu0 %876, %v851
      %v878 = vpop.permute.xlu0 %877
      %881 = vset.pattern.permute.xlu0 0
      %882 = vperm.xlu0 %881, %v852
      %v883 = vpop.permute.xlu0 %882
      %886 = vset.pattern.permute.xlu0 0
      %887 = vperm.xlu0 %886, %v853
      %v888 = vpop.permute.xlu0 %887
      %891 = vset.pattern.permute.xlu0 0
      %892 = vperm.xlu0 %891, %v854
      %v893 = vpop.permute.xlu0 %892
      %896 = vset.pattern.permute.xlu0 0
      %897 = vperm.xlu0 %896, %v855
      %v898 = vpop.permute.xlu0 %897
      %901 = vset.pattern.permute.xlu0 0
      %902 = vperm.xlu0 %901, %v856
      %v903 = vpop.permute.xlu0 %902
      %906 = vset.pattern.permute.xlu0 0
      %907 = vperm.xlu0 %906, %v857
      %v908 = vpop.permute.xlu0 %907
      %911 = vset.pattern.permute.xlu0 0
      %912 = vperm.xlu0 %911, %v858
      %v913 = vpop.permute.xlu0 %912
      %916 = vset.pattern.permute.xlu0 0
      %917 = vperm.xlu0 %916, %v859
      %v918 = vpop.permute.xlu0 %917
      %921 = vset.pattern.permute.xlu0 0
      %922 = vperm.xlu0 %921, %v860
      %v923 = vpop.permute.xlu0 %922
      %926 = vset.pattern.permute.xlu0 0
      %927 = vperm.xlu0 %926, %v861
      %v928 = vpop.permute.xlu0 %927
      %931 = vset.pattern.permute.xlu0 0
      %932 = vperm.xlu0 %931, %v862
      %v933 = vpop.permute.xlu0 %932
      %936 = vset.pattern.permute.xlu0 0
      %937 = vperm.xlu0 %936, %v863
      %v938 = vpop.permute.xlu0 %937
      %941 = vset.pattern.permute.xlu0 0
      %942 = vperm.xlu0 %941, %v864
      %v943 = vpop.permute.xlu0 %942
      %v945 = vmul.f32 %v868, %v817
      %v946 = vmul.f32 %v868, %v818
      %v947 = vmul.f32 %v873, %v819
      %v948 = vmul.f32 %v873, %v820
      %v949 = vmul.f32 %v878, %v821
      %v950 = vmul.f32 %v878, %v822
      %v951 = vmul.f32 %v883, %v823
      %v952 = vmul.f32 %v883, %v824
      %v953 = vmul.f32 %v888, %v825
      %v954 = vmul.f32 %v888, %v826
      %v955 = vmul.f32 %v893, %v827
      %v956 = vmul.f32 %v893, %v828
      %v957 = vmul.f32 %v898, %v829
      %v958 = vmul.f32 %v898, %v830
      %v959 = vmul.f32 %v903, %v831
      %v960 = vmul.f32 %v903, %v832
      %v961 = vmul.f32 %v908, %v833
      %v962 = vmul.f32 %v908, %v834
      %v963 = vmul.f32 %v913, %v835
      %v964 = vmul.f32 %v913, %v836
      %v965 = vmul.f32 %v918, %v837
      %v966 = vmul.f32 %v918, %v838
      %v967 = vmul.f32 %v923, %v839
      %v968 = vmul.f32 %v923, %v840
      %v969 = vmul.f32 %v928, %v841
      %v970 = vmul.f32 %v928, %v842
      %v971 = vmul.f32 %v933, %v843
      %v972 = vmul.f32 %v933, %v844
      %v973 = vmul.f32 %v938, %v845
      %v974 = vmul.f32 %v938, %v846
      %v975 = vmul.f32 %v943, %v847
      %v976 = vmul.f32 %v943, %v848
      %v977 = vadd.f32 %v945, %v947
      %v978 = vadd.f32 %v977, %v949
      %v979 = vadd.f32 %v978, %v951
      %v980 = vadd.f32 %v979, %v953
      %v981 = vadd.f32 %v980, %v955
      %v982 = vadd.f32 %v981, %v957
      %v983 = vadd.f32 %v982, %v959
      %v984 = vadd.f32 %v983, %v961
      %v985 = vadd.f32 %v984, %v963
      %v986 = vadd.f32 %v985, %v965
      %v987 = vadd.f32 %v986, %v967
      %v988 = vadd.f32 %v987, %v969
      %v989 = vadd.f32 %v988, %v971
      %v990 = vadd.f32 %v989, %v973
      %v991 = vadd.f32 %v990, %v975
      %v992 = vrot.slane %v991, 4
      %v993 = vadd.f32 %v991, %v992
      %v994 = vrot.slane %v993, 2
      %v995 = vadd.f32 %v993, %v994
      %v996 = vrot.slane %v995, 1
      %v997 = vadd.f32 %v995, %v996
      %v998 = vadd.f32 %v946, %v948
      %v999 = vadd.f32 %v998, %v950
      %v1000 = vadd.f32 %v999, %v952
      %v1001 = vadd.f32 %v1000, %v954
      %v1002 = vadd.f32 %v1001, %v956
      %v1003 = vadd.f32 %v1002, %v958
      %v1004 = vadd.f32 %v1003, %v960
      %v1005 = vadd.f32 %v1004, %v962
      %v1006 = vadd.f32 %v1005, %v964
      %v1007 = vadd.f32 %v1006, %v966
      %v1008 = vadd.f32 %v1007, %v968
      %v1009 = vadd.f32 %v1008, %v970
      %v1010 = vadd.f32 %v1009, %v972
      %v1011 = vadd.f32 %v1010, %v974
      %v1012 = vadd.f32 %v1011, %v976
      %v1013 = vrot.slane %v1012, 4
      %v1014 = vadd.f32 %v1012, %v1013
      %v1015 = vrot.slane %v1014, 2
      %v1016 = vadd.f32 %v1014, %v1015
      %v1017 = vrot.slane %v1016, 1
      %v1018 = vadd.f32 %v1016, %v1017
      %v1019 = vld [vmem:[#allocation2] sm:$0x1]
      %1021 = vset.pattern.permute.xlu0 0
      %1022 = vperm.xlu0 %1021, %v1019
      %v1023 = vpop.permute.xlu0 %1022
      %v1025 = vlaneseq
      %v1026 = vshrl.u32 %v1025, 7
      %v1027 = vsub.s32 0, %v1026
      %v1028 = vrot.slane %v1023, %v1027
      %v1029 = vadd.f32 %v997, %v1028
      %v1030 = vadd.f32 %v1018, %v1028
      %v1033 = vcombine.low %v1029, %v1030
      %v1035 = vunpack.c.l.s4 1966171168
      %v1036 = vunpack.c.0.s8 %v1035
      %v1037 = vlaneseq
      %v1038 = vshrl.u32 %v1037, 7
      %v1039 = vsub.s32 %v1036, %v1038
      %v1040 = vrot.slane %v1033, %v1039
      %v1042 = vunpack.c.l.s4 1966171168
      %v1043 = vunpack.c.0.s8 %v1042
      %v1044 = vlaneseq
      %v1045 = vshrl.u32 %v1044, 7
      %v1046 = vsub.s32 %v1043, %v1045
      %v1047 = vrot.slane %v1040, %v1046
      %v1049 = vlaneseq
      %vm1050 = vcmp.ge.s32.totalorder %v1049, 0
      %vm1051 = vcmp.lt.s32.totalorder %v1049, 256
      %vm1052 = vmand %vm1050, %vm1051
      %1053 = vst.msk [vmem:[%s379] sm:$0x3] %vm1052, %v1047
      %s1054 = smul.u32 2, %s26
      %p1055 = scmp.lt.s32.totalorder %s25, 1
      %s1056 = scalar_select %p1055, %s25, 1
      %p1057 = scmp.lt.s32.totalorder %s1054, 1
      %s1058 = scalar_select %p1057, %s1054, 1
      %s1059 = smul.addr %s1056, 2
      %s1060 = sadd.s32 %s1058, %s1059
      %s1061 = scalar_lea.vmem %s8, %s1060
      // Predicated region
      $region53: #{fno2d_forward.17} parent=51 // pred_check
        %p1062 = pneg %p235
      $region54: #{fno2d_forward.17} parent=51 // pred_check_branch
        %1064 = sbr.rel (%p1062) target = $region56
      $region55: #{fno2d_forward.17} parent=51 // pred_region
        %s1065 = smul.u32 2, %s26
      $region56: #{fno2d_forward.17} parent=51 // pred_fallthru
        _
    $region52: #{fno2d_forward.17} parent=5 // pred_fallthru
      _
    %p1066 = scmp.le.s32.totalorder 2, %s16
    // Predicated region
    $region57: #{fno2d_forward.17} parent=5 // pred_check
      %p1067 = pneg %p1066
    $region58: #{fno2d_forward.17} parent=5 // pred_check_branch
      %1069 = sbr.rel (%p1067) target = $region60
    $region59: #{fno2d_forward.17} parent=5 // pred_region
      %s1070 = ssub.s32 %s16, 2
      // Predicated region
      $region61: #{fno2d_forward.17} parent=59 // pred_check
        %p1071 = pneg %p241
      $region62: #{fno2d_forward.17} parent=59 // pred_check_branch
        %1073 = sbr.rel (%p1071) target = $region64
      $region63: #{fno2d_forward.17} parent=59 // pred_region
        %s1074 = smul.u32 2, %s28
        %p1075 = scmp.lt.s32.totalorder %s27, 1
        %s1076 = scalar_select %p1075, %s27, 1
        %p1077 = scmp.lt.s32.totalorder %s1074, 1
        %s1078 = scalar_select %p1077, %s1074, 1
        %s1079 = smul.addr %s1076, 2
        %s1080 = sadd.s32 %s1078, %s1079
        %s1081 = scalar_lea.vmem %s8, %s1080
      $region64: #{fno2d_forward.17} parent=59 // pred_fallthru
        _
    $region60: #{fno2d_forward.17} parent=5 // pred_fallthru
      _
  $region6: #{fno2d_forward.17} parent=0 // loop_footer
    %s20 = sadd.s32 1, %s16
  $region7: #{fno2d_forward.17} parent=0 // loop_footer_branch
    %15 = sbr.rel target = $region3
  $region8: #{fno2d_forward.17} parent=0 // loop_exit
    _

</llo_original>
